<compile_context>
chip_gen: v6e
topology: v6e:2x2x1
jax: 0.10.0
libtpu: 0.0.40
codegen_flags: <defaults>
</compile_context>

<pallas_src>
import functools

import jax
import jax.numpy as jnp
from jax.experimental import pallas as pl
from jax.experimental.pallas import tpu as pltpu

DIM = 64
DIM_STREET = 8
DIM_BET = 32
N_ACTIONS = 3
N_HOLE = 2
N_COMM = 5
N_BET_FEATS = 5
LN_EPS = 1e-5

# Column layout of the folded one-hot / count matrix fed to the trunk1 weights.
HOLE_RANK_OFF = 0        # 13 cols
HOLE_SUIT_OFF = 13       # 4 cols
COMM_RANK_OFF = 17       # 13 cols
COMM_SUIT_OFF = 30       # 4 cols
STREET_OFF = 34          # 4 cols
FRONT_DIM = 38
FRONT_PAD = 48           # padded to a multiple of 16 (bf16 sublane packing)
SENTINEL = 127           # any index >= FRONT_PAD: the one-hot compare never fires

N_IDX = 2 * (N_HOLE + N_COMM) + 1   # 15 meaningful index columns
N_IDX_PAD = 16                      # packed index input width
BET_PAD = 16                        # betting features padded 5 -> 16 lanes

# Row offsets inside the packed bf16 weight slab (all multiples of 16).
W_BETW = 0               # rows [0,16):   betting Linear weight (rows 0:5, cols 0:32)
W_FRONT = 16             # rows [16,64):  folded rank/suit/street -> trunk1
W_BET2 = 64              # rows [64,96):  betting-activation rows of trunk1
W_T2 = 96                # rows [96,160): trunk2
W_HEAD = 160             # rows [160,224): head (cols 0:3 meaningful)
W_ROWS = 224

# Rows of the packed f32 bias / LayerNorm slab (16, 128); each vector at lane 0.
R_BET_B, R_BET_G, R_BET_BETA = 0, 1, 2
R_T1B, R_N1G, R_N1B = 3, 4, 5
R_T2B, R_N2G, R_N2B = 6, 7, 8
R_HB = 9
P_ROWS, P_COLS = 16, 128


# ----------------------------- shared helpers ------------------------------

def _layernorm(x, gamma, beta):
    """Single-pass LayerNorm: the two reductions are independent and overlap on XLU."""
    inv_n = 1.0 / x.shape[-1]
    s1 = jnp.sum(x, axis=-1, keepdims=True)
    s2 = jnp.sum(x * x, axis=-1, keepdims=True)
    mean = s1 * inv_n
    var = s2 * inv_n - mean * mean
    return (x - mean) * jax.lax.rsqrt(var + LN_EPS) * gamma + beta


def pack_card_columns(hole, comm, street):
    """(B, 16) int32 of folded one-hot column indices; SENTINEL for missing cards."""
    def cols(cards, rank_off, suit_off):
        cards = cards.astype(jnp.int32)
        valid = cards >= 0
        cc = jnp.maximum(cards, 0)
        rank = jnp.where(valid, (cc >> 2) + rank_off, SENTINEL)   # card // 4
        suit = jnp.where(valid, (cc & 3) + suit_off, SENTINEL)    # card % 4
        return rank, suit

    hr, hs = cols(hole, HOLE_RANK_OFF, HOLE_SUIT_OFF)
    cr, cs = cols(comm, COMM_RANK_OFF, COMM_SUIT_OFF)
    st = street.reshape(-1, 1).astype(jnp.int32) + STREET_OFF
    pad = jnp.full((hole.shape[0], N_IDX_PAD - N_IDX), SENTINEL, jnp.int32)
    return jnp.concatenate([hr, cr, hs, cs, st, pad], axis=1)


# --------------------------------- kernel ----------------------------------

def deep_cfr_kernel(idx_ref, bet_ref, w_ref, p_ref, out_ref):
    tb = idx_ref.shape[0]
    f32, bf16 = jnp.float32, jnp.bfloat16

    # ---- card/street one-hot counts (embedding tables pre-folded into w) ----
    idx = idx_ref[...]                                             # (tb, 16) i32
    iota = jax.lax.broadcasted_iota(jnp.int32, (tb, FRONT_PAD), 1)
    counts = jnp.zeros((tb, FRONT_PAD), jnp.int32)
    for j in range(N_IDX):               # 15 static compares; sentinel never fires
        counts = counts + (iota == idx[:, j:j + 1]).astype(jnp.int32)
    counts = counts.astype(bf16)         # exact: small non-negative integers

    # ---- betting branch: Linear(5->32) -> ReLU -> LayerNorm (bf16 MXU) ------
    b = jnp.dot(bet_ref[...].astype(bf16),
                w_ref[W_BETW:W_BETW + BET_PAD, 0:DIM_BET],
                preferred_element_type=f32)
    b = jnp.maximum(b + p_ref[R_BET_B:R_BET_B + 1, 0:DIM_BET], 0.0)
    b = _layernorm(b, p_ref[R_BET_G:R_BET_G + 1, 0:DIM_BET],
                   p_ref[R_BET_BETA:R_BET_BETA + 1, 0:DIM_BET])

    # ---- trunk1 (embeddings + 168-wide concat folded into the weights) ------
    y = (jnp.dot(counts, w_ref[W_FRONT:W_FRONT + FRONT_PAD, :],
                 preferred_element_type=f32)
         + jnp.dot(b.astype(bf16), w_ref[W_BET2:W_BET2 + DIM_BET, :],
                   preferred_element_type=f32)
         + p_ref[R_T1B:R_T1B + 1, 0:DIM])
    y = jnp.maximum(_layernorm(y, p_ref[R_N1G:R_N1G + 1, 0:DIM],
                               p_ref[R_N1B:R_N1B + 1, 0:DIM]), 0.0)
    # x (168-wide) != y (64-wide) -> residual branch statically skipped (as in PyTorch)

    # ---- trunk2 + residual ----------------------------------------------------
    z = (jnp.dot(y.astype(bf16), w_ref[W_T2:W_T2 + DIM, :],
                 preferred_element_type=f32)
         + p_ref[R_T2B:R_T2B + 1, 0:DIM])
    z = jnp.maximum(_layernorm(z, p_ref[R_N2G:R_N2G + 1, 0:DIM],
                               p_ref[R_N2B:R_N2B + 1, 0:DIM]), 0.0)
    z = z + y

    # ---- head ------------------------------------------------------------------
    out_ref[...] = (jnp.dot(z.astype(bf16),
                            w_ref[W_HEAD:W_HEAD + DIM, 0:N_ACTIONS],
                            preferred_element_type=f32)
                    + p_ref[R_HB:R_HB + 1, 0:N_ACTIONS])


# ------------------------- parameter fusion (host side) ---------------------

def fuse_params(p):
    """Fold embedding tables + concat into trunk-1 and pack everything into
    one bf16 weight slab + one f32 bias/LN slab."""
    f32, bf16 = jnp.float32, jnp.bfloat16
    t1w = p["t1w"]                                # (168, 64), x @ W convention
    t1_h = t1w[:DIM]                              # rows hit by hole-card embedding
    t1_c = t1w[DIM:2 * DIM]                       # rows hit by community embedding
    t1_s = t1w[2 * DIM:2 * DIM + DIM_STREET]      # rows hit by street embedding
    t1_b = t1w[2 * DIM + DIM_STREET:]             # rows hit by betting branch (32,64)

    w_front = jnp.concatenate([
        p["rank_t"] @ t1_h, p["suit_t"] @ t1_h,
        p["rank_t"] @ t1_c, p["suit_t"] @ t1_c,
        p["street_t"] @ t1_s,
    ], axis=0)                                    # (38, 64)
    w_front = jnp.pad(w_front, ((0, FRONT_PAD - FRONT_DIM), (0, 0)))   # (48, 64)

    bet_w_blk = jnp.zeros((BET_PAD, DIM), f32).at[:N_BET_FEATS, :DIM_BET].set(p["bet_w"])
    head_blk = jnp.zeros((DIM, DIM), f32).at[:, :N_ACTIONS].set(p["hw"])

    w_all = jnp.concatenate([bet_w_blk, w_front, t1_b, p["t2w"], head_blk],
                            axis=0).astype(bf16)
    assert w_all.shape == (W_ROWS, DIM)

    pslab = jnp.zeros((P_ROWS, P_COLS), f32)
    for row, vec, width in (
            (R_BET_B, p["bet_b"], DIM_BET), (R_BET_G, p["bet_g"], DIM_BET),
            (R_BET_BETA, p["bet_beta"], DIM_BET),
            (R_T1B, p["t1b"], DIM), (R_N1G, p["n1g"], DIM), (R_N1B, p["n1b"], DIM),
            (R_T2B, p["t2b"], DIM), (R_N2G, p["n2g"], DIM), (R_N2B, p["n2b"], DIM),
            (R_HB, p["hb"], N_ACTIONS)):
        pslab = pslab.at[row, :width].set(vec.reshape(-1))

    return dict(w_all=w_all, pslab=pslab)


# -------------------------------- wrapper -----------------------------------

def pick_tile(batch, min_steps=2, max_tile=1024):
    """Largest tile (multiple of 256, <= max_tile) leaving >= min_steps grid steps,
    so both v7x TensorCores get work while per-step overhead stays amortized."""
    t = -(-batch // min_steps)              # cdiv
    t = ((t + 255) // 256) * 256            # round up to 256
    return int(max(256, min(max_tile, t)))


@functools.partial(jax.jit, static_argnames=("tb",))
def deep_cfr_forward(hole, comm, street, bet, fused, tb=256):
    B = hole.shape[0]
    bp = ((B + tb - 1) // tb) * tb          # pad batch to a tile multiple

    idx = pack_card_columns(hole, comm, street)                          # (B, 16) i32
    bet = jnp.pad(bet.astype(jnp.float32),
                  ((0, 0), (0, BET_PAD - N_BET_FEATS)))                  # (B, 16) f32
    if bp != B:   # pad rows: sentinel indices (no one-hot hits), zero bet feats
        idx = jnp.pad(idx, ((0, bp - B), (0, 0)), constant_values=SENTINEL)
        bet = jnp.pad(bet, ((0, bp - B), (0, 0)))

    w_all, pslab = fused["w_all"], fused["pslab"]

    out = pl.pallas_call(
        deep_cfr_kernel,
        out_shape=jax.ShapeDtypeStruct((bp, N_ACTIONS), jnp.float32),
        grid=(bp // tb,),
        in_specs=[
            pl.BlockSpec((tb, N_IDX_PAD), lambda i: (i, 0)),
            pl.BlockSpec((tb, BET_PAD), lambda i: (i, 0)),
            # Broadcast parameter slabs: block index (0,0) every step, so the
            # pipeline elides their re-DMA after the first iteration.
            pl.BlockSpec(w_all.shape, lambda i: (0, 0)),
            pl.BlockSpec(pslab.shape, lambda i: (0, 0)),
        ],
        out_specs=pl.BlockSpec((tb, N_ACTIONS), lambda i: (i, 0)),
        compiler_params=pltpu.CompilerParams(
            dimension_semantics=("parallel",)),
    )(idx, bet, w_all, pslab)
    return out[:B]


# ------------------------- params & pure-JAX references ---------------------

def init_params(key):
    input_size = 2 * DIM + DIM_STREET + DIM_BET   # 168
    ks = jax.random.split(key, 7)

    def kaiming(k, fan_in, fan_out):
        # PyTorch kaiming_normal_(nonlinearity='relu'), stored (in, out) for x @ W.
        return (jax.random.normal(k, (fan_in, fan_out), jnp.float32)
                * jnp.sqrt(2.0 / fan_in))

    return dict(
        rank_t=jax.random.normal(ks[0], (13, DIM), jnp.float32),
        suit_t=jax.random.normal(ks[1], (4, DIM), jnp.float32),
        street_t=jax.random.normal(ks[2], (4, DIM_STREET), jnp.float32),
        bet_w=kaiming(ks[3], N_BET_FEATS, DIM_BET),
        bet_b=jnp.zeros((1, DIM_BET), jnp.float32),
        bet_g=jnp.ones((1, DIM_BET), jnp.float32),
        bet_beta=jnp.zeros((1, DIM_BET), jnp.float32),
        t1w=kaiming(ks[4], input_size, DIM),
        t1b=jnp.zeros((1, DIM), jnp.float32),
        n1g=jnp.ones((1, DIM), jnp.float32),
        n1b=jnp.zeros((1, DIM), jnp.float32),
        t2w=kaiming(ks[5], DIM, DIM),
        t2b=jnp.zeros((1, DIM), jnp.float32),
        n2g=jnp.ones((1, DIM), jnp.float32),
        n2b=jnp.zeros((1, DIM), jnp.float32),
        hw=kaiming(ks[6], DIM, N_ACTIONS),
        hb=jnp.zeros((1, N_ACTIONS), jnp.float32),
    )


def reference_forward(hole, comm, street, bet, p):
    """Exact f32 replica of the original PyTorch module (unfused)."""
    def ln(x, g, b):
        m = jnp.mean(x, axis=-1, keepdims=True)
        v = jnp.mean((x - m) ** 2, axis=-1, keepdims=True)
        return (x - m) / jnp.sqrt(v + LN_EPS) * g + b

    def card_emb(cards):
        mask = (cards >= 0).astype(jnp.float32)[..., None]
        cc = jnp.maximum(cards, 0)
        emb = p["rank_t"][cc // 4] + p["suit_t"][cc % 4]
        return (emb * mask).sum(axis=1)

    h = card_emb(hole)
    c = card_emb(comm)
    s = p["street_t"][street]
    b = jnp.maximum(bet @ p["bet_w"] + p["bet_b"], 0.0)
    b = ln(b, p["bet_g"], p["bet_beta"])
    x = jnp.concatenate([h, c, s, b], axis=1)
    y = jnp.maximum(ln(x @ p["t1w"] + p["t1b"], p["n1g"], p["n1b"]), 0.0)
    z = jnp.maximum(ln(y @ p["t2w"] + p["t2b"], p["n2g"], p["n2b"]), 0.0)
    z = z + y
    return z @ p["hw"] + p["hb"]


def matched_reference_forward(hole, comm, street, bet, fused):
    """Pure-JAX replica of the kernel math (fused slabs + bf16 casts)."""
    f32, bf16 = jnp.float32, jnp.bfloat16
    w, ps = fused["w_all"], fused["pslab"]

    idx = pack_card_columns(hole, comm, street)[:, :N_IDX]
    counts = jax.nn.one_hot(idx, FRONT_PAD, dtype=f32).sum(axis=1).astype(bf16)

    bet_p = jnp.pad(bet.astype(f32), ((0, 0), (0, BET_PAD - N_BET_FEATS)))
    b = jnp.dot(bet_p.astype(bf16), w[W_BETW:W_BETW + BET_PAD, :DIM_BET],
                preferred_element_type=f32)
    b = jnp.maximum(b + ps[R_BET_B:R_BET_B + 1, :DIM_BET], 0.0)
    b = _layernorm(b, ps[R_BET_G:R_BET_G + 1, :DIM_BET],
                   ps[R_BET_BETA:R_BET_BETA + 1, :DIM_BET])

    y = (jnp.dot(counts, w[W_FRONT:W_FRONT + FRONT_PAD], preferred_element_type=f32)
         + jnp.dot(b.astype(bf16), w[W_BET2:W_BET2 + DIM_BET], preferred_element_type=f32)
         + ps[R_T1B:R_T1B + 1, :DIM])
    y = jnp.maximum(_layernorm(y, ps[R_N1G:R_N1G + 1, :DIM],
                               ps[R_N1B:R_N1B + 1, :DIM]), 0.0)
    z = (jnp.dot(y.astype(bf16), w[W_T2:W_T2 + DIM], preferred_element_type=f32)
         + ps[R_T2B:R_T2B + 1, :DIM])
    z = jnp.maximum(_layernorm(z, ps[R_N2G:R_N2G + 1, :DIM],
                               ps[R_N2B:R_N2B + 1, :DIM]), 0.0)
    z = z + y
    return (jnp.dot(z.astype(bf16), w[W_HEAD:W_HEAD + DIM, :N_ACTIONS],
                    preferred_element_type=f32)
            + ps[R_HB:R_HB + 1, :N_ACTIONS])


# ---------------------------------- main ------------------------------------

if __name__ == "__main__":
    key = jax.random.PRNGKey(0)
    kp, kh, kc, ks, kb = jax.random.split(key, 5)

    params = init_params(kp)
    fused = fuse_params(params)

    # B=512: two 256-row tiles (spans both v7x TensorCores).
    # B=8: exercises the batch-padding / sentinel path.
    for B in (512, 8):
        kh_b = jax.random.fold_in(kh, B)
        kc_b = jax.random.fold_in(kc, B)
        ks_b = jax.random.fold_in(ks, B)
        kb_b = jax.random.fold_in(kb, B)
        hole_cards = jax.random.randint(kh_b, (B, N_HOLE), 0, 52, dtype=jnp.int32)
        # community cards include -1 ("no card yet") to exercise the sentinel path
        community_cards = jax.random.randint(kc_b, (B, N_COMM), -1, 52, dtype=jnp.int32)
        street = jax.random.randint(ks_b, (B,), 0, 4, dtype=jnp.int32)
        betting_feats = jax.random.normal(kb_b, (B, N_BET_FEATS), jnp.float32)

        tb = pick_tile(B)
        out = deep_cfr_forward(hole_cards, community_cards, street, betting_feats,
                               fused, tb=tb)
        out = jax.block_until_ready(out)
        assert out.shape == (B, N_ACTIONS)

        # Tight check vs a pure-JAX replica of the same fused / bf16 math.
        matched = matched_reference_forward(hole_cards, community_cards, street,
                                            betting_feats, fused)
        err_m = float(jnp.max(jnp.abs(out - matched)))
        assert jnp.allclose(out, matched, rtol=1e-2, atol=1e-2), (
            f"kernel vs matched-precision ref max abs err {err_m}")

        # Fidelity check vs the exact f32 reference of the original module
        # (loose tolerance accounts only for the bf16 weight/activation casts).
        exact = reference_forward(hole_cards, community_cards, street,
                                  betting_feats, params)
        err_e = float(jnp.max(jnp.abs(out - exact)))
        assert jnp.allclose(out, exact, rtol=5e-2, atol=2e-1), (
            f"kernel vs exact f32 ref max abs err {err_e}")

    print("KERNEL_OK")
</pallas_src>

<mosaic_0001>
module attributes {stable_mosaic.version = 11 : i64} {
  func.func @deep_cfr_kernel(%arg0: i32, %arg1: memref<256x16xi32, #tpu.memory_space<vmem>>, %arg2: memref<256x16xf32, #tpu.memory_space<vmem>>, %arg3: memref<224x64xbf16, #tpu.memory_space<vmem>>, %arg4: memref<16x128xf32, #tpu.memory_space<vmem>>, %arg5: memref<256x3xf32, #tpu.memory_space<vmem>>) attributes {dimension_semantics = [#tpu.dimension_semantics<parallel>], iteration_bounds = array<i64: 2>, scalar_prefetch = 0 : i64, scratch_operands = 0 : i64, tpu.core_type = #tpu.core_type<tc>, window_params = [{transform_indices = @transform_0, window_bounds = array<i64: 256, 16>}, {transform_indices = @transform_1, window_bounds = array<i64: 256, 16>}, {pipeline_mode = #tpu.pipeline_mode<synchronous>, transform_indices = @transform_2, window_bounds = array<i64: 224, 64>}, {pipeline_mode = #tpu.pipeline_mode<synchronous>, transform_indices = @transform_3, window_bounds = array<i64: 16, 128>}, {transform_indices = @transform_4, window_bounds = array<i64: 256, 3>}]} {
    %c0 = arith.constant 0 : index
    %c0_0 = arith.constant 0 : index
    %0 = vector.load %arg1[%c0, %c0_0] : memref<256x16xi32, #tpu.memory_space<vmem>>, vector<256x16xi32>
    %1 = tpu.iota {dimensions = array<i32: 1>} : vector<256x48xi32>
    %c0_i32 = arith.constant 0 : i32
    %2 = vector.broadcast %c0_i32 : i32 to vector<256x48xi32>
    %3 = vector.extract_strided_slice %0 {offsets = [0, 0], sizes = [256, 1], strides = [1, 1]} : vector<256x16xi32> to vector<256x1xi32>
    %4 = vector.broadcast %3 : vector<256x1xi32> to vector<256x48xi32>
    %5 = arith.cmpi eq, %1, %4 : vector<256x48xi32>
    %6 = arith.extui %5 : vector<256x48xi1> to vector<256x48xi32>
    %7 = arith.addi %2, %6 : vector<256x48xi32>
    %8 = vector.extract_strided_slice %0 {offsets = [0, 1], sizes = [256, 1], strides = [1, 1]} : vector<256x16xi32> to vector<256x1xi32>
    %9 = vector.broadcast %8 : vector<256x1xi32> to vector<256x48xi32>
    %10 = arith.cmpi eq, %1, %9 : vector<256x48xi32>
    %11 = arith.extui %10 : vector<256x48xi1> to vector<256x48xi32>
    %12 = arith.addi %7, %11 : vector<256x48xi32>
    %13 = vector.extract_strided_slice %0 {offsets = [0, 2], sizes = [256, 1], strides = [1, 1]} : vector<256x16xi32> to vector<256x1xi32>
    %14 = vector.broadcast %13 : vector<256x1xi32> to vector<256x48xi32>
    %15 = arith.cmpi eq, %1, %14 : vector<256x48xi32>
    %16 = arith.extui %15 : vector<256x48xi1> to vector<256x48xi32>
    %17 = arith.addi %12, %16 : vector<256x48xi32>
    %18 = vector.extract_strided_slice %0 {offsets = [0, 3], sizes = [256, 1], strides = [1, 1]} : vector<256x16xi32> to vector<256x1xi32>
    %19 = vector.broadcast %18 : vector<256x1xi32> to vector<256x48xi32>
    %20 = arith.cmpi eq, %1, %19 : vector<256x48xi32>
    %21 = arith.extui %20 : vector<256x48xi1> to vector<256x48xi32>
    %22 = arith.addi %17, %21 : vector<256x48xi32>
    %23 = vector.extract_strided_slice %0 {offsets = [0, 4], sizes = [256, 1], strides = [1, 1]} : vector<256x16xi32> to vector<256x1xi32>
    %24 = vector.broadcast %23 : vector<256x1xi32> to vector<256x48xi32>
    %25 = arith.cmpi eq, %1, %24 : vector<256x48xi32>
    %26 = arith.extui %25 : vector<256x48xi1> to vector<256x48xi32>
    %27 = arith.addi %22, %26 : vector<256x48xi32>
    %28 = vector.extract_strided_slice %0 {offsets = [0, 5], sizes = [256, 1], strides = [1, 1]} : vector<256x16xi32> to vector<256x1xi32>
    %29 = vector.broadcast %28 : vector<256x1xi32> to vector<256x48xi32>
    %30 = arith.cmpi eq, %1, %29 : vector<256x48xi32>
    %31 = arith.extui %30 : vector<256x48xi1> to vector<256x48xi32>
    %32 = arith.addi %27, %31 : vector<256x48xi32>
    %33 = vector.extract_strided_slice %0 {offsets = [0, 6], sizes = [256, 1], strides = [1, 1]} : vector<256x16xi32> to vector<256x1xi32>
    %34 = vector.broadcast %33 : vector<256x1xi32> to vector<256x48xi32>
    %35 = arith.cmpi eq, %1, %34 : vector<256x48xi32>
    %36 = arith.extui %35 : vector<256x48xi1> to vector<256x48xi32>
    %37 = arith.addi %32, %36 : vector<256x48xi32>
    %38 = vector.extract_strided_slice %0 {offsets = [0, 7], sizes = [256, 1], strides = [1, 1]} : vector<256x16xi32> to vector<256x1xi32>
    %39 = vector.broadcast %38 : vector<256x1xi32> to vector<256x48xi32>
    %40 = arith.cmpi eq, %1, %39 : vector<256x48xi32>
    %41 = arith.extui %40 : vector<256x48xi1> to vector<256x48xi32>
    %42 = arith.addi %37, %41 : vector<256x48xi32>
    %43 = vector.extract_strided_slice %0 {offsets = [0, 8], sizes = [256, 1], strides = [1, 1]} : vector<256x16xi32> to vector<256x1xi32>
    %44 = vector.broadcast %43 : vector<256x1xi32> to vector<256x48xi32>
    %45 = arith.cmpi eq, %1, %44 : vector<256x48xi32>
    %46 = arith.extui %45 : vector<256x48xi1> to vector<256x48xi32>
    %47 = arith.addi %42, %46 : vector<256x48xi32>
    %48 = vector.extract_strided_slice %0 {offsets = [0, 9], sizes = [256, 1], strides = [1, 1]} : vector<256x16xi32> to vector<256x1xi32>
    %49 = vector.broadcast %48 : vector<256x1xi32> to vector<256x48xi32>
    %50 = arith.cmpi eq, %1, %49 : vector<256x48xi32>
    %51 = arith.extui %50 : vector<256x48xi1> to vector<256x48xi32>
    %52 = arith.addi %47, %51 : vector<256x48xi32>
    %53 = vector.extract_strided_slice %0 {offsets = [0, 10], sizes = [256, 1], strides = [1, 1]} : vector<256x16xi32> to vector<256x1xi32>
    %54 = vector.broadcast %53 : vector<256x1xi32> to vector<256x48xi32>
    %55 = arith.cmpi eq, %1, %54 : vector<256x48xi32>
    %56 = arith.extui %55 : vector<256x48xi1> to vector<256x48xi32>
    %57 = arith.addi %52, %56 : vector<256x48xi32>
    %58 = vector.extract_strided_slice %0 {offsets = [0, 11], sizes = [256, 1], strides = [1, 1]} : vector<256x16xi32> to vector<256x1xi32>
    %59 = vector.broadcast %58 : vector<256x1xi32> to vector<256x48xi32>
    %60 = arith.cmpi eq, %1, %59 : vector<256x48xi32>
    %61 = arith.extui %60 : vector<256x48xi1> to vector<256x48xi32>
    %62 = arith.addi %57, %61 : vector<256x48xi32>
    %63 = vector.extract_strided_slice %0 {offsets = [0, 12], sizes = [256, 1], strides = [1, 1]} : vector<256x16xi32> to vector<256x1xi32>
    %64 = vector.broadcast %63 : vector<256x1xi32> to vector<256x48xi32>
    %65 = arith.cmpi eq, %1, %64 : vector<256x48xi32>
    %66 = arith.extui %65 : vector<256x48xi1> to vector<256x48xi32>
    %67 = arith.addi %62, %66 : vector<256x48xi32>
    %68 = vector.extract_strided_slice %0 {offsets = [0, 13], sizes = [256, 1], strides = [1, 1]} : vector<256x16xi32> to vector<256x1xi32>
    %69 = vector.broadcast %68 : vector<256x1xi32> to vector<256x48xi32>
    %70 = arith.cmpi eq, %1, %69 : vector<256x48xi32>
    %71 = arith.extui %70 : vector<256x48xi1> to vector<256x48xi32>
    %72 = arith.addi %67, %71 : vector<256x48xi32>
    %73 = vector.extract_strided_slice %0 {offsets = [0, 14], sizes = [256, 1], strides = [1, 1]} : vector<256x16xi32> to vector<256x1xi32>
    %74 = vector.broadcast %73 : vector<256x1xi32> to vector<256x48xi32>
    %75 = arith.cmpi eq, %1, %74 : vector<256x48xi32>
    %76 = arith.extui %75 : vector<256x48xi1> to vector<256x48xi32>
    %77 = arith.addi %72, %76 : vector<256x48xi32>
    %78 = arith.sitofp %77 : vector<256x48xi32> to vector<256x48xbf16>
    %c0_1 = arith.constant 0 : index
    %c0_2 = arith.constant 0 : index
    %79 = vector.load %arg2[%c0_1, %c0_2] : memref<256x16xf32, #tpu.memory_space<vmem>>, vector<256x16xf32>
    %80 = arith.truncf %79 : vector<256x16xf32> to vector<256x16xbf16>
    %c0_3 = arith.constant 0 : index
    %c0_4 = arith.constant 0 : index
    %81 = vector.load %arg3[%c0_3, %c0_4] : memref<224x64xbf16, #tpu.memory_space<vmem>>, vector<16x32xbf16>
    %cst = arith.constant dense<0.000000e+00> : vector<256x32xf32>
    %82 = tpu.matmul %80, %81, %cst {dimension_numbers = #tpu.dot_dimension_numbers<[1], [0], [0], [1], [0, 0, 1, 1], [], []>} : vector<256x16xbf16>, vector<16x32xbf16>, vector<256x32xf32> -> vector<256x32xf32>
    %c0_5 = arith.constant 0 : index
    %c0_6 = arith.constant 0 : index
    %83 = vector.load %arg4[%c0_5, %c0_6] : memref<16x128xf32, #tpu.memory_space<vmem>>, vector<1x32xf32>
    %84 = vector.broadcast %83 : vector<1x32xf32> to vector<256x32xf32>
    %85 = arith.addf %82, %84 : vector<256x32xf32>
    %cst_7 = arith.constant 0.000000e+00 : f32
    %86 = vector.broadcast %cst_7 : f32 to vector<256x32xf32>
    %87 = arith.maximumf %85, %86 : vector<256x32xf32>
    %c1 = arith.constant 1 : index
    %c0_8 = arith.constant 0 : index
    %88 = vector.load %arg4[%c1, %c0_8] : memref<16x128xf32, #tpu.memory_space<vmem>>, vector<1x32xf32>
    %c2 = arith.constant 2 : index
    %c0_9 = arith.constant 0 : index
    %89 = vector.load %arg4[%c2, %c0_9] : memref<16x128xf32, #tpu.memory_space<vmem>>, vector<1x32xf32>
    %cst_10 = arith.constant dense<0.000000e+00> : vector<256xf32>
    %90 = vector.multi_reduction <add>, %87, %cst_10 [1] : vector<256x32xf32> to vector<256xf32>
    %91 = vector.shape_cast %90 : vector<256xf32> to vector<256x1xf32>
    %92 = arith.mulf %87, %87 : vector<256x32xf32>
    %cst_11 = arith.constant dense<0.000000e+00> : vector<256xf32>
    %93 = vector.multi_reduction <add>, %92, %cst_11 [1] : vector<256x32xf32> to vector<256xf32>
    %94 = vector.shape_cast %93 : vector<256xf32> to vector<256x1xf32>
    %cst_12 = arith.constant 3.125000e-02 : f32
    %95 = vector.broadcast %cst_12 : f32 to vector<256x1xf32>
    %96 = arith.mulf %91, %95 : vector<256x1xf32>
    %cst_13 = arith.constant 3.125000e-02 : f32
    %97 = vector.broadcast %cst_13 : f32 to vector<256x1xf32>
    %98 = arith.mulf %94, %97 : vector<256x1xf32>
    %99 = arith.mulf %96, %96 : vector<256x1xf32>
    %100 = arith.subf %98, %99 : vector<256x1xf32>
    %101 = vector.broadcast %96 : vector<256x1xf32> to vector<256x32xf32>
    %102 = arith.subf %87, %101 : vector<256x32xf32>
    %cst_14 = arith.constant 9.99999974E-6 : f32
    %103 = vector.broadcast %cst_14 : f32 to vector<256x1xf32>
    %104 = arith.addf %100, %103 : vector<256x1xf32>
    %105 = math.rsqrt %104 : vector<256x1xf32>
    %106 = vector.broadcast %105 : vector<256x1xf32> to vector<256x32xf32>
    %107 = arith.mulf %102, %106 : vector<256x32xf32>
    %108 = vector.broadcast %88 : vector<1x32xf32> to vector<256x32xf32>
    %109 = arith.mulf %107, %108 : vector<256x32xf32>
    %110 = vector.broadcast %89 : vector<1x32xf32> to vector<256x32xf32>
    %111 = arith.addf %109, %110 : vector<256x32xf32>
    %c16 = arith.constant 16 : index
    %c0_15 = arith.constant 0 : index
    %112 = vector.load %arg3[%c16, %c0_15] : memref<224x64xbf16, #tpu.memory_space<vmem>>, vector<48x64xbf16>
    %cst_16 = arith.constant dense<0.000000e+00> : vector<256x64xf32>
    %113 = tpu.matmul %78, %112, %cst_16 {dimension_numbers = #tpu.dot_dimension_numbers<[1], [0], [0], [1], [0, 0, 1, 1], [], []>} : vector<256x48xbf16>, vector<48x64xbf16>, vector<256x64xf32> -> vector<256x64xf32>
    %114 = arith.truncf %111 : vector<256x32xf32> to vector<256x32xbf16>
    %c64 = arith.constant 64 : index
    %c0_17 = arith.constant 0 : index
    %115 = vector.load %arg3[%c64, %c0_17] : memref<224x64xbf16, #tpu.memory_space<vmem>>, vector<32x64xbf16>
    %cst_18 = arith.constant dense<0.000000e+00> : vector<256x64xf32>
    %116 = tpu.matmul %114, %115, %cst_18 {dimension_numbers = #tpu.dot_dimension_numbers<[1], [0], [0], [1], [0, 0, 1, 1], [], []>} : vector<256x32xbf16>, vector<32x64xbf16>, vector<256x64xf32> -> vector<256x64xf32>
    %117 = arith.addf %113, %116 : vector<256x64xf32>
    %c3 = arith.constant 3 : index
    %c0_19 = arith.constant 0 : index
    %118 = vector.load %arg4[%c3, %c0_19] : memref<16x128xf32, #tpu.memory_space<vmem>>, vector<1x64xf32>
    %119 = vector.broadcast %118 : vector<1x64xf32> to vector<256x64xf32>
    %120 = arith.addf %117, %119 : vector<256x64xf32>
    %c4 = arith.constant 4 : index
    %c0_20 = arith.constant 0 : index
    %121 = vector.load %arg4[%c4, %c0_20] : memref<16x128xf32, #tpu.memory_space<vmem>>, vector<1x64xf32>
    %c5 = arith.constant 5 : index
    %c0_21 = arith.constant 0 : index
    %122 = vector.load %arg4[%c5, %c0_21] : memref<16x128xf32, #tpu.memory_space<vmem>>, vector<1x64xf32>
    %cst_22 = arith.constant dense<0.000000e+00> : vector<256xf32>
    %123 = vector.multi_reduction <add>, %120, %cst_22 [1] : vector<256x64xf32> to vector<256xf32>
    %124 = vector.shape_cast %123 : vector<256xf32> to vector<256x1xf32>
    %125 = arith.mulf %120, %120 : vector<256x64xf32>
    %cst_23 = arith.constant dense<0.000000e+00> : vector<256xf32>
    %126 = vector.multi_reduction <add>, %125, %cst_23 [1] : vector<256x64xf32> to vector<256xf32>
    %127 = vector.shape_cast %126 : vector<256xf32> to vector<256x1xf32>
    %cst_24 = arith.constant 1.562500e-02 : f32
    %128 = vector.broadcast %cst_24 : f32 to vector<256x1xf32>
    %129 = arith.mulf %124, %128 : vector<256x1xf32>
    %cst_25 = arith.constant 1.562500e-02 : f32
    %130 = vector.broadcast %cst_25 : f32 to vector<256x1xf32>
    %131 = arith.mulf %127, %130 : vector<256x1xf32>
    %132 = arith.mulf %129, %129 : vector<256x1xf32>
    %133 = arith.subf %131, %132 : vector<256x1xf32>
    %134 = vector.broadcast %129 : vector<256x1xf32> to vector<256x64xf32>
    %135 = arith.subf %120, %134 : vector<256x64xf32>
    %cst_26 = arith.constant 9.99999974E-6 : f32
    %136 = vector.broadcast %cst_26 : f32 to vector<256x1xf32>
    %137 = arith.addf %133, %136 : vector<256x1xf32>
    %138 = math.rsqrt %137 : vector<256x1xf32>
    %139 = vector.broadcast %138 : vector<256x1xf32> to vector<256x64xf32>
    %140 = arith.mulf %135, %139 : vector<256x64xf32>
    %141 = vector.broadcast %121 : vector<1x64xf32> to vector<256x64xf32>
    %142 = arith.mulf %140, %141 : vector<256x64xf32>
    %143 = vector.broadcast %122 : vector<1x64xf32> to vector<256x64xf32>
    %144 = arith.addf %142, %143 : vector<256x64xf32>
    %cst_27 = arith.constant 0.000000e+00 : f32
    %145 = vector.broadcast %cst_27 : f32 to vector<256x64xf32>
    %146 = arith.maximumf %144, %145 : vector<256x64xf32>
    %147 = arith.truncf %146 : vector<256x64xf32> to vector<256x64xbf16>
    %c96 = arith.constant 96 : index
    %c0_28 = arith.constant 0 : index
    %148 = vector.load %arg3[%c96, %c0_28] : memref<224x64xbf16, #tpu.memory_space<vmem>>, vector<64x64xbf16>
    %cst_29 = arith.constant dense<0.000000e+00> : vector<256x64xf32>
    %149 = tpu.matmul %147, %148, %cst_29 {dimension_numbers = #tpu.dot_dimension_numbers<[1], [0], [0], [1], [0, 0, 1, 1], [], []>} : vector<256x64xbf16>, vector<64x64xbf16>, vector<256x64xf32> -> vector<256x64xf32>
    %c6 = arith.constant 6 : index
    %c0_30 = arith.constant 0 : index
    %150 = vector.load %arg4[%c6, %c0_30] : memref<16x128xf32, #tpu.memory_space<vmem>>, vector<1x64xf32>
    %151 = vector.broadcast %150 : vector<1x64xf32> to vector<256x64xf32>
    %152 = arith.addf %149, %151 : vector<256x64xf32>
    %c7 = arith.constant 7 : index
    %c0_31 = arith.constant 0 : index
    %153 = vector.load %arg4[%c7, %c0_31] : memref<16x128xf32, #tpu.memory_space<vmem>>, vector<1x64xf32>
    %c8 = arith.constant 8 : index
    %c0_32 = arith.constant 0 : index
    %154 = vector.load %arg4[%c8, %c0_32] : memref<16x128xf32, #tpu.memory_space<vmem>>, vector<1x64xf32>
    %cst_33 = arith.constant dense<0.000000e+00> : vector<256xf32>
    %155 = vector.multi_reduction <add>, %152, %cst_33 [1] : vector<256x64xf32> to vector<256xf32>
    %156 = vector.shape_cast %155 : vector<256xf32> to vector<256x1xf32>
    %157 = arith.mulf %152, %152 : vector<256x64xf32>
    %cst_34 = arith.constant dense<0.000000e+00> : vector<256xf32>
    %158 = vector.multi_reduction <add>, %157, %cst_34 [1] : vector<256x64xf32> to vector<256xf32>
    %159 = vector.shape_cast %158 : vector<256xf32> to vector<256x1xf32>
    %cst_35 = arith.constant 1.562500e-02 : f32
    %160 = vector.broadcast %cst_35 : f32 to vector<256x1xf32>
    %161 = arith.mulf %156, %160 : vector<256x1xf32>
    %cst_36 = arith.constant 1.562500e-02 : f32
    %162 = vector.broadcast %cst_36 : f32 to vector<256x1xf32>
    %163 = arith.mulf %159, %162 : vector<256x1xf32>
    %164 = arith.mulf %161, %161 : vector<256x1xf32>
    %165 = arith.subf %163, %164 : vector<256x1xf32>
    %166 = vector.broadcast %161 : vector<256x1xf32> to vector<256x64xf32>
    %167 = arith.subf %152, %166 : vector<256x64xf32>
    %cst_37 = arith.constant 9.99999974E-6 : f32
    %168 = vector.broadcast %cst_37 : f32 to vector<256x1xf32>
    %169 = arith.addf %165, %168 : vector<256x1xf32>
    %170 = math.rsqrt %169 : vector<256x1xf32>
    %171 = vector.broadcast %170 : vector<256x1xf32> to vector<256x64xf32>
    %172 = arith.mulf %167, %171 : vector<256x64xf32>
    %173 = vector.broadcast %153 : vector<1x64xf32> to vector<256x64xf32>
    %174 = arith.mulf %172, %173 : vector<256x64xf32>
    %175 = vector.broadcast %154 : vector<1x64xf32> to vector<256x64xf32>
    %176 = arith.addf %174, %175 : vector<256x64xf32>
    %cst_38 = arith.constant 0.000000e+00 : f32
    %177 = vector.broadcast %cst_38 : f32 to vector<256x64xf32>
    %178 = arith.maximumf %176, %177 : vector<256x64xf32>
    %179 = arith.addf %178, %146 : vector<256x64xf32>
    %180 = arith.truncf %179 : vector<256x64xf32> to vector<256x64xbf16>
    %c160 = arith.constant 160 : index
    %c0_39 = arith.constant 0 : index
    %181 = vector.load %arg3[%c160, %c0_39] : memref<224x64xbf16, #tpu.memory_space<vmem>>, vector<64x3xbf16>
    %cst_40 = arith.constant dense<0.000000e+00> : vector<256x3xf32>
    %182 = tpu.matmul %180, %181, %cst_40 {dimension_numbers = #tpu.dot_dimension_numbers<[1], [0], [0], [1], [0, 0, 1, 1], [], []>} : vector<256x64xbf16>, vector<64x3xbf16>, vector<256x3xf32> -> vector<256x3xf32>
    %c9 = arith.constant 9 : index
    %c0_41 = arith.constant 0 : index
    %183 = vector.load %arg4[%c9, %c0_41] : memref<16x128xf32, #tpu.memory_space<vmem>>, vector<1x3xf32>
    %184 = vector.broadcast %183 : vector<1x3xf32> to vector<256x3xf32>
    %185 = arith.addf %182, %184 : vector<256x3xf32>
    %c0_42 = arith.constant 0 : index
    %c0_43 = arith.constant 0 : index
    %186 = vector.load %arg5[%c0_42, %c0_43] : memref<256x3xf32, #tpu.memory_space<vmem>>, vector<256x3xf32>
    tpu.vector_store %arg5[%c0_42, %c0_43], %185 {strides = array<i32>} : memref<256x3xf32, #tpu.memory_space<vmem>>, vector<256x3xf32>,
    return
  }
  func.func @transform_0(%arg0: i32) -> (i32, i32) {
    %c0_i32 = arith.constant 0 : i32
    %c0_i32_0 = arith.constant 0 : i32
    return %arg0, %c0_i32 : i32, i32
  }
  func.func @transform_1(%arg0: i32) -> (i32, i32) {
    %c0_i32 = arith.constant 0 : i32
    %c0_i32_0 = arith.constant 0 : i32
    return %arg0, %c0_i32 : i32, i32
  }
  func.func @transform_2(%arg0: i32) -> (i32, i32) {
    %c0_i32 = arith.constant 0 : i32
    %c0_i32_0 = arith.constant 0 : i32
    %c0_i32_1 = arith.constant 0 : i32
    return %c0_i32, %c0_i32_0 : i32, i32
  }
  func.func @transform_3(%arg0: i32) -> (i32, i32) {
    %c0_i32 = arith.constant 0 : i32
    %c0_i32_0 = arith.constant 0 : i32
    %c0_i32_1 = arith.constant 0 : i32
    return %c0_i32, %c0_i32_0 : i32, i32
  }
  func.func @transform_4(%arg0: i32) -> (i32, i32) {
    %c0_i32 = arith.constant 0 : i32
    %c0_i32_0 = arith.constant 0 : i32
    return %arg0, %c0_i32 : i32, i32
  }
}

</mosaic_0001>

<llo_original>
// kernel: deep_cfr_forward.1
$region0: #{deep_cfr_forward.1}
  #allocation0 [shape = 'u32[]', space=smem, size = 0x4, offset = 0x4, fixed_abs, tag = 'smem constant byte address 0x4 - core index']
  #allocation1 [shape = 'u32[144,128]{1,0:T(1,128)}', space=vmem, size = 0x12000, scoped, tag = 'internal scratch']
  %s0 = inlined_call_operand.vmem [shape: s32[512,16], index: 0, kind: input, shape index: {}]
  %s1 = inlined_call_operand.vmem [shape: f32[512,16], index: 1, kind: input, shape index: {}]
  %s2 = inlined_call_operand.vmem [shape: bf16[224,64], index: 2, kind: input, shape index: {}]
  %s3 = inlined_call_operand.vmem [shape: f32[16,128], index: 3, kind: input, shape index: {}]
  %s4 = inlined_call_operand.vmem [shape: f32[512,3], index: 4, kind: output, shape index: {}]
  %s5 = sld [smem:[#allocation0]]
  $region49: #{deep_cfr_forward.1} parent=0
    _
  %s7 = ssub.s32 1, %s5
  %s8 = scalar_select 0, %s7, %s5
  loop: start=0, step=1, limit=4
  $region2: #{deep_cfr_forward.1} parent=0 // loop_pre_header
    _
  $region3: #{deep_cfr_forward.1} parent=0 // loop_header
    %s10 = sphi 0, %s14
    %p11 = scmp.ge.s32.totalorder %s10, 4
    %s20 = sphi 0, %s22
    %s23 = sphi 0, %s20
    %s24 = sphi 0, %s23
    %s40 = sphi 0, %s24
    %s46 = sphi 0, %s48
    %s49 = sphi 0, %s46
    %s50 = sphi 0, %s49
    %s66 = sphi 0, %s50
    %s70 = sphi 0, %s70
    %s72 = sphi 0, %s70
    %s73 = sphi 0, %s72
    %s87 = sphi 0, %s73
    %s91 = sphi 0, %s91
    %s93 = sphi 0, %s91
    %s94 = sphi 0, %s93
    %s108 = sphi 0, %s94
    %s114 = sphi 0, %s116
    %s117 = sphi 0, %s114
    %s118 = sphi 0, %s117
    %s134 = sphi 0, %s118
  $region4: #{deep_cfr_forward.1} parent=0 // loop_header_branch
    %13 = sbr.rel (%p11) target = $region8
  $region5: #{deep_cfr_forward.1} parent=0 // loop_body
    %s15 = ssub.s32 %s10, 1
    %s16 = ssub.s32 %s10, 2
    %s17 = sadd.s32 %s10, 1
    %s18 = ssub.s32 %s10, %s17
    %p19 = scmp.eq.s32.totalorder %s18, 0
    %s21 = sadd.s32 %s20, 1
    %s22 = scalar_select %p19, %s20, %s21
    %p25 = pneg %p19
    %p26 = scmp.eq.s32.totalorder %s10, 1
    %p27 = por %p25, %p26
    %p28 = scmp.ne.s32.totalorder %s20, %s23
    %p29 = scmp.eq.s32.totalorder %s10, 0
    %p30 = por %p28, %p29
    %p31 = scmp.ne.s32.totalorder %s20, %s23
    %p32 = scmp.eq.s32.totalorder %s15, 1
    %p33 = por %p31, %p32
    %p34 = scmp.ne.s32.totalorder %s23, %s24
    %p35 = scmp.eq.s32.totalorder %s15, 0
    %p36 = por %p34, %p35
    %p37 = scmp.ne.s32.totalorder %s23, %s24
    %p38 = scmp.eq.s32.totalorder %s16, 1
    %p39 = por %p37, %p38
    %p41 = scmp.ne.s32.totalorder %s24, %s40
    %p42 = scmp.eq.s32.totalorder %s16, 0
    %p43 = por %p41, %p42
    %s44 = ssub.s32 %s10, %s17
    %p45 = scmp.eq.s32.totalorder %s44, 0
    %s47 = sadd.s32 %s46, 1
    %s48 = scalar_select %p45, %s46, %s47
    %p51 = pneg %p45
    %p52 = scmp.eq.s32.totalorder %s10, 1
    %p53 = por %p51, %p52
    %p54 = scmp.ne.s32.totalorder %s46, %s49
    %p55 = scmp.eq.s32.totalorder %s10, 0
    %p56 = por %p54, %p55
    %p57 = scmp.ne.s32.totalorder %s46, %s49
    %p58 = scmp.eq.s32.totalorder %s15, 1
    %p59 = por %p57, %p58
    %p60 = scmp.ne.s32.totalorder %s49, %s50
    %p61 = scmp.eq.s32.totalorder %s15, 0
    %p62 = por %p60, %p61
    %p63 = scmp.ne.s32.totalorder %s49, %s50
    %p64 = scmp.eq.s32.totalorder %s16, 1
    %p65 = por %p63, %p64
    %p67 = scmp.ne.s32.totalorder %s50, %s66
    %p68 = scmp.eq.s32.totalorder %s16, 0
    %p69 = por %p67, %p68
    %s71 = sadd.s32 %s70, 1
    %p74 = scmp.eq.s32.totalorder %s10, 1
    %p75 = scmp.ne.s32.totalorder %s70, %s72
    %p76 = scmp.eq.s32.totalorder %s10, 0
    %p77 = por %p75, %p76
    %p78 = scmp.ne.s32.totalorder %s70, %s72
    %p79 = scmp.eq.s32.totalorder %s15, 1
    %p80 = por %p78, %p79
    %p81 = scmp.ne.s32.totalorder %s72, %s73
    %p82 = scmp.eq.s32.totalorder %s15, 0
    %p83 = por %p81, %p82
    %p84 = scmp.ne.s32.totalorder %s72, %s73
    %p85 = scmp.eq.s32.totalorder %s16, 1
    %p86 = por %p84, %p85
    %p88 = scmp.ne.s32.totalorder %s73, %s87
    %p89 = scmp.eq.s32.totalorder %s16, 0
    %p90 = por %p88, %p89
    %s92 = sadd.s32 %s91, 1
    %p95 = scmp.eq.s32.totalorder %s10, 1
    %p96 = scmp.ne.s32.totalorder %s91, %s93
    %p97 = scmp.eq.s32.totalorder %s10, 0
    %p98 = por %p96, %p97
    %p99 = scmp.ne.s32.totalorder %s91, %s93
    %p100 = scmp.eq.s32.totalorder %s15, 1
    %p101 = por %p99, %p100
    %p102 = scmp.ne.s32.totalorder %s93, %s94
    %p103 = scmp.eq.s32.totalorder %s15, 0
    %p104 = por %p102, %p103
    %p105 = scmp.ne.s32.totalorder %s93, %s94
    %p106 = scmp.eq.s32.totalorder %s16, 1
    %p107 = por %p105, %p106
    %p109 = scmp.ne.s32.totalorder %s94, %s108
    %p110 = scmp.eq.s32.totalorder %s16, 0
    %p111 = por %p109, %p110
    %s112 = ssub.s32 %s10, %s17
    %p113 = scmp.eq.s32.totalorder %s112, 0
    %s115 = sadd.s32 %s114, 1
    %s116 = scalar_select %p113, %s114, %s115
    %p119 = pneg %p113
    %p120 = scmp.eq.s32.totalorder %s10, 1
    %p121 = por %p119, %p120
    %p122 = scmp.ne.s32.totalorder %s114, %s117
    %p123 = scmp.eq.s32.totalorder %s10, 0
    %p124 = por %p122, %p123
    %p125 = scmp.ne.s32.totalorder %s114, %s117
    %p126 = scmp.eq.s32.totalorder %s15, 1
    %p127 = por %p125, %p126
    %p128 = scmp.ne.s32.totalorder %s117, %s118
    %p129 = scmp.eq.s32.totalorder %s15, 0
    %p130 = por %p128, %p129
    %p131 = scmp.ne.s32.totalorder %s117, %s118
    %p132 = scmp.eq.s32.totalorder %s16, 1
    %p133 = por %p131, %p132
    %p135 = scmp.ne.s32.totalorder %s118, %s134
    %p136 = scmp.eq.s32.totalorder %s16, 0
    %p137 = por %p135, %p136
    %p138 = scmp.le.s32.totalorder 1, %s10
    %p139 = scmp.lt.s32.totalorder %s10, 3
    %p140 = pnand %p138, %p139
    %p141 = pneg %p140
    // Predicated region
    $region9: #{deep_cfr_forward.1} parent=5 // pred_check
      _
    $region10: #{deep_cfr_forward.1} parent=5 // pred_check_branch
      %143 = sbr.rel (%p140) target = $region12
    $region11: #{deep_cfr_forward.1} parent=5 // pred_region
      %s144 = ssub.s32 %s10, 1
      // Predicated region
      $region13: #{deep_cfr_forward.1} parent=11 // pred_check
        %p145 = pneg %p83
      $region14: #{deep_cfr_forward.1} parent=11 // pred_check_branch
        %147 = sbr.rel (%p145) target = $region16
      $region15: #{deep_cfr_forward.1} parent=11 // pred_region
        _
      $region16: #{deep_cfr_forward.1} parent=11 // pred_fallthru
        _
      // Predicated region
      $region17: #{deep_cfr_forward.1} parent=11 // pred_check
        %p148 = pneg %p104
      $region18: #{deep_cfr_forward.1} parent=11 // pred_check_branch
        %150 = sbr.rel (%p148) target = $region20
      $region19: #{deep_cfr_forward.1} parent=11 // pred_region
        _
      $region20: #{deep_cfr_forward.1} parent=11 // pred_fallthru
        _
    $region12: #{deep_cfr_forward.1} parent=5 // pred_fallthru
      _
    %p151 = scmp.lt.s32.totalorder %s10, 2
    // Predicated region
    $region21: #{deep_cfr_forward.1} parent=5 // pred_check
      %p152 = pneg %p151
    $region22: #{deep_cfr_forward.1} parent=5 // pred_check_branch
      %154 = sbr.rel (%p152) target = $region24
    $region23: #{deep_cfr_forward.1} parent=5 // pred_region
      // Predicated region
      $region25: #{deep_cfr_forward.1} parent=23 // pred_check
        %p155 = pneg %p30
      $region26: #{deep_cfr_forward.1} parent=23 // pred_check_branch
        %157 = sbr.rel (%p155) target = $region28
      $region27: #{deep_cfr_forward.1} parent=23 // pred_region
        %s158 = smul.u32 32, %s10
        %p159 = scmp.lt.s32.totalorder %s158, 63
        %s160 = scalar_select %p159, %s158, 63
        %s161 = smul.addr %s160, 8
        %s162 = scalar_lea.vmem %s0, %s161
        %s163 = smul.u32 32, %s10
      $region28: #{deep_cfr_forward.1} parent=23 // pred_fallthru
        _
      // Predicated region
      $region29: #{deep_cfr_forward.1} parent=23 // pred_check
        %p164 = pneg %p56
      $region30: #{deep_cfr_forward.1} parent=23 // pred_check_branch
        %166 = sbr.rel (%p164) target = $region32
      $region31: #{deep_cfr_forward.1} parent=23 // pred_region
        %s167 = smul.u32 32, %s10
        %p168 = scmp.lt.s32.totalorder %s167, 63
        %s169 = scalar_select %p168, %s167, 63
        %s170 = smul.addr %s169, 8
        %s171 = scalar_lea.vmem %s1, %s170
        %s172 = smul.u32 32, %s10
      $region32: #{deep_cfr_forward.1} parent=23 // pred_fallthru
        _
    $region24: #{deep_cfr_forward.1} parent=5 // pred_fallthru
      _
    %p173 = scmp.le.s32.totalorder 1, %s10
    %p174 = scmp.lt.s32.totalorder %s10, 3
    %p175 = pnand %p173, %p174
    %p176 = pneg %p175
    // Predicated region
    $region33: #{deep_cfr_forward.1} parent=5 // pred_check
      _
    $region34: #{deep_cfr_forward.1} parent=5 // pred_check_branch
      %178 = sbr.rel (%p175) target = $region36
    $region35: #{deep_cfr_forward.1} parent=5 // pred_region
      %s179 = ssub.s32 %s10, 1
      %s180 = smul.u32 32, %s15
      %p181 = scmp.lt.s32.totalorder %s180, 63
      %s182 = scalar_select %p181, %s180, 63
      %s183 = smul.addr %s182, 8
      %s184 = scalar_lea.vmem %s0, %s183
      %p185 = pneg %p36
      %p186 = pneg %p33
      %s187 = smul.u32 32, %s15
      %p188 = scmp.lt.s32.totalorder %s187, 63
      %s189 = scalar_select %p188, %s187, 63
      %s190 = smul.addr %s189, 8
      %s191 = scalar_lea.vmem %s1, %s190
      %p192 = pneg %p62
      %p193 = pneg %p59
      %p194 = pneg %p83
      %p195 = pneg %p80
      %p196 = pneg %p104
      %p197 = pneg %p101
      %p198 = pneg %p130
      %p199 = pneg %p127
      %s200 = smul.u32 32, %s15
      %p201 = scmp.lt.s32.totalorder %s200, 63
      %s202 = scalar_select %p201, %s200, 63
      %s203 = smul.addr %s202, 8
      %s204 = scalar_lea.vmem %s4, %s203
      %s205 = smul.u32 32, %s15
      %p206 = scmp.lt.s32.totalorder %s205, 63
      %s207 = scalar_select %p206, %s205, 63
      %s208 = smul.addr %s207, 8
      %s209 = scalar_lea.vmem %s0, %s208
      %s210 = smul.u32 32, %s15
      %s211 = smul.u32 32, %s15
      %p212 = scmp.lt.s32.totalorder %s211, 63
      %s213 = scalar_select %p212, %s211, 63
      %s214 = smul.addr %s213, 8
      %s215 = scalar_lea.vmem %s1, %s214
      %s216 = smul.u32 32, %s15
      %s217 = smul.u32 32, %s15
      %p218 = scmp.lt.s32.totalorder %s217, 63
      %s219 = scalar_select %p218, %s217, 63
      %s220 = smul.addr %s219, 8
      %s221 = scalar_lea.vmem %s4, %s220
      %s222 = smul.u32 32, %s15
      %v224 = vld [vmem:[%s209] sm:$0xff]
      %v225 = vld [vmem:[%s209 + $0x8] sm:$0xff]
      %v226 = vld [vmem:[%s209 + $0x10] sm:$0xff]
      %v227 = vld [vmem:[%s209 + $0x18] sm:$0xff]
      %v228 = vld [vmem:[%s209 + $0x20] sm:$0xff]
      %v229 = vld [vmem:[%s209 + $0x28] sm:$0xff]
      %v230 = vld [vmem:[%s209 + $0x30] sm:$0xff]
      %v231 = vld [vmem:[%s209 + $0x38] sm:$0xff]
      %v232 = vld [vmem:[%s209 + $0x40] sm:$0xff]
      %v233 = vld [vmem:[%s209 + $0x48] sm:$0xff]
      %v234 = vld [vmem:[%s209 + $0x50] sm:$0xff]
      %v235 = vld [vmem:[%s209 + $0x58] sm:$0xff]
      %v236 = vld [vmem:[%s209 + $0x60] sm:$0xff]
      %v237 = vld [vmem:[%s209 + $0x68] sm:$0xff]
      %v238 = vld [vmem:[%s209 + $0x70] sm:$0xff]
      %v239 = vld [vmem:[%s209 + $0x78] sm:$0xff]
      %v240 = vld [vmem:[%s209 + $0x80] sm:$0xff]
      %v241 = vld [vmem:[%s209 + $0x88] sm:$0xff]
      %v242 = vld [vmem:[%s209 + $0x90] sm:$0xff]
      %v243 = vld [vmem:[%s209 + $0x98] sm:$0xff]
      %v244 = vld [vmem:[%s209 + $0xa0] sm:$0xff]
      %v245 = vld [vmem:[%s209 + $0xa8] sm:$0xff]
      %v246 = vld [vmem:[%s209 + $0xb0] sm:$0xff]
      %v247 = vld [vmem:[%s209 + $0xb8] sm:$0xff]
      %v248 = vld [vmem:[%s209 + $0xc0] sm:$0xff]
      %v249 = vld [vmem:[%s209 + $0xc8] sm:$0xff]
      %v250 = vld [vmem:[%s209 + $0xd0] sm:$0xff]
      %v251 = vld [vmem:[%s209 + $0xd8] sm:$0xff]
      %v252 = vld [vmem:[%s209 + $0xe0] sm:$0xff]
      %v253 = vld [vmem:[%s209 + $0xe8] sm:$0xff]
      %v254 = vld [vmem:[%s209 + $0xf0] sm:$0xff]
      %v255 = vld [vmem:[%s209 + $0xf8] sm:$0xff]
      %v256 = vlaneseq
      %v257 = vand.u32 %v256, 127
      %258 = vset.pattern.permute.xlu0 0
      %259 = vperm.xlu0 %258, %v224
      %v260 = vpop.permute.xlu0 %259
      %261 = vset.pattern.permute.xlu0 0
      %262 = vperm.xlu0 %261, %v225
      %v263 = vpop.permute.xlu0 %262
      %264 = vset.pattern.permute.xlu0 0
      %265 = vperm.xlu0 %264, %v226
      %v266 = vpop.permute.xlu0 %265
      %267 = vset.pattern.permute.xlu0 0
      %268 = vperm.xlu0 %267, %v227
      %v269 = vpop.permute.xlu0 %268
      %270 = vset.pattern.permute.xlu0 0
      %271 = vperm.xlu0 %270, %v228
      %v272 = vpop.permute.xlu0 %271
      %273 = vset.pattern.permute.xlu0 0
      %274 = vperm.xlu0 %273, %v229
      %v275 = vpop.permute.xlu0 %274
      %276 = vset.pattern.permute.xlu0 0
      %277 = vperm.xlu0 %276, %v230
      %v278 = vpop.permute.xlu0 %277
      %279 = vset.pattern.permute.xlu0 0
      %280 = vperm.xlu0 %279, %v231
      %v281 = vpop.permute.xlu0 %280
      %282 = vset.pattern.permute.xlu0 0
      %283 = vperm.xlu0 %282, %v232
      %v284 = vpop.permute.xlu0 %283
      %285 = vset.pattern.permute.xlu0 0
      %286 = vperm.xlu0 %285, %v233
      %v287 = vpop.permute.xlu0 %286
      %288 = vset.pattern.permute.xlu0 0
      %289 = vperm.xlu0 %288, %v234
      %v290 = vpop.permute.xlu0 %289
      %291 = vset.pattern.permute.xlu0 0
      %292 = vperm.xlu0 %291, %v235
      %v293 = vpop.permute.xlu0 %292
      %294 = vset.pattern.permute.xlu0 0
      %295 = vperm.xlu0 %294, %v236
      %v296 = vpop.permute.xlu0 %295
      %297 = vset.pattern.permute.xlu0 0
      %298 = vperm.xlu0 %297, %v237
      %v299 = vpop.permute.xlu0 %298
      %300 = vset.pattern.permute.xlu0 0
      %301 = vperm.xlu0 %300, %v238
      %v302 = vpop.permute.xlu0 %301
      %303 = vset.pattern.permute.xlu0 0
      %304 = vperm.xlu0 %303, %v239
      %v305 = vpop.permute.xlu0 %304
      %306 = vset.pattern.permute.xlu0 0
      %307 = vperm.xlu0 %306, %v240
      %v308 = vpop.permute.xlu0 %307
      %309 = vset.pattern.permute.xlu0 0
      %310 = vperm.xlu0 %309, %v241
      %v311 = vpop.permute.xlu0 %310
      %312 = vset.pattern.permute.xlu0 0
      %313 = vperm.xlu0 %312, %v242
      %v314 = vpop.permute.xlu0 %313
      %315 = vset.pattern.permute.xlu0 0
      %316 = vperm.xlu0 %315, %v243
      %v317 = vpop.permute.xlu0 %316
      %318 = vset.pattern.permute.xlu0 0
      %319 = vperm.xlu0 %318, %v244
      %v320 = vpop.permute.xlu0 %319
      %321 = vset.pattern.permute.xlu0 0
      %322 = vperm.xlu0 %321, %v245
      %v323 = vpop.permute.xlu0 %322
      %324 = vset.pattern.permute.xlu0 0
      %325 = vperm.xlu0 %324, %v246
      %v326 = vpop.permute.xlu0 %325
      %327 = vset.pattern.permute.xlu0 0
      %328 = vperm.xlu0 %327, %v247
      %v329 = vpop.permute.xlu0 %328
      %330 = vset.pattern.permute.xlu0 0
      %331 = vperm.xlu0 %330, %v248
      %v332 = vpop.permute.xlu0 %331
      %333 = vset.pattern.permute.xlu0 0
      %334 = vperm.xlu0 %333, %v249
      %v335 = vpop.permute.xlu0 %334
      %336 = vset.pattern.permute.xlu0 0
      %337 = vperm.xlu0 %336, %v250
      %v338 = vpop.permute.xlu0 %337
      %339 = vset.pattern.permute.xlu0 0
      %340 = vperm.xlu0 %339, %v251
      %v341 = vpop.permute.xlu0 %340
      %342 = vset.pattern.permute.xlu0 0
      %343 = vperm.xlu0 %342, %v252
      %v344 = vpop.permute.xlu0 %343
      %345 = vset.pattern.permute.xlu0 0
      %346 = vperm.xlu0 %345, %v253
      %v347 = vpop.permute.xlu0 %346
      %348 = vset.pattern.permute.xlu0 0
      %349 = vperm.xlu0 %348, %v254
      %v350 = vpop.permute.xlu0 %349
      %351 = vset.pattern.permute.xlu0 0
      %352 = vperm.xlu0 %351, %v255
      %v353 = vpop.permute.xlu0 %352
      %vm354 = vcmp.eq.s32.totalorder %v257, %v260
      %vm355 = vcmp.eq.s32.totalorder %v257, %v263
      %vm356 = vcmp.eq.s32.totalorder %v257, %v266
      %vm357 = vcmp.eq.s32.totalorder %v257, %v269
      %vm358 = vcmp.eq.s32.totalorder %v257, %v272
      %vm359 = vcmp.eq.s32.totalorder %v257, %v275
      %vm360 = vcmp.eq.s32.totalorder %v257, %v278
      %vm361 = vcmp.eq.s32.totalorder %v257, %v281
      %vm362 = vcmp.eq.s32.totalorder %v257, %v284
      %vm363 = vcmp.eq.s32.totalorder %v257, %v287
      %vm364 = vcmp.eq.s32.totalorder %v257, %v290
      %vm365 = vcmp.eq.s32.totalorder %v257, %v293
      %vm366 = vcmp.eq.s32.totalorder %v257, %v296
      %vm367 = vcmp.eq.s32.totalorder %v257, %v299
      %vm368 = vcmp.eq.s32.totalorder %v257, %v302
      %vm369 = vcmp.eq.s32.totalorder %v257, %v305
      %vm370 = vcmp.eq.s32.totalorder %v257, %v308
      %vm371 = vcmp.eq.s32.totalorder %v257, %v311
      %vm372 = vcmp.eq.s32.totalorder %v257, %v314
      %vm373 = vcmp.eq.s32.totalorder %v257, %v317
      %vm374 = vcmp.eq.s32.totalorder %v257, %v320
      %vm375 = vcmp.eq.s32.totalorder %v257, %v323
      %vm376 = vcmp.eq.s32.totalorder %v257, %v326
      %vm377 = vcmp.eq.s32.totalorder %v257, %v329
      %vm378 = vcmp.eq.s32.totalorder %v257, %v332
      %vm379 = vcmp.eq.s32.totalorder %v257, %v335
      %vm380 = vcmp.eq.s32.totalorder %v257, %v338
      %vm381 = vcmp.eq.s32.totalorder %v257, %v341
      %vm382 = vcmp.eq.s32.totalorder %v257, %v344
      %vm383 = vcmp.eq.s32.totalorder %v257, %v347
      %vm384 = vcmp.eq.s32.totalorder %v257, %v350
      %vm385 = vcmp.eq.s32.totalorder %v257, %v353
      %v386 = vsel %vm354, 1, 0
      %v387 = vsel %vm355, 1, 0
      %v388 = vsel %vm356, 1, 0
      %v389 = vsel %vm357, 1, 0
      %v390 = vsel %vm358, 1, 0
      %v391 = vsel %vm359, 1, 0
      %v392 = vsel %vm360, 1, 0
      %v393 = vsel %vm361, 1, 0
      %v394 = vsel %vm362, 1, 0
      %v395 = vsel %vm363, 1, 0
      %v396 = vsel %vm364, 1, 0
      %v397 = vsel %vm365, 1, 0
      %v398 = vsel %vm366, 1, 0
      %v399 = vsel %vm367, 1, 0
      %v400 = vsel %vm368, 1, 0
      %v401 = vsel %vm369, 1, 0
      %v402 = vsel %vm370, 1, 0
      %v403 = vsel %vm371, 1, 0
      %v404 = vsel %vm372, 1, 0
      %v405 = vsel %vm373, 1, 0
      %v406 = vsel %vm374, 1, 0
      %v407 = vsel %vm375, 1, 0
      %v408 = vsel %vm376, 1, 0
      %v409 = vsel %vm377, 1, 0
      %v410 = vsel %vm378, 1, 0
      %v411 = vsel %vm379, 1, 0
      %v412 = vsel %vm380, 1, 0
      %v413 = vsel %vm381, 1, 0
      %v414 = vsel %vm382, 1, 0
      %v415 = vsel %vm383, 1, 0
      %v416 = vsel %vm384, 1, 0
      %v417 = vsel %vm385, 1, 0
      %418 = vset.pattern.permute.xlu0 1
      %419 = vperm.xlu0 %418, %v224
      %v420 = vpop.permute.xlu0 %419
      %421 = vset.pattern.permute.xlu0 1
      %422 = vperm.xlu0 %421, %v225
      %v423 = vpop.permute.xlu0 %422
      %424 = vset.pattern.permute.xlu0 1
      %425 = vperm.xlu0 %424, %v226
      %v426 = vpop.permute.xlu0 %425
      %427 = vset.pattern.permute.xlu0 1
      %428 = vperm.xlu0 %427, %v227
      %v429 = vpop.permute.xlu0 %428
      %430 = vset.pattern.permute.xlu0 1
      %431 = vperm.xlu0 %430, %v228
      %v432 = vpop.permute.xlu0 %431
      %433 = vset.pattern.permute.xlu0 1
      %434 = vperm.xlu0 %433, %v229
      %v435 = vpop.permute.xlu0 %434
      %436 = vset.pattern.permute.xlu0 1
      %437 = vperm.xlu0 %436, %v230
      %v438 = vpop.permute.xlu0 %437
      %439 = vset.pattern.permute.xlu0 1
      %440 = vperm.xlu0 %439, %v231
      %v441 = vpop.permute.xlu0 %440
      %442 = vset.pattern.permute.xlu0 1
      %443 = vperm.xlu0 %442, %v232
      %v444 = vpop.permute.xlu0 %443
      %445 = vset.pattern.permute.xlu0 1
      %446 = vperm.xlu0 %445, %v233
      %v447 = vpop.permute.xlu0 %446
      %448 = vset.pattern.permute.xlu0 1
      %449 = vperm.xlu0 %448, %v234
      %v450 = vpop.permute.xlu0 %449
      %451 = vset.pattern.permute.xlu0 1
      %452 = vperm.xlu0 %451, %v235
      %v453 = vpop.permute.xlu0 %452
      %454 = vset.pattern.permute.xlu0 1
      %455 = vperm.xlu0 %454, %v236
      %v456 = vpop.permute.xlu0 %455
      %457 = vset.pattern.permute.xlu0 1
      %458 = vperm.xlu0 %457, %v237
      %v459 = vpop.permute.xlu0 %458
      %460 = vset.pattern.permute.xlu0 1
      %461 = vperm.xlu0 %460, %v238
      %v462 = vpop.permute.xlu0 %461
      %463 = vset.pattern.permute.xlu0 1
      %464 = vperm.xlu0 %463, %v239
      %v465 = vpop.permute.xlu0 %464
      %466 = vset.pattern.permute.xlu0 1
      %467 = vperm.xlu0 %466, %v240
      %v468 = vpop.permute.xlu0 %467
      %469 = vset.pattern.permute.xlu0 1
      %470 = vperm.xlu0 %469, %v241
      %v471 = vpop.permute.xlu0 %470
      %472 = vset.pattern.permute.xlu0 1
      %473 = vperm.xlu0 %472, %v242
      %v474 = vpop.permute.xlu0 %473
      %475 = vset.pattern.permute.xlu0 1
      %476 = vperm.xlu0 %475, %v243
      %v477 = vpop.permute.xlu0 %476
      %478 = vset.pattern.permute.xlu0 1
      %479 = vperm.xlu0 %478, %v244
      %v480 = vpop.permute.xlu0 %479
      %481 = vset.pattern.permute.xlu0 1
      %482 = vperm.xlu0 %481, %v245
      %v483 = vpop.permute.xlu0 %482
      %484 = vset.pattern.permute.xlu0 1
      %485 = vperm.xlu0 %484, %v246
      %v486 = vpop.permute.xlu0 %485
      %487 = vset.pattern.permute.xlu0 1
      %488 = vperm.xlu0 %487, %v247
      %v489 = vpop.permute.xlu0 %488
      %490 = vset.pattern.permute.xlu0 1
      %491 = vperm.xlu0 %490, %v248
      %v492 = vpop.permute.xlu0 %491
      %493 = vset.pattern.permute.xlu0 1
      %494 = vperm.xlu0 %493, %v249
      %v495 = vpop.permute.xlu0 %494
      %496 = vset.pattern.permute.xlu0 1
      %497 = vperm.xlu0 %496, %v250
      %v498 = vpop.permute.xlu0 %497
      %499 = vset.pattern.permute.xlu0 1
      %500 = vperm.xlu0 %499, %v251
      %v501 = vpop.permute.xlu0 %500
      %502 = vset.pattern.permute.xlu0 1
      %503 = vperm.xlu0 %502, %v252
      %v504 = vpop.permute.xlu0 %503
      %505 = vset.pattern.permute.xlu0 1
      %506 = vperm.xlu0 %505, %v253
      %v507 = vpop.permute.xlu0 %506
      %508 = vset.pattern.permute.xlu0 1
      %509 = vperm.xlu0 %508, %v254
      %v510 = vpop.permute.xlu0 %509
      %511 = vset.pattern.permute.xlu0 1
      %512 = vperm.xlu0 %511, %v255
      %v513 = vpop.permute.xlu0 %512
      %vm514 = vcmp.eq.s32.totalorder %v257, %v420
      %vm515 = vcmp.eq.s32.totalorder %v257, %v423
      %vm516 = vcmp.eq.s32.totalorder %v257, %v426
      %vm517 = vcmp.eq.s32.totalorder %v257, %v429
      %vm518 = vcmp.eq.s32.totalorder %v257, %v432
      %vm519 = vcmp.eq.s32.totalorder %v257, %v435
      %vm520 = vcmp.eq.s32.totalorder %v257, %v438
      %vm521 = vcmp.eq.s32.totalorder %v257, %v441
      %vm522 = vcmp.eq.s32.totalorder %v257, %v444
      %vm523 = vcmp.eq.s32.totalorder %v257, %v447
      %vm524 = vcmp.eq.s32.totalorder %v257, %v450
      %vm525 = vcmp.eq.s32.totalorder %v257, %v453
      %vm526 = vcmp.eq.s32.totalorder %v257, %v456
      %vm527 = vcmp.eq.s32.totalorder %v257, %v459
      %vm528 = vcmp.eq.s32.totalorder %v257, %v462
      %vm529 = vcmp.eq.s32.totalorder %v257, %v465
      %vm530 = vcmp.eq.s32.totalorder %v257, %v468
      %vm531 = vcmp.eq.s32.totalorder %v257, %v471
      %vm532 = vcmp.eq.s32.totalorder %v257, %v474
      %vm533 = vcmp.eq.s32.totalorder %v257, %v477
      %vm534 = vcmp.eq.s32.totalorder %v257, %v480
      %vm535 = vcmp.eq.s32.totalorder %v257, %v483
      %vm536 = vcmp.eq.s32.totalorder %v257, %v486
      %vm537 = vcmp.eq.s32.totalorder %v257, %v489
      %vm538 = vcmp.eq.s32.totalorder %v257, %v492
      %vm539 = vcmp.eq.s32.totalorder %v257, %v495
      %vm540 = vcmp.eq.s32.totalorder %v257, %v498
      %vm541 = vcmp.eq.s32.totalorder %v257, %v501
      %vm542 = vcmp.eq.s32.totalorder %v257, %v504
      %vm543 = vcmp.eq.s32.totalorder %v257, %v507
      %vm544 = vcmp.eq.s32.totalorder %v257, %v510
      %vm545 = vcmp.eq.s32.totalorder %v257, %v513
      %v546 = vsel %vm514, 1, 0
      %v547 = vsel %vm515, 1, 0
      %v548 = vsel %vm516, 1, 0
      %v549 = vsel %vm517, 1, 0
      %v550 = vsel %vm518, 1, 0
      %v551 = vsel %vm519, 1, 0
      %v552 = vsel %vm520, 1, 0
      %v553 = vsel %vm521, 1, 0
      %v554 = vsel %vm522, 1, 0
      %v555 = vsel %vm523, 1, 0
      %v556 = vsel %vm524, 1, 0
      %v557 = vsel %vm525, 1, 0
      %v558 = vsel %vm526, 1, 0
      %v559 = vsel %vm527, 1, 0
      %v560 = vsel %vm528, 1, 0
      %v561 = vsel %vm529, 1, 0
      %v562 = vsel %vm530, 1, 0
      %v563 = vsel %vm531, 1, 0
      %v564 = vsel %vm532, 1, 0
      %v565 = vsel %vm533, 1, 0
      %v566 = vsel %vm534, 1, 0
      %v567 = vsel %vm535, 1, 0
      %v568 = vsel %vm536, 1, 0
      %v569 = vsel %vm537, 1, 0
      %v570 = vsel %vm538, 1, 0
      %v571 = vsel %vm539, 1, 0
      %v572 = vsel %vm540, 1, 0
      %v573 = vsel %vm541, 1, 0
      %v574 = vsel %vm542, 1, 0
      %v575 = vsel %vm543, 1, 0
      %v576 = vsel %vm544, 1, 0
      %v577 = vsel %vm545, 1, 0
      %v578 = vadd.s32 %v386, %v546
      %v579 = vadd.s32 %v387, %v547
      %v580 = vadd.s32 %v388, %v548
      %v581 = vadd.s32 %v389, %v549
      %v582 = vadd.s32 %v390, %v550
      %v583 = vadd.s32 %v391, %v551
      %v584 = vadd.s32 %v392, %v552
      %v585 = vadd.s32 %v393, %v553
      %v586 = vadd.s32 %v394, %v554
      %v587 = vadd.s32 %v395, %v555
      %v588 = vadd.s32 %v396, %v556
      %v589 = vadd.s32 %v397, %v557
      %v590 = vadd.s32 %v398, %v558
      %v591 = vadd.s32 %v399, %v559
      %v592 = vadd.s32 %v400, %v560
      %v593 = vadd.s32 %v401, %v561
      %v594 = vadd.s32 %v402, %v562
      %v595 = vadd.s32 %v403, %v563
      %v596 = vadd.s32 %v404, %v564
      %v597 = vadd.s32 %v405, %v565
      %v598 = vadd.s32 %v406, %v566
      %v599 = vadd.s32 %v407, %v567
      %v600 = vadd.s32 %v408, %v568
      %v601 = vadd.s32 %v409, %v569
      %v602 = vadd.s32 %v410, %v570
      %v603 = vadd.s32 %v411, %v571
      %v604 = vadd.s32 %v412, %v572
      %v605 = vadd.s32 %v413, %v573
      %v606 = vadd.s32 %v414, %v574
      %v607 = vadd.s32 %v415, %v575
      %v608 = vadd.s32 %v416, %v576
      %v609 = vadd.s32 %v417, %v577
      %610 = vset.pattern.permute.xlu0 2
      %611 = vperm.xlu0 %610, %v224
      %v612 = vpop.permute.xlu0 %611
      %613 = vset.pattern.permute.xlu0 2
      %614 = vperm.xlu0 %613, %v225
      %v615 = vpop.permute.xlu0 %614
      %616 = vset.pattern.permute.xlu0 2
      %617 = vperm.xlu0 %616, %v226
      %v618 = vpop.permute.xlu0 %617
      %619 = vset.pattern.permute.xlu0 2
      %620 = vperm.xlu0 %619, %v227
      %v621 = vpop.permute.xlu0 %620
      %622 = vset.pattern.permute.xlu0 2
      %623 = vperm.xlu0 %622, %v228
      %v624 = vpop.permute.xlu0 %623
      %625 = vset.pattern.permute.xlu0 2
      %626 = vperm.xlu0 %625, %v229
      %v627 = vpop.permute.xlu0 %626
      %628 = vset.pattern.permute.xlu0 2
      %629 = vperm.xlu0 %628, %v230
      %v630 = vpop.permute.xlu0 %629
      %631 = vset.pattern.permute.xlu0 2
      %632 = vperm.xlu0 %631, %v231
      %v633 = vpop.permute.xlu0 %632
      %634 = vset.pattern.permute.xlu0 2
      %635 = vperm.xlu0 %634, %v232
      %v636 = vpop.permute.xlu0 %635
      %637 = vset.pattern.permute.xlu0 2
      %638 = vperm.xlu0 %637, %v233
      %v639 = vpop.permute.xlu0 %638
      %640 = vset.pattern.permute.xlu0 2
      %641 = vperm.xlu0 %640, %v234
      %v642 = vpop.permute.xlu0 %641
      %643 = vset.pattern.permute.xlu0 2
      %644 = vperm.xlu0 %643, %v235
      %v645 = vpop.permute.xlu0 %644
      %646 = vset.pattern.permute.xlu0 2
      %647 = vperm.xlu0 %646, %v236
      %v648 = vpop.permute.xlu0 %647
      %649 = vset.pattern.permute.xlu0 2
      %650 = vperm.xlu0 %649, %v237
      %v651 = vpop.permute.xlu0 %650
      %652 = vset.pattern.permute.xlu0 2
      %653 = vperm.xlu0 %652, %v238
      %v654 = vpop.permute.xlu0 %653
      %655 = vset.pattern.permute.xlu0 2
      %656 = vperm.xlu0 %655, %v239
      %v657 = vpop.permute.xlu0 %656
      %658 = vset.pattern.permute.xlu0 2
      %659 = vperm.xlu0 %658, %v240
      %v660 = vpop.permute.xlu0 %659
      %661 = vset.pattern.permute.xlu0 2
      %662 = vperm.xlu0 %661, %v241
      %v663 = vpop.permute.xlu0 %662
      %664 = vset.pattern.permute.xlu0 2
      %665 = vperm.xlu0 %664, %v242
      %v666 = vpop.permute.xlu0 %665
      %667 = vset.pattern.permute.xlu0 2
      %668 = vperm.xlu0 %667, %v243
      %v669 = vpop.permute.xlu0 %668
      %670 = vset.pattern.permute.xlu0 2
      %671 = vperm.xlu0 %670, %v244
      %v672 = vpop.permute.xlu0 %671
      %673 = vset.pattern.permute.xlu0 2
      %674 = vperm.xlu0 %673, %v245
      %v675 = vpop.permute.xlu0 %674
      %676 = vset.pattern.permute.xlu0 2
      %677 = vperm.xlu0 %676, %v246
      %v678 = vpop.permute.xlu0 %677
      %679 = vset.pattern.permute.xlu0 2
      %680 = vperm.xlu0 %679, %v247
      %v681 = vpop.permute.xlu0 %680
      %682 = vset.pattern.permute.xlu0 2
      %683 = vperm.xlu0 %682, %v248
      %v684 = vpop.permute.xlu0 %683
      %685 = vset.pattern.permute.xlu0 2
      %686 = vperm.xlu0 %685, %v249
      %v687 = vpop.permute.xlu0 %686
      %688 = vset.pattern.permute.xlu0 2
      %689 = vperm.xlu0 %688, %v250
      %v690 = vpop.permute.xlu0 %689
      %691 = vset.pattern.permute.xlu0 2
      %692 = vperm.xlu0 %691, %v251
      %v693 = vpop.permute.xlu0 %692
      %694 = vset.pattern.permute.xlu0 2
      %695 = vperm.xlu0 %694, %v252
      %v696 = vpop.permute.xlu0 %695
      %697 = vset.pattern.permute.xlu0 2
      %698 = vperm.xlu0 %697, %v253
      %v699 = vpop.permute.xlu0 %698
      %700 = vset.pattern.permute.xlu0 2
      %701 = vperm.xlu0 %700, %v254
      %v702 = vpop.permute.xlu0 %701
      %703 = vset.pattern.permute.xlu0 2
      %704 = vperm.xlu0 %703, %v255
      %v705 = vpop.permute.xlu0 %704
      %vm706 = vcmp.eq.s32.totalorder %v257, %v612
      %vm707 = vcmp.eq.s32.totalorder %v257, %v615
      %vm708 = vcmp.eq.s32.totalorder %v257, %v618
      %vm709 = vcmp.eq.s32.totalorder %v257, %v621
      %vm710 = vcmp.eq.s32.totalorder %v257, %v624
      %vm711 = vcmp.eq.s32.totalorder %v257, %v627
      %vm712 = vcmp.eq.s32.totalorder %v257, %v630
      %vm713 = vcmp.eq.s32.totalorder %v257, %v633
      %vm714 = vcmp.eq.s32.totalorder %v257, %v636
      %vm715 = vcmp.eq.s32.totalorder %v257, %v639
      %vm716 = vcmp.eq.s32.totalorder %v257, %v642
      %vm717 = vcmp.eq.s32.totalorder %v257, %v645
      %vm718 = vcmp.eq.s32.totalorder %v257, %v648
      %vm719 = vcmp.eq.s32.totalorder %v257, %v651
      %vm720 = vcmp.eq.s32.totalorder %v257, %v654
      %vm721 = vcmp.eq.s32.totalorder %v257, %v657
      %vm722 = vcmp.eq.s32.totalorder %v257, %v660
      %vm723 = vcmp.eq.s32.totalorder %v257, %v663
      %vm724 = vcmp.eq.s32.totalorder %v257, %v666
      %vm725 = vcmp.eq.s32.totalorder %v257, %v669
      %vm726 = vcmp.eq.s32.totalorder %v257, %v672
      %vm727 = vcmp.eq.s32.totalorder %v257, %v675
      %vm728 = vcmp.eq.s32.totalorder %v257, %v678
      %vm729 = vcmp.eq.s32.totalorder %v257, %v681
      %vm730 = vcmp.eq.s32.totalorder %v257, %v684
      %vm731 = vcmp.eq.s32.totalorder %v257, %v687
      %vm732 = vcmp.eq.s32.totalorder %v257, %v690
      %vm733 = vcmp.eq.s32.totalorder %v257, %v693
      %vm734 = vcmp.eq.s32.totalorder %v257, %v696
      %vm735 = vcmp.eq.s32.totalorder %v257, %v699
      %vm736 = vcmp.eq.s32.totalorder %v257, %v702
      %vm737 = vcmp.eq.s32.totalorder %v257, %v705
      %v738 = vsel %vm706, 1, 0
      %v739 = vsel %vm707, 1, 0
      %v740 = vsel %vm708, 1, 0
      %v741 = vsel %vm709, 1, 0
      %v742 = vsel %vm710, 1, 0
      %v743 = vsel %vm711, 1, 0
      %v744 = vsel %vm712, 1, 0
      %v745 = vsel %vm713, 1, 0
      %v746 = vsel %vm714, 1, 0
      %v747 = vsel %vm715, 1, 0
      %v748 = vsel %vm716, 1, 0
      %v749 = vsel %vm717, 1, 0
      %v750 = vsel %vm718, 1, 0
      %v751 = vsel %vm719, 1, 0
      %v752 = vsel %vm720, 1, 0
      %v753 = vsel %vm721, 1, 0
      %v754 = vsel %vm722, 1, 0
      %v755 = vsel %vm723, 1, 0
      %v756 = vsel %vm724, 1, 0
      %v757 = vsel %vm725, 1, 0
      %v758 = vsel %vm726, 1, 0
      %v759 = vsel %vm727, 1, 0
      %v760 = vsel %vm728, 1, 0
      %v761 = vsel %vm729, 1, 0
      %v762 = vsel %vm730, 1, 0
      %v763 = vsel %vm731, 1, 0
      %v764 = vsel %vm732, 1, 0
      %v765 = vsel %vm733, 1, 0
      %v766 = vsel %vm734, 1, 0
      %v767 = vsel %vm735, 1, 0
      %v768 = vsel %vm736, 1, 0
      %v769 = vsel %vm737, 1, 0
      %v770 = vadd.s32 %v578, %v738
      %v771 = vadd.s32 %v579, %v739
      %v772 = vadd.s32 %v580, %v740
      %v773 = vadd.s32 %v581, %v741
      %v774 = vadd.s32 %v582, %v742
      %v775 = vadd.s32 %v583, %v743
      %v776 = vadd.s32 %v584, %v744
      %v777 = vadd.s32 %v585, %v745
      %v778 = vadd.s32 %v586, %v746
      %v779 = vadd.s32 %v587, %v747
      %v780 = vadd.s32 %v588, %v748
      %v781 = vadd.s32 %v589, %v749
      %v782 = vadd.s32 %v590, %v750
      %v783 = vadd.s32 %v591, %v751
      %v784 = vadd.s32 %v592, %v752
      %v785 = vadd.s32 %v593, %v753
      %v786 = vadd.s32 %v594, %v754
      %v787 = vadd.s32 %v595, %v755
      %v788 = vadd.s32 %v596, %v756
      %v789 = vadd.s32 %v597, %v757
      %v790 = vadd.s32 %v598, %v758
      %v791 = vadd.s32 %v599, %v759
      %v792 = vadd.s32 %v600, %v760
      %v793 = vadd.s32 %v601, %v761
      %v794 = vadd.s32 %v602, %v762
      %v795 = vadd.s32 %v603, %v763
      %v796 = vadd.s32 %v604, %v764
      %v797 = vadd.s32 %v605, %v765
      %v798 = vadd.s32 %v606, %v766
      %v799 = vadd.s32 %v607, %v767
      %v800 = vadd.s32 %v608, %v768
      %v801 = vadd.s32 %v609, %v769
      %802 = vset.pattern.permute.xlu0 3
      %803 = vperm.xlu0 %802, %v224
      %v804 = vpop.permute.xlu0 %803
      %805 = vset.pattern.permute.xlu0 3
      %806 = vperm.xlu0 %805, %v225
      %v807 = vpop.permute.xlu0 %806
      %808 = vset.pattern.permute.xlu0 3
      %809 = vperm.xlu0 %808, %v226
      %v810 = vpop.permute.xlu0 %809
      %811 = vset.pattern.permute.xlu0 3
      %812 = vperm.xlu0 %811, %v227
      %v813 = vpop.permute.xlu0 %812
      %814 = vset.pattern.permute.xlu0 3
      %815 = vperm.xlu0 %814, %v228
      %v816 = vpop.permute.xlu0 %815
      %817 = vset.pattern.permute.xlu0 3
      %818 = vperm.xlu0 %817, %v229
      %v819 = vpop.permute.xlu0 %818
      %820 = vset.pattern.permute.xlu0 3
      %821 = vperm.xlu0 %820, %v230
      %v822 = vpop.permute.xlu0 %821
      %823 = vset.pattern.permute.xlu0 3
      %824 = vperm.xlu0 %823, %v231
      %v825 = vpop.permute.xlu0 %824
      %826 = vset.pattern.permute.xlu0 3
      %827 = vperm.xlu0 %826, %v232
      %v828 = vpop.permute.xlu0 %827
      %829 = vset.pattern.permute.xlu0 3
      %830 = vperm.xlu0 %829, %v233
      %v831 = vpop.permute.xlu0 %830
      %832 = vset.pattern.permute.xlu0 3
      %833 = vperm.xlu0 %832, %v234
      %v834 = vpop.permute.xlu0 %833
      %835 = vset.pattern.permute.xlu0 3
      %836 = vperm.xlu0 %835, %v235
      %v837 = vpop.permute.xlu0 %836
      %838 = vset.pattern.permute.xlu0 3
      %839 = vperm.xlu0 %838, %v236
      %v840 = vpop.permute.xlu0 %839
      %841 = vset.pattern.permute.xlu0 3
      %842 = vperm.xlu0 %841, %v237
      %v843 = vpop.permute.xlu0 %842
      %844 = vset.pattern.permute.xlu0 3
      %845 = vperm.xlu0 %844, %v238
      %v846 = vpop.permute.xlu0 %845
      %847 = vset.pattern.permute.xlu0 3
      %848 = vperm.xlu0 %847, %v239
      %v849 = vpop.permute.xlu0 %848
      %850 = vset.pattern.permute.xlu0 3
      %851 = vperm.xlu0 %850, %v240
      %v852 = vpop.permute.xlu0 %851
      %853 = vset.pattern.permute.xlu0 3
      %854 = vperm.xlu0 %853, %v241
      %v855 = vpop.permute.xlu0 %854
      %856 = vset.pattern.permute.xlu0 3
      %857 = vperm.xlu0 %856, %v242
      %v858 = vpop.permute.xlu0 %857
      %859 = vset.pattern.permute.xlu0 3
      %860 = vperm.xlu0 %859, %v243
      %v861 = vpop.permute.xlu0 %860
      %862 = vset.pattern.permute.xlu0 3
      %863 = vperm.xlu0 %862, %v244
      %v864 = vpop.permute.xlu0 %863
      %865 = vset.pattern.permute.xlu0 3
      %866 = vperm.xlu0 %865, %v245
      %v867 = vpop.permute.xlu0 %866
      %868 = vset.pattern.permute.xlu0 3
      %869 = vperm.xlu0 %868, %v246
      %v870 = vpop.permute.xlu0 %869
      %871 = vset.pattern.permute.xlu0 3
      %872 = vperm.xlu0 %871, %v247
      %v873 = vpop.permute.xlu0 %872
      %874 = vset.pattern.permute.xlu0 3
      %875 = vperm.xlu0 %874, %v248
      %v876 = vpop.permute.xlu0 %875
      %877 = vset.pattern.permute.xlu0 3
      %878 = vperm.xlu0 %877, %v249
      %v879 = vpop.permute.xlu0 %878
      %880 = vset.pattern.permute.xlu0 3
      %881 = vperm.xlu0 %880, %v250
      %v882 = vpop.permute.xlu0 %881
      %883 = vset.pattern.permute.xlu0 3
      %884 = vperm.xlu0 %883, %v251
      %v885 = vpop.permute.xlu0 %884
      %886 = vset.pattern.permute.xlu0 3
      %887 = vperm.xlu0 %886, %v252
      %v888 = vpop.permute.xlu0 %887
      %889 = vset.pattern.permute.xlu0 3
      %890 = vperm.xlu0 %889, %v253
      %v891 = vpop.permute.xlu0 %890
      %892 = vset.pattern.permute.xlu0 3
      %893 = vperm.xlu0 %892, %v254
      %v894 = vpop.permute.xlu0 %893
      %895 = vset.pattern.permute.xlu0 3
      %896 = vperm.xlu0 %895, %v255
      %v897 = vpop.permute.xlu0 %896
      %vm898 = vcmp.eq.s32.totalorder %v257, %v804
      %vm899 = vcmp.eq.s32.totalorder %v257, %v807
      %vm900 = vcmp.eq.s32.totalorder %v257, %v810
      %vm901 = vcmp.eq.s32.totalorder %v257, %v813
      %vm902 = vcmp.eq.s32.totalorder %v257, %v816
      %vm903 = vcmp.eq.s32.totalorder %v257, %v819
      %vm904 = vcmp.eq.s32.totalorder %v257, %v822
      %vm905 = vcmp.eq.s32.totalorder %v257, %v825
      %vm906 = vcmp.eq.s32.totalorder %v257, %v828
      %vm907 = vcmp.eq.s32.totalorder %v257, %v831
      %vm908 = vcmp.eq.s32.totalorder %v257, %v834
      %vm909 = vcmp.eq.s32.totalorder %v257, %v837
      %vm910 = vcmp.eq.s32.totalorder %v257, %v840
      %vm911 = vcmp.eq.s32.totalorder %v257, %v843
      %vm912 = vcmp.eq.s32.totalorder %v257, %v846
      %vm913 = vcmp.eq.s32.totalorder %v257, %v849
      %vm914 = vcmp.eq.s32.totalorder %v257, %v852
      %vm915 = vcmp.eq.s32.totalorder %v257, %v855
      %vm916 = vcmp.eq.s32.totalorder %v257, %v858
      %vm917 = vcmp.eq.s32.totalorder %v257, %v861
      %vm918 = vcmp.eq.s32.totalorder %v257, %v864
      %vm919 = vcmp.eq.s32.totalorder %v257, %v867
      %vm920 = vcmp.eq.s32.totalorder %v257, %v870
      %vm921 = vcmp.eq.s32.totalorder %v257, %v873
      %vm922 = vcmp.eq.s32.totalorder %v257, %v876
      %vm923 = vcmp.eq.s32.totalorder %v257, %v879
      %vm924 = vcmp.eq.s32.totalorder %v257, %v882
      %vm925 = vcmp.eq.s32.totalorder %v257, %v885
      %vm926 = vcmp.eq.s32.totalorder %v257, %v888
      %vm927 = vcmp.eq.s32.totalorder %v257, %v891
      %vm928 = vcmp.eq.s32.totalorder %v257, %v894
      %vm929 = vcmp.eq.s32.totalorder %v257, %v897
      %v930 = vsel %vm898, 1, 0
      %v931 = vsel %vm899, 1, 0
      %v932 = vsel %vm900, 1, 0
      %v933 = vsel %vm901, 1, 0
      %v934 = vsel %vm902, 1, 0
      %v935 = vsel %vm903, 1, 0
      %v936 = vsel %vm904, 1, 0
      %v937 = vsel %vm905, 1, 0
      %v938 = vsel %vm906, 1, 0
      %v939 = vsel %vm907, 1, 0
      %v940 = vsel %vm908, 1, 0
      %v941 = vsel %vm909, 1, 0
      %v942 = vsel %vm910, 1, 0
      %v943 = vsel %vm911, 1, 0
      %v944 = vsel %vm912, 1, 0
      %v945 = vsel %vm913, 1, 0
      %v946 = vsel %vm914, 1, 0
      %v947 = vsel %vm915, 1, 0
      %v948 = vsel %vm916, 1, 0
      %v949 = vsel %vm917, 1, 0
      %v950 = vsel %vm918, 1, 0
      %v951 = vsel %vm919, 1, 0
      %v952 = vsel %vm920, 1, 0
      %v953 = vsel %vm921, 1, 0
      %v954 = vsel %vm922, 1, 0
      %v955 = vsel %vm923, 1, 0
      %v956 = vsel %vm924, 1, 0
      %v957 = vsel %vm925, 1, 0
      %v958 = vsel %vm926, 1, 0
      %v959 = vsel %vm927, 1, 0
      %v960 = vsel %vm928, 1, 0
      %v961 = vsel %vm929, 1, 0
      %v962 = vadd.s32 %v770, %v930
      %v963 = vadd.s32 %v771, %v931
      %v964 = vadd.s32 %v772, %v932
      %v965 = vadd.s32 %v773, %v933
      %v966 = vadd.s32 %v774, %v934
      %v967 = vadd.s32 %v775, %v935
      %v968 = vadd.s32 %v776, %v936
      %v969 = vadd.s32 %v777, %v937
      %v970 = vadd.s32 %v778, %v938
      %v971 = vadd.s32 %v779, %v939
      %v972 = vadd.s32 %v780, %v940
      %v973 = vadd.s32 %v781, %v941
      %v974 = vadd.s32 %v782, %v942
      %v975 = vadd.s32 %v783, %v943
      %v976 = vadd.s32 %v784, %v944
      %v977 = vadd.s32 %v785, %v945
      %v978 = vadd.s32 %v786, %v946
      %v979 = vadd.s32 %v787, %v947
      %v980 = vadd.s32 %v788, %v948
      %v981 = vadd.s32 %v789, %v949
      %v982 = vadd.s32 %v790, %v950
      %v983 = vadd.s32 %v791, %v951
      %v984 = vadd.s32 %v792, %v952
      %v985 = vadd.s32 %v793, %v953
      %v986 = vadd.s32 %v794, %v954
      %v987 = vadd.s32 %v795, %v955
      %v988 = vadd.s32 %v796, %v956
      %v989 = vadd.s32 %v797, %v957
      %v990 = vadd.s32 %v798, %v958
      %v991 = vadd.s32 %v799, %v959
      %v992 = vadd.s32 %v800, %v960
      %v993 = vadd.s32 %v801, %v961
      %994 = vset.pattern.permute.xlu0 4
      %995 = vperm.xlu0 %994, %v224
      %v996 = vpop.permute.xlu0 %995
      %997 = vset.pattern.permute.xlu0 4
      %998 = vperm.xlu0 %997, %v225
      %v999 = vpop.permute.xlu0 %998
      %1000 = vset.pattern.permute.xlu0 4
      %1001 = vperm.xlu0 %1000, %v226
      %v1002 = vpop.permute.xlu0 %1001
      %1003 = vset.pattern.permute.xlu0 4
      %1004 = vperm.xlu0 %1003, %v227
      %v1005 = vpop.permute.xlu0 %1004
      %1006 = vset.pattern.permute.xlu0 4
      %1007 = vperm.xlu0 %1006, %v228
      %v1008 = vpop.permute.xlu0 %1007
      %1009 = vset.pattern.permute.xlu0 4
      %1010 = vperm.xlu0 %1009, %v229
      %v1011 = vpop.permute.xlu0 %1010
      %1012 = vset.pattern.permute.xlu0 4
      %1013 = vperm.xlu0 %1012, %v230
      %v1014 = vpop.permute.xlu0 %1013
      %1015 = vset.pattern.permute.xlu0 4
      %1016 = vperm.xlu0 %1015, %v231
      %v1017 = vpop.permute.xlu0 %1016
      %1018 = vset.pattern.permute.xlu0 4
      %1019 = vperm.xlu0 %1018, %v232
      %v1020 = vpop.permute.xlu0 %1019
      %1021 = vset.pattern.permute.xlu0 4
      %1022 = vperm.xlu0 %1021, %v233
      %v1023 = vpop.permute.xlu0 %1022
      %1024 = vset.pattern.permute.xlu0 4
      %1025 = vperm.xlu0 %1024, %v234
      %v1026 = vpop.permute.xlu0 %1025
      %1027 = vset.pattern.permute.xlu0 4
      %1028 = vperm.xlu0 %1027, %v235
      %v1029 = vpop.permute.xlu0 %1028
      %1030 = vset.pattern.permute.xlu0 4
      %1031 = vperm.xlu0 %1030, %v236
      %v1032 = vpop.permute.xlu0 %1031
      %1033 = vset.pattern.permute.xlu0 4
      %1034 = vperm.xlu0 %1033, %v237
      %v1035 = vpop.permute.xlu0 %1034
      %1036 = vset.pattern.permute.xlu0 4
      %1037 = vperm.xlu0 %1036, %v238
      %v1038 = vpop.permute.xlu0 %1037
      %1039 = vset.pattern.permute.xlu0 4
      %1040 = vperm.xlu0 %1039, %v239
      %v1041 = vpop.permute.xlu0 %1040
      %1042 = vset.pattern.permute.xlu0 4
      %1043 = vperm.xlu0 %1042, %v240
      %v1044 = vpop.permute.xlu0 %1043
      %1045 = vset.pattern.permute.xlu0 4
      %1046 = vperm.xlu0 %1045, %v241
      %v1047 = vpop.permute.xlu0 %1046
      %1048 = vset.pattern.permute.xlu0 4
      %1049 = vperm.xlu0 %1048, %v242
      %v1050 = vpop.permute.xlu0 %1049
      %1051 = vset.pattern.permute.xlu0 4
      %1052 = vperm.xlu0 %1051, %v243
      %v1053 = vpop.permute.xlu0 %1052
      %1054 = vset.pattern.permute.xlu0 4
      %1055 = vperm.xlu0 %1054, %v244
      %v1056 = vpop.permute.xlu0 %1055
      %1057 = vset.pattern.permute.xlu0 4
      %1058 = vperm.xlu0 %1057, %v245
      %v1059 = vpop.permute.xlu0 %1058
      %1060 = vset.pattern.permute.xlu0 4
      %1061 = vperm.xlu0 %1060, %v246
      %v1062 = vpop.permute.xlu0 %1061
      %1063 = vset.pattern.permute.xlu0 4
      %1064 = vperm.xlu0 %1063, %v247
      %v1065 = vpop.permute.xlu0 %1064
      %1066 = vset.pattern.permute.xlu0 4
      %1067 = vperm.xlu0 %1066, %v248
      %v1068 = vpop.permute.xlu0 %1067
      %1069 = vset.pattern.permute.xlu0 4
      %1070 = vperm.xlu0 %1069, %v249
      %v1071 = vpop.permute.xlu0 %1070
      %1072 = vset.pattern.permute.xlu0 4
      %1073 = vperm.xlu0 %1072, %v250
      %v1074 = vpop.permute.xlu0 %1073
      %1075 = vset.pattern.permute.xlu0 4
      %1076 = vperm.xlu0 %1075, %v251
      %v1077 = vpop.permute.xlu0 %1076
      %1078 = vset.pattern.permute.xlu0 4
      %1079 = vperm.xlu0 %1078, %v252
      %v1080 = vpop.permute.xlu0 %1079
      %1081 = vset.pattern.permute.xlu0 4
      %1082 = vperm.xlu0 %1081, %v253
      %v1083 = vpop.permute.xlu0 %1082
      %1084 = vset.pattern.permute.xlu0 4
      %1085 = vperm.xlu0 %1084, %v254
      %v1086 = vpop.permute.xlu0 %1085
      %1087 = vset.pattern.permute.xlu0 4
      %1088 = vperm.xlu0 %1087, %v255
      %v1089 = vpop.permute.xlu0 %1088
      %vm1090 = vcmp.eq.s32.totalorder %v257, %v996
      %vm1091 = vcmp.eq.s32.totalorder %v257, %v999
      %vm1092 = vcmp.eq.s32.totalorder %v257, %v1002
      %vm1093 = vcmp.eq.s32.totalorder %v257, %v1005
      %vm1094 = vcmp.eq.s32.totalorder %v257, %v1008
      %vm1095 = vcmp.eq.s32.totalorder %v257, %v1011
      %vm1096 = vcmp.eq.s32.totalorder %v257, %v1014
      %vm1097 = vcmp.eq.s32.totalorder %v257, %v1017
      %vm1098 = vcmp.eq.s32.totalorder %v257, %v1020
      %vm1099 = vcmp.eq.s32.totalorder %v257, %v1023
      %vm1100 = vcmp.eq.s32.totalorder %v257, %v1026
      %vm1101 = vcmp.eq.s32.totalorder %v257, %v1029
      %vm1102 = vcmp.eq.s32.totalorder %v257, %v1032
      %vm1103 = vcmp.eq.s32.totalorder %v257, %v1035
      %vm1104 = vcmp.eq.s32.totalorder %v257, %v1038
      %vm1105 = vcmp.eq.s32.totalorder %v257, %v1041
      %vm1106 = vcmp.eq.s32.totalorder %v257, %v1044
      %vm1107 = vcmp.eq.s32.totalorder %v257, %v1047
      %vm1108 = vcmp.eq.s32.totalorder %v257, %v1050
      %vm1109 = vcmp.eq.s32.totalorder %v257, %v1053
      %vm1110 = vcmp.eq.s32.totalorder %v257, %v1056
      %vm1111 = vcmp.eq.s32.totalorder %v257, %v1059
      %vm1112 = vcmp.eq.s32.totalorder %v257, %v1062
      %vm1113 = vcmp.eq.s32.totalorder %v257, %v1065
      %vm1114 = vcmp.eq.s32.totalorder %v257, %v1068
      %vm1115 = vcmp.eq.s32.totalorder %v257, %v1071
      %vm1116 = vcmp.eq.s32.totalorder %v257, %v1074
      %vm1117 = vcmp.eq.s32.totalorder %v257, %v1077
      %vm1118 = vcmp.eq.s32.totalorder %v257, %v1080
      %vm1119 = vcmp.eq.s32.totalorder %v257, %v1083
      %vm1120 = vcmp.eq.s32.totalorder %v257, %v1086
      %vm1121 = vcmp.eq.s32.totalorder %v257, %v1089
      %v1122 = vsel %vm1090, 1, 0
      %v1123 = vsel %vm1091, 1, 0
      %v1124 = vsel %vm1092, 1, 0
      %v1125 = vsel %vm1093, 1, 0
      %v1126 = vsel %vm1094, 1, 0
      %v1127 = vsel %vm1095, 1, 0
      %v1128 = vsel %vm1096, 1, 0
      %v1129 = vsel %vm1097, 1, 0
      %v1130 = vsel %vm1098, 1, 0
      %v1131 = vsel %vm1099, 1, 0
      %v1132 = vsel %vm1100, 1, 0
      %v1133 = vsel %vm1101, 1, 0
      %v1134 = vsel %vm1102, 1, 0
      %v1135 = vsel %vm1103, 1, 0
      %v1136 = vsel %vm1104, 1, 0
      %v1137 = vsel %vm1105, 1, 0
      %v1138 = vsel %vm1106, 1, 0
      %v1139 = vsel %vm1107, 1, 0
      %v1140 = vsel %vm1108, 1, 0
      %v1141 = vsel %vm1109, 1, 0
      %v1142 = vsel %vm1110, 1, 0
      %v1143 = vsel %vm1111, 1, 0
      %v1144 = vsel %vm1112, 1, 0
      %v1145 = vsel %vm1113, 1, 0
      %v1146 = vsel %vm1114, 1, 0
      %v1147 = vsel %vm1115, 1, 0
      %v1148 = vsel %vm1116, 1, 0
      %v1149 = vsel %vm1117, 1, 0
      %v1150 = vsel %vm1118, 1, 0
      %v1151 = vsel %vm1119, 1, 0
      %v1152 = vsel %vm1120, 1, 0
      %v1153 = vsel %vm1121, 1, 0
      %v1154 = vadd.s32 %v962, %v1122
      %v1155 = vadd.s32 %v963, %v1123
      %v1156 = vadd.s32 %v964, %v1124
      %v1157 = vadd.s32 %v965, %v1125
      %v1158 = vadd.s32 %v966, %v1126
      %v1159 = vadd.s32 %v967, %v1127
      %v1160 = vadd.s32 %v968, %v1128
      %v1161 = vadd.s32 %v969, %v1129
      %v1162 = vadd.s32 %v970, %v1130
      %v1163 = vadd.s32 %v971, %v1131
      %v1164 = vadd.s32 %v972, %v1132
      %v1165 = vadd.s32 %v973, %v1133
      %v1166 = vadd.s32 %v974, %v1134
      %v1167 = vadd.s32 %v975, %v1135
      %v1168 = vadd.s32 %v976, %v1136
      %v1169 = vadd.s32 %v977, %v1137
      %v1170 = vadd.s32 %v978, %v1138
      %v1171 = vadd.s32 %v979, %v1139
      %v1172 = vadd.s32 %v980, %v1140
      %v1173 = vadd.s32 %v981, %v1141
      %v1174 = vadd.s32 %v982, %v1142
      %v1175 = vadd.s32 %v983, %v1143
      %v1176 = vadd.s32 %v984, %v1144
      %v1177 = vadd.s32 %v985, %v1145
      %v1178 = vadd.s32 %v986, %v1146
      %v1179 = vadd.s32 %v987, %v1147
      %v1180 = vadd.s32 %v988, %v1148
      %v1181 = vadd.s32 %v989, %v1149
      %v1182 = vadd.s32 %v990, %v1150
      %v1183 = vadd.s32 %v991, %v1151
      %v1184 = vadd.s32 %v992, %v1152
      %v1185 = vadd.s32 %v993, %v1153
      %1186 = vset.pattern.permute.xlu0 5
      %1187 = vperm.xlu0 %1186, %v224
      %v1188 = vpop.permute.xlu0 %1187
      %1189 = vset.pattern.permute.xlu0 5
      %1190 = vperm.xlu0 %1189, %v225
      %v1191 = vpop.permute.xlu0 %1190
      %1192 = vset.pattern.permute.xlu0 5
      %1193 = vperm.xlu0 %1192, %v226
      %v1194 = vpop.permute.xlu0 %1193
      %1195 = vset.pattern.permute.xlu0 5
      %1196 = vperm.xlu0 %1195, %v227
      %v1197 = vpop.permute.xlu0 %1196
      %1198 = vset.pattern.permute.xlu0 5
      %1199 = vperm.xlu0 %1198, %v228
      %v1200 = vpop.permute.xlu0 %1199
      %1201 = vset.pattern.permute.xlu0 5
      %1202 = vperm.xlu0 %1201, %v229
      %v1203 = vpop.permute.xlu0 %1202
      %1204 = vset.pattern.permute.xlu0 5
      %1205 = vperm.xlu0 %1204, %v230
      %v1206 = vpop.permute.xlu0 %1205
      %1207 = vset.pattern.permute.xlu0 5
      %1208 = vperm.xlu0 %1207, %v231
      %v1209 = vpop.permute.xlu0 %1208
      %1210 = vset.pattern.permute.xlu0 5
      %1211 = vperm.xlu0 %1210, %v232
      %v1212 = vpop.permute.xlu0 %1211
      %1213 = vset.pattern.permute.xlu0 5
      %1214 = vperm.xlu0 %1213, %v233
      %v1215 = vpop.permute.xlu0 %1214
      %1216 = vset.pattern.permute.xlu0 5
      %1217 = vperm.xlu0 %1216, %v234
      %v1218 = vpop.permute.xlu0 %1217
      %1219 = vset.pattern.permute.xlu0 5
      %1220 = vperm.xlu0 %1219, %v235
      %v1221 = vpop.permute.xlu0 %1220
      %1222 = vset.pattern.permute.xlu0 5
      %1223 = vperm.xlu0 %1222, %v236
      %v1224 = vpop.permute.xlu0 %1223
      %1225 = vset.pattern.permute.xlu0 5
      %1226 = vperm.xlu0 %1225, %v237
      %v1227 = vpop.permute.xlu0 %1226
      %1228 = vset.pattern.permute.xlu0 5
      %1229 = vperm.xlu0 %1228, %v238
      %v1230 = vpop.permute.xlu0 %1229
      %1231 = vset.pattern.permute.xlu0 5
      %1232 = vperm.xlu0 %1231, %v239
      %v1233 = vpop.permute.xlu0 %1232
      %1234 = vset.pattern.permute.xlu0 5
      %1235 = vperm.xlu0 %1234, %v240
      %v1236 = vpop.permute.xlu0 %1235
      %1237 = vset.pattern.permute.xlu0 5
      %1238 = vperm.xlu0 %1237, %v241
      %v1239 = vpop.permute.xlu0 %1238
      %1240 = vset.pattern.permute.xlu0 5
      %1241 = vperm.xlu0 %1240, %v242
      %v1242 = vpop.permute.xlu0 %1241
      %1243 = vset.pattern.permute.xlu0 5
      %1244 = vperm.xlu0 %1243, %v243
      %v1245 = vpop.permute.xlu0 %1244
      %1246 = vset.pattern.permute.xlu0 5
      %1247 = vperm.xlu0 %1246, %v244
      %v1248 = vpop.permute.xlu0 %1247
      %1249 = vset.pattern.permute.xlu0 5
      %1250 = vperm.xlu0 %1249, %v245
      %v1251 = vpop.permute.xlu0 %1250
      %1252 = vset.pattern.permute.xlu0 5
      %1253 = vperm.xlu0 %1252, %v246
      %v1254 = vpop.permute.xlu0 %1253
      %1255 = vset.pattern.permute.xlu0 5
      %1256 = vperm.xlu0 %1255, %v247
      %v1257 = vpop.permute.xlu0 %1256
      %1258 = vset.pattern.permute.xlu0 5
      %1259 = vperm.xlu0 %1258, %v248
      %v1260 = vpop.permute.xlu0 %1259
      %1261 = vset.pattern.permute.xlu0 5
      %1262 = vperm.xlu0 %1261, %v249
      %v1263 = vpop.permute.xlu0 %1262
      %1264 = vset.pattern.permute.xlu0 5
      %1265 = vperm.xlu0 %1264, %v250
      %v1266 = vpop.permute.xlu0 %1265
      %1267 = vset.pattern.permute.xlu0 5
      %1268 = vperm.xlu0 %1267, %v251
      %v1269 = vpop.permute.xlu0 %1268
      %1270 = vset.pattern.permute.xlu0 5
      %1271 = vperm.xlu0 %1270, %v252
      %v1272 = vpop.permute.xlu0 %1271
      %1273 = vset.pattern.permute.xlu0 5
      %1274 = vperm.xlu0 %1273, %v253
      %v1275 = vpop.permute.xlu0 %1274
      %1276 = vset.pattern.permute.xlu0 5
      %1277 = vperm.xlu0 %1276, %v254
      %v1278 = vpop.permute.xlu0 %1277
      %1279 = vset.pattern.permute.xlu0 5
      %1280 = vperm.xlu0 %1279, %v255
      %v1281 = vpop.permute.xlu0 %1280
      %vm1282 = vcmp.eq.s32.totalorder %v257, %v1188
      %vm1283 = vcmp.eq.s32.totalorder %v257, %v1191
      %vm1284 = vcmp.eq.s32.totalorder %v257, %v1194
      %vm1285 = vcmp.eq.s32.totalorder %v257, %v1197
      %vm1286 = vcmp.eq.s32.totalorder %v257, %v1200
      %vm1287 = vcmp.eq.s32.totalorder %v257, %v1203
      %vm1288 = vcmp.eq.s32.totalorder %v257, %v1206
      %vm1289 = vcmp.eq.s32.totalorder %v257, %v1209
      %vm1290 = vcmp.eq.s32.totalorder %v257, %v1212
      %vm1291 = vcmp.eq.s32.totalorder %v257, %v1215
      %vm1292 = vcmp.eq.s32.totalorder %v257, %v1218
      %vm1293 = vcmp.eq.s32.totalorder %v257, %v1221
      %vm1294 = vcmp.eq.s32.totalorder %v257, %v1224
      %vm1295 = vcmp.eq.s32.totalorder %v257, %v1227
      %vm1296 = vcmp.eq.s32.totalorder %v257, %v1230
      %vm1297 = vcmp.eq.s32.totalorder %v257, %v1233
      %vm1298 = vcmp.eq.s32.totalorder %v257, %v1236
      %vm1299 = vcmp.eq.s32.totalorder %v257, %v1239
      %vm1300 = vcmp.eq.s32.totalorder %v257, %v1242
      %vm1301 = vcmp.eq.s32.totalorder %v257, %v1245
      %vm1302 = vcmp.eq.s32.totalorder %v257, %v1248
      %vm1303 = vcmp.eq.s32.totalorder %v257, %v1251
      %vm1304 = vcmp.eq.s32.totalorder %v257, %v1254
      %vm1305 = vcmp.eq.s32.totalorder %v257, %v1257
      %vm1306 = vcmp.eq.s32.totalorder %v257, %v1260
      %vm1307 = vcmp.eq.s32.totalorder %v257, %v1263
      %vm1308 = vcmp.eq.s32.totalorder %v257, %v1266
      %vm1309 = vcmp.eq.s32.totalorder %v257, %v1269
      %vm1310 = vcmp.eq.s32.totalorder %v257, %v1272
      %vm1311 = vcmp.eq.s32.totalorder %v257, %v1275
      %vm1312 = vcmp.eq.s32.totalorder %v257, %v1278
      %vm1313 = vcmp.eq.s32.totalorder %v257, %v1281
      %v1314 = vsel %vm1282, 1, 0
      %v1315 = vsel %vm1283, 1, 0
      %v1316 = vsel %vm1284, 1, 0
      %v1317 = vsel %vm1285, 1, 0
      %v1318 = vsel %vm1286, 1, 0
      %v1319 = vsel %vm1287, 1, 0
      %v1320 = vsel %vm1288, 1, 0
      %v1321 = vsel %vm1289, 1, 0
      %v1322 = vsel %vm1290, 1, 0
      %v1323 = vsel %vm1291, 1, 0
      %v1324 = vsel %vm1292, 1, 0
      %v1325 = vsel %vm1293, 1, 0
      %v1326 = vsel %vm1294, 1, 0
      %v1327 = vsel %vm1295, 1, 0
      %v1328 = vsel %vm1296, 1, 0
      %v1329 = vsel %vm1297, 1, 0
      %v1330 = vsel %vm1298, 1, 0
      %v1331 = vsel %vm1299, 1, 0
      %v1332 = vsel %vm1300, 1, 0
      %v1333 = vsel %vm1301, 1, 0
      %v1334 = vsel %vm1302, 1, 0
      %v1335 = vsel %vm1303, 1, 0
      %v1336 = vsel %vm1304, 1, 0
      %v1337 = vsel %vm1305, 1, 0
      %v1338 = vsel %vm1306, 1, 0
      %v1339 = vsel %vm1307, 1, 0
      %v1340 = vsel %vm1308, 1, 0
      %v1341 = vsel %vm1309, 1, 0
      %v1342 = vsel %vm1310, 1, 0
      %v1343 = vsel %vm1311, 1, 0
      %v1344 = vsel %vm1312, 1, 0
      %v1345 = vsel %vm1313, 1, 0
      %v1346 = vadd.s32 %v1154, %v1314
      %v1347 = vadd.s32 %v1155, %v1315
      %v1348 = vadd.s32 %v1156, %v1316
      %v1349 = vadd.s32 %v1157, %v1317
      %v1350 = vadd.s32 %v1158, %v1318
      %v1351 = vadd.s32 %v1159, %v1319
      %v1352 = vadd.s32 %v1160, %v1320
      %v1353 = vadd.s32 %v1161, %v1321
      %v1354 = vadd.s32 %v1162, %v1322
      %v1355 = vadd.s32 %v1163, %v1323
      %v1356 = vadd.s32 %v1164, %v1324
      %v1357 = vadd.s32 %v1165, %v1325
      %v1358 = vadd.s32 %v1166, %v1326
      %v1359 = vadd.s32 %v1167, %v1327
      %v1360 = vadd.s32 %v1168, %v1328
      %v1361 = vadd.s32 %v1169, %v1329
      %v1362 = vadd.s32 %v1170, %v1330
      %v1363 = vadd.s32 %v1171, %v1331
      %v1364 = vadd.s32 %v1172, %v1332
      %v1365 = vadd.s32 %v1173, %v1333
      %v1366 = vadd.s32 %v1174, %v1334
      %v1367 = vadd.s32 %v1175, %v1335
      %v1368 = vadd.s32 %v1176, %v1336
      %v1369 = vadd.s32 %v1177, %v1337
      %v1370 = vadd.s32 %v1178, %v1338
      %v1371 = vadd.s32 %v1179, %v1339
      %v1372 = vadd.s32 %v1180, %v1340
      %v1373 = vadd.s32 %v1181, %v1341
      %v1374 = vadd.s32 %v1182, %v1342
      %v1375 = vadd.s32 %v1183, %v1343
      %v1376 = vadd.s32 %v1184, %v1344
      %v1377 = vadd.s32 %v1185, %v1345
      %1378 = vset.pattern.permute.xlu0 6
      %1379 = vperm.xlu0 %1378, %v224
      %v1380 = vpop.permute.xlu0 %1379
      %1381 = vset.pattern.permute.xlu0 6
      %1382 = vperm.xlu0 %1381, %v225
      %v1383 = vpop.permute.xlu0 %1382
      %1384 = vset.pattern.permute.xlu0 6
      %1385 = vperm.xlu0 %1384, %v226
      %v1386 = vpop.permute.xlu0 %1385
      %1387 = vset.pattern.permute.xlu0 6
      %1388 = vperm.xlu0 %1387, %v227
      %v1389 = vpop.permute.xlu0 %1388
      %1390 = vset.pattern.permute.xlu0 6
      %1391 = vperm.xlu0 %1390, %v228
      %v1392 = vpop.permute.xlu0 %1391
      %1393 = vset.pattern.permute.xlu0 6
      %1394 = vperm.xlu0 %1393, %v229
      %v1395 = vpop.permute.xlu0 %1394
      %1396 = vset.pattern.permute.xlu0 6
      %1397 = vperm.xlu0 %1396, %v230
      %v1398 = vpop.permute.xlu0 %1397
      %1399 = vset.pattern.permute.xlu0 6
      %1400 = vperm.xlu0 %1399, %v231
      %v1401 = vpop.permute.xlu0 %1400
      %1402 = vset.pattern.permute.xlu0 6
      %1403 = vperm.xlu0 %1402, %v232
      %v1404 = vpop.permute.xlu0 %1403
      %1405 = vset.pattern.permute.xlu0 6
      %1406 = vperm.xlu0 %1405, %v233
      %v1407 = vpop.permute.xlu0 %1406
      %1408 = vset.pattern.permute.xlu0 6
      %1409 = vperm.xlu0 %1408, %v234
      %v1410 = vpop.permute.xlu0 %1409
      %1411 = vset.pattern.permute.xlu0 6
      %1412 = vperm.xlu0 %1411, %v235
      %v1413 = vpop.permute.xlu0 %1412
      %1414 = vset.pattern.permute.xlu0 6
      %1415 = vperm.xlu0 %1414, %v236
      %v1416 = vpop.permute.xlu0 %1415
      %1417 = vset.pattern.permute.xlu0 6
      %1418 = vperm.xlu0 %1417, %v237
      %v1419 = vpop.permute.xlu0 %1418
      %1420 = vset.pattern.permute.xlu0 6
      %1421 = vperm.xlu0 %1420, %v238
      %v1422 = vpop.permute.xlu0 %1421
      %1423 = vset.pattern.permute.xlu0 6
      %1424 = vperm.xlu0 %1423, %v239
      %v1425 = vpop.permute.xlu0 %1424
      %1426 = vset.pattern.permute.xlu0 6
      %1427 = vperm.xlu0 %1426, %v240
      %v1428 = vpop.permute.xlu0 %1427
      %1429 = vset.pattern.permute.xlu0 6
      %1430 = vperm.xlu0 %1429, %v241
      %v1431 = vpop.permute.xlu0 %1430
      %1432 = vset.pattern.permute.xlu0 6
      %1433 = vperm.xlu0 %1432, %v242
      %v1434 = vpop.permute.xlu0 %1433
      %1435 = vset.pattern.permute.xlu0 6
      %1436 = vperm.xlu0 %1435, %v243
      %v1437 = vpop.permute.xlu0 %1436
      %1438 = vset.pattern.permute.xlu0 6
      %1439 = vperm.xlu0 %1438, %v244
      %v1440 = vpop.permute.xlu0 %1439
      %1441 = vset.pattern.permute.xlu0 6
      %1442 = vperm.xlu0 %1441, %v245
      %v1443 = vpop.permute.xlu0 %1442
      %1444 = vset.pattern.permute.xlu0 6
      %1445 = vperm.xlu0 %1444, %v246
      %v1446 = vpop.permute.xlu0 %1445
      %1447 = vset.pattern.permute.xlu0 6
      %1448 = vperm.xlu0 %1447, %v247
      %v1449 = vpop.permute.xlu0 %1448
      %1450 = vset.pattern.permute.xlu0 6
      %1451 = vperm.xlu0 %1450, %v248
      %v1452 = vpop.permute.xlu0 %1451
      %1453 = vset.pattern.permute.xlu0 6
      %1454 = vperm.xlu0 %1453, %v249
      %v1455 = vpop.permute.xlu0 %1454
      %1456 = vset.pattern.permute.xlu0 6
      %1457 = vperm.xlu0 %1456, %v250
      %v1458 = vpop.permute.xlu0 %1457
      %1459 = vset.pattern.permute.xlu0 6
      %1460 = vperm.xlu0 %1459, %v251
      %v1461 = vpop.permute.xlu0 %1460
      %1462 = vset.pattern.permute.xlu0 6
      %1463 = vperm.xlu0 %1462, %v252
      %v1464 = vpop.permute.xlu0 %1463
      %1465 = vset.pattern.permute.xlu0 6
      %1466 = vperm.xlu0 %1465, %v253
      %v1467 = vpop.permute.xlu0 %1466
      %1468 = vset.pattern.permute.xlu0 6
      %1469 = vperm.xlu0 %1468, %v254
      %v1470 = vpop.permute.xlu0 %1469
      %1471 = vset.pattern.permute.xlu0 6
      %1472 = vperm.xlu0 %1471, %v255
      %v1473 = vpop.permute.xlu0 %1472
      %vm1474 = vcmp.eq.s32.totalorder %v257, %v1380
      %vm1475 = vcmp.eq.s32.totalorder %v257, %v1383
      %vm1476 = vcmp.eq.s32.totalorder %v257, %v1386
      %vm1477 = vcmp.eq.s32.totalorder %v257, %v1389
      %vm1478 = vcmp.eq.s32.totalorder %v257, %v1392
      %vm1479 = vcmp.eq.s32.totalorder %v257, %v1395
      %vm1480 = vcmp.eq.s32.totalorder %v257, %v1398
      %vm1481 = vcmp.eq.s32.totalorder %v257, %v1401
      %vm1482 = vcmp.eq.s32.totalorder %v257, %v1404
      %vm1483 = vcmp.eq.s32.totalorder %v257, %v1407
      %vm1484 = vcmp.eq.s32.totalorder %v257, %v1410
      %vm1485 = vcmp.eq.s32.totalorder %v257, %v1413
      %vm1486 = vcmp.eq.s32.totalorder %v257, %v1416
      %vm1487 = vcmp.eq.s32.totalorder %v257, %v1419
      %vm1488 = vcmp.eq.s32.totalorder %v257, %v1422
      %vm1489 = vcmp.eq.s32.totalorder %v257, %v1425
      %vm1490 = vcmp.eq.s32.totalorder %v257, %v1428
      %vm1491 = vcmp.eq.s32.totalorder %v257, %v1431
      %vm1492 = vcmp.eq.s32.totalorder %v257, %v1434
      %vm1493 = vcmp.eq.s32.totalorder %v257, %v1437
      %vm1494 = vcmp.eq.s32.totalorder %v257, %v1440
      %vm1495 = vcmp.eq.s32.totalorder %v257, %v1443
      %vm1496 = vcmp.eq.s32.totalorder %v257, %v1446
      %vm1497 = vcmp.eq.s32.totalorder %v257, %v1449
      %vm1498 = vcmp.eq.s32.totalorder %v257, %v1452
      %vm1499 = vcmp.eq.s32.totalorder %v257, %v1455
      %vm1500 = vcmp.eq.s32.totalorder %v257, %v1458
      %vm1501 = vcmp.eq.s32.totalorder %v257, %v1461
      %vm1502 = vcmp.eq.s32.totalorder %v257, %v1464
      %vm1503 = vcmp.eq.s32.totalorder %v257, %v1467
      %vm1504 = vcmp.eq.s32.totalorder %v257, %v1470
      %vm1505 = vcmp.eq.s32.totalorder %v257, %v1473
      %v1506 = vsel %vm1474, 1, 0
      %v1507 = vsel %vm1475, 1, 0
      %v1508 = vsel %vm1476, 1, 0
      %v1509 = vsel %vm1477, 1, 0
      %v1510 = vsel %vm1478, 1, 0
      %v1511 = vsel %vm1479, 1, 0
      %v1512 = vsel %vm1480, 1, 0
      %v1513 = vsel %vm1481, 1, 0
      %v1514 = vsel %vm1482, 1, 0
      %v1515 = vsel %vm1483, 1, 0
      %v1516 = vsel %vm1484, 1, 0
      %v1517 = vsel %vm1485, 1, 0
      %v1518 = vsel %vm1486, 1, 0
      %v1519 = vsel %vm1487, 1, 0
      %v1520 = vsel %vm1488, 1, 0
      %v1521 = vsel %vm1489, 1, 0
      %v1522 = vsel %vm1490, 1, 0
      %v1523 = vsel %vm1491, 1, 0
      %v1524 = vsel %vm1492, 1, 0
      %v1525 = vsel %vm1493, 1, 0
      %v1526 = vsel %vm1494, 1, 0
      %v1527 = vsel %vm1495, 1, 0
      %v1528 = vsel %vm1496, 1, 0
      %v1529 = vsel %vm1497, 1, 0
      %v1530 = vsel %vm1498, 1, 0
      %v1531 = vsel %vm1499, 1, 0
      %v1532 = vsel %vm1500, 1, 0
      %v1533 = vsel %vm1501, 1, 0
      %v1534 = vsel %vm1502, 1, 0
      %v1535 = vsel %vm1503, 1, 0
      %v1536 = vsel %vm1504, 1, 0
      %v1537 = vsel %vm1505, 1, 0
      %v1538 = vadd.s32 %v1346, %v1506
      %v1539 = vadd.s32 %v1347, %v1507
      %v1540 = vadd.s32 %v1348, %v1508
      %v1541 = vadd.s32 %v1349, %v1509
      %v1542 = vadd.s32 %v1350, %v1510
      %v1543 = vadd.s32 %v1351, %v1511
      %v1544 = vadd.s32 %v1352, %v1512
      %v1545 = vadd.s32 %v1353, %v1513
      %v1546 = vadd.s32 %v1354, %v1514
      %v1547 = vadd.s32 %v1355, %v1515
      %v1548 = vadd.s32 %v1356, %v1516
      %v1549 = vadd.s32 %v1357, %v1517
      %v1550 = vadd.s32 %v1358, %v1518
      %v1551 = vadd.s32 %v1359, %v1519
      %v1552 = vadd.s32 %v1360, %v1520
      %v1553 = vadd.s32 %v1361, %v1521
      %v1554 = vadd.s32 %v1362, %v1522
      %v1555 = vadd.s32 %v1363, %v1523
      %v1556 = vadd.s32 %v1364, %v1524
      %v1557 = vadd.s32 %v1365, %v1525
      %v1558 = vadd.s32 %v1366, %v1526
      %v1559 = vadd.s32 %v1367, %v1527
      %v1560 = vadd.s32 %v1368, %v1528
      %v1561 = vadd.s32 %v1369, %v1529
      %v1562 = vadd.s32 %v1370, %v1530
      %v1563 = vadd.s32 %v1371, %v1531
      %v1564 = vadd.s32 %v1372, %v1532
      %v1565 = vadd.s32 %v1373, %v1533
      %v1566 = vadd.s32 %v1374, %v1534
      %v1567 = vadd.s32 %v1375, %v1535
      %v1568 = vadd.s32 %v1376, %v1536
      %v1569 = vadd.s32 %v1377, %v1537
      %1570 = vset.pattern.permute.xlu0 7
      %1571 = vperm.xlu0 %1570, %v224
      %v1572 = vpop.permute.xlu0 %1571
      %1573 = vset.pattern.permute.xlu0 7
      %1574 = vperm.xlu0 %1573, %v225
      %v1575 = vpop.permute.xlu0 %1574
      %1576 = vset.pattern.permute.xlu0 7
      %1577 = vperm.xlu0 %1576, %v226
      %v1578 = vpop.permute.xlu0 %1577
      %1579 = vset.pattern.permute.xlu0 7
      %1580 = vperm.xlu0 %1579, %v227
      %v1581 = vpop.permute.xlu0 %1580
      %1582 = vset.pattern.permute.xlu0 7
      %1583 = vperm.xlu0 %1582, %v228
      %v1584 = vpop.permute.xlu0 %1583
      %1585 = vset.pattern.permute.xlu0 7
      %1586 = vperm.xlu0 %1585, %v229
      %v1587 = vpop.permute.xlu0 %1586
      %1588 = vset.pattern.permute.xlu0 7
      %1589 = vperm.xlu0 %1588, %v230
      %v1590 = vpop.permute.xlu0 %1589
      %1591 = vset.pattern.permute.xlu0 7
      %1592 = vperm.xlu0 %1591, %v231
      %v1593 = vpop.permute.xlu0 %1592
      %1594 = vset.pattern.permute.xlu0 7
      %1595 = vperm.xlu0 %1594, %v232
      %v1596 = vpop.permute.xlu0 %1595
      %1597 = vset.pattern.permute.xlu0 7
      %1598 = vperm.xlu0 %1597, %v233
      %v1599 = vpop.permute.xlu0 %1598
      %1600 = vset.pattern.permute.xlu0 7
      %1601 = vperm.xlu0 %1600, %v234
      %v1602 = vpop.permute.xlu0 %1601
      %1603 = vset.pattern.permute.xlu0 7
      %1604 = vperm.xlu0 %1603, %v235
      %v1605 = vpop.permute.xlu0 %1604
      %1606 = vset.pattern.permute.xlu0 7
      %1607 = vperm.xlu0 %1606, %v236
      %v1608 = vpop.permute.xlu0 %1607
      %1609 = vset.pattern.permute.xlu0 7
      %1610 = vperm.xlu0 %1609, %v237
      %v1611 = vpop.permute.xlu0 %1610
      %1612 = vset.pattern.permute.xlu0 7
      %1613 = vperm.xlu0 %1612, %v238
      %v1614 = vpop.permute.xlu0 %1613
      %1615 = vset.pattern.permute.xlu0 7
      %1616 = vperm.xlu0 %1615, %v239
      %v1617 = vpop.permute.xlu0 %1616
      %1618 = vset.pattern.permute.xlu0 7
      %1619 = vperm.xlu0 %1618, %v240
      %v1620 = vpop.permute.xlu0 %1619
      %1621 = vset.pattern.permute.xlu0 7
      %1622 = vperm.xlu0 %1621, %v241
      %v1623 = vpop.permute.xlu0 %1622
      %1624 = vset.pattern.permute.xlu0 7
      %1625 = vperm.xlu0 %1624, %v242
      %v1626 = vpop.permute.xlu0 %1625
      %1627 = vset.pattern.permute.xlu0 7
      %1628 = vperm.xlu0 %1627, %v243
      %v1629 = vpop.permute.xlu0 %1628
      %1630 = vset.pattern.permute.xlu0 7
      %1631 = vperm.xlu0 %1630, %v244
      %v1632 = vpop.permute.xlu0 %1631
      %1633 = vset.pattern.permute.xlu0 7
      %1634 = vperm.xlu0 %1633, %v245
      %v1635 = vpop.permute.xlu0 %1634
      %1636 = vset.pattern.permute.xlu0 7
      %1637 = vperm.xlu0 %1636, %v246
      %v1638 = vpop.permute.xlu0 %1637
      %1639 = vset.pattern.permute.xlu0 7
      %1640 = vperm.xlu0 %1639, %v247
      %v1641 = vpop.permute.xlu0 %1640
      %1642 = vset.pattern.permute.xlu0 7
      %1643 = vperm.xlu0 %1642, %v248
      %v1644 = vpop.permute.xlu0 %1643
      %1645 = vset.pattern.permute.xlu0 7
      %1646 = vperm.xlu0 %1645, %v249
      %v1647 = vpop.permute.xlu0 %1646
      %1648 = vset.pattern.permute.xlu0 7
      %1649 = vperm.xlu0 %1648, %v250
      %v1650 = vpop.permute.xlu0 %1649
      %1651 = vset.pattern.permute.xlu0 7
      %1652 = vperm.xlu0 %1651, %v251
      %v1653 = vpop.permute.xlu0 %1652
      %1654 = vset.pattern.permute.xlu0 7
      %1655 = vperm.xlu0 %1654, %v252
      %v1656 = vpop.permute.xlu0 %1655
      %1657 = vset.pattern.permute.xlu0 7
      %1658 = vperm.xlu0 %1657, %v253
      %v1659 = vpop.permute.xlu0 %1658
      %1660 = vset.pattern.permute.xlu0 7
      %1661 = vperm.xlu0 %1660, %v254
      %v1662 = vpop.permute.xlu0 %1661
      %1663 = vset.pattern.permute.xlu0 7
      %1664 = vperm.xlu0 %1663, %v255
      %v1665 = vpop.permute.xlu0 %1664
      %vm1666 = vcmp.eq.s32.totalorder %v257, %v1572
      %vm1667 = vcmp.eq.s32.totalorder %v257, %v1575
      %vm1668 = vcmp.eq.s32.totalorder %v257, %v1578
      %vm1669 = vcmp.eq.s32.totalorder %v257, %v1581
      %vm1670 = vcmp.eq.s32.totalorder %v257, %v1584
      %vm1671 = vcmp.eq.s32.totalorder %v257, %v1587
      %vm1672 = vcmp.eq.s32.totalorder %v257, %v1590
      %vm1673 = vcmp.eq.s32.totalorder %v257, %v1593
      %vm1674 = vcmp.eq.s32.totalorder %v257, %v1596
      %vm1675 = vcmp.eq.s32.totalorder %v257, %v1599
      %vm1676 = vcmp.eq.s32.totalorder %v257, %v1602
      %vm1677 = vcmp.eq.s32.totalorder %v257, %v1605
      %vm1678 = vcmp.eq.s32.totalorder %v257, %v1608
      %vm1679 = vcmp.eq.s32.totalorder %v257, %v1611
      %vm1680 = vcmp.eq.s32.totalorder %v257, %v1614
      %vm1681 = vcmp.eq.s32.totalorder %v257, %v1617
      %vm1682 = vcmp.eq.s32.totalorder %v257, %v1620
      %vm1683 = vcmp.eq.s32.totalorder %v257, %v1623
      %vm1684 = vcmp.eq.s32.totalorder %v257, %v1626
      %vm1685 = vcmp.eq.s32.totalorder %v257, %v1629
      %vm1686 = vcmp.eq.s32.totalorder %v257, %v1632
      %vm1687 = vcmp.eq.s32.totalorder %v257, %v1635
      %vm1688 = vcmp.eq.s32.totalorder %v257, %v1638
      %vm1689 = vcmp.eq.s32.totalorder %v257, %v1641
      %vm1690 = vcmp.eq.s32.totalorder %v257, %v1644
      %vm1691 = vcmp.eq.s32.totalorder %v257, %v1647
      %vm1692 = vcmp.eq.s32.totalorder %v257, %v1650
      %vm1693 = vcmp.eq.s32.totalorder %v257, %v1653
      %vm1694 = vcmp.eq.s32.totalorder %v257, %v1656
      %vm1695 = vcmp.eq.s32.totalorder %v257, %v1659
      %vm1696 = vcmp.eq.s32.totalorder %v257, %v1662
      %vm1697 = vcmp.eq.s32.totalorder %v257, %v1665
      %v1698 = vsel %vm1666, 1, 0
      %v1699 = vsel %vm1667, 1, 0
      %v1700 = vsel %vm1668, 1, 0
      %v1701 = vsel %vm1669, 1, 0
      %v1702 = vsel %vm1670, 1, 0
      %v1703 = vsel %vm1671, 1, 0
      %v1704 = vsel %vm1672, 1, 0
      %v1705 = vsel %vm1673, 1, 0
      %v1706 = vsel %vm1674, 1, 0
      %v1707 = vsel %vm1675, 1, 0
      %v1708 = vsel %vm1676, 1, 0
      %v1709 = vsel %vm1677, 1, 0
      %v1710 = vsel %vm1678, 1, 0
      %v1711 = vsel %vm1679, 1, 0
      %v1712 = vsel %vm1680, 1, 0
      %v1713 = vsel %vm1681, 1, 0
      %v1714 = vsel %vm1682, 1, 0
      %v1715 = vsel %vm1683, 1, 0
      %v1716 = vsel %vm1684, 1, 0
      %v1717 = vsel %vm1685, 1, 0
      %v1718 = vsel %vm1686, 1, 0
      %v1719 = vsel %vm1687, 1, 0
      %v1720 = vsel %vm1688, 1, 0
      %v1721 = vsel %vm1689, 1, 0
      %v1722 = vsel %vm1690, 1, 0
      %v1723 = vsel %vm1691, 1, 0
      %v1724 = vsel %vm1692, 1, 0
      %v1725 = vsel %vm1693, 1, 0
      %v1726 = vsel %vm1694, 1, 0
      %v1727 = vsel %vm1695, 1, 0
      %v1728 = vsel %vm1696, 1, 0
      %v1729 = vsel %vm1697, 1, 0
      %v1730 = vadd.s32 %v1538, %v1698
      %v1731 = vadd.s32 %v1539, %v1699
      %v1732 = vadd.s32 %v1540, %v1700
      %v1733 = vadd.s32 %v1541, %v1701
      %v1734 = vadd.s32 %v1542, %v1702
      %v1735 = vadd.s32 %v1543, %v1703
      %v1736 = vadd.s32 %v1544, %v1704
      %v1737 = vadd.s32 %v1545, %v1705
      %v1738 = vadd.s32 %v1546, %v1706
      %v1739 = vadd.s32 %v1547, %v1707
      %v1740 = vadd.s32 %v1548, %v1708
      %v1741 = vadd.s32 %v1549, %v1709
      %v1742 = vadd.s32 %v1550, %v1710
      %v1743 = vadd.s32 %v1551, %v1711
      %v1744 = vadd.s32 %v1552, %v1712
      %v1745 = vadd.s32 %v1553, %v1713
      %v1746 = vadd.s32 %v1554, %v1714
      %v1747 = vadd.s32 %v1555, %v1715
      %v1748 = vadd.s32 %v1556, %v1716
      %v1749 = vadd.s32 %v1557, %v1717
      %v1750 = vadd.s32 %v1558, %v1718
      %v1751 = vadd.s32 %v1559, %v1719
      %v1752 = vadd.s32 %v1560, %v1720
      %v1753 = vadd.s32 %v1561, %v1721
      %v1754 = vadd.s32 %v1562, %v1722
      %v1755 = vadd.s32 %v1563, %v1723
      %v1756 = vadd.s32 %v1564, %v1724
      %v1757 = vadd.s32 %v1565, %v1725
      %v1758 = vadd.s32 %v1566, %v1726
      %v1759 = vadd.s32 %v1567, %v1727
      %v1760 = vadd.s32 %v1568, %v1728
      %v1761 = vadd.s32 %v1569, %v1729
      %1762 = vset.pattern.permute.xlu0 8
      %1763 = vperm.xlu0 %1762, %v224
      %v1764 = vpop.permute.xlu0 %1763
      %1765 = vset.pattern.permute.xlu0 8
      %1766 = vperm.xlu0 %1765, %v225
      %v1767 = vpop.permute.xlu0 %1766
      %1768 = vset.pattern.permute.xlu0 8
      %1769 = vperm.xlu0 %1768, %v226
      %v1770 = vpop.permute.xlu0 %1769
      %1771 = vset.pattern.permute.xlu0 8
      %1772 = vperm.xlu0 %1771, %v227
      %v1773 = vpop.permute.xlu0 %1772
      %1774 = vset.pattern.permute.xlu0 8
      %1775 = vperm.xlu0 %1774, %v228
      %v1776 = vpop.permute.xlu0 %1775
      %1777 = vset.pattern.permute.xlu0 8
      %1778 = vperm.xlu0 %1777, %v229
      %v1779 = vpop.permute.xlu0 %1778
      %1780 = vset.pattern.permute.xlu0 8
      %1781 = vperm.xlu0 %1780, %v230
      %v1782 = vpop.permute.xlu0 %1781
      %1783 = vset.pattern.permute.xlu0 8
      %1784 = vperm.xlu0 %1783, %v231
      %v1785 = vpop.permute.xlu0 %1784
      %1786 = vset.pattern.permute.xlu0 8
      %1787 = vperm.xlu0 %1786, %v232
      %v1788 = vpop.permute.xlu0 %1787
      %1789 = vset.pattern.permute.xlu0 8
      %1790 = vperm.xlu0 %1789, %v233
      %v1791 = vpop.permute.xlu0 %1790
      %1792 = vset.pattern.permute.xlu0 8
      %1793 = vperm.xlu0 %1792, %v234
      %v1794 = vpop.permute.xlu0 %1793
      %1795 = vset.pattern.permute.xlu0 8
      %1796 = vperm.xlu0 %1795, %v235
      %v1797 = vpop.permute.xlu0 %1796
      %1798 = vset.pattern.permute.xlu0 8
      %1799 = vperm.xlu0 %1798, %v236
      %v1800 = vpop.permute.xlu0 %1799
      %1801 = vset.pattern.permute.xlu0 8
      %1802 = vperm.xlu0 %1801, %v237
      %v1803 = vpop.permute.xlu0 %1802
      %1804 = vset.pattern.permute.xlu0 8
      %1805 = vperm.xlu0 %1804, %v238
      %v1806 = vpop.permute.xlu0 %1805
      %1807 = vset.pattern.permute.xlu0 8
      %1808 = vperm.xlu0 %1807, %v239
      %v1809 = vpop.permute.xlu0 %1808
      %1810 = vset.pattern.permute.xlu0 8
      %1811 = vperm.xlu0 %1810, %v240
      %v1812 = vpop.permute.xlu0 %1811
      %1813 = vset.pattern.permute.xlu0 8
      %1814 = vperm.xlu0 %1813, %v241
      %v1815 = vpop.permute.xlu0 %1814
      %1816 = vset.pattern.permute.xlu0 8
      %1817 = vperm.xlu0 %1816, %v242
      %v1818 = vpop.permute.xlu0 %1817
      %1819 = vset.pattern.permute.xlu0 8
      %1820 = vperm.xlu0 %1819, %v243
      %v1821 = vpop.permute.xlu0 %1820
      %1822 = vset.pattern.permute.xlu0 8
      %1823 = vperm.xlu0 %1822, %v244
      %v1824 = vpop.permute.xlu0 %1823
      %1825 = vset.pattern.permute.xlu0 8
      %1826 = vperm.xlu0 %1825, %v245
      %v1827 = vpop.permute.xlu0 %1826
      %1828 = vset.pattern.permute.xlu0 8
      %1829 = vperm.xlu0 %1828, %v246
      %v1830 = vpop.permute.xlu0 %1829
      %1831 = vset.pattern.permute.xlu0 8
      %1832 = vperm.xlu0 %1831, %v247
      %v1833 = vpop.permute.xlu0 %1832
      %1834 = vset.pattern.permute.xlu0 8
      %1835 = vperm.xlu0 %1834, %v248
      %v1836 = vpop.permute.xlu0 %1835
      %1837 = vset.pattern.permute.xlu0 8
      %1838 = vperm.xlu0 %1837, %v249
      %v1839 = vpop.permute.xlu0 %1838
      %1840 = vset.pattern.permute.xlu0 8
      %1841 = vperm.xlu0 %1840, %v250
      %v1842 = vpop.permute.xlu0 %1841
      %1843 = vset.pattern.permute.xlu0 8
      %1844 = vperm.xlu0 %1843, %v251
      %v1845 = vpop.permute.xlu0 %1844
      %1846 = vset.pattern.permute.xlu0 8
      %1847 = vperm.xlu0 %1846, %v252
      %v1848 = vpop.permute.xlu0 %1847
      %1849 = vset.pattern.permute.xlu0 8
      %1850 = vperm.xlu0 %1849, %v253
      %v1851 = vpop.permute.xlu0 %1850
      %1852 = vset.pattern.permute.xlu0 8
      %1853 = vperm.xlu0 %1852, %v254
      %v1854 = vpop.permute.xlu0 %1853
      %1855 = vset.pattern.permute.xlu0 8
      %1856 = vperm.xlu0 %1855, %v255
      %v1857 = vpop.permute.xlu0 %1856
      %vm1858 = vcmp.eq.s32.totalorder %v257, %v1764
      %vm1859 = vcmp.eq.s32.totalorder %v257, %v1767
      %vm1860 = vcmp.eq.s32.totalorder %v257, %v1770
      %vm1861 = vcmp.eq.s32.totalorder %v257, %v1773
      %vm1862 = vcmp.eq.s32.totalorder %v257, %v1776
      %vm1863 = vcmp.eq.s32.totalorder %v257, %v1779
      %vm1864 = vcmp.eq.s32.totalorder %v257, %v1782
      %vm1865 = vcmp.eq.s32.totalorder %v257, %v1785
      %vm1866 = vcmp.eq.s32.totalorder %v257, %v1788
      %vm1867 = vcmp.eq.s32.totalorder %v257, %v1791
      %vm1868 = vcmp.eq.s32.totalorder %v257, %v1794
      %vm1869 = vcmp.eq.s32.totalorder %v257, %v1797
      %vm1870 = vcmp.eq.s32.totalorder %v257, %v1800
      %vm1871 = vcmp.eq.s32.totalorder %v257, %v1803
      %vm1872 = vcmp.eq.s32.totalorder %v257, %v1806
      %vm1873 = vcmp.eq.s32.totalorder %v257, %v1809
      %vm1874 = vcmp.eq.s32.totalorder %v257, %v1812
      %vm1875 = vcmp.eq.s32.totalorder %v257, %v1815
      %vm1876 = vcmp.eq.s32.totalorder %v257, %v1818
      %vm1877 = vcmp.eq.s32.totalorder %v257, %v1821
      %vm1878 = vcmp.eq.s32.totalorder %v257, %v1824
      %vm1879 = vcmp.eq.s32.totalorder %v257, %v1827
      %vm1880 = vcmp.eq.s32.totalorder %v257, %v1830
      %vm1881 = vcmp.eq.s32.totalorder %v257, %v1833
      %vm1882 = vcmp.eq.s32.totalorder %v257, %v1836
      %vm1883 = vcmp.eq.s32.totalorder %v257, %v1839
      %vm1884 = vcmp.eq.s32.totalorder %v257, %v1842
      %vm1885 = vcmp.eq.s32.totalorder %v257, %v1845
      %vm1886 = vcmp.eq.s32.totalorder %v257, %v1848
      %vm1887 = vcmp.eq.s32.totalorder %v257, %v1851
      %vm1888 = vcmp.eq.s32.totalorder %v257, %v1854
      %vm1889 = vcmp.eq.s32.totalorder %v257, %v1857
      %v1890 = vsel %vm1858, 1, 0
      %v1891 = vsel %vm1859, 1, 0
      %v1892 = vsel %vm1860, 1, 0
      %v1893 = vsel %vm1861, 1, 0
      %v1894 = vsel %vm1862, 1, 0
      %v1895 = vsel %vm1863, 1, 0
      %v1896 = vsel %vm1864, 1, 0
      %v1897 = vsel %vm1865, 1, 0
      %v1898 = vsel %vm1866, 1, 0
      %v1899 = vsel %vm1867, 1, 0
      %v1900 = vsel %vm1868, 1, 0
      %v1901 = vsel %vm1869, 1, 0
      %v1902 = vsel %vm1870, 1, 0
      %v1903 = vsel %vm1871, 1, 0
      %v1904 = vsel %vm1872, 1, 0
      %v1905 = vsel %vm1873, 1, 0
      %v1906 = vsel %vm1874, 1, 0
      %v1907 = vsel %vm1875, 1, 0
      %v1908 = vsel %vm1876, 1, 0
      %v1909 = vsel %vm1877, 1, 0
      %v1910 = vsel %vm1878, 1, 0
      %v1911 = vsel %vm1879, 1, 0
      %v1912 = vsel %vm1880, 1, 0
      %v1913 = vsel %vm1881, 1, 0
      %v1914 = vsel %vm1882, 1, 0
      %v1915 = vsel %vm1883, 1, 0
      %v1916 = vsel %vm1884, 1, 0
      %v1917 = vsel %vm1885, 1, 0
      %v1918 = vsel %vm1886, 1, 0
      %v1919 = vsel %vm1887, 1, 0
      %v1920 = vsel %vm1888, 1, 0
      %v1921 = vsel %vm1889, 1, 0
      %v1922 = vadd.s32 %v1730, %v1890
      %v1923 = vadd.s32 %v1731, %v1891
      %v1924 = vadd.s32 %v1732, %v1892
      %v1925 = vadd.s32 %v1733, %v1893
      %v1926 = vadd.s32 %v1734, %v1894
      %v1927 = vadd.s32 %v1735, %v1895
      %v1928 = vadd.s32 %v1736, %v1896
      %v1929 = vadd.s32 %v1737, %v1897
      %v1930 = vadd.s32 %v1738, %v1898
      %v1931 = vadd.s32 %v1739, %v1899
      %v1932 = vadd.s32 %v1740, %v1900
      %v1933 = vadd.s32 %v1741, %v1901
      %v1934 = vadd.s32 %v1742, %v1902
      %v1935 = vadd.s32 %v1743, %v1903
      %v1936 = vadd.s32 %v1744, %v1904
      %v1937 = vadd.s32 %v1745, %v1905
      %v1938 = vadd.s32 %v1746, %v1906
      %v1939 = vadd.s32 %v1747, %v1907
      %v1940 = vadd.s32 %v1748, %v1908
      %v1941 = vadd.s32 %v1749, %v1909
      %v1942 = vadd.s32 %v1750, %v1910
      %v1943 = vadd.s32 %v1751, %v1911
      %v1944 = vadd.s32 %v1752, %v1912
      %v1945 = vadd.s32 %v1753, %v1913
      %v1946 = vadd.s32 %v1754, %v1914
      %v1947 = vadd.s32 %v1755, %v1915
      %v1948 = vadd.s32 %v1756, %v1916
      %v1949 = vadd.s32 %v1757, %v1917
      %v1950 = vadd.s32 %v1758, %v1918
      %v1951 = vadd.s32 %v1759, %v1919
      %v1952 = vadd.s32 %v1760, %v1920
      %v1953 = vadd.s32 %v1761, %v1921
      %1954 = vset.pattern.permute.xlu0 9
      %1955 = vperm.xlu0 %1954, %v224
      %v1956 = vpop.permute.xlu0 %1955
      %1957 = vset.pattern.permute.xlu0 9
      %1958 = vperm.xlu0 %1957, %v225
      %v1959 = vpop.permute.xlu0 %1958
      %1960 = vset.pattern.permute.xlu0 9
      %1961 = vperm.xlu0 %1960, %v226
      %v1962 = vpop.permute.xlu0 %1961
      %1963 = vset.pattern.permute.xlu0 9
      %1964 = vperm.xlu0 %1963, %v227
      %v1965 = vpop.permute.xlu0 %1964
      %1966 = vset.pattern.permute.xlu0 9
      %1967 = vperm.xlu0 %1966, %v228
      %v1968 = vpop.permute.xlu0 %1967
      %1969 = vset.pattern.permute.xlu0 9
      %1970 = vperm.xlu0 %1969, %v229
      %v1971 = vpop.permute.xlu0 %1970
      %1972 = vset.pattern.permute.xlu0 9
      %1973 = vperm.xlu0 %1972, %v230
      %v1974 = vpop.permute.xlu0 %1973
      %1975 = vset.pattern.permute.xlu0 9
      %1976 = vperm.xlu0 %1975, %v231
      %v1977 = vpop.permute.xlu0 %1976
      %1978 = vset.pattern.permute.xlu0 9
      %1979 = vperm.xlu0 %1978, %v232
      %v1980 = vpop.permute.xlu0 %1979
      %1981 = vset.pattern.permute.xlu0 9
      %1982 = vperm.xlu0 %1981, %v233
      %v1983 = vpop.permute.xlu0 %1982
      %1984 = vset.pattern.permute.xlu0 9
      %1985 = vperm.xlu0 %1984, %v234
      %v1986 = vpop.permute.xlu0 %1985
      %1987 = vset.pattern.permute.xlu0 9
      %1988 = vperm.xlu0 %1987, %v235
      %v1989 = vpop.permute.xlu0 %1988
      %1990 = vset.pattern.permute.xlu0 9
      %1991 = vperm.xlu0 %1990, %v236
      %v1992 = vpop.permute.xlu0 %1991
      %1993 = vset.pattern.permute.xlu0 9
      %1994 = vperm.xlu0 %1993, %v237
      %v1995 = vpop.permute.xlu0 %1994
      %1996 = vset.pattern.permute.xlu0 9
      %1997 = vperm.xlu0 %1996, %v238
      %v1998 = vpop.permute.xlu0 %1997
      %1999 = vset.pattern.permute.xlu0 9
      %2000 = vperm.xlu0 %1999, %v239
      %v2001 = vpop.permute.xlu0 %2000
      %2002 = vset.pattern.permute.xlu0 9
      %2003 = vperm.xlu0 %2002, %v240
      %v2004 = vpop.permute.xlu0 %2003
      %2005 = vset.pattern.permute.xlu0 9
      %2006 = vperm.xlu0 %2005, %v241
      %v2007 = vpop.permute.xlu0 %2006
      %2008 = vset.pattern.permute.xlu0 9
      %2009 = vperm.xlu0 %2008, %v242
      %v2010 = vpop.permute.xlu0 %2009
      %2011 = vset.pattern.permute.xlu0 9
      %2012 = vperm.xlu0 %2011, %v243
      %v2013 = vpop.permute.xlu0 %2012
      %2014 = vset.pattern.permute.xlu0 9
      %2015 = vperm.xlu0 %2014, %v244
      %v2016 = vpop.permute.xlu0 %2015
      %2017 = vset.pattern.permute.xlu0 9
      %2018 = vperm.xlu0 %2017, %v245
      %v2019 = vpop.permute.xlu0 %2018
      %2020 = vset.pattern.permute.xlu0 9
      %2021 = vperm.xlu0 %2020, %v246
      %v2022 = vpop.permute.xlu0 %2021
      %2023 = vset.pattern.permute.xlu0 9
      %2024 = vperm.xlu0 %2023, %v247
      %v2025 = vpop.permute.xlu0 %2024
      %2026 = vset.pattern.permute.xlu0 9
      %2027 = vperm.xlu0 %2026, %v248
      %v2028 = vpop.permute.xlu0 %2027
      %2029 = vset.pattern.permute.xlu0 9
      %2030 = vperm.xlu0 %2029, %v249
      %v2031 = vpop.permute.xlu0 %2030
      %2032 = vset.pattern.permute.xlu0 9
      %2033 = vperm.xlu0 %2032, %v250
      %v2034 = vpop.permute.xlu0 %2033
      %2035 = vset.pattern.permute.xlu0 9
      %2036 = vperm.xlu0 %2035, %v251
      %v2037 = vpop.permute.xlu0 %2036
      %2038 = vset.pattern.permute.xlu0 9
      %2039 = vperm.xlu0 %2038, %v252
      %v2040 = vpop.permute.xlu0 %2039
      %2041 = vset.pattern.permute.xlu0 9
      %2042 = vperm.xlu0 %2041, %v253
      %v2043 = vpop.permute.xlu0 %2042
      %2044 = vset.pattern.permute.xlu0 9
      %2045 = vperm.xlu0 %2044, %v254
      %v2046 = vpop.permute.xlu0 %2045
      %2047 = vset.pattern.permute.xlu0 9
      %2048 = vperm.xlu0 %2047, %v255
      %v2049 = vpop.permute.xlu0 %2048
      %vm2050 = vcmp.eq.s32.totalorder %v257, %v1956
      %vm2051 = vcmp.eq.s32.totalorder %v257, %v1959
      %vm2052 = vcmp.eq.s32.totalorder %v257, %v1962
      %vm2053 = vcmp.eq.s32.totalorder %v257, %v1965
      %vm2054 = vcmp.eq.s32.totalorder %v257, %v1968
      %vm2055 = vcmp.eq.s32.totalorder %v257, %v1971
      %vm2056 = vcmp.eq.s32.totalorder %v257, %v1974
      %vm2057 = vcmp.eq.s32.totalorder %v257, %v1977
      %vm2058 = vcmp.eq.s32.totalorder %v257, %v1980
      %vm2059 = vcmp.eq.s32.totalorder %v257, %v1983
      %vm2060 = vcmp.eq.s32.totalorder %v257, %v1986
      %vm2061 = vcmp.eq.s32.totalorder %v257, %v1989
      %vm2062 = vcmp.eq.s32.totalorder %v257, %v1992
      %vm2063 = vcmp.eq.s32.totalorder %v257, %v1995
      %vm2064 = vcmp.eq.s32.totalorder %v257, %v1998
      %vm2065 = vcmp.eq.s32.totalorder %v257, %v2001
      %vm2066 = vcmp.eq.s32.totalorder %v257, %v2004
      %vm2067 = vcmp.eq.s32.totalorder %v257, %v2007
      %vm2068 = vcmp.eq.s32.totalorder %v257, %v2010
      %vm2069 = vcmp.eq.s32.totalorder %v257, %v2013
      %vm2070 = vcmp.eq.s32.totalorder %v257, %v2016
      %vm2071 = vcmp.eq.s32.totalorder %v257, %v2019
      %vm2072 = vcmp.eq.s32.totalorder %v257, %v2022
      %vm2073 = vcmp.eq.s32.totalorder %v257, %v2025
      %vm2074 = vcmp.eq.s32.totalorder %v257, %v2028
      %vm2075 = vcmp.eq.s32.totalorder %v257, %v2031
      %vm2076 = vcmp.eq.s32.totalorder %v257, %v2034
      %vm2077 = vcmp.eq.s32.totalorder %v257, %v2037
      %vm2078 = vcmp.eq.s32.totalorder %v257, %v2040
      %vm2079 = vcmp.eq.s32.totalorder %v257, %v2043
      %vm2080 = vcmp.eq.s32.totalorder %v257, %v2046
      %vm2081 = vcmp.eq.s32.totalorder %v257, %v2049
      %v2082 = vsel %vm2050, 1, 0
      %v2083 = vsel %vm2051, 1, 0
      %v2084 = vsel %vm2052, 1, 0
      %v2085 = vsel %vm2053, 1, 0
      %v2086 = vsel %vm2054, 1, 0
      %v2087 = vsel %vm2055, 1, 0
      %v2088 = vsel %vm2056, 1, 0
      %v2089 = vsel %vm2057, 1, 0
      %v2090 = vsel %vm2058, 1, 0
      %v2091 = vsel %vm2059, 1, 0
      %v2092 = vsel %vm2060, 1, 0
      %v2093 = vsel %vm2061, 1, 0
      %v2094 = vsel %vm2062, 1, 0
      %v2095 = vsel %vm2063, 1, 0
      %v2096 = vsel %vm2064, 1, 0
      %v2097 = vsel %vm2065, 1, 0
      %v2098 = vsel %vm2066, 1, 0
      %v2099 = vsel %vm2067, 1, 0
      %v2100 = vsel %vm2068, 1, 0
      %v2101 = vsel %vm2069, 1, 0
      %v2102 = vsel %vm2070, 1, 0
      %v2103 = vsel %vm2071, 1, 0
      %v2104 = vsel %vm2072, 1, 0
      %v2105 = vsel %vm2073, 1, 0
      %v2106 = vsel %vm2074, 1, 0
      %v2107 = vsel %vm2075, 1, 0
      %v2108 = vsel %vm2076, 1, 0
      %v2109 = vsel %vm2077, 1, 0
      %v2110 = vsel %vm2078, 1, 0
      %v2111 = vsel %vm2079, 1, 0
      %v2112 = vsel %vm2080, 1, 0
      %v2113 = vsel %vm2081, 1, 0
      %v2114 = vadd.s32 %v1922, %v2082
      %v2115 = vadd.s32 %v1923, %v2083
      %v2116 = vadd.s32 %v1924, %v2084
      %v2117 = vadd.s32 %v1925, %v2085
      %v2118 = vadd.s32 %v1926, %v2086
      %v2119 = vadd.s32 %v1927, %v2087
      %v2120 = vadd.s32 %v1928, %v2088
      %v2121 = vadd.s32 %v1929, %v2089
      %v2122 = vadd.s32 %v1930, %v2090
      %v2123 = vadd.s32 %v1931, %v2091
      %v2124 = vadd.s32 %v1932, %v2092
      %v2125 = vadd.s32 %v1933, %v2093
      %v2126 = vadd.s32 %v1934, %v2094
      %v2127 = vadd.s32 %v1935, %v2095
      %v2128 = vadd.s32 %v1936, %v2096
      %v2129 = vadd.s32 %v1937, %v2097
      %v2130 = vadd.s32 %v1938, %v2098
      %v2131 = vadd.s32 %v1939, %v2099
      %v2132 = vadd.s32 %v1940, %v2100
      %v2133 = vadd.s32 %v1941, %v2101
      %v2134 = vadd.s32 %v1942, %v2102
      %v2135 = vadd.s32 %v1943, %v2103
      %v2136 = vadd.s32 %v1944, %v2104
      %v2137 = vadd.s32 %v1945, %v2105
      %v2138 = vadd.s32 %v1946, %v2106
      %v2139 = vadd.s32 %v1947, %v2107
      %v2140 = vadd.s32 %v1948, %v2108
      %v2141 = vadd.s32 %v1949, %v2109
      %v2142 = vadd.s32 %v1950, %v2110
      %v2143 = vadd.s32 %v1951, %v2111
      %v2144 = vadd.s32 %v1952, %v2112
      %v2145 = vadd.s32 %v1953, %v2113
      %2146 = vset.pattern.permute.xlu0 10
      %2147 = vperm.xlu0 %2146, %v224
      %v2148 = vpop.permute.xlu0 %2147
      %2149 = vset.pattern.permute.xlu0 10
      %2150 = vperm.xlu0 %2149, %v225
      %v2151 = vpop.permute.xlu0 %2150
      %2152 = vset.pattern.permute.xlu0 10
      %2153 = vperm.xlu0 %2152, %v226
      %v2154 = vpop.permute.xlu0 %2153
      %2155 = vset.pattern.permute.xlu0 10
      %2156 = vperm.xlu0 %2155, %v227
      %v2157 = vpop.permute.xlu0 %2156
      %2158 = vset.pattern.permute.xlu0 10
      %2159 = vperm.xlu0 %2158, %v228
      %v2160 = vpop.permute.xlu0 %2159
      %2161 = vset.pattern.permute.xlu0 10
      %2162 = vperm.xlu0 %2161, %v229
      %v2163 = vpop.permute.xlu0 %2162
      %2164 = vset.pattern.permute.xlu0 10
      %2165 = vperm.xlu0 %2164, %v230
      %v2166 = vpop.permute.xlu0 %2165
      %2167 = vset.pattern.permute.xlu0 10
      %2168 = vperm.xlu0 %2167, %v231
      %v2169 = vpop.permute.xlu0 %2168
      %2170 = vset.pattern.permute.xlu0 10
      %2171 = vperm.xlu0 %2170, %v232
      %v2172 = vpop.permute.xlu0 %2171
      %2173 = vset.pattern.permute.xlu0 10
      %2174 = vperm.xlu0 %2173, %v233
      %v2175 = vpop.permute.xlu0 %2174
      %2176 = vset.pattern.permute.xlu0 10
      %2177 = vperm.xlu0 %2176, %v234
      %v2178 = vpop.permute.xlu0 %2177
      %2179 = vset.pattern.permute.xlu0 10
      %2180 = vperm.xlu0 %2179, %v235
      %v2181 = vpop.permute.xlu0 %2180
      %2182 = vset.pattern.permute.xlu0 10
      %2183 = vperm.xlu0 %2182, %v236
      %v2184 = vpop.permute.xlu0 %2183
      %2185 = vset.pattern.permute.xlu0 10
      %2186 = vperm.xlu0 %2185, %v237
      %v2187 = vpop.permute.xlu0 %2186
      %2188 = vset.pattern.permute.xlu0 10
      %2189 = vperm.xlu0 %2188, %v238
      %v2190 = vpop.permute.xlu0 %2189
      %2191 = vset.pattern.permute.xlu0 10
      %2192 = vperm.xlu0 %2191, %v239
      %v2193 = vpop.permute.xlu0 %2192
      %2194 = vset.pattern.permute.xlu0 10
      %2195 = vperm.xlu0 %2194, %v240
      %v2196 = vpop.permute.xlu0 %2195
      %2197 = vset.pattern.permute.xlu0 10
      %2198 = vperm.xlu0 %2197, %v241
      %v2199 = vpop.permute.xlu0 %2198
      %2200 = vset.pattern.permute.xlu0 10
      %2201 = vperm.xlu0 %2200, %v242
      %v2202 = vpop.permute.xlu0 %2201
      %2203 = vset.pattern.permute.xlu0 10
      %2204 = vperm.xlu0 %2203, %v243
      %v2205 = vpop.permute.xlu0 %2204
      %2206 = vset.pattern.permute.xlu0 10
      %2207 = vperm.xlu0 %2206, %v244
      %v2208 = vpop.permute.xlu0 %2207
      %2209 = vset.pattern.permute.xlu0 10
      %2210 = vperm.xlu0 %2209, %v245
      %v2211 = vpop.permute.xlu0 %2210
      %2212 = vset.pattern.permute.xlu0 10
      %2213 = vperm.xlu0 %2212, %v246
      %v2214 = vpop.permute.xlu0 %2213
      %2215 = vset.pattern.permute.xlu0 10
      %2216 = vperm.xlu0 %2215, %v247
      %v2217 = vpop.permute.xlu0 %2216
      %2218 = vset.pattern.permute.xlu0 10
      %2219 = vperm.xlu0 %2218, %v248
      %v2220 = vpop.permute.xlu0 %2219
      %2221 = vset.pattern.permute.xlu0 10
      %2222 = vperm.xlu0 %2221, %v249
      %v2223 = vpop.permute.xlu0 %2222
      %2224 = vset.pattern.permute.xlu0 10
      %2225 = vperm.xlu0 %2224, %v250
      %v2226 = vpop.permute.xlu0 %2225
      %2227 = vset.pattern.permute.xlu0 10
      %2228 = vperm.xlu0 %2227, %v251
      %v2229 = vpop.permute.xlu0 %2228
      %2230 = vset.pattern.permute.xlu0 10
      %2231 = vperm.xlu0 %2230, %v252
      %v2232 = vpop.permute.xlu0 %2231
      %2233 = vset.pattern.permute.xlu0 10
      %2234 = vperm.xlu0 %2233, %v253
      %v2235 = vpop.permute.xlu0 %2234
      %2236 = vset.pattern.permute.xlu0 10
      %2237 = vperm.xlu0 %2236, %v254
      %v2238 = vpop.permute.xlu0 %2237
      %2239 = vset.pattern.permute.xlu0 10
      %2240 = vperm.xlu0 %2239, %v255
      %v2241 = vpop.permute.xlu0 %2240
      %vm2242 = vcmp.eq.s32.totalorder %v257, %v2148
      %vm2243 = vcmp.eq.s32.totalorder %v257, %v2151
      %vm2244 = vcmp.eq.s32.totalorder %v257, %v2154
      %vm2245 = vcmp.eq.s32.totalorder %v257, %v2157
      %vm2246 = vcmp.eq.s32.totalorder %v257, %v2160
      %vm2247 = vcmp.eq.s32.totalorder %v257, %v2163
      %vm2248 = vcmp.eq.s32.totalorder %v257, %v2166
      %vm2249 = vcmp.eq.s32.totalorder %v257, %v2169
      %vm2250 = vcmp.eq.s32.totalorder %v257, %v2172
      %vm2251 = vcmp.eq.s32.totalorder %v257, %v2175
      %vm2252 = vcmp.eq.s32.totalorder %v257, %v2178
      %vm2253 = vcmp.eq.s32.totalorder %v257, %v2181
      %vm2254 = vcmp.eq.s32.totalorder %v257, %v2184
      %vm2255 = vcmp.eq.s32.totalorder %v257, %v2187
      %vm2256 = vcmp.eq.s32.totalorder %v257, %v2190
      %vm2257 = vcmp.eq.s32.totalorder %v257, %v2193
      %vm2258 = vcmp.eq.s32.totalorder %v257, %v2196
      %vm2259 = vcmp.eq.s32.totalorder %v257, %v2199
      %vm2260 = vcmp.eq.s32.totalorder %v257, %v2202
      %vm2261 = vcmp.eq.s32.totalorder %v257, %v2205
      %vm2262 = vcmp.eq.s32.totalorder %v257, %v2208
      %vm2263 = vcmp.eq.s32.totalorder %v257, %v2211
      %vm2264 = vcmp.eq.s32.totalorder %v257, %v2214
      %vm2265 = vcmp.eq.s32.totalorder %v257, %v2217
      %vm2266 = vcmp.eq.s32.totalorder %v257, %v2220
      %vm2267 = vcmp.eq.s32.totalorder %v257, %v2223
      %vm2268 = vcmp.eq.s32.totalorder %v257, %v2226
      %vm2269 = vcmp.eq.s32.totalorder %v257, %v2229
      %vm2270 = vcmp.eq.s32.totalorder %v257, %v2232
      %vm2271 = vcmp.eq.s32.totalorder %v257, %v2235
      %vm2272 = vcmp.eq.s32.totalorder %v257, %v2238
      %vm2273 = vcmp.eq.s32.totalorder %v257, %v2241
      %v2274 = vsel %vm2242, 1, 0
      %v2275 = vsel %vm2243, 1, 0
      %v2276 = vsel %vm2244, 1, 0
      %v2277 = vsel %vm2245, 1, 0
      %v2278 = vsel %vm2246, 1, 0
      %v2279 = vsel %vm2247, 1, 0
      %v2280 = vsel %vm2248, 1, 0
      %v2281 = vsel %vm2249, 1, 0
      %v2282 = vsel %vm2250, 1, 0
      %v2283 = vsel %vm2251, 1, 0
      %v2284 = vsel %vm2252, 1, 0
      %v2285 = vsel %vm2253, 1, 0
      %v2286 = vsel %vm2254, 1, 0
      %v2287 = vsel %vm2255, 1, 0
      %v2288 = vsel %vm2256, 1, 0
      %v2289 = vsel %vm2257, 1, 0
      %v2290 = vsel %vm2258, 1, 0
      %v2291 = vsel %vm2259, 1, 0
      %v2292 = vsel %vm2260, 1, 0
      %v2293 = vsel %vm2261, 1, 0
      %v2294 = vsel %vm2262, 1, 0
      %v2295 = vsel %vm2263, 1, 0
      %v2296 = vsel %vm2264, 1, 0
      %v2297 = vsel %vm2265, 1, 0
      %v2298 = vsel %vm2266, 1, 0
      %v2299 = vsel %vm2267, 1, 0
      %v2300 = vsel %vm2268, 1, 0
      %v2301 = vsel %vm2269, 1, 0
      %v2302 = vsel %vm2270, 1, 0
      %v2303 = vsel %vm2271, 1, 0
      %v2304 = vsel %vm2272, 1, 0
      %v2305 = vsel %vm2273, 1, 0
      %v2306 = vadd.s32 %v2114, %v2274
      %v2307 = vadd.s32 %v2115, %v2275
      %v2308 = vadd.s32 %v2116, %v2276
      %v2309 = vadd.s32 %v2117, %v2277
      %v2310 = vadd.s32 %v2118, %v2278
      %v2311 = vadd.s32 %v2119, %v2279
      %v2312 = vadd.s32 %v2120, %v2280
      %v2313 = vadd.s32 %v2121, %v2281
      %v2314 = vadd.s32 %v2122, %v2282
      %v2315 = vadd.s32 %v2123, %v2283
      %v2316 = vadd.s32 %v2124, %v2284
      %v2317 = vadd.s32 %v2125, %v2285
      %v2318 = vadd.s32 %v2126, %v2286
      %v2319 = vadd.s32 %v2127, %v2287
      %v2320 = vadd.s32 %v2128, %v2288
      %v2321 = vadd.s32 %v2129, %v2289
      %v2322 = vadd.s32 %v2130, %v2290
      %v2323 = vadd.s32 %v2131, %v2291
      %v2324 = vadd.s32 %v2132, %v2292
      %v2325 = vadd.s32 %v2133, %v2293
      %v2326 = vadd.s32 %v2134, %v2294
      %v2327 = vadd.s32 %v2135, %v2295
      %v2328 = vadd.s32 %v2136, %v2296
      %v2329 = vadd.s32 %v2137, %v2297
      %v2330 = vadd.s32 %v2138, %v2298
      %v2331 = vadd.s32 %v2139, %v2299
      %v2332 = vadd.s32 %v2140, %v2300
      %v2333 = vadd.s32 %v2141, %v2301
      %v2334 = vadd.s32 %v2142, %v2302
      %v2335 = vadd.s32 %v2143, %v2303
      %v2336 = vadd.s32 %v2144, %v2304
      %v2337 = vadd.s32 %v2145, %v2305
      %2338 = vset.pattern.permute.xlu0 11
      %2339 = vperm.xlu0 %2338, %v224
      %v2340 = vpop.permute.xlu0 %2339
      %2341 = vset.pattern.permute.xlu0 11
      %2342 = vperm.xlu0 %2341, %v225
      %v2343 = vpop.permute.xlu0 %2342
      %2344 = vset.pattern.permute.xlu0 11
      %2345 = vperm.xlu0 %2344, %v226
      %v2346 = vpop.permute.xlu0 %2345
      %2347 = vset.pattern.permute.xlu0 11
      %2348 = vperm.xlu0 %2347, %v227
      %v2349 = vpop.permute.xlu0 %2348
      %2350 = vset.pattern.permute.xlu0 11
      %2351 = vperm.xlu0 %2350, %v228
      %v2352 = vpop.permute.xlu0 %2351
      %2353 = vset.pattern.permute.xlu0 11
      %2354 = vperm.xlu0 %2353, %v229
      %v2355 = vpop.permute.xlu0 %2354
      %2356 = vset.pattern.permute.xlu0 11
      %2357 = vperm.xlu0 %2356, %v230
      %v2358 = vpop.permute.xlu0 %2357
      %2359 = vset.pattern.permute.xlu0 11
      %2360 = vperm.xlu0 %2359, %v231
      %v2361 = vpop.permute.xlu0 %2360
      %2362 = vset.pattern.permute.xlu0 11
      %2363 = vperm.xlu0 %2362, %v232
      %v2364 = vpop.permute.xlu0 %2363
      %2365 = vset.pattern.permute.xlu0 11
      %2366 = vperm.xlu0 %2365, %v233
      %v2367 = vpop.permute.xlu0 %2366
      %2368 = vset.pattern.permute.xlu0 11
      %2369 = vperm.xlu0 %2368, %v234
      %v2370 = vpop.permute.xlu0 %2369
      %2371 = vset.pattern.permute.xlu0 11
      %2372 = vperm.xlu0 %2371, %v235
      %v2373 = vpop.permute.xlu0 %2372
      %2374 = vset.pattern.permute.xlu0 11
      %2375 = vperm.xlu0 %2374, %v236
      %v2376 = vpop.permute.xlu0 %2375
      %2377 = vset.pattern.permute.xlu0 11
      %2378 = vperm.xlu0 %2377, %v237
      %v2379 = vpop.permute.xlu0 %2378
      %2380 = vset.pattern.permute.xlu0 11
      %2381 = vperm.xlu0 %2380, %v238
      %v2382 = vpop.permute.xlu0 %2381
      %2383 = vset.pattern.permute.xlu0 11
      %2384 = vperm.xlu0 %2383, %v239
      %v2385 = vpop.permute.xlu0 %2384
      %2386 = vset.pattern.permute.xlu0 11
      %2387 = vperm.xlu0 %2386, %v240
      %v2388 = vpop.permute.xlu0 %2387
      %2389 = vset.pattern.permute.xlu0 11
      %2390 = vperm.xlu0 %2389, %v241
      %v2391 = vpop.permute.xlu0 %2390
      %2392 = vset.pattern.permute.xlu0 11
      %2393 = vperm.xlu0 %2392, %v242
      %v2394 = vpop.permute.xlu0 %2393
      %2395 = vset.pattern.permute.xlu0 11
      %2396 = vperm.xlu0 %2395, %v243
      %v2397 = vpop.permute.xlu0 %2396
      %2398 = vset.pattern.permute.xlu0 11
      %2399 = vperm.xlu0 %2398, %v244
      %v2400 = vpop.permute.xlu0 %2399
      %2401 = vset.pattern.permute.xlu0 11
      %2402 = vperm.xlu0 %2401, %v245
      %v2403 = vpop.permute.xlu0 %2402
      %2404 = vset.pattern.permute.xlu0 11
      %2405 = vperm.xlu0 %2404, %v246
      %v2406 = vpop.permute.xlu0 %2405
      %2407 = vset.pattern.permute.xlu0 11
      %2408 = vperm.xlu0 %2407, %v247
      %v2409 = vpop.permute.xlu0 %2408
      %2410 = vset.pattern.permute.xlu0 11
      %2411 = vperm.xlu0 %2410, %v248
      %v2412 = vpop.permute.xlu0 %2411
      %2413 = vset.pattern.permute.xlu0 11
      %2414 = vperm.xlu0 %2413, %v249
      %v2415 = vpop.permute.xlu0 %2414
      %2416 = vset.pattern.permute.xlu0 11
      %2417 = vperm.xlu0 %2416, %v250
      %v2418 = vpop.permute.xlu0 %2417
      %2419 = vset.pattern.permute.xlu0 11
      %2420 = vperm.xlu0 %2419, %v251
      %v2421 = vpop.permute.xlu0 %2420
      %2422 = vset.pattern.permute.xlu0 11
      %2423 = vperm.xlu0 %2422, %v252
      %v2424 = vpop.permute.xlu0 %2423
      %2425 = vset.pattern.permute.xlu0 11
      %2426 = vperm.xlu0 %2425, %v253
      %v2427 = vpop.permute.xlu0 %2426
      %2428 = vset.pattern.permute.xlu0 11
      %2429 = vperm.xlu0 %2428, %v254
      %v2430 = vpop.permute.xlu0 %2429
      %2431 = vset.pattern.permute.xlu0 11
      %2432 = vperm.xlu0 %2431, %v255
      %v2433 = vpop.permute.xlu0 %2432
      %vm2434 = vcmp.eq.s32.totalorder %v257, %v2340
      %vm2435 = vcmp.eq.s32.totalorder %v257, %v2343
      %vm2436 = vcmp.eq.s32.totalorder %v257, %v2346
      %vm2437 = vcmp.eq.s32.totalorder %v257, %v2349
      %vm2438 = vcmp.eq.s32.totalorder %v257, %v2352
      %vm2439 = vcmp.eq.s32.totalorder %v257, %v2355
      %vm2440 = vcmp.eq.s32.totalorder %v257, %v2358
      %vm2441 = vcmp.eq.s32.totalorder %v257, %v2361
      %vm2442 = vcmp.eq.s32.totalorder %v257, %v2364
      %vm2443 = vcmp.eq.s32.totalorder %v257, %v2367
      %vm2444 = vcmp.eq.s32.totalorder %v257, %v2370
      %vm2445 = vcmp.eq.s32.totalorder %v257, %v2373
      %vm2446 = vcmp.eq.s32.totalorder %v257, %v2376
      %vm2447 = vcmp.eq.s32.totalorder %v257, %v2379
      %vm2448 = vcmp.eq.s32.totalorder %v257, %v2382
      %vm2449 = vcmp.eq.s32.totalorder %v257, %v2385
      %vm2450 = vcmp.eq.s32.totalorder %v257, %v2388
      %vm2451 = vcmp.eq.s32.totalorder %v257, %v2391
      %vm2452 = vcmp.eq.s32.totalorder %v257, %v2394
      %vm2453 = vcmp.eq.s32.totalorder %v257, %v2397
      %vm2454 = vcmp.eq.s32.totalorder %v257, %v2400
      %vm2455 = vcmp.eq.s32.totalorder %v257, %v2403
      %vm2456 = vcmp.eq.s32.totalorder %v257, %v2406
      %vm2457 = vcmp.eq.s32.totalorder %v257, %v2409
      %vm2458 = vcmp.eq.s32.totalorder %v257, %v2412
      %vm2459 = vcmp.eq.s32.totalorder %v257, %v2415
      %vm2460 = vcmp.eq.s32.totalorder %v257, %v2418
      %vm2461 = vcmp.eq.s32.totalorder %v257, %v2421
      %vm2462 = vcmp.eq.s32.totalorder %v257, %v2424
      %vm2463 = vcmp.eq.s32.totalorder %v257, %v2427
      %vm2464 = vcmp.eq.s32.totalorder %v257, %v2430
      %vm2465 = vcmp.eq.s32.totalorder %v257, %v2433
      %v2466 = vsel %vm2434, 1, 0
      %v2467 = vsel %vm2435, 1, 0
      %v2468 = vsel %vm2436, 1, 0
      %v2469 = vsel %vm2437, 1, 0
      %v2470 = vsel %vm2438, 1, 0
      %v2471 = vsel %vm2439, 1, 0
      %v2472 = vsel %vm2440, 1, 0
      %v2473 = vsel %vm2441, 1, 0
      %v2474 = vsel %vm2442, 1, 0
      %v2475 = vsel %vm2443, 1, 0
      %v2476 = vsel %vm2444, 1, 0
      %v2477 = vsel %vm2445, 1, 0
      %v2478 = vsel %vm2446, 1, 0
      %v2479 = vsel %vm2447, 1, 0
      %v2480 = vsel %vm2448, 1, 0
      %v2481 = vsel %vm2449, 1, 0
      %v2482 = vsel %vm2450, 1, 0
      %v2483 = vsel %vm2451, 1, 0
      %v2484 = vsel %vm2452, 1, 0
      %v2485 = vsel %vm2453, 1, 0
      %v2486 = vsel %vm2454, 1, 0
      %v2487 = vsel %vm2455, 1, 0
      %v2488 = vsel %vm2456, 1, 0
      %v2489 = vsel %vm2457, 1, 0
      %v2490 = vsel %vm2458, 1, 0
      %v2491 = vsel %vm2459, 1, 0
      %v2492 = vsel %vm2460, 1, 0
      %v2493 = vsel %vm2461, 1, 0
      %v2494 = vsel %vm2462, 1, 0
      %v2495 = vsel %vm2463, 1, 0
      %v2496 = vsel %vm2464, 1, 0
      %v2497 = vsel %vm2465, 1, 0
      %v2498 = vadd.s32 %v2306, %v2466
      %v2499 = vadd.s32 %v2307, %v2467
      %v2500 = vadd.s32 %v2308, %v2468
      %v2501 = vadd.s32 %v2309, %v2469
      %v2502 = vadd.s32 %v2310, %v2470
      %v2503 = vadd.s32 %v2311, %v2471
      %v2504 = vadd.s32 %v2312, %v2472
      %v2505 = vadd.s32 %v2313, %v2473
      %v2506 = vadd.s32 %v2314, %v2474
      %v2507 = vadd.s32 %v2315, %v2475
      %v2508 = vadd.s32 %v2316, %v2476
      %v2509 = vadd.s32 %v2317, %v2477
      %v2510 = vadd.s32 %v2318, %v2478
      %v2511 = vadd.s32 %v2319, %v2479
      %v2512 = vadd.s32 %v2320, %v2480
      %v2513 = vadd.s32 %v2321, %v2481
      %v2514 = vadd.s32 %v2322, %v2482
      %v2515 = vadd.s32 %v2323, %v2483
      %v2516 = vadd.s32 %v2324, %v2484
      %v2517 = vadd.s32 %v2325, %v2485
      %v2518 = vadd.s32 %v2326, %v2486
      %v2519 = vadd.s32 %v2327, %v2487
      %v2520 = vadd.s32 %v2328, %v2488
      %v2521 = vadd.s32 %v2329, %v2489
      %v2522 = vadd.s32 %v2330, %v2490
      %v2523 = vadd.s32 %v2331, %v2491
      %v2524 = vadd.s32 %v2332, %v2492
      %v2525 = vadd.s32 %v2333, %v2493
      %v2526 = vadd.s32 %v2334, %v2494
      %v2527 = vadd.s32 %v2335, %v2495
      %v2528 = vadd.s32 %v2336, %v2496
      %v2529 = vadd.s32 %v2337, %v2497
      %2530 = vset.pattern.permute.xlu0 12
      %2531 = vperm.xlu0 %2530, %v224
      %v2532 = vpop.permute.xlu0 %2531
      %2533 = vset.pattern.permute.xlu0 12
      %2534 = vperm.xlu0 %2533, %v225
      %v2535 = vpop.permute.xlu0 %2534
      %2536 = vset.pattern.permute.xlu0 12
      %2537 = vperm.xlu0 %2536, %v226
      %v2538 = vpop.permute.xlu0 %2537
      %2539 = vset.pattern.permute.xlu0 12
      %2540 = vperm.xlu0 %2539, %v227
      %v2541 = vpop.permute.xlu0 %2540
      %2542 = vset.pattern.permute.xlu0 12
      %2543 = vperm.xlu0 %2542, %v228
      %v2544 = vpop.permute.xlu0 %2543
      %2545 = vset.pattern.permute.xlu0 12
      %2546 = vperm.xlu0 %2545, %v229
      %v2547 = vpop.permute.xlu0 %2546
      %2548 = vset.pattern.permute.xlu0 12
      %2549 = vperm.xlu0 %2548, %v230
      %v2550 = vpop.permute.xlu0 %2549
      %2551 = vset.pattern.permute.xlu0 12
      %2552 = vperm.xlu0 %2551, %v231
      %v2553 = vpop.permute.xlu0 %2552
      %2554 = vset.pattern.permute.xlu0 12
      %2555 = vperm.xlu0 %2554, %v232
      %v2556 = vpop.permute.xlu0 %2555
      %2557 = vset.pattern.permute.xlu0 12
      %2558 = vperm.xlu0 %2557, %v233
      %v2559 = vpop.permute.xlu0 %2558
      %2560 = vset.pattern.permute.xlu0 12
      %2561 = vperm.xlu0 %2560, %v234
      %v2562 = vpop.permute.xlu0 %2561
      %2563 = vset.pattern.permute.xlu0 12
      %2564 = vperm.xlu0 %2563, %v235
      %v2565 = vpop.permute.xlu0 %2564
      %2566 = vset.pattern.permute.xlu0 12
      %2567 = vperm.xlu0 %2566, %v236
      %v2568 = vpop.permute.xlu0 %2567
      %2569 = vset.pattern.permute.xlu0 12
      %2570 = vperm.xlu0 %2569, %v237
      %v2571 = vpop.permute.xlu0 %2570
      %2572 = vset.pattern.permute.xlu0 12
      %2573 = vperm.xlu0 %2572, %v238
      %v2574 = vpop.permute.xlu0 %2573
      %2575 = vset.pattern.permute.xlu0 12
      %2576 = vperm.xlu0 %2575, %v239
      %v2577 = vpop.permute.xlu0 %2576
      %2578 = vset.pattern.permute.xlu0 12
      %2579 = vperm.xlu0 %2578, %v240
      %v2580 = vpop.permute.xlu0 %2579
      %2581 = vset.pattern.permute.xlu0 12
      %2582 = vperm.xlu0 %2581, %v241
      %v2583 = vpop.permute.xlu0 %2582
      %2584 = vset.pattern.permute.xlu0 12
      %2585 = vperm.xlu0 %2584, %v242
      %v2586 = vpop.permute.xlu0 %2585
      %2587 = vset.pattern.permute.xlu0 12
      %2588 = vperm.xlu0 %2587, %v243
      %v2589 = vpop.permute.xlu0 %2588
      %2590 = vset.pattern.permute.xlu0 12
      %2591 = vperm.xlu0 %2590, %v244
      %v2592 = vpop.permute.xlu0 %2591
      %2593 = vset.pattern.permute.xlu0 12
      %2594 = vperm.xlu0 %2593, %v245
      %v2595 = vpop.permute.xlu0 %2594
      %2596 = vset.pattern.permute.xlu0 12
      %2597 = vperm.xlu0 %2596, %v246
      %v2598 = vpop.permute.xlu0 %2597
      %2599 = vset.pattern.permute.xlu0 12
      %2600 = vperm.xlu0 %2599, %v247
      %v2601 = vpop.permute.xlu0 %2600
      %2602 = vset.pattern.permute.xlu0 12
      %2603 = vperm.xlu0 %2602, %v248
      %v2604 = vpop.permute.xlu0 %2603
      %2605 = vset.pattern.permute.xlu0 12
      %2606 = vperm.xlu0 %2605, %v249
      %v2607 = vpop.permute.xlu0 %2606
      %2608 = vset.pattern.permute.xlu0 12
      %2609 = vperm.xlu0 %2608, %v250
      %v2610 = vpop.permute.xlu0 %2609
      %2611 = vset.pattern.permute.xlu0 12
      %2612 = vperm.xlu0 %2611, %v251
      %v2613 = vpop.permute.xlu0 %2612
      %2614 = vset.pattern.permute.xlu0 12
      %2615 = vperm.xlu0 %2614, %v252
      %v2616 = vpop.permute.xlu0 %2615
      %2617 = vset.pattern.permute.xlu0 12
      %2618 = vperm.xlu0 %2617, %v253
      %v2619 = vpop.permute.xlu0 %2618
      %2620 = vset.pattern.permute.xlu0 12
      %2621 = vperm.xlu0 %2620, %v254
      %v2622 = vpop.permute.xlu0 %2621
      %2623 = vset.pattern.permute.xlu0 12
      %2624 = vperm.xlu0 %2623, %v255
      %v2625 = vpop.permute.xlu0 %2624
      %vm2626 = vcmp.eq.s32.totalorder %v257, %v2532
      %vm2627 = vcmp.eq.s32.totalorder %v257, %v2535
      %vm2628 = vcmp.eq.s32.totalorder %v257, %v2538
      %vm2629 = vcmp.eq.s32.totalorder %v257, %v2541
      %vm2630 = vcmp.eq.s32.totalorder %v257, %v2544
      %vm2631 = vcmp.eq.s32.totalorder %v257, %v2547
      %vm2632 = vcmp.eq.s32.totalorder %v257, %v2550
      %vm2633 = vcmp.eq.s32.totalorder %v257, %v2553
      %vm2634 = vcmp.eq.s32.totalorder %v257, %v2556
      %vm2635 = vcmp.eq.s32.totalorder %v257, %v2559
      %vm2636 = vcmp.eq.s32.totalorder %v257, %v2562
      %vm2637 = vcmp.eq.s32.totalorder %v257, %v2565
      %vm2638 = vcmp.eq.s32.totalorder %v257, %v2568
      %vm2639 = vcmp.eq.s32.totalorder %v257, %v2571
      %vm2640 = vcmp.eq.s32.totalorder %v257, %v2574
      %vm2641 = vcmp.eq.s32.totalorder %v257, %v2577
      %vm2642 = vcmp.eq.s32.totalorder %v257, %v2580
      %vm2643 = vcmp.eq.s32.totalorder %v257, %v2583
      %vm2644 = vcmp.eq.s32.totalorder %v257, %v2586
      %vm2645 = vcmp.eq.s32.totalorder %v257, %v2589
      %vm2646 = vcmp.eq.s32.totalorder %v257, %v2592
      %vm2647 = vcmp.eq.s32.totalorder %v257, %v2595
      %vm2648 = vcmp.eq.s32.totalorder %v257, %v2598
      %vm2649 = vcmp.eq.s32.totalorder %v257, %v2601
      %vm2650 = vcmp.eq.s32.totalorder %v257, %v2604
      %vm2651 = vcmp.eq.s32.totalorder %v257, %v2607
      %vm2652 = vcmp.eq.s32.totalorder %v257, %v2610
      %vm2653 = vcmp.eq.s32.totalorder %v257, %v2613
      %vm2654 = vcmp.eq.s32.totalorder %v257, %v2616
      %vm2655 = vcmp.eq.s32.totalorder %v257, %v2619
      %vm2656 = vcmp.eq.s32.totalorder %v257, %v2622
      %vm2657 = vcmp.eq.s32.totalorder %v257, %v2625
      %v2658 = vsel %vm2626, 1, 0
      %v2659 = vsel %vm2627, 1, 0
      %v2660 = vsel %vm2628, 1, 0
      %v2661 = vsel %vm2629, 1, 0
      %v2662 = vsel %vm2630, 1, 0
      %v2663 = vsel %vm2631, 1, 0
      %v2664 = vsel %vm2632, 1, 0
      %v2665 = vsel %vm2633, 1, 0
      %v2666 = vsel %vm2634, 1, 0
      %v2667 = vsel %vm2635, 1, 0
      %v2668 = vsel %vm2636, 1, 0
      %v2669 = vsel %vm2637, 1, 0
      %v2670 = vsel %vm2638, 1, 0
      %v2671 = vsel %vm2639, 1, 0
      %v2672 = vsel %vm2640, 1, 0
      %v2673 = vsel %vm2641, 1, 0
      %v2674 = vsel %vm2642, 1, 0
      %v2675 = vsel %vm2643, 1, 0
      %v2676 = vsel %vm2644, 1, 0
      %v2677 = vsel %vm2645, 1, 0
      %v2678 = vsel %vm2646, 1, 0
      %v2679 = vsel %vm2647, 1, 0
      %v2680 = vsel %vm2648, 1, 0
      %v2681 = vsel %vm2649, 1, 0
      %v2682 = vsel %vm2650, 1, 0
      %v2683 = vsel %vm2651, 1, 0
      %v2684 = vsel %vm2652, 1, 0
      %v2685 = vsel %vm2653, 1, 0
      %v2686 = vsel %vm2654, 1, 0
      %v2687 = vsel %vm2655, 1, 0
      %v2688 = vsel %vm2656, 1, 0
      %v2689 = vsel %vm2657, 1, 0
      %v2690 = vadd.s32 %v2498, %v2658
      %v2691 = vadd.s32 %v2499, %v2659
      %v2692 = vadd.s32 %v2500, %v2660
      %v2693 = vadd.s32 %v2501, %v2661
      %v2694 = vadd.s32 %v2502, %v2662
      %v2695 = vadd.s32 %v2503, %v2663
      %v2696 = vadd.s32 %v2504, %v2664
      %v2697 = vadd.s32 %v2505, %v2665
      %v2698 = vadd.s32 %v2506, %v2666
      %v2699 = vadd.s32 %v2507, %v2667
      %v2700 = vadd.s32 %v2508, %v2668
      %v2701 = vadd.s32 %v2509, %v2669
      %v2702 = vadd.s32 %v2510, %v2670
      %v2703 = vadd.s32 %v2511, %v2671
      %v2704 = vadd.s32 %v2512, %v2672
      %v2705 = vadd.s32 %v2513, %v2673
      %v2706 = vadd.s32 %v2514, %v2674
      %v2707 = vadd.s32 %v2515, %v2675
      %v2708 = vadd.s32 %v2516, %v2676
      %v2709 = vadd.s32 %v2517, %v2677
      %v2710 = vadd.s32 %v2518, %v2678
      %v2711 = vadd.s32 %v2519, %v2679
      %v2712 = vadd.s32 %v2520, %v2680
      %v2713 = vadd.s32 %v2521, %v2681
      %v2714 = vadd.s32 %v2522, %v2682
      %v2715 = vadd.s32 %v2523, %v2683
      %v2716 = vadd.s32 %v2524, %v2684
      %v2717 = vadd.s32 %v2525, %v2685
      %v2718 = vadd.s32 %v2526, %v2686
      %v2719 = vadd.s32 %v2527, %v2687
      %v2720 = vadd.s32 %v2528, %v2688
      %v2721 = vadd.s32 %v2529, %v2689
      %2722 = vset.pattern.permute.xlu0 13
      %2723 = vperm.xlu0 %2722, %v224
      %v2724 = vpop.permute.xlu0 %2723
      %2725 = vset.pattern.permute.xlu0 13
      %2726 = vperm.xlu0 %2725, %v225
      %v2727 = vpop.permute.xlu0 %2726
      %2728 = vset.pattern.permute.xlu0 13
      %2729 = vperm.xlu0 %2728, %v226
      %v2730 = vpop.permute.xlu0 %2729
      %2731 = vset.pattern.permute.xlu0 13
      %2732 = vperm.xlu0 %2731, %v227
      %v2733 = vpop.permute.xlu0 %2732
      %2734 = vset.pattern.permute.xlu0 13
      %2735 = vperm.xlu0 %2734, %v228
      %v2736 = vpop.permute.xlu0 %2735
      %2737 = vset.pattern.permute.xlu0 13
      %2738 = vperm.xlu0 %2737, %v229
      %v2739 = vpop.permute.xlu0 %2738
      %2740 = vset.pattern.permute.xlu0 13
      %2741 = vperm.xlu0 %2740, %v230
      %v2742 = vpop.permute.xlu0 %2741
      %2743 = vset.pattern.permute.xlu0 13
      %2744 = vperm.xlu0 %2743, %v231
      %v2745 = vpop.permute.xlu0 %2744
      %2746 = vset.pattern.permute.xlu0 13
      %2747 = vperm.xlu0 %2746, %v232
      %v2748 = vpop.permute.xlu0 %2747
      %2749 = vset.pattern.permute.xlu0 13
      %2750 = vperm.xlu0 %2749, %v233
      %v2751 = vpop.permute.xlu0 %2750
      %2752 = vset.pattern.permute.xlu0 13
      %2753 = vperm.xlu0 %2752, %v234
      %v2754 = vpop.permute.xlu0 %2753
      %2755 = vset.pattern.permute.xlu0 13
      %2756 = vperm.xlu0 %2755, %v235
      %v2757 = vpop.permute.xlu0 %2756
      %2758 = vset.pattern.permute.xlu0 13
      %2759 = vperm.xlu0 %2758, %v236
      %v2760 = vpop.permute.xlu0 %2759
      %2761 = vset.pattern.permute.xlu0 13
      %2762 = vperm.xlu0 %2761, %v237
      %v2763 = vpop.permute.xlu0 %2762
      %2764 = vset.pattern.permute.xlu0 13
      %2765 = vperm.xlu0 %2764, %v238
      %v2766 = vpop.permute.xlu0 %2765
      %2767 = vset.pattern.permute.xlu0 13
      %2768 = vperm.xlu0 %2767, %v239
      %v2769 = vpop.permute.xlu0 %2768
      %2770 = vset.pattern.permute.xlu0 13
      %2771 = vperm.xlu0 %2770, %v240
      %v2772 = vpop.permute.xlu0 %2771
      %2773 = vset.pattern.permute.xlu0 13
      %2774 = vperm.xlu0 %2773, %v241
      %v2775 = vpop.permute.xlu0 %2774
      %2776 = vset.pattern.permute.xlu0 13
      %2777 = vperm.xlu0 %2776, %v242
      %v2778 = vpop.permute.xlu0 %2777
      %2779 = vset.pattern.permute.xlu0 13
      %2780 = vperm.xlu0 %2779, %v243
      %v2781 = vpop.permute.xlu0 %2780
      %2782 = vset.pattern.permute.xlu0 13
      %2783 = vperm.xlu0 %2782, %v244
      %v2784 = vpop.permute.xlu0 %2783
      %2785 = vset.pattern.permute.xlu0 13
      %2786 = vperm.xlu0 %2785, %v245
      %v2787 = vpop.permute.xlu0 %2786
      %2788 = vset.pattern.permute.xlu0 13
      %2789 = vperm.xlu0 %2788, %v246
      %v2790 = vpop.permute.xlu0 %2789
      %2791 = vset.pattern.permute.xlu0 13
      %2792 = vperm.xlu0 %2791, %v247
      %v2793 = vpop.permute.xlu0 %2792
      %2794 = vset.pattern.permute.xlu0 13
      %2795 = vperm.xlu0 %2794, %v248
      %v2796 = vpop.permute.xlu0 %2795
      %2797 = vset.pattern.permute.xlu0 13
      %2798 = vperm.xlu0 %2797, %v249
      %v2799 = vpop.permute.xlu0 %2798
      %2800 = vset.pattern.permute.xlu0 13
      %2801 = vperm.xlu0 %2800, %v250
      %v2802 = vpop.permute.xlu0 %2801
      %2803 = vset.pattern.permute.xlu0 13
      %2804 = vperm.xlu0 %2803, %v251
      %v2805 = vpop.permute.xlu0 %2804
      %2806 = vset.pattern.permute.xlu0 13
      %2807 = vperm.xlu0 %2806, %v252
      %v2808 = vpop.permute.xlu0 %2807
      %2809 = vset.pattern.permute.xlu0 13
      %2810 = vperm.xlu0 %2809, %v253
      %v2811 = vpop.permute.xlu0 %2810
      %2812 = vset.pattern.permute.xlu0 13
      %2813 = vperm.xlu0 %2812, %v254
      %v2814 = vpop.permute.xlu0 %2813
      %2815 = vset.pattern.permute.xlu0 13
      %2816 = vperm.xlu0 %2815, %v255
      %v2817 = vpop.permute.xlu0 %2816
      %vm2818 = vcmp.eq.s32.totalorder %v257, %v2724
      %vm2819 = vcmp.eq.s32.totalorder %v257, %v2727
      %vm2820 = vcmp.eq.s32.totalorder %v257, %v2730
      %vm2821 = vcmp.eq.s32.totalorder %v257, %v2733
      %vm2822 = vcmp.eq.s32.totalorder %v257, %v2736
      %vm2823 = vcmp.eq.s32.totalorder %v257, %v2739
      %vm2824 = vcmp.eq.s32.totalorder %v257, %v2742
      %vm2825 = vcmp.eq.s32.totalorder %v257, %v2745
      %vm2826 = vcmp.eq.s32.totalorder %v257, %v2748
      %vm2827 = vcmp.eq.s32.totalorder %v257, %v2751
      %vm2828 = vcmp.eq.s32.totalorder %v257, %v2754
      %vm2829 = vcmp.eq.s32.totalorder %v257, %v2757
      %vm2830 = vcmp.eq.s32.totalorder %v257, %v2760
      %vm2831 = vcmp.eq.s32.totalorder %v257, %v2763
      %vm2832 = vcmp.eq.s32.totalorder %v257, %v2766
      %vm2833 = vcmp.eq.s32.totalorder %v257, %v2769
      %vm2834 = vcmp.eq.s32.totalorder %v257, %v2772
      %vm2835 = vcmp.eq.s32.totalorder %v257, %v2775
      %vm2836 = vcmp.eq.s32.totalorder %v257, %v2778
      %vm2837 = vcmp.eq.s32.totalorder %v257, %v2781
      %vm2838 = vcmp.eq.s32.totalorder %v257, %v2784
      %vm2839 = vcmp.eq.s32.totalorder %v257, %v2787
      %vm2840 = vcmp.eq.s32.totalorder %v257, %v2790
      %vm2841 = vcmp.eq.s32.totalorder %v257, %v2793
      %vm2842 = vcmp.eq.s32.totalorder %v257, %v2796
      %vm2843 = vcmp.eq.s32.totalorder %v257, %v2799
      %vm2844 = vcmp.eq.s32.totalorder %v257, %v2802
      %vm2845 = vcmp.eq.s32.totalorder %v257, %v2805
      %vm2846 = vcmp.eq.s32.totalorder %v257, %v2808
      %vm2847 = vcmp.eq.s32.totalorder %v257, %v2811
      %vm2848 = vcmp.eq.s32.totalorder %v257, %v2814
      %vm2849 = vcmp.eq.s32.totalorder %v257, %v2817
      %v2850 = vsel %vm2818, 1, 0
      %v2851 = vsel %vm2819, 1, 0
      %v2852 = vsel %vm2820, 1, 0
      %v2853 = vsel %vm2821, 1, 0
      %v2854 = vsel %vm2822, 1, 0
      %v2855 = vsel %vm2823, 1, 0
      %v2856 = vsel %vm2824, 1, 0
      %v2857 = vsel %vm2825, 1, 0
      %v2858 = vsel %vm2826, 1, 0
      %v2859 = vsel %vm2827, 1, 0
      %v2860 = vsel %vm2828, 1, 0
      %v2861 = vsel %vm2829, 1, 0
      %v2862 = vsel %vm2830, 1, 0
      %v2863 = vsel %vm2831, 1, 0
      %v2864 = vsel %vm2832, 1, 0
      %v2865 = vsel %vm2833, 1, 0
      %v2866 = vsel %vm2834, 1, 0
      %v2867 = vsel %vm2835, 1, 0
      %v2868 = vsel %vm2836, 1, 0
      %v2869 = vsel %vm2837, 1, 0
      %v2870 = vsel %vm2838, 1, 0
      %v2871 = vsel %vm2839, 1, 0
      %v2872 = vsel %vm2840, 1, 0
      %v2873 = vsel %vm2841, 1, 0
      %v2874 = vsel %vm2842, 1, 0
      %v2875 = vsel %vm2843, 1, 0
      %v2876 = vsel %vm2844, 1, 0
      %v2877 = vsel %vm2845, 1, 0
      %v2878 = vsel %vm2846, 1, 0
      %v2879 = vsel %vm2847, 1, 0
      %v2880 = vsel %vm2848, 1, 0
      %v2881 = vsel %vm2849, 1, 0
      %v2882 = vadd.s32 %v2690, %v2850
      %v2883 = vadd.s32 %v2691, %v2851
      %v2884 = vadd.s32 %v2692, %v2852
      %v2885 = vadd.s32 %v2693, %v2853
      %v2886 = vadd.s32 %v2694, %v2854
      %v2887 = vadd.s32 %v2695, %v2855
      %v2888 = vadd.s32 %v2696, %v2856
      %v2889 = vadd.s32 %v2697, %v2857
      %v2890 = vadd.s32 %v2698, %v2858
      %v2891 = vadd.s32 %v2699, %v2859
      %v2892 = vadd.s32 %v2700, %v2860
      %v2893 = vadd.s32 %v2701, %v2861
      %v2894 = vadd.s32 %v2702, %v2862
      %v2895 = vadd.s32 %v2703, %v2863
      %v2896 = vadd.s32 %v2704, %v2864
      %v2897 = vadd.s32 %v2705, %v2865
      %v2898 = vadd.s32 %v2706, %v2866
      %v2899 = vadd.s32 %v2707, %v2867
      %v2900 = vadd.s32 %v2708, %v2868
      %v2901 = vadd.s32 %v2709, %v2869
      %v2902 = vadd.s32 %v2710, %v2870
      %v2903 = vadd.s32 %v2711, %v2871
      %v2904 = vadd.s32 %v2712, %v2872
      %v2905 = vadd.s32 %v2713, %v2873
      %v2906 = vadd.s32 %v2714, %v2874
      %v2907 = vadd.s32 %v2715, %v2875
      %v2908 = vadd.s32 %v2716, %v2876
      %v2909 = vadd.s32 %v2717, %v2877
      %v2910 = vadd.s32 %v2718, %v2878
      %v2911 = vadd.s32 %v2719, %v2879
      %v2912 = vadd.s32 %v2720, %v2880
      %v2913 = vadd.s32 %v2721, %v2881
      %2914 = vset.pattern.permute.xlu0 14
      %2915 = vperm.xlu0 %2914, %v224
      %v2916 = vpop.permute.xlu0 %2915
      %2917 = vset.pattern.permute.xlu0 14
      %2918 = vperm.xlu0 %2917, %v225
      %v2919 = vpop.permute.xlu0 %2918
      %2920 = vset.pattern.permute.xlu0 14
      %2921 = vperm.xlu0 %2920, %v226
      %v2922 = vpop.permute.xlu0 %2921
      %2923 = vset.pattern.permute.xlu0 14
      %2924 = vperm.xlu0 %2923, %v227
      %v2925 = vpop.permute.xlu0 %2924
      %2926 = vset.pattern.permute.xlu0 14
      %2927 = vperm.xlu0 %2926, %v228
      %v2928 = vpop.permute.xlu0 %2927
      %2929 = vset.pattern.permute.xlu0 14
      %2930 = vperm.xlu0 %2929, %v229
      %v2931 = vpop.permute.xlu0 %2930
      %2932 = vset.pattern.permute.xlu0 14
      %2933 = vperm.xlu0 %2932, %v230
      %v2934 = vpop.permute.xlu0 %2933
      %2935 = vset.pattern.permute.xlu0 14
      %2936 = vperm.xlu0 %2935, %v231
      %v2937 = vpop.permute.xlu0 %2936
      %2938 = vset.pattern.permute.xlu0 14
      %2939 = vperm.xlu0 %2938, %v232
      %v2940 = vpop.permute.xlu0 %2939
      %2941 = vset.pattern.permute.xlu0 14
      %2942 = vperm.xlu0 %2941, %v233
      %v2943 = vpop.permute.xlu0 %2942
      %2944 = vset.pattern.permute.xlu0 14
      %2945 = vperm.xlu0 %2944, %v234
      %v2946 = vpop.permute.xlu0 %2945
      %2947 = vset.pattern.permute.xlu0 14
      %2948 = vperm.xlu0 %2947, %v235
      %v2949 = vpop.permute.xlu0 %2948
      %2950 = vset.pattern.permute.xlu0 14
      %2951 = vperm.xlu0 %2950, %v236
      %v2952 = vpop.permute.xlu0 %2951
      %2953 = vset.pattern.permute.xlu0 14
      %2954 = vperm.xlu0 %2953, %v237
      %v2955 = vpop.permute.xlu0 %2954
      %2956 = vset.pattern.permute.xlu0 14
      %2957 = vperm.xlu0 %2956, %v238
      %v2958 = vpop.permute.xlu0 %2957
      %2959 = vset.pattern.permute.xlu0 14
      %2960 = vperm.xlu0 %2959, %v239
      %v2961 = vpop.permute.xlu0 %2960
      %2962 = vset.pattern.permute.xlu0 14
      %2963 = vperm.xlu0 %2962, %v240
      %v2964 = vpop.permute.xlu0 %2963
      %2965 = vset.pattern.permute.xlu0 14
      %2966 = vperm.xlu0 %2965, %v241
      %v2967 = vpop.permute.xlu0 %2966
      %2968 = vset.pattern.permute.xlu0 14
      %2969 = vperm.xlu0 %2968, %v242
      %v2970 = vpop.permute.xlu0 %2969
      %2971 = vset.pattern.permute.xlu0 14
      %2972 = vperm.xlu0 %2971, %v243
      %v2973 = vpop.permute.xlu0 %2972
      %2974 = vset.pattern.permute.xlu0 14
      %2975 = vperm.xlu0 %2974, %v244
      %v2976 = vpop.permute.xlu0 %2975
      %2977 = vset.pattern.permute.xlu0 14
      %2978 = vperm.xlu0 %2977, %v245
      %v2979 = vpop.permute.xlu0 %2978
      %2980 = vset.pattern.permute.xlu0 14
      %2981 = vperm.xlu0 %2980, %v246
      %v2982 = vpop.permute.xlu0 %2981
      %2983 = vset.pattern.permute.xlu0 14
      %2984 = vperm.xlu0 %2983, %v247
      %v2985 = vpop.permute.xlu0 %2984
      %2986 = vset.pattern.permute.xlu0 14
      %2987 = vperm.xlu0 %2986, %v248
      %v2988 = vpop.permute.xlu0 %2987
      %2989 = vset.pattern.permute.xlu0 14
      %2990 = vperm.xlu0 %2989, %v249
      %v2991 = vpop.permute.xlu0 %2990
      %2992 = vset.pattern.permute.xlu0 14
      %2993 = vperm.xlu0 %2992, %v250
      %v2994 = vpop.permute.xlu0 %2993
      %2995 = vset.pattern.permute.xlu0 14
      %2996 = vperm.xlu0 %2995, %v251
      %v2997 = vpop.permute.xlu0 %2996
      %2998 = vset.pattern.permute.xlu0 14
      %2999 = vperm.xlu0 %2998, %v252
      %v3000 = vpop.permute.xlu0 %2999
      %3001 = vset.pattern.permute.xlu0 14
      %3002 = vperm.xlu0 %3001, %v253
      %v3003 = vpop.permute.xlu0 %3002
      %3004 = vset.pattern.permute.xlu0 14
      %3005 = vperm.xlu0 %3004, %v254
      %v3006 = vpop.permute.xlu0 %3005
      %3007 = vset.pattern.permute.xlu0 14
      %3008 = vperm.xlu0 %3007, %v255
      %v3009 = vpop.permute.xlu0 %3008
      %vm3010 = vcmp.eq.s32.totalorder %v257, %v2916
      %vm3011 = vcmp.eq.s32.totalorder %v257, %v2919
      %vm3012 = vcmp.eq.s32.totalorder %v257, %v2922
      %vm3013 = vcmp.eq.s32.totalorder %v257, %v2925
      %vm3014 = vcmp.eq.s32.totalorder %v257, %v2928
      %vm3015 = vcmp.eq.s32.totalorder %v257, %v2931
      %vm3016 = vcmp.eq.s32.totalorder %v257, %v2934
      %vm3017 = vcmp.eq.s32.totalorder %v257, %v2937
      %vm3018 = vcmp.eq.s32.totalorder %v257, %v2940
      %vm3019 = vcmp.eq.s32.totalorder %v257, %v2943
      %vm3020 = vcmp.eq.s32.totalorder %v257, %v2946
      %vm3021 = vcmp.eq.s32.totalorder %v257, %v2949
      %vm3022 = vcmp.eq.s32.totalorder %v257, %v2952
      %vm3023 = vcmp.eq.s32.totalorder %v257, %v2955
      %vm3024 = vcmp.eq.s32.totalorder %v257, %v2958
      %vm3025 = vcmp.eq.s32.totalorder %v257, %v2961
      %vm3026 = vcmp.eq.s32.totalorder %v257, %v2964
      %vm3027 = vcmp.eq.s32.totalorder %v257, %v2967
      %vm3028 = vcmp.eq.s32.totalorder %v257, %v2970
      %vm3029 = vcmp.eq.s32.totalorder %v257, %v2973
      %vm3030 = vcmp.eq.s32.totalorder %v257, %v2976
      %vm3031 = vcmp.eq.s32.totalorder %v257, %v2979
      %vm3032 = vcmp.eq.s32.totalorder %v257, %v2982
      %vm3033 = vcmp.eq.s32.totalorder %v257, %v2985
      %vm3034 = vcmp.eq.s32.totalorder %v257, %v2988
      %vm3035 = vcmp.eq.s32.totalorder %v257, %v2991
      %vm3036 = vcmp.eq.s32.totalorder %v257, %v2994
      %vm3037 = vcmp.eq.s32.totalorder %v257, %v2997
      %vm3038 = vcmp.eq.s32.totalorder %v257, %v3000
      %vm3039 = vcmp.eq.s32.totalorder %v257, %v3003
      %vm3040 = vcmp.eq.s32.totalorder %v257, %v3006
      %vm3041 = vcmp.eq.s32.totalorder %v257, %v3009
      %v3042 = vsel %vm3010, 1, 0
      %v3043 = vsel %vm3011, 1, 0
      %v3044 = vsel %vm3012, 1, 0
      %v3045 = vsel %vm3013, 1, 0
      %v3046 = vsel %vm3014, 1, 0
      %v3047 = vsel %vm3015, 1, 0
      %v3048 = vsel %vm3016, 1, 0
      %v3049 = vsel %vm3017, 1, 0
      %v3050 = vsel %vm3018, 1, 0
      %v3051 = vsel %vm3019, 1, 0
      %v3052 = vsel %vm3020, 1, 0
      %v3053 = vsel %vm3021, 1, 0
      %v3054 = vsel %vm3022, 1, 0
      %v3055 = vsel %vm3023, 1, 0
      %v3056 = vsel %vm3024, 1, 0
      %v3057 = vsel %vm3025, 1, 0
      %v3058 = vsel %vm3026, 1, 0
      %v3059 = vsel %vm3027, 1, 0
      %v3060 = vsel %vm3028, 1, 0
      %v3061 = vsel %vm3029, 1, 0
      %v3062 = vsel %vm3030, 1, 0
      %v3063 = vsel %vm3031, 1, 0
      %v3064 = vsel %vm3032, 1, 0
      %v3065 = vsel %vm3033, 1, 0
      %v3066 = vsel %vm3034, 1, 0
      %v3067 = vsel %vm3035, 1, 0
      %v3068 = vsel %vm3036, 1, 0
      %v3069 = vsel %vm3037, 1, 0
      %v3070 = vsel %vm3038, 1, 0
      %v3071 = vsel %vm3039, 1, 0
      %v3072 = vsel %vm3040, 1, 0
      %v3073 = vsel %vm3041, 1, 0
      %v3074 = vadd.s32 %v2882, %v3042
      %v3075 = vadd.s32 %v2883, %v3043
      %v3076 = vadd.s32 %v2884, %v3044
      %v3077 = vadd.s32 %v2885, %v3045
      %v3078 = vadd.s32 %v2886, %v3046
      %v3079 = vadd.s32 %v2887, %v3047
      %v3080 = vadd.s32 %v2888, %v3048
      %v3081 = vadd.s32 %v2889, %v3049
      %v3082 = vadd.s32 %v2890, %v3050
      %v3083 = vadd.s32 %v2891, %v3051
      %v3084 = vadd.s32 %v2892, %v3052
      %v3085 = vadd.s32 %v2893, %v3053
      %v3086 = vadd.s32 %v2894, %v3054
      %v3087 = vadd.s32 %v2895, %v3055
      %v3088 = vadd.s32 %v2896, %v3056
      %v3089 = vadd.s32 %v2897, %v3057
      %v3090 = vadd.s32 %v2898, %v3058
      %v3091 = vadd.s32 %v2899, %v3059
      %v3092 = vadd.s32 %v2900, %v3060
      %v3093 = vadd.s32 %v2901, %v3061
      %v3094 = vadd.s32 %v2902, %v3062
      %v3095 = vadd.s32 %v2903, %v3063
      %v3096 = vadd.s32 %v2904, %v3064
      %v3097 = vadd.s32 %v2905, %v3065
      %v3098 = vadd.s32 %v2906, %v3066
      %v3099 = vadd.s32 %v2907, %v3067
      %v3100 = vadd.s32 %v2908, %v3068
      %v3101 = vadd.s32 %v2909, %v3069
      %v3102 = vadd.s32 %v2910, %v3070
      %v3103 = vadd.s32 %v2911, %v3071
      %v3104 = vadd.s32 %v2912, %v3072
      %v3105 = vadd.s32 %v2913, %v3073
      %v3106 = vcvt.s32.f32 %v3074
      %v3107 = vcvt.s32.f32 %v3075
      %v3108 = vcvt.s32.f32 %v3076
      %v3109 = vcvt.s32.f32 %v3077
      %v3110 = vcvt.s32.f32 %v3078
      %v3111 = vcvt.s32.f32 %v3079
      %v3112 = vcvt.s32.f32 %v3080
      %v3113 = vcvt.s32.f32 %v3081
      %v3114 = vcvt.s32.f32 %v3082
      %v3115 = vcvt.s32.f32 %v3083
      %v3116 = vcvt.s32.f32 %v3084
      %v3117 = vcvt.s32.f32 %v3085
      %v3118 = vcvt.s32.f32 %v3086
      %v3119 = vcvt.s32.f32 %v3087
      %v3120 = vcvt.s32.f32 %v3088
      %v3121 = vcvt.s32.f32 %v3089
      %v3122 = vcvt.s32.f32 %v3090
      %v3123 = vcvt.s32.f32 %v3091
      %v3124 = vcvt.s32.f32 %v3092
      %v3125 = vcvt.s32.f32 %v3093
      %v3126 = vcvt.s32.f32 %v3094
      %v3127 = vcvt.s32.f32 %v3095
      %v3128 = vcvt.s32.f32 %v3096
      %v3129 = vcvt.s32.f32 %v3097
      %v3130 = vcvt.s32.f32 %v3098
      %v3131 = vcvt.s32.f32 %v3099
      %v3132 = vcvt.s32.f32 %v3100
      %v3133 = vcvt.s32.f32 %v3101
      %v3134 = vcvt.s32.f32 %v3102
      %v3135 = vcvt.s32.f32 %v3103
      %v3136 = vcvt.s32.f32 %v3104
      %v3137 = vcvt.s32.f32 %v3105
      %v3138 = vpack.c.bf16 %v3107, %v3106
      %v3139 = vpack.c.bf16 %v3109, %v3108
      %v3140 = vpack.c.bf16 %v3111, %v3110
      %v3141 = vpack.c.bf16 %v3113, %v3112
      %v3142 = vpack.c.bf16 %v3115, %v3114
      %v3143 = vpack.c.bf16 %v3117, %v3116
      %v3144 = vpack.c.bf16 %v3119, %v3118
      %v3145 = vpack.c.bf16 %v3121, %v3120
      %v3146 = vpack.c.bf16 %v3123, %v3122
      %v3147 = vpack.c.bf16 %v3125, %v3124
      %v3148 = vpack.c.bf16 %v3127, %v3126
      %v3149 = vpack.c.bf16 %v3129, %v3128
      %v3150 = vpack.c.bf16 %v3131, %v3130
      %v3151 = vpack.c.bf16 %v3133, %v3132
      %v3152 = vpack.c.bf16 %v3135, %v3134
      %v3153 = vpack.c.bf16 %v3137, %v3136
      %v3154 = vld [vmem:[%s215] sm:$0xff]
      %v3155 = vld [vmem:[%s215 + $0x8] sm:$0xff]
      %v3156 = vld [vmem:[%s215 + $0x10] sm:$0xff]
      %v3157 = vld [vmem:[%s215 + $0x18] sm:$0xff]
      %v3158 = vld [vmem:[%s215 + $0x20] sm:$0xff]
      %v3159 = vld [vmem:[%s215 + $0x28] sm:$0xff]
      %v3160 = vld [vmem:[%s215 + $0x30] sm:$0xff]
      %v3161 = vld [vmem:[%s215 + $0x38] sm:$0xff]
      %v3162 = vld [vmem:[%s215 + $0x40] sm:$0xff]
      %v3163 = vld [vmem:[%s215 + $0x48] sm:$0xff]
      %v3164 = vld [vmem:[%s215 + $0x50] sm:$0xff]
      %v3165 = vld [vmem:[%s215 + $0x58] sm:$0xff]
      %v3166 = vld [vmem:[%s215 + $0x60] sm:$0xff]
      %v3167 = vld [vmem:[%s215 + $0x68] sm:$0xff]
      %v3168 = vld [vmem:[%s215 + $0x70] sm:$0xff]
      %v3169 = vld [vmem:[%s215 + $0x78] sm:$0xff]
      %v3170 = vld [vmem:[%s215 + $0x80] sm:$0xff]
      %v3171 = vld [vmem:[%s215 + $0x88] sm:$0xff]
      %v3172 = vld [vmem:[%s215 + $0x90] sm:$0xff]
      %v3173 = vld [vmem:[%s215 + $0x98] sm:$0xff]
      %v3174 = vld [vmem:[%s215 + $0xa0] sm:$0xff]
      %v3175 = vld [vmem:[%s215 + $0xa8] sm:$0xff]
      %v3176 = vld [vmem:[%s215 + $0xb0] sm:$0xff]
      %v3177 = vld [vmem:[%s215 + $0xb8] sm:$0xff]
      %v3178 = vld [vmem:[%s215 + $0xc0] sm:$0xff]
      %v3179 = vld [vmem:[%s215 + $0xc8] sm:$0xff]
      %v3180 = vld [vmem:[%s215 + $0xd0] sm:$0xff]
      %v3181 = vld [vmem:[%s215 + $0xd8] sm:$0xff]
      %v3182 = vld [vmem:[%s215 + $0xe0] sm:$0xff]
      %v3183 = vld [vmem:[%s215 + $0xe8] sm:$0xff]
      %v3184 = vld [vmem:[%s215 + $0xf0] sm:$0xff]
      %v3185 = vld [vmem:[%s215 + $0xf8] sm:$0xff]
      %v3186 = vpack.c.bf16 %v3155, %v3154
      %v3187 = vpack.c.bf16 %v3157, %v3156
      %v3188 = vpack.c.bf16 %v3159, %v3158
      %v3189 = vpack.c.bf16 %v3161, %v3160
      %v3190 = vpack.c.bf16 %v3163, %v3162
      %v3191 = vpack.c.bf16 %v3165, %v3164
      %v3192 = vpack.c.bf16 %v3167, %v3166
      %v3193 = vpack.c.bf16 %v3169, %v3168
      %v3194 = vpack.c.bf16 %v3171, %v3170
      %v3195 = vpack.c.bf16 %v3173, %v3172
      %v3196 = vpack.c.bf16 %v3175, %v3174
      %v3197 = vpack.c.bf16 %v3177, %v3176
      %v3198 = vpack.c.bf16 %v3179, %v3178
      %v3199 = vpack.c.bf16 %v3181, %v3180
      %v3200 = vpack.c.bf16 %v3183, %v3182
      %v3201 = vpack.c.bf16 %v3185, %v3184
      %v3202 = vld [vmem:[%s2] sm:$0xf]
      %v3203 = vld [vmem:[%s2 + $0x4] sm:$0xf]
      %v3204 = vld [vmem:[%s3] sm:$0x1]
      %v3205 = vlaneseq
      %v3206 = vshrl.u32 %v3205, 7
      %v3207 = vsub.s32 0, %v3206
      %v3208 = vrot.slane %v3204, %v3207
      %v3211 = vunpack.c.l.b16 %v3202
      %v3212 = vunpack.c.l.b16 %v3203
      %v3213 = vpack.c.b16 %v3212, %v3211
      %vm3215 = vcmask 130048
      %v3217 = vsel %vm3215, %v3186, 0
      %v3220 = vsel %vm3215, %v3187, 0
      %v3223 = vsel %vm3215, %v3188, 0
      %v3226 = vsel %vm3215, %v3189, 0
      %v3229 = vsel %vm3215, %v3190, 0
      %v3232 = vsel %vm3215, %v3191, 0
      %v3235 = vsel %vm3215, %v3192, 0
      %v3238 = vsel %vm3215, %v3193, 0
      %v3241 = vsel %vm3215, %v3194, 0
      %v3244 = vsel %vm3215, %v3195, 0
      %v3247 = vsel %vm3215, %v3196, 0
      %v3250 = vsel %vm3215, %v3197, 0
      %v3253 = vsel %vm3215, %v3198, 0
      %v3256 = vsel %vm3215, %v3199, 0
      %v3259 = vsel %vm3215, %v3200, 0
      %v3262 = vsel %vm3215, %v3201, 0
      %3264 = vmatprep.subr.bf16.mxu0 0
      %3265 = vmatpush1.bf16.msra.mxu0 0
      %3266 = vmatprep.subr.bf16.mxu0 0
      %3267 = vmatpush1.bf16.msra.mxu0 0
      %3268 = vmatprep.subr.bf16.mxu0 0
      %3269 = vmatpush1.bf16.msra.mxu0 0
      %3270 = vmatprep.subr.bf16.mxu0 0
      %3271 = vmatpush1.bf16.msra.mxu0 0
      %3272 = vmatprep.subr.bf16.mxu0 0
      %3273 = vmatpush1.bf16.msra.mxu0 0
      %3274 = vmatprep.subr.bf16.mxu0 0
      %3275 = vmatpush1.bf16.msra.mxu0 0
      %3276 = vmatprep.subr.bf16.mxu0 0
      %3277 = vmatpush1.bf16.msra.mxu0 0
      %3278 = vmatprep.subr.bf16.mxu0 0
      %3279 = vmatpush1.bf16.msra.mxu0 %v3213
      %3280 = vmatprep.subr.bf16.mxu0 0
      %3281 = vmatpush2.bf16.msra.mxu0 0
      %3282 = vmatprep.subr.bf16.mxu0 0
      %3283 = vmatpush2.bf16.msra.mxu0 0
      %3284 = vmatprep.subr.bf16.mxu0 0
      %3285 = vmatpush2.bf16.msra.mxu0 0
      %3286 = vmatprep.subr.bf16.mxu0 0
      %3287 = vmatpush2.bf16.msra.mxu0 0
      %3288 = vmatprep.subr.bf16.mxu0 0
      %3289 = vmatpush2.bf16.msra.mxu0 0
      %3290 = vmatprep.subr.bf16.mxu0 0
      %3291 = vmatpush2.bf16.msra.mxu0 0
      %3292 = vmatprep.subr.bf16.mxu0 0
      %3293 = vmatpush2.bf16.msra.mxu0 0
      %3294 = vmatprep.subr.bf16.mxu0 0
      %3295 = vmatpush2.bf16.msra.mxu0 0
      %3296 = vmatprep.mubr.bf16.mxu0 0
      %3297 = vmatmul.mubr.bf16.gmra.mxu0 %v3217
      %v3298 = vpop.f32.mrf.mxu0
      %v3299 = vadd.f32 %v3208, %v3298
      %v3300 = vpop.f32.mrf.mxu0
      %v3301 = vpop.f32.mrf.mxu0
      %v3302 = vadd.f32 %v3208, %v3301
      %v3303 = vpop.f32.mrf.mxu0
      %3304 = vmatprep.mubr.bf16.mxu0 0
      %3305 = vmatmul.mubr.bf16.gmra.mxu0 %v3220
      %v3306 = vpop.f32.mrf.mxu0
      %v3307 = vadd.f32 %v3208, %v3306
      %v3308 = vpop.f32.mrf.mxu0
      %v3309 = vpop.f32.mrf.mxu0
      %v3310 = vadd.f32 %v3208, %v3309
      %v3311 = vpop.f32.mrf.mxu0
      %3312 = vmatprep.mubr.bf16.mxu0 0
      %3313 = vmatmul.mubr.bf16.gmra.mxu0 %v3223
      %v3314 = vpop.f32.mrf.mxu0
      %v3315 = vadd.f32 %v3208, %v3314
      %v3316 = vpop.f32.mrf.mxu0
      %v3317 = vpop.f32.mrf.mxu0
      %v3318 = vadd.f32 %v3208, %v3317
      %v3319 = vpop.f32.mrf.mxu0
      %3320 = vmatprep.mubr.bf16.mxu0 0
      %3321 = vmatmul.mubr.bf16.gmra.mxu0 %v3226
      %v3322 = vpop.f32.mrf.mxu0
      %v3323 = vadd.f32 %v3208, %v3322
      %v3324 = vpop.f32.mrf.mxu0
      %v3325 = vpop.f32.mrf.mxu0
      %v3326 = vadd.f32 %v3208, %v3325
      %v3327 = vpop.f32.mrf.mxu0
      %3328 = vmatprep.mubr.bf16.mxu0 0
      %3329 = vmatmul.mubr.bf16.gmra.mxu0 %v3229
      %v3330 = vpop.f32.mrf.mxu0
      %v3331 = vadd.f32 %v3208, %v3330
      %v3332 = vpop.f32.mrf.mxu0
      %v3333 = vpop.f32.mrf.mxu0
      %v3334 = vadd.f32 %v3208, %v3333
      %v3335 = vpop.f32.mrf.mxu0
      %3336 = vmatprep.mubr.bf16.mxu0 0
      %3337 = vmatmul.mubr.bf16.gmra.mxu0 %v3232
      %v3338 = vpop.f32.mrf.mxu0
      %v3339 = vadd.f32 %v3208, %v3338
      %v3340 = vpop.f32.mrf.mxu0
      %v3341 = vpop.f32.mrf.mxu0
      %v3342 = vadd.f32 %v3208, %v3341
      %v3343 = vpop.f32.mrf.mxu0
      %3344 = vmatprep.mubr.bf16.mxu0 0
      %3345 = vmatmul.mubr.bf16.gmra.mxu0 %v3235
      %v3346 = vpop.f32.mrf.mxu0
      %v3347 = vadd.f32 %v3208, %v3346
      %v3348 = vpop.f32.mrf.mxu0
      %v3349 = vpop.f32.mrf.mxu0
      %v3350 = vadd.f32 %v3208, %v3349
      %v3351 = vpop.f32.mrf.mxu0
      %3352 = vmatprep.mubr.bf16.mxu0 0
      %3353 = vmatmul.mubr.bf16.gmra.mxu0 %v3238
      %v3354 = vpop.f32.mrf.mxu0
      %v3355 = vadd.f32 %v3208, %v3354
      %v3356 = vpop.f32.mrf.mxu0
      %v3357 = vpop.f32.mrf.mxu0
      %v3358 = vadd.f32 %v3208, %v3357
      %v3359 = vpop.f32.mrf.mxu0
      %3360 = vmatprep.mubr.bf16.mxu0 0
      %3361 = vmatmul.mubr.bf16.gmra.mxu0 %v3241
      %v3362 = vpop.f32.mrf.mxu0
      %v3363 = vadd.f32 %v3208, %v3362
      %v3364 = vpop.f32.mrf.mxu0
      %v3365 = vpop.f32.mrf.mxu0
      %v3366 = vadd.f32 %v3208, %v3365
      %v3367 = vpop.f32.mrf.mxu0
      %3368 = vmatprep.mubr.bf16.mxu0 0
      %3369 = vmatmul.mubr.bf16.gmra.mxu0 %v3244
      %v3370 = vpop.f32.mrf.mxu0
      %v3371 = vadd.f32 %v3208, %v3370
      %v3372 = vpop.f32.mrf.mxu0
      %v3373 = vpop.f32.mrf.mxu0
      %v3374 = vadd.f32 %v3208, %v3373
      %v3375 = vpop.f32.mrf.mxu0
      %3376 = vmatprep.mubr.bf16.mxu0 0
      %3377 = vmatmul.mubr.bf16.gmra.mxu0 %v3247
      %v3378 = vpop.f32.mrf.mxu0
      %v3379 = vadd.f32 %v3208, %v3378
      %v3380 = vpop.f32.mrf.mxu0
      %v3381 = vpop.f32.mrf.mxu0
      %v3382 = vadd.f32 %v3208, %v3381
      %v3383 = vpop.f32.mrf.mxu0
      %3384 = vmatprep.mubr.bf16.mxu0 0
      %3385 = vmatmul.mubr.bf16.gmra.mxu0 %v3250
      %v3386 = vpop.f32.mrf.mxu0
      %v3387 = vadd.f32 %v3208, %v3386
      %v3388 = vpop.f32.mrf.mxu0
      %v3389 = vpop.f32.mrf.mxu0
      %v3390 = vadd.f32 %v3208, %v3389
      %v3391 = vpop.f32.mrf.mxu0
      %3392 = vmatprep.mubr.bf16.mxu0 0
      %3393 = vmatmul.mubr.bf16.gmra.mxu0 %v3253
      %v3394 = vpop.f32.mrf.mxu0
      %v3395 = vadd.f32 %v3208, %v3394
      %v3396 = vpop.f32.mrf.mxu0
      %v3397 = vpop.f32.mrf.mxu0
      %v3398 = vadd.f32 %v3208, %v3397
      %v3399 = vpop.f32.mrf.mxu0
      %3400 = vmatprep.mubr.bf16.mxu0 0
      %3401 = vmatmul.mubr.bf16.gmra.mxu0 %v3256
      %v3402 = vpop.f32.mrf.mxu0
      %v3403 = vadd.f32 %v3208, %v3402
      %v3404 = vpop.f32.mrf.mxu0
      %v3405 = vpop.f32.mrf.mxu0
      %v3406 = vadd.f32 %v3208, %v3405
      %v3407 = vpop.f32.mrf.mxu0
      %3408 = vmatprep.mubr.bf16.mxu0 0
      %3409 = vmatmul.mubr.bf16.gmra.mxu0 %v3259
      %v3410 = vpop.f32.mrf.mxu0
      %v3411 = vadd.f32 %v3208, %v3410
      %v3412 = vpop.f32.mrf.mxu0
      %v3413 = vpop.f32.mrf.mxu0
      %v3414 = vadd.f32 %v3208, %v3413
      %v3415 = vpop.f32.mrf.mxu0
      %3416 = vmatprep.mubr.bf16.mxu0 0
      %3417 = vmatmul.mubr.bf16.gmra.mxu0 %v3262
      %v3418 = vpop.f32.mrf.mxu0
      %v3419 = vadd.f32 %v3208, %v3418
      %v3420 = vpop.f32.mrf.mxu0
      %v3421 = vpop.f32.mrf.mxu0
      %v3422 = vadd.f32 %v3208, %v3421
      %v3423 = vpop.f32.mrf.mxu0
      %3424 = vdwg.mxu0
      %v3425 = vmax.f32 %v3299, 0.0
      %v3426 = vmax.f32 %v3302, 0.0
      %v3427 = vmax.f32 %v3307, 0.0
      %v3428 = vmax.f32 %v3310, 0.0
      %v3429 = vmax.f32 %v3315, 0.0
      %v3430 = vmax.f32 %v3318, 0.0
      %v3431 = vmax.f32 %v3323, 0.0
      %v3432 = vmax.f32 %v3326, 0.0
      %v3433 = vmax.f32 %v3331, 0.0
      %v3434 = vmax.f32 %v3334, 0.0
      %v3435 = vmax.f32 %v3339, 0.0
      %v3436 = vmax.f32 %v3342, 0.0
      %v3437 = vmax.f32 %v3347, 0.0
      %v3438 = vmax.f32 %v3350, 0.0
      %v3439 = vmax.f32 %v3355, 0.0
      %v3440 = vmax.f32 %v3358, 0.0
      %v3441 = vmax.f32 %v3363, 0.0
      %v3442 = vmax.f32 %v3366, 0.0
      %v3443 = vmax.f32 %v3371, 0.0
      %v3444 = vmax.f32 %v3374, 0.0
      %v3445 = vmax.f32 %v3379, 0.0
      %v3446 = vmax.f32 %v3382, 0.0
      %v3447 = vmax.f32 %v3387, 0.0
      %v3448 = vmax.f32 %v3390, 0.0
      %v3449 = vmax.f32 %v3395, 0.0
      %v3450 = vmax.f32 %v3398, 0.0
      %v3451 = vmax.f32 %v3403, 0.0
      %v3452 = vmax.f32 %v3406, 0.0
      %v3453 = vmax.f32 %v3411, 0.0
      %v3454 = vmax.f32 %v3414, 0.0
      %v3455 = vmax.f32 %v3419, 0.0
      %v3456 = vmax.f32 %v3422, 0.0
      %v3457 = vld [vmem:[%s3 + $0x1] sm:$0x1]
      %v3458 = vld [vmem:[%s3 + $0x2] sm:$0x1]
      %vm3459 = vcmask 261120
      %v3460 = vsel %vm3459, %v3425, 0.0
      %3461 = vadd.xlane.f32.xlu0 %v3460
      %v3462 = vpop.xlane.xlu0 %3461
      %v3463 = vsel %vm3459, %v3426, 0.0
      %3464 = vadd.xlane.f32.xlu0 %v3463
      %v3465 = vpop.xlane.xlu0 %3464
      %v3466 = vsel %vm3459, %v3427, 0.0
      %3467 = vadd.xlane.f32.xlu0 %v3466
      %v3468 = vpop.xlane.xlu0 %3467
      %v3469 = vsel %vm3459, %v3428, 0.0
      %3470 = vadd.xlane.f32.xlu0 %v3469
      %v3471 = vpop.xlane.xlu0 %3470
      %v3472 = vsel %vm3459, %v3429, 0.0
      %3473 = vadd.xlane.f32.xlu0 %v3472
      %v3474 = vpop.xlane.xlu0 %3473
      %v3475 = vsel %vm3459, %v3430, 0.0
      %3476 = vadd.xlane.f32.xlu0 %v3475
      %v3477 = vpop.xlane.xlu0 %3476
      %v3478 = vsel %vm3459, %v3431, 0.0
      %3479 = vadd.xlane.f32.xlu0 %v3478
      %v3480 = vpop.xlane.xlu0 %3479
      %v3481 = vsel %vm3459, %v3432, 0.0
      %3482 = vadd.xlane.f32.xlu0 %v3481
      %v3483 = vpop.xlane.xlu0 %3482
      %v3484 = vsel %vm3459, %v3433, 0.0
      %3485 = vadd.xlane.f32.xlu0 %v3484
      %v3486 = vpop.xlane.xlu0 %3485
      %v3487 = vsel %vm3459, %v3434, 0.0
      %3488 = vadd.xlane.f32.xlu0 %v3487
      %v3489 = vpop.xlane.xlu0 %3488
      %v3490 = vsel %vm3459, %v3435, 0.0
      %3491 = vadd.xlane.f32.xlu0 %v3490
      %v3492 = vpop.xlane.xlu0 %3491
      %v3493 = vsel %vm3459, %v3436, 0.0
      %3494 = vadd.xlane.f32.xlu0 %v3493
      %v3495 = vpop.xlane.xlu0 %3494
      %v3496 = vsel %vm3459, %v3437, 0.0
      %3497 = vadd.xlane.f32.xlu0 %v3496
      %v3498 = vpop.xlane.xlu0 %3497
      %v3499 = vsel %vm3459, %v3438, 0.0
      %3500 = vadd.xlane.f32.xlu0 %v3499
      %v3501 = vpop.xlane.xlu0 %3500
      %v3502 = vsel %vm3459, %v3439, 0.0
      %3503 = vadd.xlane.f32.xlu0 %v3502
      %v3504 = vpop.xlane.xlu0 %3503
      %v3505 = vsel %vm3459, %v3440, 0.0
      %3506 = vadd.xlane.f32.xlu0 %v3505
      %v3507 = vpop.xlane.xlu0 %3506
      %v3508 = vsel %vm3459, %v3441, 0.0
      %3509 = vadd.xlane.f32.xlu0 %v3508
      %v3510 = vpop.xlane.xlu0 %3509
      %v3511 = vsel %vm3459, %v3442, 0.0
      %3512 = vadd.xlane.f32.xlu0 %v3511
      %v3513 = vpop.xlane.xlu0 %3512
      %v3514 = vsel %vm3459, %v3443, 0.0
      %3515 = vadd.xlane.f32.xlu0 %v3514
      %v3516 = vpop.xlane.xlu0 %3515
      %v3517 = vsel %vm3459, %v3444, 0.0
      %3518 = vadd.xlane.f32.xlu0 %v3517
      %v3519 = vpop.xlane.xlu0 %3518
      %v3520 = vsel %vm3459, %v3445, 0.0
      %3521 = vadd.xlane.f32.xlu0 %v3520
      %v3522 = vpop.xlane.xlu0 %3521
      %v3523 = vsel %vm3459, %v3446, 0.0
      %3524 = vadd.xlane.f32.xlu0 %v3523
      %v3525 = vpop.xlane.xlu0 %3524
      %v3526 = vsel %vm3459, %v3447, 0.0
      %3527 = vadd.xlane.f32.xlu0 %v3526
      %v3528 = vpop.xlane.xlu0 %3527
      %v3529 = vsel %vm3459, %v3448, 0.0
      %3530 = vadd.xlane.f32.xlu0 %v3529
      %v3531 = vpop.xlane.xlu0 %3530
      %v3532 = vsel %vm3459, %v3449, 0.0
      %3533 = vadd.xlane.f32.xlu0 %v3532
      %v3534 = vpop.xlane.xlu0 %3533
      %v3535 = vsel %vm3459, %v3450, 0.0
      %3536 = vadd.xlane.f32.xlu0 %v3535
      %v3537 = vpop.xlane.xlu0 %3536
      %v3538 = vsel %vm3459, %v3451, 0.0
      %3539 = vadd.xlane.f32.xlu0 %v3538
      %v3540 = vpop.xlane.xlu0 %3539
      %v3541 = vsel %vm3459, %v3452, 0.0
      %3542 = vadd.xlane.f32.xlu0 %v3541
      %v3543 = vpop.xlane.xlu0 %3542
      %v3544 = vsel %vm3459, %v3453, 0.0
      %3545 = vadd.xlane.f32.xlu0 %v3544
      %v3546 = vpop.xlane.xlu0 %3545
      %v3547 = vsel %vm3459, %v3454, 0.0
      %3548 = vadd.xlane.f32.xlu0 %v3547
      %v3549 = vpop.xlane.xlu0 %3548
      %v3550 = vsel %vm3459, %v3455, 0.0
      %3551 = vadd.xlane.f32.xlu0 %v3550
      %v3552 = vpop.xlane.xlu0 %3551
      %v3553 = vsel %vm3459, %v3456, 0.0
      %3554 = vadd.xlane.f32.xlu0 %v3553
      %v3555 = vpop.xlane.xlu0 %3554
      %v3556 = vmul.f32 %v3425, %v3425
      %v3557 = vmul.f32 %v3426, %v3426
      %v3558 = vmul.f32 %v3427, %v3427
      %v3559 = vmul.f32 %v3428, %v3428
      %v3560 = vmul.f32 %v3429, %v3429
      %v3561 = vmul.f32 %v3430, %v3430
      %v3562 = vmul.f32 %v3431, %v3431
      %v3563 = vmul.f32 %v3432, %v3432
      %v3564 = vmul.f32 %v3433, %v3433
      %v3565 = vmul.f32 %v3434, %v3434
      %v3566 = vmul.f32 %v3435, %v3435
      %v3567 = vmul.f32 %v3436, %v3436
      %v3568 = vmul.f32 %v3437, %v3437
      %v3569 = vmul.f32 %v3438, %v3438
      %v3570 = vmul.f32 %v3439, %v3439
      %v3571 = vmul.f32 %v3440, %v3440
      %v3572 = vmul.f32 %v3441, %v3441
      %v3573 = vmul.f32 %v3442, %v3442
      %v3574 = vmul.f32 %v3443, %v3443
      %v3575 = vmul.f32 %v3444, %v3444
      %v3576 = vmul.f32 %v3445, %v3445
      %v3577 = vmul.f32 %v3446, %v3446
      %v3578 = vmul.f32 %v3447, %v3447
      %v3579 = vmul.f32 %v3448, %v3448
      %v3580 = vmul.f32 %v3449, %v3449
      %v3581 = vmul.f32 %v3450, %v3450
      %v3582 = vmul.f32 %v3451, %v3451
      %v3583 = vmul.f32 %v3452, %v3452
      %v3584 = vmul.f32 %v3453, %v3453
      %v3585 = vmul.f32 %v3454, %v3454
      %v3586 = vmul.f32 %v3455, %v3455
      %v3587 = vmul.f32 %v3456, %v3456
      %v3588 = vsel %vm3459, %v3556, 0.0
      %3589 = vadd.xlane.f32.xlu0 %v3588
      %v3590 = vpop.xlane.xlu0 %3589
      %v3591 = vsel %vm3459, %v3557, 0.0
      %3592 = vadd.xlane.f32.xlu0 %v3591
      %v3593 = vpop.xlane.xlu0 %3592
      %v3594 = vsel %vm3459, %v3558, 0.0
      %3595 = vadd.xlane.f32.xlu0 %v3594
      %v3596 = vpop.xlane.xlu0 %3595
      %v3597 = vsel %vm3459, %v3559, 0.0
      %3598 = vadd.xlane.f32.xlu0 %v3597
      %v3599 = vpop.xlane.xlu0 %3598
      %v3600 = vsel %vm3459, %v3560, 0.0
      %3601 = vadd.xlane.f32.xlu0 %v3600
      %v3602 = vpop.xlane.xlu0 %3601
      %v3603 = vsel %vm3459, %v3561, 0.0
      %3604 = vadd.xlane.f32.xlu0 %v3603
      %v3605 = vpop.xlane.xlu0 %3604
      %v3606 = vsel %vm3459, %v3562, 0.0
      %3607 = vadd.xlane.f32.xlu0 %v3606
      %v3608 = vpop.xlane.xlu0 %3607
      %v3609 = vsel %vm3459, %v3563, 0.0
      %3610 = vadd.xlane.f32.xlu0 %v3609
      %v3611 = vpop.xlane.xlu0 %3610
      %v3612 = vsel %vm3459, %v3564, 0.0
      %3613 = vadd.xlane.f32.xlu0 %v3612
      %v3614 = vpop.xlane.xlu0 %3613
      %v3615 = vsel %vm3459, %v3565, 0.0
      %3616 = vadd.xlane.f32.xlu0 %v3615
      %v3617 = vpop.xlane.xlu0 %3616
      %v3618 = vsel %vm3459, %v3566, 0.0
      %3619 = vadd.xlane.f32.xlu0 %v3618
      %v3620 = vpop.xlane.xlu0 %3619
      %v3621 = vsel %vm3459, %v3567, 0.0
      %3622 = vadd.xlane.f32.xlu0 %v3621
      %v3623 = vpop.xlane.xlu0 %3622
      %v3624 = vsel %vm3459, %v3568, 0.0
      %3625 = vadd.xlane.f32.xlu0 %v3624
      %v3626 = vpop.xlane.xlu0 %3625
      %v3627 = vsel %vm3459, %v3569, 0.0
      %3628 = vadd.xlane.f32.xlu0 %v3627
      %v3629 = vpop.xlane.xlu0 %3628
      %v3630 = vsel %vm3459, %v3570, 0.0
      %3631 = vadd.xlane.f32.xlu0 %v3630
      %v3632 = vpop.xlane.xlu0 %3631
      %v3633 = vsel %vm3459, %v3571, 0.0
      %3634 = vadd.xlane.f32.xlu0 %v3633
      %v3635 = vpop.xlane.xlu0 %3634
      %v3636 = vsel %vm3459, %v3572, 0.0
      %3637 = vadd.xlane.f32.xlu0 %v3636
      %v3638 = vpop.xlane.xlu0 %3637
      %v3639 = vsel %vm3459, %v3573, 0.0
      %3640 = vadd.xlane.f32.xlu0 %v3639
      %v3641 = vpop.xlane.xlu0 %3640
      %v3642 = vsel %vm3459, %v3574, 0.0
      %3643 = vadd.xlane.f32.xlu0 %v3642
      %v3644 = vpop.xlane.xlu0 %3643
      %v3645 = vsel %vm3459, %v3575, 0.0
      %3646 = vadd.xlane.f32.xlu0 %v3645
      %v3647 = vpop.xlane.xlu0 %3646
      %v3648 = vsel %vm3459, %v3576, 0.0
      %3649 = vadd.xlane.f32.xlu0 %v3648
      %v3650 = vpop.xlane.xlu0 %3649
      %v3651 = vsel %vm3459, %v3577, 0.0
      %3652 = vadd.xlane.f32.xlu0 %v3651
      %v3653 = vpop.xlane.xlu0 %3652
      %v3654 = vsel %vm3459, %v3578, 0.0
      %3655 = vadd.xlane.f32.xlu0 %v3654
      %v3656 = vpop.xlane.xlu0 %3655
      %v3657 = vsel %vm3459, %v3579, 0.0
      %3658 = vadd.xlane.f32.xlu0 %v3657
      %v3659 = vpop.xlane.xlu0 %3658
      %v3660 = vsel %vm3459, %v3580, 0.0
      %3661 = vadd.xlane.f32.xlu0 %v3660
      %v3662 = vpop.xlane.xlu0 %3661
      %v3663 = vsel %vm3459, %v3581, 0.0
      %3664 = vadd.xlane.f32.xlu0 %v3663
      %v3665 = vpop.xlane.xlu0 %3664
      %v3666 = vsel %vm3459, %v3582, 0.0
      %3667 = vadd.xlane.f32.xlu0 %v3666
      %v3668 = vpop.xlane.xlu0 %3667
      %v3669 = vsel %vm3459, %v3583, 0.0
      %3670 = vadd.xlane.f32.xlu0 %v3669
      %v3671 = vpop.xlane.xlu0 %3670
      %v3672 = vsel %vm3459, %v3584, 0.0
      %3673 = vadd.xlane.f32.xlu0 %v3672
      %v3674 = vpop.xlane.xlu0 %3673
      %v3675 = vsel %vm3459, %v3585, 0.0
      %3676 = vadd.xlane.f32.xlu0 %v3675
      %v3677 = vpop.xlane.xlu0 %3676
      %v3678 = vsel %vm3459, %v3586, 0.0
      %3679 = vadd.xlane.f32.xlu0 %v3678
      %v3680 = vpop.xlane.xlu0 %3679
      %v3681 = vsel %vm3459, %v3587, 0.0
      %3682 = vadd.xlane.f32.xlu0 %v3681
      %v3683 = vpop.xlane.xlu0 %3682
      %v3684 = vmul.f32 %v3462, 0.03125
      %v3685 = vmul.f32 %v3465, 0.03125
      %v3686 = vmul.f32 %v3468, 0.03125
      %v3687 = vmul.f32 %v3471, 0.03125
      %v3688 = vmul.f32 %v3474, 0.03125
      %v3689 = vmul.f32 %v3477, 0.03125
      %v3690 = vmul.f32 %v3480, 0.03125
      %v3691 = vmul.f32 %v3483, 0.03125
      %v3692 = vmul.f32 %v3486, 0.03125
      %v3693 = vmul.f32 %v3489, 0.03125
      %v3694 = vmul.f32 %v3492, 0.03125
      %v3695 = vmul.f32 %v3495, 0.03125
      %v3696 = vmul.f32 %v3498, 0.03125
      %v3697 = vmul.f32 %v3501, 0.03125
      %v3698 = vmul.f32 %v3504, 0.03125
      %v3699 = vmul.f32 %v3507, 0.03125
      %v3700 = vmul.f32 %v3510, 0.03125
      %v3701 = vmul.f32 %v3513, 0.03125
      %v3702 = vmul.f32 %v3516, 0.03125
      %v3703 = vmul.f32 %v3519, 0.03125
      %v3704 = vmul.f32 %v3522, 0.03125
      %v3705 = vmul.f32 %v3525, 0.03125
      %v3706 = vmul.f32 %v3528, 0.03125
      %v3707 = vmul.f32 %v3531, 0.03125
      %v3708 = vmul.f32 %v3534, 0.03125
      %v3709 = vmul.f32 %v3537, 0.03125
      %v3710 = vmul.f32 %v3540, 0.03125
      %v3711 = vmul.f32 %v3543, 0.03125
      %v3712 = vmul.f32 %v3546, 0.03125
      %v3713 = vmul.f32 %v3549, 0.03125
      %v3714 = vmul.f32 %v3552, 0.03125
      %v3715 = vmul.f32 %v3555, 0.03125
      %v3716 = vmul.f32 %v3590, 0.03125
      %v3717 = vmul.f32 %v3593, 0.03125
      %v3718 = vmul.f32 %v3596, 0.03125
      %v3719 = vmul.f32 %v3599, 0.03125
      %v3720 = vmul.f32 %v3602, 0.03125
      %v3721 = vmul.f32 %v3605, 0.03125
      %v3722 = vmul.f32 %v3608, 0.03125
      %v3723 = vmul.f32 %v3611, 0.03125
      %v3724 = vmul.f32 %v3614, 0.03125
      %v3725 = vmul.f32 %v3617, 0.03125
      %v3726 = vmul.f32 %v3620, 0.03125
      %v3727 = vmul.f32 %v3623, 0.03125
      %v3728 = vmul.f32 %v3626, 0.03125
      %v3729 = vmul.f32 %v3629, 0.03125
      %v3730 = vmul.f32 %v3632, 0.03125
      %v3731 = vmul.f32 %v3635, 0.03125
      %v3732 = vmul.f32 %v3638, 0.03125
      %v3733 = vmul.f32 %v3641, 0.03125
      %v3734 = vmul.f32 %v3644, 0.03125
      %v3735 = vmul.f32 %v3647, 0.03125
      %v3736 = vmul.f32 %v3650, 0.03125
      %v3737 = vmul.f32 %v3653, 0.03125
      %v3738 = vmul.f32 %v3656, 0.03125
      %v3739 = vmul.f32 %v3659, 0.03125
      %v3740 = vmul.f32 %v3662, 0.03125
      %v3741 = vmul.f32 %v3665, 0.03125
      %v3742 = vmul.f32 %v3668, 0.03125
      %v3743 = vmul.f32 %v3671, 0.03125
      %v3744 = vmul.f32 %v3674, 0.03125
      %v3745 = vmul.f32 %v3677, 0.03125
      %v3746 = vmul.f32 %v3680, 0.03125
      %v3747 = vmul.f32 %v3683, 0.03125
      %v3748 = vmul.f32 %v3684, %v3684
      %v3749 = vmul.f32 %v3685, %v3685
      %v3750 = vmul.f32 %v3686, %v3686
      %v3751 = vmul.f32 %v3687, %v3687
      %v3752 = vmul.f32 %v3688, %v3688
      %v3753 = vmul.f32 %v3689, %v3689
      %v3754 = vmul.f32 %v3690, %v3690
      %v3755 = vmul.f32 %v3691, %v3691
      %v3756 = vmul.f32 %v3692, %v3692
      %v3757 = vmul.f32 %v3693, %v3693
      %v3758 = vmul.f32 %v3694, %v3694
      %v3759 = vmul.f32 %v3695, %v3695
      %v3760 = vmul.f32 %v3696, %v3696
      %v3761 = vmul.f32 %v3697, %v3697
      %v3762 = vmul.f32 %v3698, %v3698
      %v3763 = vmul.f32 %v3699, %v3699
      %v3764 = vmul.f32 %v3700, %v3700
      %v3765 = vmul.f32 %v3701, %v3701
      %v3766 = vmul.f32 %v3702, %v3702
      %v3767 = vmul.f32 %v3703, %v3703
      %v3768 = vmul.f32 %v3704, %v3704
      %v3769 = vmul.f32 %v3705, %v3705
      %v3770 = vmul.f32 %v3706, %v3706
      %v3771 = vmul.f32 %v3707, %v3707
      %v3772 = vmul.f32 %v3708, %v3708
      %v3773 = vmul.f32 %v3709, %v3709
      %v3774 = vmul.f32 %v3710, %v3710
      %v3775 = vmul.f32 %v3711, %v3711
      %v3776 = vmul.f32 %v3712, %v3712
      %v3777 = vmul.f32 %v3713, %v3713
      %v3778 = vmul.f32 %v3714, %v3714
      %v3779 = vmul.f32 %v3715, %v3715
      %v3780 = vsub.f32 %v3716, %v3748
      %v3781 = vsub.f32 %v3717, %v3749
      %v3782 = vsub.f32 %v3718, %v3750
      %v3783 = vsub.f32 %v3719, %v3751
      %v3784 = vsub.f32 %v3720, %v3752
      %v3785 = vsub.f32 %v3721, %v3753
      %v3786 = vsub.f32 %v3722, %v3754
      %v3787 = vsub.f32 %v3723, %v3755
      %v3788 = vsub.f32 %v3724, %v3756
      %v3789 = vsub.f32 %v3725, %v3757
      %v3790 = vsub.f32 %v3726, %v3758
      %v3791 = vsub.f32 %v3727, %v3759
      %v3792 = vsub.f32 %v3728, %v3760
      %v3793 = vsub.f32 %v3729, %v3761
      %v3794 = vsub.f32 %v3730, %v3762
      %v3795 = vsub.f32 %v3731, %v3763
      %v3796 = vsub.f32 %v3732, %v3764
      %v3797 = vsub.f32 %v3733, %v3765
      %v3798 = vsub.f32 %v3734, %v3766
      %v3799 = vsub.f32 %v3735, %v3767
      %v3800 = vsub.f32 %v3736, %v3768
      %v3801 = vsub.f32 %v3737, %v3769
      %v3802 = vsub.f32 %v3738, %v3770
      %v3803 = vsub.f32 %v3739, %v3771
      %v3804 = vsub.f32 %v3740, %v3772
      %v3805 = vsub.f32 %v3741, %v3773
      %v3806 = vsub.f32 %v3742, %v3774
      %v3807 = vsub.f32 %v3743, %v3775
      %v3808 = vsub.f32 %v3744, %v3776
      %v3809 = vsub.f32 %v3745, %v3777
      %v3810 = vsub.f32 %v3746, %v3778
      %v3811 = vsub.f32 %v3747, %v3779
      %v3812 = vsub.f32 %v3425, %v3684
      %v3813 = vsub.f32 %v3426, %v3685
      %v3814 = vsub.f32 %v3427, %v3686
      %v3815 = vsub.f32 %v3428, %v3687
      %v3816 = vsub.f32 %v3429, %v3688
      %v3817 = vsub.f32 %v3430, %v3689
      %v3818 = vsub.f32 %v3431, %v3690
      %v3819 = vsub.f32 %v3432, %v3691
      %v3820 = vsub.f32 %v3433, %v3692
      %v3821 = vsub.f32 %v3434, %v3693
      %v3822 = vsub.f32 %v3435, %v3694
      %v3823 = vsub.f32 %v3436, %v3695
      %v3824 = vsub.f32 %v3437, %v3696
      %v3825 = vsub.f32 %v3438, %v3697
      %v3826 = vsub.f32 %v3439, %v3698
      %v3827 = vsub.f32 %v3440, %v3699
      %v3828 = vsub.f32 %v3441, %v3700
      %v3829 = vsub.f32 %v3442, %v3701
      %v3830 = vsub.f32 %v3443, %v3702
      %v3831 = vsub.f32 %v3444, %v3703
      %v3832 = vsub.f32 %v3445, %v3704
      %v3833 = vsub.f32 %v3446, %v3705
      %v3834 = vsub.f32 %v3447, %v3706
      %v3835 = vsub.f32 %v3448, %v3707
      %v3836 = vsub.f32 %v3449, %v3708
      %v3837 = vsub.f32 %v3450, %v3709
      %v3838 = vsub.f32 %v3451, %v3710
      %v3839 = vsub.f32 %v3452, %v3711
      %v3840 = vsub.f32 %v3453, %v3712
      %v3841 = vsub.f32 %v3454, %v3713
      %v3842 = vsub.f32 %v3455, %v3714
      %v3843 = vsub.f32 %v3456, %v3715
      %v3844 = vadd.f32 %v3780, 1e-05
      %v3845 = vadd.f32 %v3781, 1e-05
      %v3846 = vadd.f32 %v3782, 1e-05
      %v3847 = vadd.f32 %v3783, 1e-05
      %v3848 = vadd.f32 %v3784, 1e-05
      %v3849 = vadd.f32 %v3785, 1e-05
      %v3850 = vadd.f32 %v3786, 1e-05
      %v3851 = vadd.f32 %v3787, 1e-05
      %v3852 = vadd.f32 %v3788, 1e-05
      %v3853 = vadd.f32 %v3789, 1e-05
      %v3854 = vadd.f32 %v3790, 1e-05
      %v3855 = vadd.f32 %v3791, 1e-05
      %v3856 = vadd.f32 %v3792, 1e-05
      %v3857 = vadd.f32 %v3793, 1e-05
      %v3858 = vadd.f32 %v3794, 1e-05
      %v3859 = vadd.f32 %v3795, 1e-05
      %v3860 = vadd.f32 %v3796, 1e-05
      %v3861 = vadd.f32 %v3797, 1e-05
      %v3862 = vadd.f32 %v3798, 1e-05
      %v3863 = vadd.f32 %v3799, 1e-05
      %v3864 = vadd.f32 %v3800, 1e-05
      %v3865 = vadd.f32 %v3801, 1e-05
      %v3866 = vadd.f32 %v3802, 1e-05
      %v3867 = vadd.f32 %v3803, 1e-05
      %v3868 = vadd.f32 %v3804, 1e-05
      %v3869 = vadd.f32 %v3805, 1e-05
      %v3870 = vadd.f32 %v3806, 1e-05
      %v3871 = vadd.f32 %v3807, 1e-05
      %v3872 = vadd.f32 %v3808, 1e-05
      %v3873 = vadd.f32 %v3809, 1e-05
      %v3874 = vadd.f32 %v3810, 1e-05
      %v3875 = vadd.f32 %v3811, 1e-05
      %v3876 = vrsqrt.pop %v3844
      %v3877 = vrsqrt.pop %v3845
      %v3878 = vrsqrt.pop %v3846
      %v3879 = vrsqrt.pop %v3847
      %v3880 = vrsqrt.pop %v3848
      %v3881 = vrsqrt.pop %v3849
      %v3882 = vrsqrt.pop %v3850
      %v3883 = vrsqrt.pop %v3851
      %v3884 = vrsqrt.pop %v3852
      %v3885 = vrsqrt.pop %v3853
      %v3886 = vrsqrt.pop %v3854
      %v3887 = vrsqrt.pop %v3855
      %v3888 = vrsqrt.pop %v3856
      %v3889 = vrsqrt.pop %v3857
      %v3890 = vrsqrt.pop %v3858
      %v3891 = vrsqrt.pop %v3859
      %v3892 = vrsqrt.pop %v3860
      %v3893 = vrsqrt.pop %v3861
      %v3894 = vrsqrt.pop %v3862
      %v3895 = vrsqrt.pop %v3863
      %v3896 = vrsqrt.pop %v3864
      %v3897 = vrsqrt.pop %v3865
      %v3898 = vrsqrt.pop %v3866
      %v3899 = vrsqrt.pop %v3867
      %v3900 = vrsqrt.pop %v3868
      %v3901 = vrsqrt.pop %v3869
      %v3902 = vrsqrt.pop %v3870
      %v3903 = vrsqrt.pop %v3871
      %v3904 = vrsqrt.pop %v3872
      %v3905 = vrsqrt.pop %v3873
      %v3906 = vrsqrt.pop %v3874
      %v3907 = vrsqrt.pop %v3875
      %v3908 = vmul.f32 %v3812, %v3876
      %v3909 = vmul.f32 %v3813, %v3877
      %v3910 = vmul.f32 %v3814, %v3878
      %v3911 = vmul.f32 %v3815, %v3879
      %v3912 = vmul.f32 %v3816, %v3880
      %v3913 = vmul.f32 %v3817, %v3881
      %v3914 = vmul.f32 %v3818, %v3882
      %v3915 = vmul.f32 %v3819, %v3883
      %v3916 = vmul.f32 %v3820, %v3884
      %v3917 = vmul.f32 %v3821, %v3885
      %v3918 = vmul.f32 %v3822, %v3886
      %v3919 = vmul.f32 %v3823, %v3887
      %v3920 = vmul.f32 %v3824, %v3888
      %v3921 = vmul.f32 %v3825, %v3889
      %v3922 = vmul.f32 %v3826, %v3890
      %v3923 = vmul.f32 %v3827, %v3891
      %v3924 = vmul.f32 %v3828, %v3892
      %v3925 = vmul.f32 %v3829, %v3893
      %v3926 = vmul.f32 %v3830, %v3894
      %v3927 = vmul.f32 %v3831, %v3895
      %v3928 = vmul.f32 %v3832, %v3896
      %v3929 = vmul.f32 %v3833, %v3897
      %v3930 = vmul.f32 %v3834, %v3898
      %v3931 = vmul.f32 %v3835, %v3899
      %v3932 = vmul.f32 %v3836, %v3900
      %v3933 = vmul.f32 %v3837, %v3901
      %v3934 = vmul.f32 %v3838, %v3902
      %v3935 = vmul.f32 %v3839, %v3903
      %v3936 = vmul.f32 %v3840, %v3904
      %v3937 = vmul.f32 %v3841, %v3905
      %v3938 = vmul.f32 %v3842, %v3906
      %v3939 = vmul.f32 %v3843, %v3907
      %v3940 = vlaneseq
      %v3941 = vshrl.u32 %v3940, 7
      %v3942 = vsub.s32 0, %v3941
      %v3943 = vrot.slane %v3457, %v3942
      %v3944 = vmul.f32 %v3908, %v3943
      %v3945 = vmul.f32 %v3909, %v3943
      %v3946 = vmul.f32 %v3910, %v3943
      %v3947 = vmul.f32 %v3911, %v3943
      %v3948 = vmul.f32 %v3912, %v3943
      %v3949 = vmul.f32 %v3913, %v3943
      %v3950 = vmul.f32 %v3914, %v3943
      %v3951 = vmul.f32 %v3915, %v3943
      %v3952 = vmul.f32 %v3916, %v3943
      %v3953 = vmul.f32 %v3917, %v3943
      %v3954 = vmul.f32 %v3918, %v3943
      %v3955 = vmul.f32 %v3919, %v3943
      %v3956 = vmul.f32 %v3920, %v3943
      %v3957 = vmul.f32 %v3921, %v3943
      %v3958 = vmul.f32 %v3922, %v3943
      %v3959 = vmul.f32 %v3923, %v3943
      %v3960 = vmul.f32 %v3924, %v3943
      %v3961 = vmul.f32 %v3925, %v3943
      %v3962 = vmul.f32 %v3926, %v3943
      %v3963 = vmul.f32 %v3927, %v3943
      %v3964 = vmul.f32 %v3928, %v3943
      %v3965 = vmul.f32 %v3929, %v3943
      %v3966 = vmul.f32 %v3930, %v3943
      %v3967 = vmul.f32 %v3931, %v3943
      %v3968 = vmul.f32 %v3932, %v3943
      %v3969 = vmul.f32 %v3933, %v3943
      %v3970 = vmul.f32 %v3934, %v3943
      %v3971 = vmul.f32 %v3935, %v3943
      %v3972 = vmul.f32 %v3936, %v3943
      %v3973 = vmul.f32 %v3937, %v3943
      %v3974 = vmul.f32 %v3938, %v3943
      %v3975 = vmul.f32 %v3939, %v3943
      %v3976 = vlaneseq
      %v3977 = vshrl.u32 %v3976, 7
      %v3978 = vsub.s32 0, %v3977
      %v3979 = vrot.slane %v3458, %v3978
      %v3980 = vadd.f32 %v3944, %v3979
      %v3981 = vadd.f32 %v3945, %v3979
      %v3982 = vadd.f32 %v3946, %v3979
      %v3983 = vadd.f32 %v3947, %v3979
      %v3984 = vadd.f32 %v3948, %v3979
      %v3985 = vadd.f32 %v3949, %v3979
      %v3986 = vadd.f32 %v3950, %v3979
      %v3987 = vadd.f32 %v3951, %v3979
      %v3988 = vadd.f32 %v3952, %v3979
      %v3989 = vadd.f32 %v3953, %v3979
      %v3990 = vadd.f32 %v3954, %v3979
      %v3991 = vadd.f32 %v3955, %v3979
      %v3992 = vadd.f32 %v3956, %v3979
      %v3993 = vadd.f32 %v3957, %v3979
      %v3994 = vadd.f32 %v3958, %v3979
      %v3995 = vadd.f32 %v3959, %v3979
      %v3996 = vadd.f32 %v3960, %v3979
      %v3997 = vadd.f32 %v3961, %v3979
      %v3998 = vadd.f32 %v3962, %v3979
      %v3999 = vadd.f32 %v3963, %v3979
      %v4000 = vadd.f32 %v3964, %v3979
      %v4001 = vadd.f32 %v3965, %v3979
      %v4002 = vadd.f32 %v3966, %v3979
      %v4003 = vadd.f32 %v3967, %v3979
      %v4004 = vadd.f32 %v3968, %v3979
      %v4005 = vadd.f32 %v3969, %v3979
      %v4006 = vadd.f32 %v3970, %v3979
      %v4007 = vadd.f32 %v3971, %v3979
      %v4008 = vadd.f32 %v3972, %v3979
      %v4009 = vadd.f32 %v3973, %v3979
      %v4010 = vadd.f32 %v3974, %v3979
      %v4011 = vadd.f32 %v3975, %v3979
      %v4012 = vld [vmem:[%s2 + $0x8] sm:$0xf]
      %v4013 = vld [vmem:[%s2 + $0xc] sm:$0xf]
      %v4014 = vld [vmem:[%s2 + $0x10] sm:$0xf]
      %v4015 = vld [vmem:[%s2 + $0x14] sm:$0xf]
      %v4016 = vld [vmem:[%s2 + $0x18] sm:$0xf]
      %v4017 = vld [vmem:[%s2 + $0x1c] sm:$0xf]
      %v4018 = vpack.c.bf16 %v3981, %v3980
      %v4019 = vpack.c.bf16 %v3983, %v3982
      %v4020 = vpack.c.bf16 %v3985, %v3984
      %v4021 = vpack.c.bf16 %v3987, %v3986
      %v4022 = vpack.c.bf16 %v3989, %v3988
      %v4023 = vpack.c.bf16 %v3991, %v3990
      %v4024 = vpack.c.bf16 %v3993, %v3992
      %v4025 = vpack.c.bf16 %v3995, %v3994
      %v4026 = vpack.c.bf16 %v3997, %v3996
      %v4027 = vpack.c.bf16 %v3999, %v3998
      %v4028 = vpack.c.bf16 %v4001, %v4000
      %v4029 = vpack.c.bf16 %v4003, %v4002
      %v4030 = vpack.c.bf16 %v4005, %v4004
      %v4031 = vpack.c.bf16 %v4007, %v4006
      %v4032 = vpack.c.bf16 %v4009, %v4008
      %v4033 = vpack.c.bf16 %v4011, %v4010
      %v4034 = vld [vmem:[%s2 + $0x20] sm:$0xf]
      %v4035 = vld [vmem:[%s2 + $0x24] sm:$0xf]
      %v4036 = vld [vmem:[%s2 + $0x28] sm:$0xf]
      %v4037 = vld [vmem:[%s2 + $0x2c] sm:$0xf]
      %v4042 = vunpack.c.l.b16 %v4034
      %v4043 = vunpack.c.l.b16 %v4035
      %v4044 = vunpack.c.l.b16 %v4036
      %v4045 = vunpack.c.l.b16 %v4037
      %v4046 = vpack.c.b16 %v4043, %v4042
      %v4047 = vpack.c.b16 %v4045, %v4044
      %v4051 = vsel %vm3459, %v4018, 0
      %v4054 = vsel %vm3459, %v4019, 0
      %v4057 = vsel %vm3459, %v4020, 0
      %v4060 = vsel %vm3459, %v4021, 0
      %v4063 = vsel %vm3459, %v4022, 0
      %v4066 = vsel %vm3459, %v4023, 0
      %v4069 = vsel %vm3459, %v4024, 0
      %v4072 = vsel %vm3459, %v4025, 0
      %v4075 = vsel %vm3459, %v4026, 0
      %v4078 = vsel %vm3459, %v4027, 0
      %v4081 = vsel %vm3459, %v4028, 0
      %v4084 = vsel %vm3459, %v4029, 0
      %v4087 = vsel %vm3459, %v4030, 0
      %v4090 = vsel %vm3459, %v4031, 0
      %v4093 = vsel %vm3459, %v4032, 0
      %v4096 = vsel %vm3459, %v4033, 0
      %4098 = vmatprep.subr.bf16.mxu0 0
      %4099 = vmatpush1.bf16.msra.mxu0 0
      %4100 = vmatprep.subr.bf16.mxu0 0
      %4101 = vmatpush1.bf16.msra.mxu0 0
      %4102 = vmatprep.subr.bf16.mxu0 0
      %4103 = vmatpush1.bf16.msra.mxu0 0
      %4104 = vmatprep.subr.bf16.mxu0 0
      %4105 = vmatpush1.bf16.msra.mxu0 0
      %4106 = vmatprep.subr.bf16.mxu0 0
      %4107 = vmatpush1.bf16.msra.mxu0 0
      %4108 = vmatprep.subr.bf16.mxu0 0
      %4109 = vmatpush1.bf16.msra.mxu0 0
      %4110 = vmatprep.subr.bf16.mxu0 0
      %4111 = vmatpush1.bf16.msra.mxu0 %v4047
      %4112 = vmatprep.subr.bf16.mxu0 0
      %4113 = vmatpush1.bf16.msra.mxu0 %v4046
      %4114 = vmatprep.subr.bf16.mxu0 0
      %4115 = vmatpush2.bf16.msra.mxu0 0
      %4116 = vmatprep.subr.bf16.mxu0 0
      %4117 = vmatpush2.bf16.msra.mxu0 0
      %4118 = vmatprep.subr.bf16.mxu0 0
      %4119 = vmatpush2.bf16.msra.mxu0 0
      %4120 = vmatprep.subr.bf16.mxu0 0
      %4121 = vmatpush2.bf16.msra.mxu0 0
      %4122 = vmatprep.subr.bf16.mxu0 0
      %4123 = vmatpush2.bf16.msra.mxu0 0
      %4124 = vmatprep.subr.bf16.mxu0 0
      %4125 = vmatpush2.bf16.msra.mxu0 0
      %4126 = vmatprep.subr.bf16.mxu0 0
      %4127 = vmatpush2.bf16.msra.mxu0 0
      %4128 = vmatprep.subr.bf16.mxu0 0
      %4129 = vmatpush2.bf16.msra.mxu0 0
      %4130 = vmatprep.mubr.bf16.mxu0 0
      %4131 = vmatmul.mubr.bf16.gmra.mxu0 %v4051
      %v4132 = vpop.f32.mrf.mxu0
      %v4133 = vadd.f32 0.0, %v4132
      %v4134 = vpop.f32.mrf.mxu0
      %v4135 = vpop.f32.mrf.mxu0
      %v4136 = vadd.f32 0.0, %v4135
      %v4137 = vpop.f32.mrf.mxu0
      %4138 = vmatprep.mubr.bf16.mxu0 0
      %4139 = vmatmul.mubr.bf16.gmra.mxu0 %v4054
      %v4140 = vpop.f32.mrf.mxu0
      %v4141 = vadd.f32 0.0, %v4140
      %v4142 = vpop.f32.mrf.mxu0
      %v4143 = vpop.f32.mrf.mxu0
      %v4144 = vadd.f32 0.0, %v4143
      %v4145 = vpop.f32.mrf.mxu0
      %4146 = vmatprep.mubr.bf16.mxu0 0
      %4147 = vmatmul.mubr.bf16.gmra.mxu0 %v4057
      %v4148 = vpop.f32.mrf.mxu0
      %v4149 = vadd.f32 0.0, %v4148
      %v4150 = vpop.f32.mrf.mxu0
      %v4151 = vpop.f32.mrf.mxu0
      %v4152 = vadd.f32 0.0, %v4151
      %v4153 = vpop.f32.mrf.mxu0
      %4154 = vmatprep.mubr.bf16.mxu0 0
      %4155 = vmatmul.mubr.bf16.gmra.mxu0 %v4060
      %v4156 = vpop.f32.mrf.mxu0
      %v4157 = vadd.f32 0.0, %v4156
      %v4158 = vpop.f32.mrf.mxu0
      %v4159 = vpop.f32.mrf.mxu0
      %v4160 = vadd.f32 0.0, %v4159
      %v4161 = vpop.f32.mrf.mxu0
      %4162 = vmatprep.mubr.bf16.mxu0 0
      %4163 = vmatmul.mubr.bf16.gmra.mxu0 %v4063
      %v4164 = vpop.f32.mrf.mxu0
      %v4165 = vadd.f32 0.0, %v4164
      %v4166 = vpop.f32.mrf.mxu0
      %v4167 = vpop.f32.mrf.mxu0
      %v4168 = vadd.f32 0.0, %v4167
      %v4169 = vpop.f32.mrf.mxu0
      %4170 = vmatprep.mubr.bf16.mxu0 0
      %4171 = vmatmul.mubr.bf16.gmra.mxu0 %v4066
      %v4172 = vpop.f32.mrf.mxu0
      %v4173 = vadd.f32 0.0, %v4172
      %v4174 = vpop.f32.mrf.mxu0
      %v4175 = vpop.f32.mrf.mxu0
      %v4176 = vadd.f32 0.0, %v4175
      %v4177 = vpop.f32.mrf.mxu0
      %4178 = vmatprep.mubr.bf16.mxu0 0
      %4179 = vmatmul.mubr.bf16.gmra.mxu0 %v4069
      %v4180 = vpop.f32.mrf.mxu0
      %v4181 = vadd.f32 0.0, %v4180
      %v4182 = vpop.f32.mrf.mxu0
      %v4183 = vpop.f32.mrf.mxu0
      %v4184 = vadd.f32 0.0, %v4183
      %v4185 = vpop.f32.mrf.mxu0
      %4186 = vmatprep.mubr.bf16.mxu0 0
      %4187 = vmatmul.mubr.bf16.gmra.mxu0 %v4072
      %v4188 = vpop.f32.mrf.mxu0
      %v4189 = vadd.f32 0.0, %v4188
      %v4190 = vpop.f32.mrf.mxu0
      %v4191 = vpop.f32.mrf.mxu0
      %v4192 = vadd.f32 0.0, %v4191
      %v4193 = vpop.f32.mrf.mxu0
      %4194 = vmatprep.mubr.bf16.mxu0 0
      %4195 = vmatmul.mubr.bf16.gmra.mxu0 %v4075
      %v4196 = vpop.f32.mrf.mxu0
      %v4197 = vadd.f32 0.0, %v4196
      %v4198 = vpop.f32.mrf.mxu0
      %v4199 = vpop.f32.mrf.mxu0
      %v4200 = vadd.f32 0.0, %v4199
      %v4201 = vpop.f32.mrf.mxu0
      %4202 = vmatprep.mubr.bf16.mxu0 0
      %4203 = vmatmul.mubr.bf16.gmra.mxu0 %v4078
      %v4204 = vpop.f32.mrf.mxu0
      %v4205 = vadd.f32 0.0, %v4204
      %v4206 = vpop.f32.mrf.mxu0
      %v4207 = vpop.f32.mrf.mxu0
      %v4208 = vadd.f32 0.0, %v4207
      %v4209 = vpop.f32.mrf.mxu0
      %4210 = vmatprep.mubr.bf16.mxu0 0
      %4211 = vmatmul.mubr.bf16.gmra.mxu0 %v4081
      %v4212 = vpop.f32.mrf.mxu0
      %v4213 = vadd.f32 0.0, %v4212
      %v4214 = vpop.f32.mrf.mxu0
      %v4215 = vpop.f32.mrf.mxu0
      %v4216 = vadd.f32 0.0, %v4215
      %v4217 = vpop.f32.mrf.mxu0
      %4218 = vmatprep.mubr.bf16.mxu0 0
      %4219 = vmatmul.mubr.bf16.gmra.mxu0 %v4084
      %v4220 = vpop.f32.mrf.mxu0
      %v4221 = vadd.f32 0.0, %v4220
      %v4222 = vpop.f32.mrf.mxu0
      %v4223 = vpop.f32.mrf.mxu0
      %v4224 = vadd.f32 0.0, %v4223
      %v4225 = vpop.f32.mrf.mxu0
      %4226 = vmatprep.mubr.bf16.mxu0 0
      %4227 = vmatmul.mubr.bf16.gmra.mxu0 %v4087
      %v4228 = vpop.f32.mrf.mxu0
      %v4229 = vadd.f32 0.0, %v4228
      %v4230 = vpop.f32.mrf.mxu0
      %v4231 = vpop.f32.mrf.mxu0
      %v4232 = vadd.f32 0.0, %v4231
      %v4233 = vpop.f32.mrf.mxu0
      %4234 = vmatprep.mubr.bf16.mxu0 0
      %4235 = vmatmul.mubr.bf16.gmra.mxu0 %v4090
      %v4236 = vpop.f32.mrf.mxu0
      %v4237 = vadd.f32 0.0, %v4236
      %v4238 = vpop.f32.mrf.mxu0
      %v4239 = vpop.f32.mrf.mxu0
      %v4240 = vadd.f32 0.0, %v4239
      %v4241 = vpop.f32.mrf.mxu0
      %4242 = vmatprep.mubr.bf16.mxu0 0
      %4243 = vmatmul.mubr.bf16.gmra.mxu0 %v4093
      %v4244 = vpop.f32.mrf.mxu0
      %v4245 = vadd.f32 0.0, %v4244
      %v4246 = vpop.f32.mrf.mxu0
      %v4247 = vpop.f32.mrf.mxu0
      %v4248 = vadd.f32 0.0, %v4247
      %v4249 = vpop.f32.mrf.mxu0
      %4250 = vmatprep.mubr.bf16.mxu0 0
      %4251 = vmatmul.mubr.bf16.gmra.mxu0 %v4096
      %v4252 = vpop.f32.mrf.mxu0
      %v4253 = vadd.f32 0.0, %v4252
      %v4254 = vpop.f32.mrf.mxu0
      %v4255 = vpop.f32.mrf.mxu0
      %v4256 = vadd.f32 0.0, %v4255
      %v4257 = vpop.f32.mrf.mxu0
      %4258 = vdwg.mxu0
      %v4265 = vunpack.c.l.b16 %v4012
      %v4266 = vunpack.c.l.b16 %v4013
      %v4267 = vunpack.c.l.b16 %v4014
      %v4268 = vunpack.c.l.b16 %v4015
      %v4269 = vunpack.c.l.b16 %v4016
      %v4270 = vunpack.c.l.b16 %v4017
      %v4271 = vpack.c.b16 %v4266, %v4265
      %v4272 = vpack.c.b16 %v4268, %v4267
      %v4273 = vpack.c.b16 %v4270, %v4269
      %vm4277 = vcmask 392192
      %v4279 = vsel %vm4277, %v3138, 0
      %v4282 = vsel %vm4277, %v3139, 0
      %v4285 = vsel %vm4277, %v3140, 0
      %v4288 = vsel %vm4277, %v3141, 0
      %v4291 = vsel %vm4277, %v3142, 0
      %v4294 = vsel %vm4277, %v3143, 0
      %v4297 = vsel %vm4277, %v3144, 0
      %v4300 = vsel %vm4277, %v3145, 0
      %v4303 = vsel %vm4277, %v3146, 0
      %v4306 = vsel %vm4277, %v3147, 0
      %v4309 = vsel %vm4277, %v3148, 0
      %v4312 = vsel %vm4277, %v3149, 0
      %v4315 = vsel %vm4277, %v3150, 0
      %v4318 = vsel %vm4277, %v3151, 0
      %v4321 = vsel %vm4277, %v3152, 0
      %v4324 = vsel %vm4277, %v3153, 0
      %4326 = vmatprep.subr.bf16.mxu0 0
      %4327 = vmatpush1.bf16.msra.mxu0 0
      %4328 = vmatprep.subr.bf16.mxu0 0
      %4329 = vmatpush1.bf16.msra.mxu0 0
      %4330 = vmatprep.subr.bf16.mxu0 0
      %4331 = vmatpush1.bf16.msra.mxu0 0
      %4332 = vmatprep.subr.bf16.mxu0 0
      %4333 = vmatpush1.bf16.msra.mxu0 0
      %4334 = vmatprep.subr.bf16.mxu0 0
      %4335 = vmatpush1.bf16.msra.mxu0 0
      %4336 = vmatprep.subr.bf16.mxu0 0
      %4337 = vmatpush1.bf16.msra.mxu0 %v4273
      %4338 = vmatprep.subr.bf16.mxu0 0
      %4339 = vmatpush1.bf16.msra.mxu0 %v4272
      %4340 = vmatprep.subr.bf16.mxu0 0
      %4341 = vmatpush1.bf16.msra.mxu0 %v4271
      %4342 = vmatprep.subr.bf16.mxu0 0
      %4343 = vmatpush2.bf16.msra.mxu0 0
      %4344 = vmatprep.subr.bf16.mxu0 0
      %4345 = vmatpush2.bf16.msra.mxu0 0
      %4346 = vmatprep.subr.bf16.mxu0 0
      %4347 = vmatpush2.bf16.msra.mxu0 0
      %4348 = vmatprep.subr.bf16.mxu0 0
      %4349 = vmatpush2.bf16.msra.mxu0 0
      %4350 = vmatprep.subr.bf16.mxu0 0
      %4351 = vmatpush2.bf16.msra.mxu0 0
      %4352 = vmatprep.subr.bf16.mxu0 0
      %4353 = vmatpush2.bf16.msra.mxu0 0
      %4354 = vmatprep.subr.bf16.mxu0 0
      %4355 = vmatpush2.bf16.msra.mxu0 0
      %4356 = vmatprep.subr.bf16.mxu0 0
      %4357 = vmatpush2.bf16.msra.mxu0 0
      %4358 = vmatprep.mubr.bf16.mxu0 0
      %4359 = vmatmul.mubr.bf16.gmra.mxu0 %v4279
      %v4360 = vpop.f32.mrf.mxu0
      %v4361 = vadd.f32 %v4133, %v4360
      %v4362 = vpop.f32.mrf.mxu0
      %v4363 = vpop.f32.mrf.mxu0
      %v4364 = vadd.f32 %v4136, %v4363
      %v4365 = vpop.f32.mrf.mxu0
      %4366 = vmatprep.mubr.bf16.mxu0 0
      %4367 = vmatmul.mubr.bf16.gmra.mxu0 %v4282
      %v4368 = vpop.f32.mrf.mxu0
      %v4369 = vadd.f32 %v4141, %v4368
      %v4370 = vpop.f32.mrf.mxu0
      %v4371 = vpop.f32.mrf.mxu0
      %v4372 = vadd.f32 %v4144, %v4371
      %v4373 = vpop.f32.mrf.mxu0
      %4374 = vmatprep.mubr.bf16.mxu0 0
      %4375 = vmatmul.mubr.bf16.gmra.mxu0 %v4285
      %v4376 = vpop.f32.mrf.mxu0
      %v4377 = vadd.f32 %v4149, %v4376
      %v4378 = vpop.f32.mrf.mxu0
      %v4379 = vpop.f32.mrf.mxu0
      %v4380 = vadd.f32 %v4152, %v4379
      %v4381 = vpop.f32.mrf.mxu0
      %4382 = vmatprep.mubr.bf16.mxu0 0
      %4383 = vmatmul.mubr.bf16.gmra.mxu0 %v4288
      %v4384 = vpop.f32.mrf.mxu0
      %v4385 = vadd.f32 %v4157, %v4384
      %v4386 = vpop.f32.mrf.mxu0
      %v4387 = vpop.f32.mrf.mxu0
      %v4388 = vadd.f32 %v4160, %v4387
      %v4389 = vpop.f32.mrf.mxu0
      %4390 = vmatprep.mubr.bf16.mxu0 0
      %4391 = vmatmul.mubr.bf16.gmra.mxu0 %v4291
      %v4392 = vpop.f32.mrf.mxu0
      %v4393 = vadd.f32 %v4165, %v4392
      %v4394 = vpop.f32.mrf.mxu0
      %v4395 = vpop.f32.mrf.mxu0
      %v4396 = vadd.f32 %v4168, %v4395
      %v4397 = vpop.f32.mrf.mxu0
      %4398 = vmatprep.mubr.bf16.mxu0 0
      %4399 = vmatmul.mubr.bf16.gmra.mxu0 %v4294
      %v4400 = vpop.f32.mrf.mxu0
      %v4401 = vadd.f32 %v4173, %v4400
      %v4402 = vpop.f32.mrf.mxu0
      %v4403 = vpop.f32.mrf.mxu0
      %v4404 = vadd.f32 %v4176, %v4403
      %v4405 = vpop.f32.mrf.mxu0
      %4406 = vmatprep.mubr.bf16.mxu0 0
      %4407 = vmatmul.mubr.bf16.gmra.mxu0 %v4297
      %v4408 = vpop.f32.mrf.mxu0
      %v4409 = vadd.f32 %v4181, %v4408
      %v4410 = vpop.f32.mrf.mxu0
      %v4411 = vpop.f32.mrf.mxu0
      %v4412 = vadd.f32 %v4184, %v4411
      %v4413 = vpop.f32.mrf.mxu0
      %4414 = vmatprep.mubr.bf16.mxu0 0
      %4415 = vmatmul.mubr.bf16.gmra.mxu0 %v4300
      %v4416 = vpop.f32.mrf.mxu0
      %v4417 = vadd.f32 %v4189, %v4416
      %v4418 = vpop.f32.mrf.mxu0
      %v4419 = vpop.f32.mrf.mxu0
      %v4420 = vadd.f32 %v4192, %v4419
      %v4421 = vpop.f32.mrf.mxu0
      %4422 = vmatprep.mubr.bf16.mxu0 0
      %4423 = vmatmul.mubr.bf16.gmra.mxu0 %v4303
      %v4424 = vpop.f32.mrf.mxu0
      %v4425 = vadd.f32 %v4197, %v4424
      %v4426 = vpop.f32.mrf.mxu0
      %v4427 = vpop.f32.mrf.mxu0
      %v4428 = vadd.f32 %v4200, %v4427
      %v4429 = vpop.f32.mrf.mxu0
      %4430 = vmatprep.mubr.bf16.mxu0 0
      %4431 = vmatmul.mubr.bf16.gmra.mxu0 %v4306
      %v4432 = vpop.f32.mrf.mxu0
      %v4433 = vadd.f32 %v4205, %v4432
      %v4434 = vpop.f32.mrf.mxu0
      %v4435 = vpop.f32.mrf.mxu0
      %v4436 = vadd.f32 %v4208, %v4435
      %v4437 = vpop.f32.mrf.mxu0
      %4438 = vmatprep.mubr.bf16.mxu0 0
      %4439 = vmatmul.mubr.bf16.gmra.mxu0 %v4309
      %v4440 = vpop.f32.mrf.mxu0
      %v4441 = vadd.f32 %v4213, %v4440
      %v4442 = vpop.f32.mrf.mxu0
      %v4443 = vpop.f32.mrf.mxu0
      %v4444 = vadd.f32 %v4216, %v4443
      %v4445 = vpop.f32.mrf.mxu0
      %4446 = vmatprep.mubr.bf16.mxu0 0
      %4447 = vmatmul.mubr.bf16.gmra.mxu0 %v4312
      %v4448 = vpop.f32.mrf.mxu0
      %v4449 = vadd.f32 %v4221, %v4448
      %v4450 = vpop.f32.mrf.mxu0
      %v4451 = vpop.f32.mrf.mxu0
      %v4452 = vadd.f32 %v4224, %v4451
      %v4453 = vpop.f32.mrf.mxu0
      %4454 = vmatprep.mubr.bf16.mxu0 0
      %4455 = vmatmul.mubr.bf16.gmra.mxu0 %v4315
      %v4456 = vpop.f32.mrf.mxu0
      %v4457 = vadd.f32 %v4229, %v4456
      %v4458 = vpop.f32.mrf.mxu0
      %v4459 = vpop.f32.mrf.mxu0
      %v4460 = vadd.f32 %v4232, %v4459
      %v4461 = vpop.f32.mrf.mxu0
      %4462 = vmatprep.mubr.bf16.mxu0 0
      %4463 = vmatmul.mubr.bf16.gmra.mxu0 %v4318
      %v4464 = vpop.f32.mrf.mxu0
      %v4465 = vadd.f32 %v4237, %v4464
      %v4466 = vpop.f32.mrf.mxu0
      %v4467 = vpop.f32.mrf.mxu0
      %v4468 = vadd.f32 %v4240, %v4467
      %v4469 = vpop.f32.mrf.mxu0
      %4470 = vmatprep.mubr.bf16.mxu0 0
      %4471 = vmatmul.mubr.bf16.gmra.mxu0 %v4321
      %v4472 = vpop.f32.mrf.mxu0
      %v4473 = vadd.f32 %v4245, %v4472
      %v4474 = vpop.f32.mrf.mxu0
      %v4475 = vpop.f32.mrf.mxu0
      %v4476 = vadd.f32 %v4248, %v4475
      %v4477 = vpop.f32.mrf.mxu0
      %4478 = vmatprep.mubr.bf16.mxu0 0
      %4479 = vmatmul.mubr.bf16.gmra.mxu0 %v4324
      %v4480 = vpop.f32.mrf.mxu0
      %v4481 = vadd.f32 %v4253, %v4480
      %v4482 = vpop.f32.mrf.mxu0
      %v4483 = vpop.f32.mrf.mxu0
      %v4484 = vadd.f32 %v4256, %v4483
      %v4485 = vpop.f32.mrf.mxu0
      %4486 = vdwg.mxu0
      %v4487 = vld [vmem:[%s3 + $0x3] sm:$0x1]
      %v4488 = vlaneseq
      %v4489 = vshrl.u32 %v4488, 7
      %v4490 = vsub.s32 0, %v4489
      %v4491 = vrot.slane %v4487, %v4490
      %v4492 = vadd.f32 %v4361, %v4491
      %v4493 = vadd.f32 %v4364, %v4491
      %v4494 = vadd.f32 %v4369, %v4491
      %v4495 = vadd.f32 %v4372, %v4491
      %v4496 = vadd.f32 %v4377, %v4491
      %v4497 = vadd.f32 %v4380, %v4491
      %v4498 = vadd.f32 %v4385, %v4491
      %v4499 = vadd.f32 %v4388, %v4491
      %v4500 = vadd.f32 %v4393, %v4491
      %v4501 = vadd.f32 %v4396, %v4491
      %v4502 = vadd.f32 %v4401, %v4491
      %v4503 = vadd.f32 %v4404, %v4491
      %v4504 = vadd.f32 %v4409, %v4491
      %v4505 = vadd.f32 %v4412, %v4491
      %v4506 = vadd.f32 %v4417, %v4491
      %v4507 = vadd.f32 %v4420, %v4491
      %v4508 = vadd.f32 %v4425, %v4491
      %v4509 = vadd.f32 %v4428, %v4491
      %v4510 = vadd.f32 %v4433, %v4491
      %v4511 = vadd.f32 %v4436, %v4491
      %v4512 = vadd.f32 %v4441, %v4491
      %v4513 = vadd.f32 %v4444, %v4491
      %v4514 = vadd.f32 %v4449, %v4491
      %v4515 = vadd.f32 %v4452, %v4491
      %v4516 = vadd.f32 %v4457, %v4491
      %v4517 = vadd.f32 %v4460, %v4491
      %v4518 = vadd.f32 %v4465, %v4491
      %v4519 = vadd.f32 %v4468, %v4491
      %v4520 = vadd.f32 %v4473, %v4491
      %v4521 = vadd.f32 %v4476, %v4491
      %v4522 = vadd.f32 %v4481, %v4491
      %v4523 = vadd.f32 %v4484, %v4491
      %v4524 = vld [vmem:[%s3 + $0x4] sm:$0x1]
      %v4525 = vld [vmem:[%s3 + $0x5] sm:$0x1]
      %vm4526 = vcmask 523264
      %v4527 = vsel %vm4526, %v4492, 0.0
      %4528 = vadd.xlane.f32.xlu0 %v4527
      %v4529 = vpop.xlane.xlu0 %4528
      %v4530 = vsel %vm4526, %v4493, 0.0
      %4531 = vadd.xlane.f32.xlu0 %v4530
      %v4532 = vpop.xlane.xlu0 %4531
      %v4533 = vsel %vm4526, %v4494, 0.0
      %4534 = vadd.xlane.f32.xlu0 %v4533
      %v4535 = vpop.xlane.xlu0 %4534
      %v4536 = vsel %vm4526, %v4495, 0.0
      %4537 = vadd.xlane.f32.xlu0 %v4536
      %v4538 = vpop.xlane.xlu0 %4537
      %v4539 = vsel %vm4526, %v4496, 0.0
      %4540 = vadd.xlane.f32.xlu0 %v4539
      %v4541 = vpop.xlane.xlu0 %4540
      %v4542 = vsel %vm4526, %v4497, 0.0
      %4543 = vadd.xlane.f32.xlu0 %v4542
      %v4544 = vpop.xlane.xlu0 %4543
      %v4545 = vsel %vm4526, %v4498, 0.0
      %4546 = vadd.xlane.f32.xlu0 %v4545
      %v4547 = vpop.xlane.xlu0 %4546
      %v4548 = vsel %vm4526, %v4499, 0.0
      %4549 = vadd.xlane.f32.xlu0 %v4548
      %v4550 = vpop.xlane.xlu0 %4549
      %v4551 = vsel %vm4526, %v4500, 0.0
      %4552 = vadd.xlane.f32.xlu0 %v4551
      %v4553 = vpop.xlane.xlu0 %4552
      %v4554 = vsel %vm4526, %v4501, 0.0
      %4555 = vadd.xlane.f32.xlu0 %v4554
      %v4556 = vpop.xlane.xlu0 %4555
      %v4557 = vsel %vm4526, %v4502, 0.0
      %4558 = vadd.xlane.f32.xlu0 %v4557
      %v4559 = vpop.xlane.xlu0 %4558
      %v4560 = vsel %vm4526, %v4503, 0.0
      %4561 = vadd.xlane.f32.xlu0 %v4560
      %v4562 = vpop.xlane.xlu0 %4561
      %v4563 = vsel %vm4526, %v4504, 0.0
      %4564 = vadd.xlane.f32.xlu0 %v4563
      %v4565 = vpop.xlane.xlu0 %4564
      %v4566 = vsel %vm4526, %v4505, 0.0
      %4567 = vadd.xlane.f32.xlu0 %v4566
      %v4568 = vpop.xlane.xlu0 %4567
      %v4569 = vsel %vm4526, %v4506, 0.0
      %4570 = vadd.xlane.f32.xlu0 %v4569
      %v4571 = vpop.xlane.xlu0 %4570
      %v4572 = vsel %vm4526, %v4507, 0.0
      %4573 = vadd.xlane.f32.xlu0 %v4572
      %v4574 = vpop.xlane.xlu0 %4573
      %v4575 = vsel %vm4526, %v4508, 0.0
      %4576 = vadd.xlane.f32.xlu0 %v4575
      %v4577 = vpop.xlane.xlu0 %4576
      %v4578 = vsel %vm4526, %v4509, 0.0
      %4579 = vadd.xlane.f32.xlu0 %v4578
      %v4580 = vpop.xlane.xlu0 %4579
      %v4581 = vsel %vm4526, %v4510, 0.0
      %4582 = vadd.xlane.f32.xlu0 %v4581
      %v4583 = vpop.xlane.xlu0 %4582
      %v4584 = vsel %vm4526, %v4511, 0.0
      %4585 = vadd.xlane.f32.xlu0 %v4584
      %v4586 = vpop.xlane.xlu0 %4585
      %v4587 = vsel %vm4526, %v4512, 0.0
      %4588 = vadd.xlane.f32.xlu0 %v4587
      %v4589 = vpop.xlane.xlu0 %4588
      %v4590 = vsel %vm4526, %v4513, 0.0
      %4591 = vadd.xlane.f32.xlu0 %v4590
      %v4592 = vpop.xlane.xlu0 %4591
      %v4593 = vsel %vm4526, %v4514, 0.0
      %4594 = vadd.xlane.f32.xlu0 %v4593
      %v4595 = vpop.xlane.xlu0 %4594
      %v4596 = vsel %vm4526, %v4515, 0.0
      %4597 = vadd.xlane.f32.xlu0 %v4596
      %v4598 = vpop.xlane.xlu0 %4597
      %v4599 = vsel %vm4526, %v4516, 0.0
      %4600 = vadd.xlane.f32.xlu0 %v4599
      %v4601 = vpop.xlane.xlu0 %4600
      %v4602 = vsel %vm4526, %v4517, 0.0
      %4603 = vadd.xlane.f32.xlu0 %v4602
      %v4604 = vpop.xlane.xlu0 %4603
      %v4605 = vsel %vm4526, %v4518, 0.0
      %4606 = vadd.xlane.f32.xlu0 %v4605
      %v4607 = vpop.xlane.xlu0 %4606
      %v4608 = vsel %vm4526, %v4519, 0.0
      %4609 = vadd.xlane.f32.xlu0 %v4608
      %v4610 = vpop.xlane.xlu0 %4609
      %v4611 = vsel %vm4526, %v4520, 0.0
      %4612 = vadd.xlane.f32.xlu0 %v4611
      %v4613 = vpop.xlane.xlu0 %4612
      %v4614 = vsel %vm4526, %v4521, 0.0
      %4615 = vadd.xlane.f32.xlu0 %v4614
      %v4616 = vpop.xlane.xlu0 %4615
      %v4617 = vsel %vm4526, %v4522, 0.0
      %4618 = vadd.xlane.f32.xlu0 %v4617
      %v4619 = vpop.xlane.xlu0 %4618
      %v4620 = vsel %vm4526, %v4523, 0.0
      %4621 = vadd.xlane.f32.xlu0 %v4620
      %v4622 = vpop.xlane.xlu0 %4621
      %v4623 = vmul.f32 %v4492, %v4492
      %v4624 = vmul.f32 %v4493, %v4493
      %v4625 = vmul.f32 %v4494, %v4494
      %v4626 = vmul.f32 %v4495, %v4495
      %v4627 = vmul.f32 %v4496, %v4496
      %v4628 = vmul.f32 %v4497, %v4497
      %v4629 = vmul.f32 %v4498, %v4498
      %v4630 = vmul.f32 %v4499, %v4499
      %v4631 = vmul.f32 %v4500, %v4500
      %v4632 = vmul.f32 %v4501, %v4501
      %v4633 = vmul.f32 %v4502, %v4502
      %v4634 = vmul.f32 %v4503, %v4503
      %v4635 = vmul.f32 %v4504, %v4504
      %v4636 = vmul.f32 %v4505, %v4505
      %v4637 = vmul.f32 %v4506, %v4506
      %v4638 = vmul.f32 %v4507, %v4507
      %v4639 = vmul.f32 %v4508, %v4508
      %v4640 = vmul.f32 %v4509, %v4509
      %v4641 = vmul.f32 %v4510, %v4510
      %v4642 = vmul.f32 %v4511, %v4511
      %v4643 = vmul.f32 %v4512, %v4512
      %v4644 = vmul.f32 %v4513, %v4513
      %v4645 = vmul.f32 %v4514, %v4514
      %v4646 = vmul.f32 %v4515, %v4515
      %v4647 = vmul.f32 %v4516, %v4516
      %v4648 = vmul.f32 %v4517, %v4517
      %v4649 = vmul.f32 %v4518, %v4518
      %v4650 = vmul.f32 %v4519, %v4519
      %v4651 = vmul.f32 %v4520, %v4520
      %v4652 = vmul.f32 %v4521, %v4521
      %v4653 = vmul.f32 %v4522, %v4522
      %v4654 = vmul.f32 %v4523, %v4523
      %v4655 = vsel %vm4526, %v4623, 0.0
      %4656 = vadd.xlane.f32.xlu0 %v4655
      %v4657 = vpop.xlane.xlu0 %4656
      %v4658 = vsel %vm4526, %v4624, 0.0
      %4659 = vadd.xlane.f32.xlu0 %v4658
      %v4660 = vpop.xlane.xlu0 %4659
      %v4661 = vsel %vm4526, %v4625, 0.0
      %4662 = vadd.xlane.f32.xlu0 %v4661
      %v4663 = vpop.xlane.xlu0 %4662
      %v4664 = vsel %vm4526, %v4626, 0.0
      %4665 = vadd.xlane.f32.xlu0 %v4664
      %v4666 = vpop.xlane.xlu0 %4665
      %v4667 = vsel %vm4526, %v4627, 0.0
      %4668 = vadd.xlane.f32.xlu0 %v4667
      %v4669 = vpop.xlane.xlu0 %4668
      %v4670 = vsel %vm4526, %v4628, 0.0
      %4671 = vadd.xlane.f32.xlu0 %v4670
      %v4672 = vpop.xlane.xlu0 %4671
      %v4673 = vsel %vm4526, %v4629, 0.0
      %4674 = vadd.xlane.f32.xlu0 %v4673
      %v4675 = vpop.xlane.xlu0 %4674
      %v4676 = vsel %vm4526, %v4630, 0.0
      %4677 = vadd.xlane.f32.xlu0 %v4676
      %v4678 = vpop.xlane.xlu0 %4677
      %v4679 = vsel %vm4526, %v4631, 0.0
      %4680 = vadd.xlane.f32.xlu0 %v4679
      %v4681 = vpop.xlane.xlu0 %4680
      %v4682 = vsel %vm4526, %v4632, 0.0
      %4683 = vadd.xlane.f32.xlu0 %v4682
      %v4684 = vpop.xlane.xlu0 %4683
      %v4685 = vsel %vm4526, %v4633, 0.0
      %4686 = vadd.xlane.f32.xlu0 %v4685
      %v4687 = vpop.xlane.xlu0 %4686
      %v4688 = vsel %vm4526, %v4634, 0.0
      %4689 = vadd.xlane.f32.xlu0 %v4688
      %v4690 = vpop.xlane.xlu0 %4689
      %v4691 = vsel %vm4526, %v4635, 0.0
      %4692 = vadd.xlane.f32.xlu0 %v4691
      %v4693 = vpop.xlane.xlu0 %4692
      %v4694 = vsel %vm4526, %v4636, 0.0
      %4695 = vadd.xlane.f32.xlu0 %v4694
      %v4696 = vpop.xlane.xlu0 %4695
      %v4697 = vsel %vm4526, %v4637, 0.0
      %4698 = vadd.xlane.f32.xlu0 %v4697
      %v4699 = vpop.xlane.xlu0 %4698
      %v4700 = vsel %vm4526, %v4638, 0.0
      %4701 = vadd.xlane.f32.xlu0 %v4700
      %v4702 = vpop.xlane.xlu0 %4701
      %v4703 = vsel %vm4526, %v4639, 0.0
      %4704 = vadd.xlane.f32.xlu0 %v4703
      %v4705 = vpop.xlane.xlu0 %4704
      %v4706 = vsel %vm4526, %v4640, 0.0
      %4707 = vadd.xlane.f32.xlu0 %v4706
      %v4708 = vpop.xlane.xlu0 %4707
      %v4709 = vsel %vm4526, %v4641, 0.0
      %4710 = vadd.xlane.f32.xlu0 %v4709
      %v4711 = vpop.xlane.xlu0 %4710
      %v4712 = vsel %vm4526, %v4642, 0.0
      %4713 = vadd.xlane.f32.xlu0 %v4712
      %v4714 = vpop.xlane.xlu0 %4713
      %v4715 = vsel %vm4526, %v4643, 0.0
      %4716 = vadd.xlane.f32.xlu0 %v4715
      %v4717 = vpop.xlane.xlu0 %4716
      %v4718 = vsel %vm4526, %v4644, 0.0
      %4719 = vadd.xlane.f32.xlu0 %v4718
      %v4720 = vpop.xlane.xlu0 %4719
      %v4721 = vsel %vm4526, %v4645, 0.0
      %4722 = vadd.xlane.f32.xlu0 %v4721
      %v4723 = vpop.xlane.xlu0 %4722
      %v4724 = vsel %vm4526, %v4646, 0.0
      %4725 = vadd.xlane.f32.xlu0 %v4724
      %v4726 = vpop.xlane.xlu0 %4725
      %v4727 = vsel %vm4526, %v4647, 0.0
      %4728 = vadd.xlane.f32.xlu0 %v4727
      %v4729 = vpop.xlane.xlu0 %4728
      %v4730 = vsel %vm4526, %v4648, 0.0
      %4731 = vadd.xlane.f32.xlu0 %v4730
      %v4732 = vpop.xlane.xlu0 %4731
      %v4733 = vsel %vm4526, %v4649, 0.0
      %4734 = vadd.xlane.f32.xlu0 %v4733
      %v4735 = vpop.xlane.xlu0 %4734
      %v4736 = vsel %vm4526, %v4650, 0.0
      %4737 = vadd.xlane.f32.xlu0 %v4736
      %v4738 = vpop.xlane.xlu0 %4737
      %v4739 = vsel %vm4526, %v4651, 0.0
      %4740 = vadd.xlane.f32.xlu0 %v4739
      %v4741 = vpop.xlane.xlu0 %4740
      %v4742 = vsel %vm4526, %v4652, 0.0
      %4743 = vadd.xlane.f32.xlu0 %v4742
      %v4744 = vpop.xlane.xlu0 %4743
      %v4745 = vsel %vm4526, %v4653, 0.0
      %4746 = vadd.xlane.f32.xlu0 %v4745
      %v4747 = vpop.xlane.xlu0 %4746
      %v4748 = vsel %vm4526, %v4654, 0.0
      %4749 = vadd.xlane.f32.xlu0 %v4748
      %v4750 = vpop.xlane.xlu0 %4749
      %v4751 = vmul.f32 %v4529, 0.015625
      %v4752 = vmul.f32 %v4532, 0.015625
      %v4753 = vmul.f32 %v4535, 0.015625
      %v4754 = vmul.f32 %v4538, 0.015625
      %v4755 = vmul.f32 %v4541, 0.015625
      %v4756 = vmul.f32 %v4544, 0.015625
      %v4757 = vmul.f32 %v4547, 0.015625
      %v4758 = vmul.f32 %v4550, 0.015625
      %v4759 = vmul.f32 %v4553, 0.015625
      %v4760 = vmul.f32 %v4556, 0.015625
      %v4761 = vmul.f32 %v4559, 0.015625
      %v4762 = vmul.f32 %v4562, 0.015625
      %v4763 = vmul.f32 %v4565, 0.015625
      %v4764 = vmul.f32 %v4568, 0.015625
      %v4765 = vmul.f32 %v4571, 0.015625
      %v4766 = vmul.f32 %v4574, 0.015625
      %v4767 = vmul.f32 %v4577, 0.015625
      %v4768 = vmul.f32 %v4580, 0.015625
      %v4769 = vmul.f32 %v4583, 0.015625
      %v4770 = vmul.f32 %v4586, 0.015625
      %v4771 = vmul.f32 %v4589, 0.015625
      %v4772 = vmul.f32 %v4592, 0.015625
      %v4773 = vmul.f32 %v4595, 0.015625
      %v4774 = vmul.f32 %v4598, 0.015625
      %v4775 = vmul.f32 %v4601, 0.015625
      %v4776 = vmul.f32 %v4604, 0.015625
      %v4777 = vmul.f32 %v4607, 0.015625
      %v4778 = vmul.f32 %v4610, 0.015625
      %v4779 = vmul.f32 %v4613, 0.015625
      %v4780 = vmul.f32 %v4616, 0.015625
      %v4781 = vmul.f32 %v4619, 0.015625
      %v4782 = vmul.f32 %v4622, 0.015625
      %v4783 = vmul.f32 %v4657, 0.015625
      %v4784 = vmul.f32 %v4660, 0.015625
      %v4785 = vmul.f32 %v4663, 0.015625
      %v4786 = vmul.f32 %v4666, 0.015625
      %v4787 = vmul.f32 %v4669, 0.015625
      %v4788 = vmul.f32 %v4672, 0.015625
      %v4789 = vmul.f32 %v4675, 0.015625
      %v4790 = vmul.f32 %v4678, 0.015625
      %v4791 = vmul.f32 %v4681, 0.015625
      %v4792 = vmul.f32 %v4684, 0.015625
      %v4793 = vmul.f32 %v4687, 0.015625
      %v4794 = vmul.f32 %v4690, 0.015625
      %v4795 = vmul.f32 %v4693, 0.015625
      %v4796 = vmul.f32 %v4696, 0.015625
      %v4797 = vmul.f32 %v4699, 0.015625
      %v4798 = vmul.f32 %v4702, 0.015625
      %v4799 = vmul.f32 %v4705, 0.015625
      %v4800 = vmul.f32 %v4708, 0.015625
      %v4801 = vmul.f32 %v4711, 0.015625
      %v4802 = vmul.f32 %v4714, 0.015625
      %v4803 = vmul.f32 %v4717, 0.015625
      %v4804 = vmul.f32 %v4720, 0.015625
      %v4805 = vmul.f32 %v4723, 0.015625
      %v4806 = vmul.f32 %v4726, 0.015625
      %v4807 = vmul.f32 %v4729, 0.015625
      %v4808 = vmul.f32 %v4732, 0.015625
      %v4809 = vmul.f32 %v4735, 0.015625
      %v4810 = vmul.f32 %v4738, 0.015625
      %v4811 = vmul.f32 %v4741, 0.015625
      %v4812 = vmul.f32 %v4744, 0.015625
      %v4813 = vmul.f32 %v4747, 0.015625
      %v4814 = vmul.f32 %v4750, 0.015625
      %v4815 = vmul.f32 %v4751, %v4751
      %v4816 = vmul.f32 %v4752, %v4752
      %v4817 = vmul.f32 %v4753, %v4753
      %v4818 = vmul.f32 %v4754, %v4754
      %v4819 = vmul.f32 %v4755, %v4755
      %v4820 = vmul.f32 %v4756, %v4756
      %v4821 = vmul.f32 %v4757, %v4757
      %v4822 = vmul.f32 %v4758, %v4758
      %v4823 = vmul.f32 %v4759, %v4759
      %v4824 = vmul.f32 %v4760, %v4760
      %v4825 = vmul.f32 %v4761, %v4761
      %v4826 = vmul.f32 %v4762, %v4762
      %v4827 = vmul.f32 %v4763, %v4763
      %v4828 = vmul.f32 %v4764, %v4764
      %v4829 = vmul.f32 %v4765, %v4765
      %v4830 = vmul.f32 %v4766, %v4766
      %v4831 = vmul.f32 %v4767, %v4767
      %v4832 = vmul.f32 %v4768, %v4768
      %v4833 = vmul.f32 %v4769, %v4769
      %v4834 = vmul.f32 %v4770, %v4770
      %v4835 = vmul.f32 %v4771, %v4771
      %v4836 = vmul.f32 %v4772, %v4772
      %v4837 = vmul.f32 %v4773, %v4773
      %v4838 = vmul.f32 %v4774, %v4774
      %v4839 = vmul.f32 %v4775, %v4775
      %v4840 = vmul.f32 %v4776, %v4776
      %v4841 = vmul.f32 %v4777, %v4777
      %v4842 = vmul.f32 %v4778, %v4778
      %v4843 = vmul.f32 %v4779, %v4779
      %v4844 = vmul.f32 %v4780, %v4780
      %v4845 = vmul.f32 %v4781, %v4781
      %v4846 = vmul.f32 %v4782, %v4782
      %v4847 = vsub.f32 %v4783, %v4815
      %v4848 = vsub.f32 %v4784, %v4816
      %v4849 = vsub.f32 %v4785, %v4817
      %v4850 = vsub.f32 %v4786, %v4818
      %v4851 = vsub.f32 %v4787, %v4819
      %v4852 = vsub.f32 %v4788, %v4820
      %v4853 = vsub.f32 %v4789, %v4821
      %v4854 = vsub.f32 %v4790, %v4822
      %v4855 = vsub.f32 %v4791, %v4823
      %v4856 = vsub.f32 %v4792, %v4824
      %v4857 = vsub.f32 %v4793, %v4825
      %v4858 = vsub.f32 %v4794, %v4826
      %v4859 = vsub.f32 %v4795, %v4827
      %v4860 = vsub.f32 %v4796, %v4828
      %v4861 = vsub.f32 %v4797, %v4829
      %v4862 = vsub.f32 %v4798, %v4830
      %v4863 = vsub.f32 %v4799, %v4831
      %v4864 = vsub.f32 %v4800, %v4832
      %v4865 = vsub.f32 %v4801, %v4833
      %v4866 = vsub.f32 %v4802, %v4834
      %v4867 = vsub.f32 %v4803, %v4835
      %v4868 = vsub.f32 %v4804, %v4836
      %v4869 = vsub.f32 %v4805, %v4837
      %v4870 = vsub.f32 %v4806, %v4838
      %v4871 = vsub.f32 %v4807, %v4839
      %v4872 = vsub.f32 %v4808, %v4840
      %v4873 = vsub.f32 %v4809, %v4841
      %v4874 = vsub.f32 %v4810, %v4842
      %v4875 = vsub.f32 %v4811, %v4843
      %v4876 = vsub.f32 %v4812, %v4844
      %v4877 = vsub.f32 %v4813, %v4845
      %v4878 = vsub.f32 %v4814, %v4846
      %v4879 = vsub.f32 %v4492, %v4751
      %v4880 = vsub.f32 %v4493, %v4752
      %v4881 = vsub.f32 %v4494, %v4753
      %v4882 = vsub.f32 %v4495, %v4754
      %v4883 = vsub.f32 %v4496, %v4755
      %v4884 = vsub.f32 %v4497, %v4756
      %v4885 = vsub.f32 %v4498, %v4757
      %v4886 = vsub.f32 %v4499, %v4758
      %v4887 = vsub.f32 %v4500, %v4759
      %v4888 = vsub.f32 %v4501, %v4760
      %v4889 = vsub.f32 %v4502, %v4761
      %v4890 = vsub.f32 %v4503, %v4762
      %v4891 = vsub.f32 %v4504, %v4763
      %v4892 = vsub.f32 %v4505, %v4764
      %v4893 = vsub.f32 %v4506, %v4765
      %v4894 = vsub.f32 %v4507, %v4766
      %v4895 = vsub.f32 %v4508, %v4767
      %v4896 = vsub.f32 %v4509, %v4768
      %v4897 = vsub.f32 %v4510, %v4769
      %v4898 = vsub.f32 %v4511, %v4770
      %v4899 = vsub.f32 %v4512, %v4771
      %v4900 = vsub.f32 %v4513, %v4772
      %v4901 = vsub.f32 %v4514, %v4773
      %v4902 = vsub.f32 %v4515, %v4774
      %v4903 = vsub.f32 %v4516, %v4775
      %v4904 = vsub.f32 %v4517, %v4776
      %v4905 = vsub.f32 %v4518, %v4777
      %v4906 = vsub.f32 %v4519, %v4778
      %v4907 = vsub.f32 %v4520, %v4779
      %v4908 = vsub.f32 %v4521, %v4780
      %v4909 = vsub.f32 %v4522, %v4781
      %v4910 = vsub.f32 %v4523, %v4782
      %v4911 = vadd.f32 %v4847, 1e-05
      %v4912 = vadd.f32 %v4848, 1e-05
      %v4913 = vadd.f32 %v4849, 1e-05
      %v4914 = vadd.f32 %v4850, 1e-05
      %v4915 = vadd.f32 %v4851, 1e-05
      %v4916 = vadd.f32 %v4852, 1e-05
      %v4917 = vadd.f32 %v4853, 1e-05
      %v4918 = vadd.f32 %v4854, 1e-05
      %v4919 = vadd.f32 %v4855, 1e-05
      %v4920 = vadd.f32 %v4856, 1e-05
      %v4921 = vadd.f32 %v4857, 1e-05
      %v4922 = vadd.f32 %v4858, 1e-05
      %v4923 = vadd.f32 %v4859, 1e-05
      %v4924 = vadd.f32 %v4860, 1e-05
      %v4925 = vadd.f32 %v4861, 1e-05
      %v4926 = vadd.f32 %v4862, 1e-05
      %v4927 = vadd.f32 %v4863, 1e-05
      %v4928 = vadd.f32 %v4864, 1e-05
      %v4929 = vadd.f32 %v4865, 1e-05
      %v4930 = vadd.f32 %v4866, 1e-05
      %v4931 = vadd.f32 %v4867, 1e-05
      %v4932 = vadd.f32 %v4868, 1e-05
      %v4933 = vadd.f32 %v4869, 1e-05
      %v4934 = vadd.f32 %v4870, 1e-05
      %v4935 = vadd.f32 %v4871, 1e-05
      %v4936 = vadd.f32 %v4872, 1e-05
      %v4937 = vadd.f32 %v4873, 1e-05
      %v4938 = vadd.f32 %v4874, 1e-05
      %v4939 = vadd.f32 %v4875, 1e-05
      %v4940 = vadd.f32 %v4876, 1e-05
      %v4941 = vadd.f32 %v4877, 1e-05
      %v4942 = vadd.f32 %v4878, 1e-05
      %v4943 = vrsqrt.pop %v4911
      %v4944 = vrsqrt.pop %v4912
      %v4945 = vrsqrt.pop %v4913
      %v4946 = vrsqrt.pop %v4914
      %v4947 = vrsqrt.pop %v4915
      %v4948 = vrsqrt.pop %v4916
      %v4949 = vrsqrt.pop %v4917
      %v4950 = vrsqrt.pop %v4918
      %v4951 = vrsqrt.pop %v4919
      %v4952 = vrsqrt.pop %v4920
      %v4953 = vrsqrt.pop %v4921
      %v4954 = vrsqrt.pop %v4922
      %v4955 = vrsqrt.pop %v4923
      %v4956 = vrsqrt.pop %v4924
      %v4957 = vrsqrt.pop %v4925
      %v4958 = vrsqrt.pop %v4926
      %v4959 = vrsqrt.pop %v4927
      %v4960 = vrsqrt.pop %v4928
      %v4961 = vrsqrt.pop %v4929
      %v4962 = vrsqrt.pop %v4930
      %v4963 = vrsqrt.pop %v4931
      %v4964 = vrsqrt.pop %v4932
      %v4965 = vrsqrt.pop %v4933
      %v4966 = vrsqrt.pop %v4934
      %v4967 = vrsqrt.pop %v4935
      %v4968 = vrsqrt.pop %v4936
      %v4969 = vrsqrt.pop %v4937
      %v4970 = vrsqrt.pop %v4938
      %v4971 = vrsqrt.pop %v4939
      %v4972 = vrsqrt.pop %v4940
      %v4973 = vrsqrt.pop %v4941
      %v4974 = vrsqrt.pop %v4942
      %v4975 = vmul.f32 %v4879, %v4943
      %v4976 = vmul.f32 %v4880, %v4944
      %v4977 = vmul.f32 %v4881, %v4945
      %v4978 = vmul.f32 %v4882, %v4946
      %v4979 = vmul.f32 %v4883, %v4947
      %v4980 = vmul.f32 %v4884, %v4948
      %v4981 = vmul.f32 %v4885, %v4949
      %v4982 = vmul.f32 %v4886, %v4950
      %v4983 = vmul.f32 %v4887, %v4951
      %v4984 = vmul.f32 %v4888, %v4952
      %v4985 = vmul.f32 %v4889, %v4953
      %v4986 = vmul.f32 %v4890, %v4954
      %v4987 = vmul.f32 %v4891, %v4955
      %v4988 = vmul.f32 %v4892, %v4956
      %v4989 = vmul.f32 %v4893, %v4957
      %v4990 = vmul.f32 %v4894, %v4958
      %v4991 = vmul.f32 %v4895, %v4959
      %v4992 = vmul.f32 %v4896, %v4960
      %v4993 = vmul.f32 %v4897, %v4961
      %v4994 = vmul.f32 %v4898, %v4962
      %v4995 = vmul.f32 %v4899, %v4963
      %v4996 = vmul.f32 %v4900, %v4964
      %v4997 = vmul.f32 %v4901, %v4965
      %v4998 = vmul.f32 %v4902, %v4966
      %v4999 = vmul.f32 %v4903, %v4967
      %v5000 = vmul.f32 %v4904, %v4968
      %v5001 = vmul.f32 %v4905, %v4969
      %v5002 = vmul.f32 %v4906, %v4970
      %v5003 = vmul.f32 %v4907, %v4971
      %v5004 = vmul.f32 %v4908, %v4972
      %v5005 = vmul.f32 %v4909, %v4973
      %v5006 = vmul.f32 %v4910, %v4974
      %v5007 = vlaneseq
      %v5008 = vshrl.u32 %v5007, 7
      %v5009 = vsub.s32 0, %v5008
      %v5010 = vrot.slane %v4524, %v5009
      %v5011 = vmul.f32 %v4975, %v5010
      %v5012 = vmul.f32 %v4976, %v5010
      %v5013 = vmul.f32 %v4977, %v5010
      %v5014 = vmul.f32 %v4978, %v5010
      %v5015 = vmul.f32 %v4979, %v5010
      %v5016 = vmul.f32 %v4980, %v5010
      %v5017 = vmul.f32 %v4981, %v5010
      %v5018 = vmul.f32 %v4982, %v5010
      %v5019 = vmul.f32 %v4983, %v5010
      %v5020 = vmul.f32 %v4984, %v5010
      %v5021 = vmul.f32 %v4985, %v5010
      %v5022 = vmul.f32 %v4986, %v5010
      %v5023 = vmul.f32 %v4987, %v5010
      %v5024 = vmul.f32 %v4988, %v5010
      %v5025 = vmul.f32 %v4989, %v5010
      %v5026 = vmul.f32 %v4990, %v5010
      %v5027 = vmul.f32 %v4991, %v5010
      %v5028 = vmul.f32 %v4992, %v5010
      %v5029 = vmul.f32 %v4993, %v5010
      %v5030 = vmul.f32 %v4994, %v5010
      %v5031 = vmul.f32 %v4995, %v5010
      %v5032 = vmul.f32 %v4996, %v5010
      %v5033 = vmul.f32 %v4997, %v5010
      %v5034 = vmul.f32 %v4998, %v5010
      %v5035 = vmul.f32 %v4999, %v5010
      %v5036 = vmul.f32 %v5000, %v5010
      %v5037 = vmul.f32 %v5001, %v5010
      %v5038 = vmul.f32 %v5002, %v5010
      %v5039 = vmul.f32 %v5003, %v5010
      %v5040 = vmul.f32 %v5004, %v5010
      %v5041 = vmul.f32 %v5005, %v5010
      %v5042 = vmul.f32 %v5006, %v5010
      %v5043 = vlaneseq
      %v5044 = vshrl.u32 %v5043, 7
      %v5045 = vsub.s32 0, %v5044
      %v5046 = vrot.slane %v4525, %v5045
      %v5047 = vadd.f32 %v5011, %v5046
      %v5048 = vadd.f32 %v5012, %v5046
      %v5049 = vadd.f32 %v5013, %v5046
      %v5050 = vadd.f32 %v5014, %v5046
      %v5051 = vadd.f32 %v5015, %v5046
      %v5052 = vadd.f32 %v5016, %v5046
      %v5053 = vadd.f32 %v5017, %v5046
      %v5054 = vadd.f32 %v5018, %v5046
      %v5055 = vadd.f32 %v5019, %v5046
      %v5056 = vadd.f32 %v5020, %v5046
      %v5057 = vadd.f32 %v5021, %v5046
      %v5058 = vadd.f32 %v5022, %v5046
      %v5059 = vadd.f32 %v5023, %v5046
      %v5060 = vadd.f32 %v5024, %v5046
      %v5061 = vadd.f32 %v5025, %v5046
      %v5062 = vadd.f32 %v5026, %v5046
      %v5063 = vadd.f32 %v5027, %v5046
      %v5064 = vadd.f32 %v5028, %v5046
      %v5065 = vadd.f32 %v5029, %v5046
      %v5066 = vadd.f32 %v5030, %v5046
      %v5067 = vadd.f32 %v5031, %v5046
      %v5068 = vadd.f32 %v5032, %v5046
      %v5069 = vadd.f32 %v5033, %v5046
      %v5070 = vadd.f32 %v5034, %v5046
      %v5071 = vadd.f32 %v5035, %v5046
      %v5072 = vadd.f32 %v5036, %v5046
      %v5073 = vadd.f32 %v5037, %v5046
      %v5074 = vadd.f32 %v5038, %v5046
      %v5075 = vadd.f32 %v5039, %v5046
      %v5076 = vadd.f32 %v5040, %v5046
      %v5077 = vadd.f32 %v5041, %v5046
      %v5078 = vadd.f32 %v5042, %v5046
      %v5079 = vmax.f32 %v5047, 0.0
      %v5080 = vmax.f32 %v5048, 0.0
      %v5081 = vmax.f32 %v5049, 0.0
      %v5082 = vmax.f32 %v5050, 0.0
      %v5083 = vmax.f32 %v5051, 0.0
      %v5084 = vmax.f32 %v5052, 0.0
      %v5085 = vmax.f32 %v5053, 0.0
      %v5086 = vmax.f32 %v5054, 0.0
      %v5087 = vmax.f32 %v5055, 0.0
      %v5088 = vmax.f32 %v5056, 0.0
      %v5089 = vmax.f32 %v5057, 0.0
      %v5090 = vmax.f32 %v5058, 0.0
      %v5091 = vmax.f32 %v5059, 0.0
      %v5092 = vmax.f32 %v5060, 0.0
      %v5093 = vmax.f32 %v5061, 0.0
      %v5094 = vmax.f32 %v5062, 0.0
      %v5095 = vmax.f32 %v5063, 0.0
      %v5096 = vmax.f32 %v5064, 0.0
      %v5097 = vmax.f32 %v5065, 0.0
      %v5098 = vmax.f32 %v5066, 0.0
      %v5099 = vmax.f32 %v5067, 0.0
      %v5100 = vmax.f32 %v5068, 0.0
      %v5101 = vmax.f32 %v5069, 0.0
      %v5102 = vmax.f32 %v5070, 0.0
      %v5103 = vmax.f32 %v5071, 0.0
      %v5104 = vmax.f32 %v5072, 0.0
      %v5105 = vmax.f32 %v5073, 0.0
      %v5106 = vmax.f32 %v5074, 0.0
      %v5107 = vmax.f32 %v5075, 0.0
      %v5108 = vmax.f32 %v5076, 0.0
      %v5109 = vmax.f32 %v5077, 0.0
      %v5110 = vmax.f32 %v5078, 0.0
      %v5111 = vpack.c.bf16 %v5080, %v5079
      %v5112 = vpack.c.bf16 %v5082, %v5081
      %v5113 = vpack.c.bf16 %v5084, %v5083
      %v5114 = vpack.c.bf16 %v5086, %v5085
      %v5115 = vpack.c.bf16 %v5088, %v5087
      %v5116 = vpack.c.bf16 %v5090, %v5089
      %v5117 = vpack.c.bf16 %v5092, %v5091
      %v5118 = vpack.c.bf16 %v5094, %v5093
      %v5119 = vpack.c.bf16 %v5096, %v5095
      %v5120 = vpack.c.bf16 %v5098, %v5097
      %v5121 = vpack.c.bf16 %v5100, %v5099
      %v5122 = vpack.c.bf16 %v5102, %v5101
      %v5123 = vpack.c.bf16 %v5104, %v5103
      %v5124 = vpack.c.bf16 %v5106, %v5105
      %v5125 = vpack.c.bf16 %v5108, %v5107
      %v5126 = vpack.c.bf16 %v5110, %v5109
      %v5127 = vld [vmem:[%s2 + $0x30] sm:$0xf]
      %v5128 = vld [vmem:[%s2 + $0x34] sm:$0xf]
      %v5129 = vld [vmem:[%s2 + $0x38] sm:$0xf]
      %v5130 = vld [vmem:[%s2 + $0x3c] sm:$0xf]
      %v5131 = vld [vmem:[%s2 + $0x40] sm:$0xf]
      %v5132 = vld [vmem:[%s2 + $0x44] sm:$0xf]
      %v5133 = vld [vmem:[%s2 + $0x48] sm:$0xf]
      %v5134 = vld [vmem:[%s2 + $0x4c] sm:$0xf]
      %v5135 = vld [vmem:[%s3 + $0x6] sm:$0x1]
      %v5136 = vlaneseq
      %v5137 = vshrl.u32 %v5136, 7
      %v5138 = vsub.s32 0, %v5137
      %v5139 = vrot.slane %v5135, %v5138
      %v5148 = vunpack.c.l.b16 %v5127
      %v5149 = vunpack.c.l.b16 %v5128
      %v5150 = vunpack.c.l.b16 %v5129
      %v5151 = vunpack.c.l.b16 %v5130
      %v5152 = vunpack.c.l.b16 %v5131
      %v5153 = vunpack.c.l.b16 %v5132
      %v5154 = vunpack.c.l.b16 %v5133
      %v5155 = vunpack.c.l.b16 %v5134
      %v5156 = vpack.c.b16 %v5149, %v5148
      %v5157 = vpack.c.b16 %v5151, %v5150
      %v5158 = vpack.c.b16 %v5153, %v5152
      %v5159 = vpack.c.b16 %v5155, %v5154
      %v5165 = vsel %vm4526, %v5111, 0
      %v5168 = vsel %vm4526, %v5112, 0
      %v5171 = vsel %vm4526, %v5113, 0
      %v5174 = vsel %vm4526, %v5114, 0
      %v5177 = vsel %vm4526, %v5115, 0
      %v5180 = vsel %vm4526, %v5116, 0
      %v5183 = vsel %vm4526, %v5117, 0
      %v5186 = vsel %vm4526, %v5118, 0
      %v5189 = vsel %vm4526, %v5119, 0
      %v5192 = vsel %vm4526, %v5120, 0
      %v5195 = vsel %vm4526, %v5121, 0
      %v5198 = vsel %vm4526, %v5122, 0
      %v5201 = vsel %vm4526, %v5123, 0
      %v5204 = vsel %vm4526, %v5124, 0
      %v5207 = vsel %vm4526, %v5125, 0
      %v5210 = vsel %vm4526, %v5126, 0
      %5212 = vmatprep.subr.bf16.mxu0 0
      %5213 = vmatpush1.bf16.msra.mxu0 0
      %5214 = vmatprep.subr.bf16.mxu0 0
      %5215 = vmatpush1.bf16.msra.mxu0 0
      %5216 = vmatprep.subr.bf16.mxu0 0
      %5217 = vmatpush1.bf16.msra.mxu0 0
      %5218 = vmatprep.subr.bf16.mxu0 0
      %5219 = vmatpush1.bf16.msra.mxu0 0
      %5220 = vmatprep.subr.bf16.mxu0 0
      %5221 = vmatpush1.bf16.msra.mxu0 %v5159
      %5222 = vmatprep.subr.bf16.mxu0 0
      %5223 = vmatpush1.bf16.msra.mxu0 %v5158
      %5224 = vmatprep.subr.bf16.mxu0 0
      %5225 = vmatpush1.bf16.msra.mxu0 %v5157
      %5226 = vmatprep.subr.bf16.mxu0 0
      %5227 = vmatpush1.bf16.msra.mxu0 %v5156
      %5228 = vmatprep.subr.bf16.mxu0 0
      %5229 = vmatpush2.bf16.msra.mxu0 0
      %5230 = vmatprep.subr.bf16.mxu0 0
      %5231 = vmatpush2.bf16.msra.mxu0 0
      %5232 = vmatprep.subr.bf16.mxu0 0
      %5233 = vmatpush2.bf16.msra.mxu0 0
      %5234 = vmatprep.subr.bf16.mxu0 0
      %5235 = vmatpush2.bf16.msra.mxu0 0
      %5236 = vmatprep.subr.bf16.mxu0 0
      %5237 = vmatpush2.bf16.msra.mxu0 0
      %5238 = vmatprep.subr.bf16.mxu0 0
      %5239 = vmatpush2.bf16.msra.mxu0 0
      %5240 = vmatprep.subr.bf16.mxu0 0
      %5241 = vmatpush2.bf16.msra.mxu0 0
      %5242 = vmatprep.subr.bf16.mxu0 0
      %5243 = vmatpush2.bf16.msra.mxu0 0
      %5244 = vmatprep.mubr.bf16.mxu0 0
      %5245 = vmatmul.mubr.bf16.gmra.mxu0 %v5165
      %v5246 = vpop.f32.mrf.mxu0
      %v5247 = vadd.f32 %v5139, %v5246
      %v5248 = vpop.f32.mrf.mxu0
      %v5249 = vpop.f32.mrf.mxu0
      %v5250 = vadd.f32 %v5139, %v5249
      %v5251 = vpop.f32.mrf.mxu0
      %5252 = vmatprep.mubr.bf16.mxu0 0
      %5253 = vmatmul.mubr.bf16.gmra.mxu0 %v5168
      %v5254 = vpop.f32.mrf.mxu0
      %v5255 = vadd.f32 %v5139, %v5254
      %v5256 = vpop.f32.mrf.mxu0
      %v5257 = vpop.f32.mrf.mxu0
      %v5258 = vadd.f32 %v5139, %v5257
      %v5259 = vpop.f32.mrf.mxu0
      %5260 = vmatprep.mubr.bf16.mxu0 0
      %5261 = vmatmul.mubr.bf16.gmra.mxu0 %v5171
      %v5262 = vpop.f32.mrf.mxu0
      %v5263 = vadd.f32 %v5139, %v5262
      %v5264 = vpop.f32.mrf.mxu0
      %v5265 = vpop.f32.mrf.mxu0
      %v5266 = vadd.f32 %v5139, %v5265
      %v5267 = vpop.f32.mrf.mxu0
      %5268 = vmatprep.mubr.bf16.mxu0 0
      %5269 = vmatmul.mubr.bf16.gmra.mxu0 %v5174
      %v5270 = vpop.f32.mrf.mxu0
      %v5271 = vadd.f32 %v5139, %v5270
      %v5272 = vpop.f32.mrf.mxu0
      %v5273 = vpop.f32.mrf.mxu0
      %v5274 = vadd.f32 %v5139, %v5273
      %v5275 = vpop.f32.mrf.mxu0
      %5276 = vmatprep.mubr.bf16.mxu0 0
      %5277 = vmatmul.mubr.bf16.gmra.mxu0 %v5177
      %v5278 = vpop.f32.mrf.mxu0
      %v5279 = vadd.f32 %v5139, %v5278
      %v5280 = vpop.f32.mrf.mxu0
      %v5281 = vpop.f32.mrf.mxu0
      %v5282 = vadd.f32 %v5139, %v5281
      %v5283 = vpop.f32.mrf.mxu0
      %5284 = vmatprep.mubr.bf16.mxu0 0
      %5285 = vmatmul.mubr.bf16.gmra.mxu0 %v5180
      %v5286 = vpop.f32.mrf.mxu0
      %v5287 = vadd.f32 %v5139, %v5286
      %v5288 = vpop.f32.mrf.mxu0
      %v5289 = vpop.f32.mrf.mxu0
      %v5290 = vadd.f32 %v5139, %v5289
      %v5291 = vpop.f32.mrf.mxu0
      %5292 = vmatprep.mubr.bf16.mxu0 0
      %5293 = vmatmul.mubr.bf16.gmra.mxu0 %v5183
      %v5294 = vpop.f32.mrf.mxu0
      %v5295 = vadd.f32 %v5139, %v5294
      %v5296 = vpop.f32.mrf.mxu0
      %v5297 = vpop.f32.mrf.mxu0
      %v5298 = vadd.f32 %v5139, %v5297
      %v5299 = vpop.f32.mrf.mxu0
      %5300 = vmatprep.mubr.bf16.mxu0 0
      %5301 = vmatmul.mubr.bf16.gmra.mxu0 %v5186
      %v5302 = vpop.f32.mrf.mxu0
      %v5303 = vadd.f32 %v5139, %v5302
      %v5304 = vpop.f32.mrf.mxu0
      %v5305 = vpop.f32.mrf.mxu0
      %v5306 = vadd.f32 %v5139, %v5305
      %v5307 = vpop.f32.mrf.mxu0
      %5308 = vmatprep.mubr.bf16.mxu0 0
      %5309 = vmatmul.mubr.bf16.gmra.mxu0 %v5189
      %v5310 = vpop.f32.mrf.mxu0
      %v5311 = vadd.f32 %v5139, %v5310
      %v5312 = vpop.f32.mrf.mxu0
      %v5313 = vpop.f32.mrf.mxu0
      %v5314 = vadd.f32 %v5139, %v5313
      %v5315 = vpop.f32.mrf.mxu0
      %5316 = vmatprep.mubr.bf16.mxu0 0
      %5317 = vmatmul.mubr.bf16.gmra.mxu0 %v5192
      %v5318 = vpop.f32.mrf.mxu0
      %v5319 = vadd.f32 %v5139, %v5318
      %v5320 = vpop.f32.mrf.mxu0
      %v5321 = vpop.f32.mrf.mxu0
      %v5322 = vadd.f32 %v5139, %v5321
      %v5323 = vpop.f32.mrf.mxu0
      %5324 = vmatprep.mubr.bf16.mxu0 0
      %5325 = vmatmul.mubr.bf16.gmra.mxu0 %v5195
      %v5326 = vpop.f32.mrf.mxu0
      %v5327 = vadd.f32 %v5139, %v5326
      %v5328 = vpop.f32.mrf.mxu0
      %v5329 = vpop.f32.mrf.mxu0
      %v5330 = vadd.f32 %v5139, %v5329
      %v5331 = vpop.f32.mrf.mxu0
      %5332 = vmatprep.mubr.bf16.mxu0 0
      %5333 = vmatmul.mubr.bf16.gmra.mxu0 %v5198
      %v5334 = vpop.f32.mrf.mxu0
      %v5335 = vadd.f32 %v5139, %v5334
      %v5336 = vpop.f32.mrf.mxu0
      %v5337 = vpop.f32.mrf.mxu0
      %v5338 = vadd.f32 %v5139, %v5337
      %v5339 = vpop.f32.mrf.mxu0
      %5340 = vmatprep.mubr.bf16.mxu0 0
      %5341 = vmatmul.mubr.bf16.gmra.mxu0 %v5201
      %v5342 = vpop.f32.mrf.mxu0
      %v5343 = vadd.f32 %v5139, %v5342
      %v5344 = vpop.f32.mrf.mxu0
      %v5345 = vpop.f32.mrf.mxu0
      %v5346 = vadd.f32 %v5139, %v5345
      %v5347 = vpop.f32.mrf.mxu0
      %5348 = vmatprep.mubr.bf16.mxu0 0
      %5349 = vmatmul.mubr.bf16.gmra.mxu0 %v5204
      %v5350 = vpop.f32.mrf.mxu0
      %v5351 = vadd.f32 %v5139, %v5350
      %v5352 = vpop.f32.mrf.mxu0
      %v5353 = vpop.f32.mrf.mxu0
      %v5354 = vadd.f32 %v5139, %v5353
      %v5355 = vpop.f32.mrf.mxu0
      %5356 = vmatprep.mubr.bf16.mxu0 0
      %5357 = vmatmul.mubr.bf16.gmra.mxu0 %v5207
      %v5358 = vpop.f32.mrf.mxu0
      %v5359 = vadd.f32 %v5139, %v5358
      %v5360 = vpop.f32.mrf.mxu0
      %v5361 = vpop.f32.mrf.mxu0
      %v5362 = vadd.f32 %v5139, %v5361
      %v5363 = vpop.f32.mrf.mxu0
      %5364 = vmatprep.mubr.bf16.mxu0 0
      %5365 = vmatmul.mubr.bf16.gmra.mxu0 %v5210
      %v5366 = vpop.f32.mrf.mxu0
      %v5367 = vadd.f32 %v5139, %v5366
      %v5368 = vpop.f32.mrf.mxu0
      %v5369 = vpop.f32.mrf.mxu0
      %v5370 = vadd.f32 %v5139, %v5369
      %v5371 = vpop.f32.mrf.mxu0
      %5372 = vdwg.mxu0
      %v5373 = vld [vmem:[%s3 + $0x7] sm:$0x1]
      %v5374 = vld [vmem:[%s3 + $0x8] sm:$0x1]
      %v5375 = vsel %vm4526, %v5247, 0.0
      %5376 = vadd.xlane.f32.xlu0 %v5375
      %v5377 = vpop.xlane.xlu0 %5376
      %v5378 = vsel %vm4526, %v5250, 0.0
      %5379 = vadd.xlane.f32.xlu0 %v5378
      %v5380 = vpop.xlane.xlu0 %5379
      %v5381 = vsel %vm4526, %v5255, 0.0
      %5382 = vadd.xlane.f32.xlu0 %v5381
      %v5383 = vpop.xlane.xlu0 %5382
      %v5384 = vsel %vm4526, %v5258, 0.0
      %5385 = vadd.xlane.f32.xlu0 %v5384
      %v5386 = vpop.xlane.xlu0 %5385
      %v5387 = vsel %vm4526, %v5263, 0.0
      %5388 = vadd.xlane.f32.xlu0 %v5387
      %v5389 = vpop.xlane.xlu0 %5388
      %v5390 = vsel %vm4526, %v5266, 0.0
      %5391 = vadd.xlane.f32.xlu0 %v5390
      %v5392 = vpop.xlane.xlu0 %5391
      %v5393 = vsel %vm4526, %v5271, 0.0
      %5394 = vadd.xlane.f32.xlu0 %v5393
      %v5395 = vpop.xlane.xlu0 %5394
      %v5396 = vsel %vm4526, %v5274, 0.0
      %5397 = vadd.xlane.f32.xlu0 %v5396
      %v5398 = vpop.xlane.xlu0 %5397
      %v5399 = vsel %vm4526, %v5279, 0.0
      %5400 = vadd.xlane.f32.xlu0 %v5399
      %v5401 = vpop.xlane.xlu0 %5400
      %v5402 = vsel %vm4526, %v5282, 0.0
      %5403 = vadd.xlane.f32.xlu0 %v5402
      %v5404 = vpop.xlane.xlu0 %5403
      %v5405 = vsel %vm4526, %v5287, 0.0
      %5406 = vadd.xlane.f32.xlu0 %v5405
      %v5407 = vpop.xlane.xlu0 %5406
      %v5408 = vsel %vm4526, %v5290, 0.0
      %5409 = vadd.xlane.f32.xlu0 %v5408
      %v5410 = vpop.xlane.xlu0 %5409
      %v5411 = vsel %vm4526, %v5295, 0.0
      %5412 = vadd.xlane.f32.xlu0 %v5411
      %v5413 = vpop.xlane.xlu0 %5412
      %v5414 = vsel %vm4526, %v5298, 0.0
      %5415 = vadd.xlane.f32.xlu0 %v5414
      %v5416 = vpop.xlane.xlu0 %5415
      %v5417 = vsel %vm4526, %v5303, 0.0
      %5418 = vadd.xlane.f32.xlu0 %v5417
      %v5419 = vpop.xlane.xlu0 %5418
      %v5420 = vsel %vm4526, %v5306, 0.0
      %5421 = vadd.xlane.f32.xlu0 %v5420
      %v5422 = vpop.xlane.xlu0 %5421
      %v5423 = vsel %vm4526, %v5311, 0.0
      %5424 = vadd.xlane.f32.xlu0 %v5423
      %v5425 = vpop.xlane.xlu0 %5424
      %v5426 = vsel %vm4526, %v5314, 0.0
      %5427 = vadd.xlane.f32.xlu0 %v5426
      %v5428 = vpop.xlane.xlu0 %5427
      %v5429 = vsel %vm4526, %v5319, 0.0
      %5430 = vadd.xlane.f32.xlu0 %v5429
      %v5431 = vpop.xlane.xlu0 %5430
      %v5432 = vsel %vm4526, %v5322, 0.0
      %5433 = vadd.xlane.f32.xlu0 %v5432
      %v5434 = vpop.xlane.xlu0 %5433
      %v5435 = vsel %vm4526, %v5327, 0.0
      %5436 = vadd.xlane.f32.xlu0 %v5435
      %v5437 = vpop.xlane.xlu0 %5436
      %v5438 = vsel %vm4526, %v5330, 0.0
      %5439 = vadd.xlane.f32.xlu0 %v5438
      %v5440 = vpop.xlane.xlu0 %5439
      %v5441 = vsel %vm4526, %v5335, 0.0
      %5442 = vadd.xlane.f32.xlu0 %v5441
      %v5443 = vpop.xlane.xlu0 %5442
      %v5444 = vsel %vm4526, %v5338, 0.0
      %5445 = vadd.xlane.f32.xlu0 %v5444
      %v5446 = vpop.xlane.xlu0 %5445
      %v5447 = vsel %vm4526, %v5343, 0.0
      %5448 = vadd.xlane.f32.xlu0 %v5447
      %v5449 = vpop.xlane.xlu0 %5448
      %v5450 = vsel %vm4526, %v5346, 0.0
      %5451 = vadd.xlane.f32.xlu0 %v5450
      %v5452 = vpop.xlane.xlu0 %5451
      %v5453 = vsel %vm4526, %v5351, 0.0
      %5454 = vadd.xlane.f32.xlu0 %v5453
      %v5455 = vpop.xlane.xlu0 %5454
      %v5456 = vsel %vm4526, %v5354, 0.0
      %5457 = vadd.xlane.f32.xlu0 %v5456
      %v5458 = vpop.xlane.xlu0 %5457
      %v5459 = vsel %vm4526, %v5359, 0.0
      %5460 = vadd.xlane.f32.xlu0 %v5459
      %v5461 = vpop.xlane.xlu0 %5460
      %v5462 = vsel %vm4526, %v5362, 0.0
      %5463 = vadd.xlane.f32.xlu0 %v5462
      %v5464 = vpop.xlane.xlu0 %5463
      %v5465 = vsel %vm4526, %v5367, 0.0
      %5466 = vadd.xlane.f32.xlu0 %v5465
      %v5467 = vpop.xlane.xlu0 %5466
      %v5468 = vsel %vm4526, %v5370, 0.0
      %5469 = vadd.xlane.f32.xlu0 %v5468
      %v5470 = vpop.xlane.xlu0 %5469
      %v5471 = vmul.f32 %v5247, %v5247
      %v5472 = vmul.f32 %v5250, %v5250
      %v5473 = vmul.f32 %v5255, %v5255
      %v5474 = vmul.f32 %v5258, %v5258
      %v5475 = vmul.f32 %v5263, %v5263
      %v5476 = vmul.f32 %v5266, %v5266
      %v5477 = vmul.f32 %v5271, %v5271
      %v5478 = vmul.f32 %v5274, %v5274
      %v5479 = vmul.f32 %v5279, %v5279
      %v5480 = vmul.f32 %v5282, %v5282
      %v5481 = vmul.f32 %v5287, %v5287
      %v5482 = vmul.f32 %v5290, %v5290
      %v5483 = vmul.f32 %v5295, %v5295
      %v5484 = vmul.f32 %v5298, %v5298
      %v5485 = vmul.f32 %v5303, %v5303
      %v5486 = vmul.f32 %v5306, %v5306
      %v5487 = vmul.f32 %v5311, %v5311
      %v5488 = vmul.f32 %v5314, %v5314
      %v5489 = vmul.f32 %v5319, %v5319
      %v5490 = vmul.f32 %v5322, %v5322
      %v5491 = vmul.f32 %v5327, %v5327
      %v5492 = vmul.f32 %v5330, %v5330
      %v5493 = vmul.f32 %v5335, %v5335
      %v5494 = vmul.f32 %v5338, %v5338
      %v5495 = vmul.f32 %v5343, %v5343
      %v5496 = vmul.f32 %v5346, %v5346
      %v5497 = vmul.f32 %v5351, %v5351
      %v5498 = vmul.f32 %v5354, %v5354
      %v5499 = vmul.f32 %v5359, %v5359
      %v5500 = vmul.f32 %v5362, %v5362
      %v5501 = vmul.f32 %v5367, %v5367
      %v5502 = vmul.f32 %v5370, %v5370
      %v5503 = vsel %vm4526, %v5471, 0.0
      %5504 = vadd.xlane.f32.xlu0 %v5503
      %v5505 = vpop.xlane.xlu0 %5504
      %v5506 = vsel %vm4526, %v5472, 0.0
      %5507 = vadd.xlane.f32.xlu0 %v5506
      %v5508 = vpop.xlane.xlu0 %5507
      %v5509 = vsel %vm4526, %v5473, 0.0
      %5510 = vadd.xlane.f32.xlu0 %v5509
      %v5511 = vpop.xlane.xlu0 %5510
      %v5512 = vsel %vm4526, %v5474, 0.0
      %5513 = vadd.xlane.f32.xlu0 %v5512
      %v5514 = vpop.xlane.xlu0 %5513
      %v5515 = vsel %vm4526, %v5475, 0.0
      %5516 = vadd.xlane.f32.xlu0 %v5515
      %v5517 = vpop.xlane.xlu0 %5516
      %v5518 = vsel %vm4526, %v5476, 0.0
      %5519 = vadd.xlane.f32.xlu0 %v5518
      %v5520 = vpop.xlane.xlu0 %5519
      %v5521 = vsel %vm4526, %v5477, 0.0
      %5522 = vadd.xlane.f32.xlu0 %v5521
      %v5523 = vpop.xlane.xlu0 %5522
      %v5524 = vsel %vm4526, %v5478, 0.0
      %5525 = vadd.xlane.f32.xlu0 %v5524
      %v5526 = vpop.xlane.xlu0 %5525
      %v5527 = vsel %vm4526, %v5479, 0.0
      %5528 = vadd.xlane.f32.xlu0 %v5527
      %v5529 = vpop.xlane.xlu0 %5528
      %v5530 = vsel %vm4526, %v5480, 0.0
      %5531 = vadd.xlane.f32.xlu0 %v5530
      %v5532 = vpop.xlane.xlu0 %5531
      %v5533 = vsel %vm4526, %v5481, 0.0
      %5534 = vadd.xlane.f32.xlu0 %v5533
      %v5535 = vpop.xlane.xlu0 %5534
      %v5536 = vsel %vm4526, %v5482, 0.0
      %5537 = vadd.xlane.f32.xlu0 %v5536
      %v5538 = vpop.xlane.xlu0 %5537
      %v5539 = vsel %vm4526, %v5483, 0.0
      %5540 = vadd.xlane.f32.xlu0 %v5539
      %v5541 = vpop.xlane.xlu0 %5540
      %v5542 = vsel %vm4526, %v5484, 0.0
      %5543 = vadd.xlane.f32.xlu0 %v5542
      %v5544 = vpop.xlane.xlu0 %5543
      %v5545 = vsel %vm4526, %v5485, 0.0
      %5546 = vadd.xlane.f32.xlu0 %v5545
      %v5547 = vpop.xlane.xlu0 %5546
      %v5548 = vsel %vm4526, %v5486, 0.0
      %5549 = vadd.xlane.f32.xlu0 %v5548
      %v5550 = vpop.xlane.xlu0 %5549
      %v5551 = vsel %vm4526, %v5487, 0.0
      %5552 = vadd.xlane.f32.xlu0 %v5551
      %v5553 = vpop.xlane.xlu0 %5552
      %v5554 = vsel %vm4526, %v5488, 0.0
      %5555 = vadd.xlane.f32.xlu0 %v5554
      %v5556 = vpop.xlane.xlu0 %5555
      %v5557 = vsel %vm4526, %v5489, 0.0
      %5558 = vadd.xlane.f32.xlu0 %v5557
      %v5559 = vpop.xlane.xlu0 %5558
      %v5560 = vsel %vm4526, %v5490, 0.0
      %5561 = vadd.xlane.f32.xlu0 %v5560
      %v5562 = vpop.xlane.xlu0 %5561
      %v5563 = vsel %vm4526, %v5491, 0.0
      %5564 = vadd.xlane.f32.xlu0 %v5563
      %v5565 = vpop.xlane.xlu0 %5564
      %v5566 = vsel %vm4526, %v5492, 0.0
      %5567 = vadd.xlane.f32.xlu0 %v5566
      %v5568 = vpop.xlane.xlu0 %5567
      %v5569 = vsel %vm4526, %v5493, 0.0
      %5570 = vadd.xlane.f32.xlu0 %v5569
      %v5571 = vpop.xlane.xlu0 %5570
      %v5572 = vsel %vm4526, %v5494, 0.0
      %5573 = vadd.xlane.f32.xlu0 %v5572
      %v5574 = vpop.xlane.xlu0 %5573
      %v5575 = vsel %vm4526, %v5495, 0.0
      %5576 = vadd.xlane.f32.xlu0 %v5575
      %v5577 = vpop.xlane.xlu0 %5576
      %v5578 = vsel %vm4526, %v5496, 0.0
      %5579 = vadd.xlane.f32.xlu0 %v5578
      %v5580 = vpop.xlane.xlu0 %5579
      %v5581 = vsel %vm4526, %v5497, 0.0
      %5582 = vadd.xlane.f32.xlu0 %v5581
      %v5583 = vpop.xlane.xlu0 %5582
      %v5584 = vsel %vm4526, %v5498, 0.0
      %5585 = vadd.xlane.f32.xlu0 %v5584
      %v5586 = vpop.xlane.xlu0 %5585
      %v5587 = vsel %vm4526, %v5499, 0.0
      %5588 = vadd.xlane.f32.xlu0 %v5587
      %v5589 = vpop.xlane.xlu0 %5588
      %v5590 = vsel %vm4526, %v5500, 0.0
      %5591 = vadd.xlane.f32.xlu0 %v5590
      %v5592 = vpop.xlane.xlu0 %5591
      %v5593 = vsel %vm4526, %v5501, 0.0
      %5594 = vadd.xlane.f32.xlu0 %v5593
      %v5595 = vpop.xlane.xlu0 %5594
      %v5596 = vsel %vm4526, %v5502, 0.0
      %5597 = vadd.xlane.f32.xlu0 %v5596
      %v5598 = vpop.xlane.xlu0 %5597
      %v5599 = vmul.f32 %v5377, 0.015625
      %v5600 = vmul.f32 %v5380, 0.015625
      %v5601 = vmul.f32 %v5383, 0.015625
      %v5602 = vmul.f32 %v5386, 0.015625
      %v5603 = vmul.f32 %v5389, 0.015625
      %v5604 = vmul.f32 %v5392, 0.015625
      %v5605 = vmul.f32 %v5395, 0.015625
      %v5606 = vmul.f32 %v5398, 0.015625
      %v5607 = vmul.f32 %v5401, 0.015625
      %v5608 = vmul.f32 %v5404, 0.015625
      %v5609 = vmul.f32 %v5407, 0.015625
      %v5610 = vmul.f32 %v5410, 0.015625
      %v5611 = vmul.f32 %v5413, 0.015625
      %v5612 = vmul.f32 %v5416, 0.015625
      %v5613 = vmul.f32 %v5419, 0.015625
      %v5614 = vmul.f32 %v5422, 0.015625
      %v5615 = vmul.f32 %v5425, 0.015625
      %v5616 = vmul.f32 %v5428, 0.015625
      %v5617 = vmul.f32 %v5431, 0.015625
      %v5618 = vmul.f32 %v5434, 0.015625
      %v5619 = vmul.f32 %v5437, 0.015625
      %v5620 = vmul.f32 %v5440, 0.015625
      %v5621 = vmul.f32 %v5443, 0.015625
      %v5622 = vmul.f32 %v5446, 0.015625
      %v5623 = vmul.f32 %v5449, 0.015625
      %v5624 = vmul.f32 %v5452, 0.015625
      %v5625 = vmul.f32 %v5455, 0.015625
      %v5626 = vmul.f32 %v5458, 0.015625
      %v5627 = vmul.f32 %v5461, 0.015625
      %v5628 = vmul.f32 %v5464, 0.015625
      %v5629 = vmul.f32 %v5467, 0.015625
      %v5630 = vmul.f32 %v5470, 0.015625
      %v5631 = vmul.f32 %v5505, 0.015625
      %v5632 = vmul.f32 %v5508, 0.015625
      %v5633 = vmul.f32 %v5511, 0.015625
      %v5634 = vmul.f32 %v5514, 0.015625
      %v5635 = vmul.f32 %v5517, 0.015625
      %v5636 = vmul.f32 %v5520, 0.015625
      %v5637 = vmul.f32 %v5523, 0.015625
      %v5638 = vmul.f32 %v5526, 0.015625
      %v5639 = vmul.f32 %v5529, 0.015625
      %v5640 = vmul.f32 %v5532, 0.015625
      %v5641 = vmul.f32 %v5535, 0.015625
      %v5642 = vmul.f32 %v5538, 0.015625
      %v5643 = vmul.f32 %v5541, 0.015625
      %v5644 = vmul.f32 %v5544, 0.015625
      %v5645 = vmul.f32 %v5547, 0.015625
      %v5646 = vmul.f32 %v5550, 0.015625
      %v5647 = vmul.f32 %v5553, 0.015625
      %v5648 = vmul.f32 %v5556, 0.015625
      %v5649 = vmul.f32 %v5559, 0.015625
      %v5650 = vmul.f32 %v5562, 0.015625
      %v5651 = vmul.f32 %v5565, 0.015625
      %v5652 = vmul.f32 %v5568, 0.015625
      %v5653 = vmul.f32 %v5571, 0.015625
      %v5654 = vmul.f32 %v5574, 0.015625
      %v5655 = vmul.f32 %v5577, 0.015625
      %v5656 = vmul.f32 %v5580, 0.015625
      %v5657 = vmul.f32 %v5583, 0.015625
      %v5658 = vmul.f32 %v5586, 0.015625
      %v5659 = vmul.f32 %v5589, 0.015625
      %v5660 = vmul.f32 %v5592, 0.015625
      %v5661 = vmul.f32 %v5595, 0.015625
      %v5662 = vmul.f32 %v5598, 0.015625
      %v5663 = vmul.f32 %v5599, %v5599
      %v5664 = vmul.f32 %v5600, %v5600
      %v5665 = vmul.f32 %v5601, %v5601
      %v5666 = vmul.f32 %v5602, %v5602
      %v5667 = vmul.f32 %v5603, %v5603
      %v5668 = vmul.f32 %v5604, %v5604
      %v5669 = vmul.f32 %v5605, %v5605
      %v5670 = vmul.f32 %v5606, %v5606
      %v5671 = vmul.f32 %v5607, %v5607
      %v5672 = vmul.f32 %v5608, %v5608
      %v5673 = vmul.f32 %v5609, %v5609
      %v5674 = vmul.f32 %v5610, %v5610
      %v5675 = vmul.f32 %v5611, %v5611
      %v5676 = vmul.f32 %v5612, %v5612
      %v5677 = vmul.f32 %v5613, %v5613
      %v5678 = vmul.f32 %v5614, %v5614
      %v5679 = vmul.f32 %v5615, %v5615
      %v5680 = vmul.f32 %v5616, %v5616
      %v5681 = vmul.f32 %v5617, %v5617
      %v5682 = vmul.f32 %v5618, %v5618
      %v5683 = vmul.f32 %v5619, %v5619
      %v5684 = vmul.f32 %v5620, %v5620
      %v5685 = vmul.f32 %v5621, %v5621
      %v5686 = vmul.f32 %v5622, %v5622
      %v5687 = vmul.f32 %v5623, %v5623
      %v5688 = vmul.f32 %v5624, %v5624
      %v5689 = vmul.f32 %v5625, %v5625
      %v5690 = vmul.f32 %v5626, %v5626
      %v5691 = vmul.f32 %v5627, %v5627
      %v5692 = vmul.f32 %v5628, %v5628
      %v5693 = vmul.f32 %v5629, %v5629
      %v5694 = vmul.f32 %v5630, %v5630
      %v5695 = vsub.f32 %v5631, %v5663
      %v5696 = vsub.f32 %v5632, %v5664
      %v5697 = vsub.f32 %v5633, %v5665
      %v5698 = vsub.f32 %v5634, %v5666
      %v5699 = vsub.f32 %v5635, %v5667
      %v5700 = vsub.f32 %v5636, %v5668
      %v5701 = vsub.f32 %v5637, %v5669
      %v5702 = vsub.f32 %v5638, %v5670
      %v5703 = vsub.f32 %v5639, %v5671
      %v5704 = vsub.f32 %v5640, %v5672
      %v5705 = vsub.f32 %v5641, %v5673
      %v5706 = vsub.f32 %v5642, %v5674
      %v5707 = vsub.f32 %v5643, %v5675
      %v5708 = vsub.f32 %v5644, %v5676
      %v5709 = vsub.f32 %v5645, %v5677
      %v5710 = vsub.f32 %v5646, %v5678
      %v5711 = vsub.f32 %v5647, %v5679
      %v5712 = vsub.f32 %v5648, %v5680
      %v5713 = vsub.f32 %v5649, %v5681
      %v5714 = vsub.f32 %v5650, %v5682
      %v5715 = vsub.f32 %v5651, %v5683
      %v5716 = vsub.f32 %v5652, %v5684
      %v5717 = vsub.f32 %v5653, %v5685
      %v5718 = vsub.f32 %v5654, %v5686
      %v5719 = vsub.f32 %v5655, %v5687
      %v5720 = vsub.f32 %v5656, %v5688
      %v5721 = vsub.f32 %v5657, %v5689
      %v5722 = vsub.f32 %v5658, %v5690
      %v5723 = vsub.f32 %v5659, %v5691
      %v5724 = vsub.f32 %v5660, %v5692
      %v5725 = vsub.f32 %v5661, %v5693
      %v5726 = vsub.f32 %v5662, %v5694
      %v5727 = vsub.f32 %v5247, %v5599
      %v5728 = vsub.f32 %v5250, %v5600
      %v5729 = vsub.f32 %v5255, %v5601
      %v5730 = vsub.f32 %v5258, %v5602
      %v5731 = vsub.f32 %v5263, %v5603
      %v5732 = vsub.f32 %v5266, %v5604
      %v5733 = vsub.f32 %v5271, %v5605
      %v5734 = vsub.f32 %v5274, %v5606
      %v5735 = vsub.f32 %v5279, %v5607
      %v5736 = vsub.f32 %v5282, %v5608
      %v5737 = vsub.f32 %v5287, %v5609
      %v5738 = vsub.f32 %v5290, %v5610
      %v5739 = vsub.f32 %v5295, %v5611
      %v5740 = vsub.f32 %v5298, %v5612
      %v5741 = vsub.f32 %v5303, %v5613
      %v5742 = vsub.f32 %v5306, %v5614
      %v5743 = vsub.f32 %v5311, %v5615
      %v5744 = vsub.f32 %v5314, %v5616
      %v5745 = vsub.f32 %v5319, %v5617
      %v5746 = vsub.f32 %v5322, %v5618
      %v5747 = vsub.f32 %v5327, %v5619
      %v5748 = vsub.f32 %v5330, %v5620
      %v5749 = vsub.f32 %v5335, %v5621
      %v5750 = vsub.f32 %v5338, %v5622
      %v5751 = vsub.f32 %v5343, %v5623
      %v5752 = vsub.f32 %v5346, %v5624
      %v5753 = vsub.f32 %v5351, %v5625
      %v5754 = vsub.f32 %v5354, %v5626
      %v5755 = vsub.f32 %v5359, %v5627
      %v5756 = vsub.f32 %v5362, %v5628
      %v5757 = vsub.f32 %v5367, %v5629
      %v5758 = vsub.f32 %v5370, %v5630
      %v5759 = vadd.f32 %v5695, 1e-05
      %v5760 = vadd.f32 %v5696, 1e-05
      %v5761 = vadd.f32 %v5697, 1e-05
      %v5762 = vadd.f32 %v5698, 1e-05
      %v5763 = vadd.f32 %v5699, 1e-05
      %v5764 = vadd.f32 %v5700, 1e-05
      %v5765 = vadd.f32 %v5701, 1e-05
      %v5766 = vadd.f32 %v5702, 1e-05
      %v5767 = vadd.f32 %v5703, 1e-05
      %v5768 = vadd.f32 %v5704, 1e-05
      %v5769 = vadd.f32 %v5705, 1e-05
      %v5770 = vadd.f32 %v5706, 1e-05
      %v5771 = vadd.f32 %v5707, 1e-05
      %v5772 = vadd.f32 %v5708, 1e-05
      %v5773 = vadd.f32 %v5709, 1e-05
      %v5774 = vadd.f32 %v5710, 1e-05
      %v5775 = vadd.f32 %v5711, 1e-05
      %v5776 = vadd.f32 %v5712, 1e-05
      %v5777 = vadd.f32 %v5713, 1e-05
      %v5778 = vadd.f32 %v5714, 1e-05
      %v5779 = vadd.f32 %v5715, 1e-05
      %v5780 = vadd.f32 %v5716, 1e-05
      %v5781 = vadd.f32 %v5717, 1e-05
      %v5782 = vadd.f32 %v5718, 1e-05
      %v5783 = vadd.f32 %v5719, 1e-05
      %v5784 = vadd.f32 %v5720, 1e-05
      %v5785 = vadd.f32 %v5721, 1e-05
      %v5786 = vadd.f32 %v5722, 1e-05
      %v5787 = vadd.f32 %v5723, 1e-05
      %v5788 = vadd.f32 %v5724, 1e-05
      %v5789 = vadd.f32 %v5725, 1e-05
      %v5790 = vadd.f32 %v5726, 1e-05
      %v5791 = vrsqrt.pop %v5759
      %v5792 = vrsqrt.pop %v5760
      %v5793 = vrsqrt.pop %v5761
      %v5794 = vrsqrt.pop %v5762
      %v5795 = vrsqrt.pop %v5763
      %v5796 = vrsqrt.pop %v5764
      %v5797 = vrsqrt.pop %v5765
      %v5798 = vrsqrt.pop %v5766
      %v5799 = vrsqrt.pop %v5767
      %v5800 = vrsqrt.pop %v5768
      %v5801 = vrsqrt.pop %v5769
      %v5802 = vrsqrt.pop %v5770
      %v5803 = vrsqrt.pop %v5771
      %v5804 = vrsqrt.pop %v5772
      %v5805 = vrsqrt.pop %v5773
      %v5806 = vrsqrt.pop %v5774
      %v5807 = vrsqrt.pop %v5775
      %v5808 = vrsqrt.pop %v5776
      %v5809 = vrsqrt.pop %v5777
      %v5810 = vrsqrt.pop %v5778
      %v5811 = vrsqrt.pop %v5779
      %v5812 = vrsqrt.pop %v5780
      %v5813 = vrsqrt.pop %v5781
      %v5814 = vrsqrt.pop %v5782
      %v5815 = vrsqrt.pop %v5783
      %v5816 = vrsqrt.pop %v5784
      %v5817 = vrsqrt.pop %v5785
      %v5818 = vrsqrt.pop %v5786
      %v5819 = vrsqrt.pop %v5787
      %v5820 = vrsqrt.pop %v5788
      %v5821 = vrsqrt.pop %v5789
      %v5822 = vrsqrt.pop %v5790
      %v5823 = vmul.f32 %v5727, %v5791
      %v5824 = vmul.f32 %v5728, %v5792
      %v5825 = vmul.f32 %v5729, %v5793
      %v5826 = vmul.f32 %v5730, %v5794
      %v5827 = vmul.f32 %v5731, %v5795
      %v5828 = vmul.f32 %v5732, %v5796
      %v5829 = vmul.f32 %v5733, %v5797
      %v5830 = vmul.f32 %v5734, %v5798
      %v5831 = vmul.f32 %v5735, %v5799
      %v5832 = vmul.f32 %v5736, %v5800
      %v5833 = vmul.f32 %v5737, %v5801
      %v5834 = vmul.f32 %v5738, %v5802
      %v5835 = vmul.f32 %v5739, %v5803
      %v5836 = vmul.f32 %v5740, %v5804
      %v5837 = vmul.f32 %v5741, %v5805
      %v5838 = vmul.f32 %v5742, %v5806
      %v5839 = vmul.f32 %v5743, %v5807
      %v5840 = vmul.f32 %v5744, %v5808
      %v5841 = vmul.f32 %v5745, %v5809
      %v5842 = vmul.f32 %v5746, %v5810
      %v5843 = vmul.f32 %v5747, %v5811
      %v5844 = vmul.f32 %v5748, %v5812
      %v5845 = vmul.f32 %v5749, %v5813
      %v5846 = vmul.f32 %v5750, %v5814
      %v5847 = vmul.f32 %v5751, %v5815
      %v5848 = vmul.f32 %v5752, %v5816
      %v5849 = vmul.f32 %v5753, %v5817
      %v5850 = vmul.f32 %v5754, %v5818
      %v5851 = vmul.f32 %v5755, %v5819
      %v5852 = vmul.f32 %v5756, %v5820
      %v5853 = vmul.f32 %v5757, %v5821
      %v5854 = vmul.f32 %v5758, %v5822
      %v5855 = vlaneseq
      %v5856 = vshrl.u32 %v5855, 7
      %v5857 = vsub.s32 0, %v5856
      %v5858 = vrot.slane %v5373, %v5857
      %v5859 = vmul.f32 %v5823, %v5858
      %v5860 = vmul.f32 %v5824, %v5858
      %v5861 = vmul.f32 %v5825, %v5858
      %v5862 = vmul.f32 %v5826, %v5858
      %v5863 = vmul.f32 %v5827, %v5858
      %v5864 = vmul.f32 %v5828, %v5858
      %v5865 = vmul.f32 %v5829, %v5858
      %v5866 = vmul.f32 %v5830, %v5858
      %v5867 = vmul.f32 %v5831, %v5858
      %v5868 = vmul.f32 %v5832, %v5858
      %v5869 = vmul.f32 %v5833, %v5858
      %v5870 = vmul.f32 %v5834, %v5858
      %v5871 = vmul.f32 %v5835, %v5858
      %v5872 = vmul.f32 %v5836, %v5858
      %v5873 = vmul.f32 %v5837, %v5858
      %v5874 = vmul.f32 %v5838, %v5858
      %v5875 = vmul.f32 %v5839, %v5858
      %v5876 = vmul.f32 %v5840, %v5858
      %v5877 = vmul.f32 %v5841, %v5858
      %v5878 = vmul.f32 %v5842, %v5858
      %v5879 = vmul.f32 %v5843, %v5858
      %v5880 = vmul.f32 %v5844, %v5858
      %v5881 = vmul.f32 %v5845, %v5858
      %v5882 = vmul.f32 %v5846, %v5858
      %v5883 = vmul.f32 %v5847, %v5858
      %v5884 = vmul.f32 %v5848, %v5858
      %v5885 = vmul.f32 %v5849, %v5858
      %v5886 = vmul.f32 %v5850, %v5858
      %v5887 = vmul.f32 %v5851, %v5858
      %v5888 = vmul.f32 %v5852, %v5858
      %v5889 = vmul.f32 %v5853, %v5858
      %v5890 = vmul.f32 %v5854, %v5858
      %v5891 = vlaneseq
      %v5892 = vshrl.u32 %v5891, 7
      %v5893 = vsub.s32 0, %v5892
      %v5894 = vrot.slane %v5374, %v5893
      %v5895 = vadd.f32 %v5859, %v5894
      %v5896 = vadd.f32 %v5860, %v5894
      %v5897 = vadd.f32 %v5861, %v5894
      %v5898 = vadd.f32 %v5862, %v5894
      %v5899 = vadd.f32 %v5863, %v5894
      %v5900 = vadd.f32 %v5864, %v5894
      %v5901 = vadd.f32 %v5865, %v5894
      %v5902 = vadd.f32 %v5866, %v5894
      %v5903 = vadd.f32 %v5867, %v5894
      %v5904 = vadd.f32 %v5868, %v5894
      %v5905 = vadd.f32 %v5869, %v5894
      %v5906 = vadd.f32 %v5870, %v5894
      %v5907 = vadd.f32 %v5871, %v5894
      %v5908 = vadd.f32 %v5872, %v5894
      %v5909 = vadd.f32 %v5873, %v5894
      %v5910 = vadd.f32 %v5874, %v5894
      %v5911 = vadd.f32 %v5875, %v5894
      %v5912 = vadd.f32 %v5876, %v5894
      %v5913 = vadd.f32 %v5877, %v5894
      %v5914 = vadd.f32 %v5878, %v5894
      %v5915 = vadd.f32 %v5879, %v5894
      %v5916 = vadd.f32 %v5880, %v5894
      %v5917 = vadd.f32 %v5881, %v5894
      %v5918 = vadd.f32 %v5882, %v5894
      %v5919 = vadd.f32 %v5883, %v5894
      %v5920 = vadd.f32 %v5884, %v5894
      %v5921 = vadd.f32 %v5885, %v5894
      %v5922 = vadd.f32 %v5886, %v5894
      %v5923 = vadd.f32 %v5887, %v5894
      %v5924 = vadd.f32 %v5888, %v5894
      %v5925 = vadd.f32 %v5889, %v5894
      %v5926 = vadd.f32 %v5890, %v5894
      %v5927 = vmax.f32 %v5895, 0.0
      %v5928 = vmax.f32 %v5896, 0.0
      %v5929 = vmax.f32 %v5897, 0.0
      %v5930 = vmax.f32 %v5898, 0.0
      %v5931 = vmax.f32 %v5899, 0.0
      %v5932 = vmax.f32 %v5900, 0.0
      %v5933 = vmax.f32 %v5901, 0.0
      %v5934 = vmax.f32 %v5902, 0.0
      %v5935 = vmax.f32 %v5903, 0.0
      %v5936 = vmax.f32 %v5904, 0.0
      %v5937 = vmax.f32 %v5905, 0.0
      %v5938 = vmax.f32 %v5906, 0.0
      %v5939 = vmax.f32 %v5907, 0.0
      %v5940 = vmax.f32 %v5908, 0.0
      %v5941 = vmax.f32 %v5909, 0.0
      %v5942 = vmax.f32 %v5910, 0.0
      %v5943 = vmax.f32 %v5911, 0.0
      %v5944 = vmax.f32 %v5912, 0.0
      %v5945 = vmax.f32 %v5913, 0.0
      %v5946 = vmax.f32 %v5914, 0.0
      %v5947 = vmax.f32 %v5915, 0.0
      %v5948 = vmax.f32 %v5916, 0.0
      %v5949 = vmax.f32 %v5917, 0.0
      %v5950 = vmax.f32 %v5918, 0.0
      %v5951 = vmax.f32 %v5919, 0.0
      %v5952 = vmax.f32 %v5920, 0.0
      %v5953 = vmax.f32 %v5921, 0.0
      %v5954 = vmax.f32 %v5922, 0.0
      %v5955 = vmax.f32 %v5923, 0.0
      %v5956 = vmax.f32 %v5924, 0.0
      %v5957 = vmax.f32 %v5925, 0.0
      %v5958 = vmax.f32 %v5926, 0.0
      %v5959 = vadd.f32 %v5927, %v5079
      %v5960 = vadd.f32 %v5928, %v5080
      %v5961 = vadd.f32 %v5929, %v5081
      %v5962 = vadd.f32 %v5930, %v5082
      %v5963 = vadd.f32 %v5931, %v5083
      %v5964 = vadd.f32 %v5932, %v5084
      %v5965 = vadd.f32 %v5933, %v5085
      %v5966 = vadd.f32 %v5934, %v5086
      %v5967 = vadd.f32 %v5935, %v5087
      %v5968 = vadd.f32 %v5936, %v5088
      %v5969 = vadd.f32 %v5937, %v5089
      %v5970 = vadd.f32 %v5938, %v5090
      %v5971 = vadd.f32 %v5939, %v5091
      %v5972 = vadd.f32 %v5940, %v5092
      %v5973 = vadd.f32 %v5941, %v5093
      %v5974 = vadd.f32 %v5942, %v5094
      %v5975 = vadd.f32 %v5943, %v5095
      %v5976 = vadd.f32 %v5944, %v5096
      %v5977 = vadd.f32 %v5945, %v5097
      %v5978 = vadd.f32 %v5946, %v5098
      %v5979 = vadd.f32 %v5947, %v5099
      %v5980 = vadd.f32 %v5948, %v5100
      %v5981 = vadd.f32 %v5949, %v5101
      %v5982 = vadd.f32 %v5950, %v5102
      %v5983 = vadd.f32 %v5951, %v5103
      %v5984 = vadd.f32 %v5952, %v5104
      %v5985 = vadd.f32 %v5953, %v5105
      %v5986 = vadd.f32 %v5954, %v5106
      %v5987 = vadd.f32 %v5955, %v5107
      %v5988 = vadd.f32 %v5956, %v5108
      %v5989 = vadd.f32 %v5957, %v5109
      %v5990 = vadd.f32 %v5958, %v5110
      %v5991 = vpack.c.bf16 %v5960, %v5959
      %v5992 = vpack.c.bf16 %v5962, %v5961
      %v5993 = vpack.c.bf16 %v5964, %v5963
      %v5994 = vpack.c.bf16 %v5966, %v5965
      %v5995 = vpack.c.bf16 %v5968, %v5967
      %v5996 = vpack.c.bf16 %v5970, %v5969
      %v5997 = vpack.c.bf16 %v5972, %v5971
      %v5998 = vpack.c.bf16 %v5974, %v5973
      %v5999 = vpack.c.bf16 %v5976, %v5975
      %v6000 = vpack.c.bf16 %v5978, %v5977
      %v6001 = vpack.c.bf16 %v5980, %v5979
      %v6002 = vpack.c.bf16 %v5982, %v5981
      %v6003 = vpack.c.bf16 %v5984, %v5983
      %v6004 = vpack.c.bf16 %v5986, %v5985
      %v6005 = vpack.c.bf16 %v5988, %v5987
      %v6006 = vpack.c.bf16 %v5990, %v5989
      %v6007 = vld [vmem:[%s2 + $0x50] sm:$0xf]
      %v6008 = vld [vmem:[%s2 + $0x54] sm:$0xf]
      %v6009 = vld [vmem:[%s2 + $0x58] sm:$0xf]
      %v6010 = vld [vmem:[%s2 + $0x5c] sm:$0xf]
      %v6011 = vld [vmem:[%s2 + $0x60] sm:$0xf]
      %v6012 = vld [vmem:[%s2 + $0x64] sm:$0xf]
      %v6013 = vld [vmem:[%s2 + $0x68] sm:$0xf]
      %v6014 = vld [vmem:[%s2 + $0x6c] sm:$0xf]
      %v6015 = vld [vmem:[%s3 + $0x9] sm:$0x1]
      %v6016 = vlaneseq
      %v6017 = vshrl.u32 %v6016, 7
      %v6018 = vsub.s32 0, %v6017
      %v6019 = vrot.slane %v6015, %v6018
      %v6028 = vunpack.c.l.b16 %v6007
      %v6029 = vunpack.c.l.b16 %v6008
      %v6030 = vunpack.c.l.b16 %v6009
      %v6031 = vunpack.c.l.b16 %v6010
      %v6032 = vunpack.c.l.b16 %v6011
      %v6033 = vunpack.c.l.b16 %v6012
      %v6034 = vunpack.c.l.b16 %v6013
      %v6035 = vunpack.c.l.b16 %v6014
      %v6036 = vpack.c.b16 %v6029, %v6028
      %v6037 = vpack.c.b16 %v6031, %v6030
      %v6038 = vpack.c.b16 %v6033, %v6032
      %v6039 = vpack.c.b16 %v6035, %v6034
      %v6045 = vsel %vm4526, %v5991, 0
      %v6048 = vsel %vm4526, %v5992, 0
      %v6051 = vsel %vm4526, %v5993, 0
      %v6054 = vsel %vm4526, %v5994, 0
      %v6057 = vsel %vm4526, %v5995, 0
      %v6060 = vsel %vm4526, %v5996, 0
      %v6063 = vsel %vm4526, %v5997, 0
      %v6066 = vsel %vm4526, %v5998, 0
      %v6069 = vsel %vm4526, %v5999, 0
      %v6072 = vsel %vm4526, %v6000, 0
      %v6075 = vsel %vm4526, %v6001, 0
      %v6078 = vsel %vm4526, %v6002, 0
      %v6081 = vsel %vm4526, %v6003, 0
      %v6084 = vsel %vm4526, %v6004, 0
      %v6087 = vsel %vm4526, %v6005, 0
      %v6090 = vsel %vm4526, %v6006, 0
      %6092 = vmatprep.subr.bf16.mxu0 0
      %6093 = vmatpush1.bf16.msra.mxu0 0
      %6094 = vmatprep.subr.bf16.mxu0 0
      %6095 = vmatpush1.bf16.msra.mxu0 0
      %6096 = vmatprep.subr.bf16.mxu0 0
      %6097 = vmatpush1.bf16.msra.mxu0 0
      %6098 = vmatprep.subr.bf16.mxu0 0
      %6099 = vmatpush1.bf16.msra.mxu0 0
      %6100 = vmatprep.subr.bf16.mxu0 0
      %6101 = vmatpush1.bf16.msra.mxu0 %v6039
      %6102 = vmatprep.subr.bf16.mxu0 0
      %6103 = vmatpush1.bf16.msra.mxu0 %v6038
      %6104 = vmatprep.subr.bf16.mxu0 0
      %6105 = vmatpush1.bf16.msra.mxu0 %v6037
      %6106 = vmatprep.subr.bf16.mxu0 0
      %6107 = vmatpush1.bf16.msra.mxu0 %v6036
      %6108 = vmatprep.subr.bf16.mxu0 0
      %6109 = vmatpush2.bf16.msra.mxu0 0
      %6110 = vmatprep.subr.bf16.mxu0 0
      %6111 = vmatpush2.bf16.msra.mxu0 0
      %6112 = vmatprep.subr.bf16.mxu0 0
      %6113 = vmatpush2.bf16.msra.mxu0 0
      %6114 = vmatprep.subr.bf16.mxu0 0
      %6115 = vmatpush2.bf16.msra.mxu0 0
      %6116 = vmatprep.subr.bf16.mxu0 0
      %6117 = vmatpush2.bf16.msra.mxu0 0
      %6118 = vmatprep.subr.bf16.mxu0 0
      %6119 = vmatpush2.bf16.msra.mxu0 0
      %6120 = vmatprep.subr.bf16.mxu0 0
      %6121 = vmatpush2.bf16.msra.mxu0 0
      %6122 = vmatprep.subr.bf16.mxu0 0
      %6123 = vmatpush2.bf16.msra.mxu0 0
      %6124 = vmatprep.mubr.bf16.mxu0 0
      %6125 = vmatmul.mubr.bf16.gmra.mxu0 %v6045
      %v6126 = vpop.f32.mrf.mxu0
      %v6127 = vadd.f32 %v6019, %v6126
      %v6128 = vpop.f32.mrf.mxu0
      %v6129 = vpop.f32.mrf.mxu0
      %v6130 = vadd.f32 %v6019, %v6129
      %v6131 = vpop.f32.mrf.mxu0
      %6132 = vmatprep.mubr.bf16.mxu0 0
      %6133 = vmatmul.mubr.bf16.gmra.mxu0 %v6048
      %v6134 = vpop.f32.mrf.mxu0
      %v6135 = vadd.f32 %v6019, %v6134
      %v6136 = vpop.f32.mrf.mxu0
      %v6137 = vpop.f32.mrf.mxu0
      %v6138 = vadd.f32 %v6019, %v6137
      %v6139 = vpop.f32.mrf.mxu0
      %6140 = vmatprep.mubr.bf16.mxu0 0
      %6141 = vmatmul.mubr.bf16.gmra.mxu0 %v6051
      %v6142 = vpop.f32.mrf.mxu0
      %v6143 = vadd.f32 %v6019, %v6142
      %v6144 = vpop.f32.mrf.mxu0
      %v6145 = vpop.f32.mrf.mxu0
      %v6146 = vadd.f32 %v6019, %v6145
      %v6147 = vpop.f32.mrf.mxu0
      %6148 = vmatprep.mubr.bf16.mxu0 0
      %6149 = vmatmul.mubr.bf16.gmra.mxu0 %v6054
      %v6150 = vpop.f32.mrf.mxu0
      %v6151 = vadd.f32 %v6019, %v6150
      %v6152 = vpop.f32.mrf.mxu0
      %v6153 = vpop.f32.mrf.mxu0
      %v6154 = vadd.f32 %v6019, %v6153
      %v6155 = vpop.f32.mrf.mxu0
      %6156 = vmatprep.mubr.bf16.mxu0 0
      %6157 = vmatmul.mubr.bf16.gmra.mxu0 %v6057
      %v6158 = vpop.f32.mrf.mxu0
      %v6159 = vadd.f32 %v6019, %v6158
      %v6160 = vpop.f32.mrf.mxu0
      %v6161 = vpop.f32.mrf.mxu0
      %v6162 = vadd.f32 %v6019, %v6161
      %v6163 = vpop.f32.mrf.mxu0
      %6164 = vmatprep.mubr.bf16.mxu0 0
      %6165 = vmatmul.mubr.bf16.gmra.mxu0 %v6060
      %v6166 = vpop.f32.mrf.mxu0
      %v6167 = vadd.f32 %v6019, %v6166
      %v6168 = vpop.f32.mrf.mxu0
      %v6169 = vpop.f32.mrf.mxu0
      %v6170 = vadd.f32 %v6019, %v6169
      %v6171 = vpop.f32.mrf.mxu0
      %6172 = vmatprep.mubr.bf16.mxu0 0
      %6173 = vmatmul.mubr.bf16.gmra.mxu0 %v6063
      %v6174 = vpop.f32.mrf.mxu0
      %v6175 = vadd.f32 %v6019, %v6174
      %v6176 = vpop.f32.mrf.mxu0
      %v6177 = vpop.f32.mrf.mxu0
      %v6178 = vadd.f32 %v6019, %v6177
      %v6179 = vpop.f32.mrf.mxu0
      %6180 = vmatprep.mubr.bf16.mxu0 0
      %6181 = vmatmul.mubr.bf16.gmra.mxu0 %v6066
      %v6182 = vpop.f32.mrf.mxu0
      %v6183 = vadd.f32 %v6019, %v6182
      %v6184 = vpop.f32.mrf.mxu0
      %v6185 = vpop.f32.mrf.mxu0
      %v6186 = vadd.f32 %v6019, %v6185
      %v6187 = vpop.f32.mrf.mxu0
      %6188 = vmatprep.mubr.bf16.mxu0 0
      %6189 = vmatmul.mubr.bf16.gmra.mxu0 %v6069
      %v6190 = vpop.f32.mrf.mxu0
      %v6191 = vadd.f32 %v6019, %v6190
      %v6192 = vpop.f32.mrf.mxu0
      %v6193 = vpop.f32.mrf.mxu0
      %v6194 = vadd.f32 %v6019, %v6193
      %v6195 = vpop.f32.mrf.mxu0
      %6196 = vmatprep.mubr.bf16.mxu0 0
      %6197 = vmatmul.mubr.bf16.gmra.mxu0 %v6072
      %v6198 = vpop.f32.mrf.mxu0
      %v6199 = vadd.f32 %v6019, %v6198
      %v6200 = vpop.f32.mrf.mxu0
      %v6201 = vpop.f32.mrf.mxu0
      %v6202 = vadd.f32 %v6019, %v6201
      %v6203 = vpop.f32.mrf.mxu0
      %6204 = vmatprep.mubr.bf16.mxu0 0
      %6205 = vmatmul.mubr.bf16.gmra.mxu0 %v6075
      %v6206 = vpop.f32.mrf.mxu0
      %v6207 = vadd.f32 %v6019, %v6206
      %v6208 = vpop.f32.mrf.mxu0
      %v6209 = vpop.f32.mrf.mxu0
      %v6210 = vadd.f32 %v6019, %v6209
      %v6211 = vpop.f32.mrf.mxu0
      %6212 = vmatprep.mubr.bf16.mxu0 0
      %6213 = vmatmul.mubr.bf16.gmra.mxu0 %v6078
      %v6214 = vpop.f32.mrf.mxu0
      %v6215 = vadd.f32 %v6019, %v6214
      %v6216 = vpop.f32.mrf.mxu0
      %v6217 = vpop.f32.mrf.mxu0
      %v6218 = vadd.f32 %v6019, %v6217
      %v6219 = vpop.f32.mrf.mxu0
      %6220 = vmatprep.mubr.bf16.mxu0 0
      %6221 = vmatmul.mubr.bf16.gmra.mxu0 %v6081
      %v6222 = vpop.f32.mrf.mxu0
      %v6223 = vadd.f32 %v6019, %v6222
      %v6224 = vpop.f32.mrf.mxu0
      %v6225 = vpop.f32.mrf.mxu0
      %v6226 = vadd.f32 %v6019, %v6225
      %v6227 = vpop.f32.mrf.mxu0
      %6228 = vmatprep.mubr.bf16.mxu0 0
      %6229 = vmatmul.mubr.bf16.gmra.mxu0 %v6084
      %v6230 = vpop.f32.mrf.mxu0
      %v6231 = vadd.f32 %v6019, %v6230
      %v6232 = vpop.f32.mrf.mxu0
      %v6233 = vpop.f32.mrf.mxu0
      %v6234 = vadd.f32 %v6019, %v6233
      %v6235 = vpop.f32.mrf.mxu0
      %6236 = vmatprep.mubr.bf16.mxu0 0
      %6237 = vmatmul.mubr.bf16.gmra.mxu0 %v6087
      %v6238 = vpop.f32.mrf.mxu0
      %v6239 = vadd.f32 %v6019, %v6238
      %v6240 = vpop.f32.mrf.mxu0
      %v6241 = vpop.f32.mrf.mxu0
      %v6242 = vadd.f32 %v6019, %v6241
      %v6243 = vpop.f32.mrf.mxu0
      %6244 = vmatprep.mubr.bf16.mxu0 0
      %6245 = vmatmul.mubr.bf16.gmra.mxu0 %v6090
      %v6246 = vpop.f32.mrf.mxu0
      %v6247 = vadd.f32 %v6019, %v6246
      %v6248 = vpop.f32.mrf.mxu0
      %v6249 = vpop.f32.mrf.mxu0
      %v6250 = vadd.f32 %v6019, %v6249
      %v6251 = vpop.f32.mrf.mxu0
      %6252 = vdwg.mxu0
      %vm6253 = vcmask 23552
      %6254 = vst.msk [vmem:[%s221] sm:$0xff] %vm6253, %v6127
      %6255 = vst.msk [vmem:[%s221 + $0x8] sm:$0xff] %vm6253, %v6130
      %6256 = vst.msk [vmem:[%s221 + $0x10] sm:$0xff] %vm6253, %v6135
      %6257 = vst.msk [vmem:[%s221 + $0x18] sm:$0xff] %vm6253, %v6138
      %6258 = vst.msk [vmem:[%s221 + $0x20] sm:$0xff] %vm6253, %v6143
      %6259 = vst.msk [vmem:[%s221 + $0x28] sm:$0xff] %vm6253, %v6146
      %6260 = vst.msk [vmem:[%s221 + $0x30] sm:$0xff] %vm6253, %v6151
      %6261 = vst.msk [vmem:[%s221 + $0x38] sm:$0xff] %vm6253, %v6154
      %6262 = vst.msk [vmem:[%s221 + $0x40] sm:$0xff] %vm6253, %v6159
      %6263 = vst.msk [vmem:[%s221 + $0x48] sm:$0xff] %vm6253, %v6162
      %6264 = vst.msk [vmem:[%s221 + $0x50] sm:$0xff] %vm6253, %v6167
      %6265 = vst.msk [vmem:[%s221 + $0x58] sm:$0xff] %vm6253, %v6170
      %6266 = vst.msk [vmem:[%s221 + $0x60] sm:$0xff] %vm6253, %v6175
      %6267 = vst.msk [vmem:[%s221 + $0x68] sm:$0xff] %vm6253, %v6178
      %6268 = vst.msk [vmem:[%s221 + $0x70] sm:$0xff] %vm6253, %v6183
      %6269 = vst.msk [vmem:[%s221 + $0x78] sm:$0xff] %vm6253, %v6186
      %6270 = vst.msk [vmem:[%s221 + $0x80] sm:$0xff] %vm6253, %v6191
      %6271 = vst.msk [vmem:[%s221 + $0x88] sm:$0xff] %vm6253, %v6194
      %6272 = vst.msk [vmem:[%s221 + $0x90] sm:$0xff] %vm6253, %v6199
      %6273 = vst.msk [vmem:[%s221 + $0x98] sm:$0xff] %vm6253, %v6202
      %6274 = vst.msk [vmem:[%s221 + $0xa0] sm:$0xff] %vm6253, %v6207
      %6275 = vst.msk [vmem:[%s221 + $0xa8] sm:$0xff] %vm6253, %v6210
      %6276 = vst.msk [vmem:[%s221 + $0xb0] sm:$0xff] %vm6253, %v6215
      %6277 = vst.msk [vmem:[%s221 + $0xb8] sm:$0xff] %vm6253, %v6218
      %6278 = vst.msk [vmem:[%s221 + $0xc0] sm:$0xff] %vm6253, %v6223
      %6279 = vst.msk [vmem:[%s221 + $0xc8] sm:$0xff] %vm6253, %v6226
      %6280 = vst.msk [vmem:[%s221 + $0xd0] sm:$0xff] %vm6253, %v6231
      %6281 = vst.msk [vmem:[%s221 + $0xd8] sm:$0xff] %vm6253, %v6234
      %6282 = vst.msk [vmem:[%s221 + $0xe0] sm:$0xff] %vm6253, %v6239
      %6283 = vst.msk [vmem:[%s221 + $0xe8] sm:$0xff] %vm6253, %v6242
      %6284 = vst.msk [vmem:[%s221 + $0xf0] sm:$0xff] %vm6253, %v6247
      %6285 = vst.msk [vmem:[%s221 + $0xf8] sm:$0xff] %vm6253, %v6250
      %s6286 = smul.u32 32, %s15
      %p6287 = scmp.lt.s32.totalorder %s6286, 63
      %s6288 = scalar_select %p6287, %s6286, 63
      %s6289 = smul.addr %s6288, 8
      %s6290 = scalar_lea.vmem %s4, %s6289
      // Predicated region
      $region37: #{deep_cfr_forward.1} parent=35 // pred_check
        %p6291 = pneg %p127
      $region38: #{deep_cfr_forward.1} parent=35 // pred_check_branch
        %6293 = sbr.rel (%p6291) target = $region40
      $region39: #{deep_cfr_forward.1} parent=35 // pred_region
        %s6294 = smul.u32 32, %s15
      $region40: #{deep_cfr_forward.1} parent=35 // pred_fallthru
        _
    $region36: #{deep_cfr_forward.1} parent=5 // pred_fallthru
      _
    %p6295 = scmp.le.s32.totalorder 2, %s10
    // Predicated region
    $region41: #{deep_cfr_forward.1} parent=5 // pred_check
      %p6296 = pneg %p6295
    $region42: #{deep_cfr_forward.1} parent=5 // pred_check_branch
      %6298 = sbr.rel (%p6296) target = $region44
    $region43: #{deep_cfr_forward.1} parent=5 // pred_region
      %s6299 = ssub.s32 %s10, 2
      // Predicated region
      $region45: #{deep_cfr_forward.1} parent=43 // pred_check
        %p6300 = pneg %p133
      $region46: #{deep_cfr_forward.1} parent=43 // pred_check_branch
        %6302 = sbr.rel (%p6300) target = $region48
      $region47: #{deep_cfr_forward.1} parent=43 // pred_region
        %s6303 = smul.u32 32, %s16
        %p6304 = scmp.lt.s32.totalorder %s6303, 63
        %s6305 = scalar_select %p6304, %s6303, 63
        %s6306 = smul.addr %s6305, 8
        %s6307 = scalar_lea.vmem %s4, %s6306
      $region48: #{deep_cfr_forward.1} parent=43 // pred_fallthru
        _
    $region44: #{deep_cfr_forward.1} parent=5 // pred_fallthru
      _
  $region6: #{deep_cfr_forward.1} parent=0 // loop_footer
    %s14 = sadd.s32 1, %s10
  $region7: #{deep_cfr_forward.1} parent=0 // loop_footer_branch
    %9 = sbr.rel target = $region3
  $region8: #{deep_cfr_forward.1} parent=0 // loop_exit
    _

</llo_original>
